<compile_context>
chip_gen: v6e
topology: v6e:2x2x1
jax: 0.10.0
libtpu: 0.0.40
codegen_flags: <defaults>
</compile_context>

<pallas_src>
import functools

import jax
import jax.numpy as jnp
from jax.experimental import pallas as pl
from jax.experimental.pallas import tpu as pltpu


def _round_up(x, m):
    return (x + m - 1) // m * m


# ----------------------------------------------------------------------------
# Kernel 1: folded bn1 + ReLU (lane-dense, row-tiled, "parallel")
# ----------------------------------------------------------------------------
def _bn_relu_kernel(x_ref, s_ref, b_ref, o_ref):
    y = x_ref[...].astype(jnp.float32) * s_ref[...] + b_ref[...]
    o_ref[...] = jnp.maximum(y, 0.0).astype(o_ref.dtype)


def bn_relu(x, scale_t, bias_t, scale, bias, out_dtype=jnp.bfloat16):
    """relu(bn1(x)) on NHWC x with channels folded into 128-wide lanes."""
    N, H, W, C = x.shape
    R = N * H * W
    k = 1
    if C < 128 and 128 % C == 0 and R % (128 // C) == 0:
        k = 128 // C
    Rf, Cf = R // k, C * k
    if scale_t.shape[-1] == Cf:                 # precomputed at init (usual path)
        s, b = scale_t, bias_t
    else:                                       # fallback (different fold factor)
        s = jnp.tile(scale, k).reshape(1, Cf).astype(jnp.float32)
        b = jnp.tile(bias, k).reshape(1, Cf).astype(jnp.float32)
    x2 = x.reshape(Rf, Cf)
    tr = min(512, Rf)
    Rp = _round_up(Rf, tr)
    if Rp != Rf:
        x2 = jnp.pad(x2, ((0, Rp - Rf), (0, 0)))
    out = pl.pallas_call(
        _bn_relu_kernel,
        out_shape=jax.ShapeDtypeStruct((Rp, Cf), out_dtype),
        grid=(Rp // tr,),
        in_specs=[pl.BlockSpec((tr, Cf), lambda i: (i, 0)),
                  pl.BlockSpec((1, Cf), lambda i: (0, 0)),
                  pl.BlockSpec((1, Cf), lambda i: (0, 0))],
        out_specs=pl.BlockSpec((tr, Cf), lambda i: (i, 0)),
        compiler_params=pltpu.CompilerParams(
            dimension_semantics=("parallel",)),
    )(x2, s, b)
    return out[:Rf].reshape(N, H, W, C)


# ----------------------------------------------------------------------------
# im2col: 3x3 taps folded into the contraction dim, padded ONCE to a lane mult.
# ----------------------------------------------------------------------------
def _im2col_3x3(x, stride, k_pad):
    """x: (N,H,W,C) -> (N*Ho*Wo, k_pad) bf16, K = 9*C (tap-major, chan-minor)."""
    N, H, W, C = x.shape
    Ho = (H - 1) // stride + 1
    Wo = (W - 1) // stride + 1
    xp = jnp.pad(x, ((0, 0), (1, 1), (1, 1), (0, 0)))
    cols = [xp[:, dh:dh + (Ho - 1) * stride + 1:stride,
               dw:dw + (Wo - 1) * stride + 1:stride, :]
            for dh in range(3) for dw in range(3)]
    a = jnp.concatenate(cols, axis=-1).reshape(N * Ho * Wo, 9 * C)
    if k_pad > 9 * C:
        a = jnp.pad(a, ((0, 0), (0, k_pad - 9 * C)))
    return a


# ----------------------------------------------------------------------------
# Kernel 2: conv1 matmul + fused folded-bn2 affine + ReLU, and (optionally)
# the 1x1 projection shortcut computed from the SAME im2col block (the
# shortcut weights live only at the center-tap rows of sc_w).
# ----------------------------------------------------------------------------
def _conv1_kernel(*refs, has_sc):
    if has_sc:
        a_ref, w_ref, s_ref, b_ref, scw_ref, o_ref, sc_ref = refs
    else:
        a_ref, w_ref, s_ref, b_ref, o_ref = refs
    y = jnp.dot(a_ref[...], w_ref[...], preferred_element_type=jnp.float32)
    y = jnp.maximum(y * s_ref[...] + b_ref[...], 0.0)
    o_ref[...] = y.astype(o_ref.dtype)
    if has_sc:
        sc_ref[...] = jnp.dot(a_ref[...], scw_ref[...],
                              preferred_element_type=jnp.float32)


def conv1_bn2_relu(a, w, scale, bias, sc_w, *, tm, tn=128):
    M, Kp = a.shape
    _, Np = w.shape
    assert M % tm == 0 and Np % tn == 0
    grid = (M // tm, Np // tn)
    has_sc = sc_w is not None

    in_specs = [pl.BlockSpec((tm, Kp), lambda i, j: (i, 0)),
                pl.BlockSpec((Kp, tn), lambda i, j: (0, j)),
                pl.BlockSpec((1, tn), lambda i, j: (0, j)),
                pl.BlockSpec((1, tn), lambda i, j: (0, j))]
    args = [a, w, scale, bias]
    params = pltpu.CompilerParams(dimension_semantics=("parallel", "parallel"))

    if has_sc:
        in_specs.append(pl.BlockSpec((Kp, tn), lambda i, j: (0, j)))
        args.append(sc_w)
        out1, sc = pl.pallas_call(
            functools.partial(_conv1_kernel, has_sc=True),
            out_shape=(jax.ShapeDtypeStruct((M, Np), jnp.bfloat16),
                       jax.ShapeDtypeStruct((M, Np), jnp.float32)),
            grid=grid, in_specs=in_specs,
            out_specs=(pl.BlockSpec((tm, tn), lambda i, j: (i, j)),
                       pl.BlockSpec((tm, tn), lambda i, j: (i, j))),
            compiler_params=params,
        )(*args)
        return out1, sc
    out1 = pl.pallas_call(
        functools.partial(_conv1_kernel, has_sc=False),
        out_shape=jax.ShapeDtypeStruct((M, Np), jnp.bfloat16),
        grid=grid, in_specs=in_specs,
        out_specs=pl.BlockSpec((tm, tn), lambda i, j: (i, j)),
        compiler_params=params,
    )(*args)
    return out1, None


# ----------------------------------------------------------------------------
# Kernel 3: conv2 matmul with the global average pool fused into the epilogue
# (one M tile == one image, so the pooled row is exact f32 per image).
# ----------------------------------------------------------------------------
def _conv2_gap_kernel(a_ref, w_ref, o_ref, p_ref, *, inv_hw):
    y = jnp.dot(a_ref[...], w_ref[...], preferred_element_type=jnp.float32)
    # TODO(synk): out2 is stored in bf16 (PyTorch keeps f32 here) — tiny drift
    # in the SE-scaled output; the pooled values themselves are exact f32.
    o_ref[...] = y.astype(o_ref.dtype)
    s = jnp.sum(y, axis=0, keepdims=True) * inv_hw          # (1, tn)
    p_ref[...] = jnp.broadcast_to(s.reshape(1, 1, -1), (1, 8, s.shape[-1]))


def conv2_gap(a, w, *, n_images, tm, tn=128):
    M, Kp = a.shape
    _, Np = w.shape
    assert M % tm == 0 and M // tm == n_images and Np % tn == 0
    grid = (n_images, Np // tn)
    out2, pooled8 = pl.pallas_call(
        functools.partial(_conv2_gap_kernel, inv_hw=1.0 / tm),
        out_shape=(jax.ShapeDtypeStruct((M, Np), jnp.bfloat16),
                   jax.ShapeDtypeStruct((n_images, 8, Np), jnp.float32)),
        grid=grid,
        in_specs=[pl.BlockSpec((tm, Kp), lambda i, j: (i, 0)),
                  pl.BlockSpec((Kp, tn), lambda i, j: (0, j))],
        out_specs=(pl.BlockSpec((tm, tn), lambda i, j: (i, j)),
                   pl.BlockSpec((1, 8, tn), lambda i, j: (i, 0, j))),
        compiler_params=pltpu.CompilerParams(
            dimension_semantics=("parallel", "parallel")),
    )(a, w)
    return out2, pooled8[:, 0, :]


# ----------------------------------------------------------------------------
# Kernel 4: SE excitation MLP  sigmoid(relu(p @ w1 + b1) @ w2 + b2)
# ----------------------------------------------------------------------------
def _se_mlp_kernel(p_ref, w1_ref, b1_ref, w2_ref, b2_ref, o_ref):
    h = jnp.dot(p_ref[...], w1_ref[...],
                preferred_element_type=jnp.float32) + b1_ref[...]
    h = jnp.maximum(h, 0.0)
    s = jnp.dot(h, w2_ref[...],
                preferred_element_type=jnp.float32) + b2_ref[...]
    o_ref[...] = jax.nn.sigmoid(s)


def se_gates(pooled, p):
    N, Np = pooled.shape
    Crp = p['fc1_w'].shape[1]
    Nr = max(8, _round_up(N, 8))
    x = jnp.pad(pooled, ((0, Nr - N), (0, 0)))
    out = pl.pallas_call(
        _se_mlp_kernel,
        out_shape=jax.ShapeDtypeStruct((Nr, Np), jnp.float32),
        grid=(1,),
        in_specs=[pl.BlockSpec((Nr, Np), lambda i: (0, 0)),
                  pl.BlockSpec((Np, Crp), lambda i: (0, 0)),
                  pl.BlockSpec((1, Crp), lambda i: (0, 0)),
                  pl.BlockSpec((Crp, Np), lambda i: (0, 0)),
                  pl.BlockSpec((1, Np), lambda i: (0, 0))],
        out_specs=pl.BlockSpec((Nr, Np), lambda i: (0, 0)),
    )(x, p['fc1_w'], p['fc1_b'], p['fc2_w'], p['fc2_b'])
    return out[:N]


# ----------------------------------------------------------------------------
# Kernel 5: fused SE scaling + residual add (lane-dense, no final ReLU)
# ----------------------------------------------------------------------------
def _scale_add_kernel(x_ref, g_ref, r_ref, o_ref):
    o_ref[...] = (x_ref[...].astype(jnp.float32) * g_ref[...]
                  + r_ref[...].astype(jnp.float32))


def se_scale_add(out2_3d, gates, res_3d, *, t_hw):
    N, HW, Np = out2_3d.shape
    assert HW % t_hw == 0
    g = gates.reshape(N, 1, Np)
    return pl.pallas_call(
        _scale_add_kernel,
        out_shape=jax.ShapeDtypeStruct((N, HW, Np), jnp.float32),
        grid=(N, HW // t_hw),
        in_specs=[pl.BlockSpec((1, t_hw, Np), lambda i, j: (i, j, 0)),
                  pl.BlockSpec((1, 1, Np), lambda i, j: (i, 0, 0)),
                  pl.BlockSpec((1, t_hw, Np), lambda i, j: (i, j, 0))],
        out_specs=pl.BlockSpec((1, t_hw, Np), lambda i, j: (i, j, 0)),
        compiler_params=pltpu.CompilerParams(
            dimension_semantics=("parallel", "parallel")),
    )(out2_3d, g, res_3d)


# ----------------------------------------------------------------------------
# Parameters: synthetic, folded / reshaped / padded ONCE at init
# ----------------------------------------------------------------------------
def _bn_init(key, c):
    k1, k2, k3, k4 = jax.random.split(key, 4)
    return dict(gamma=1.0 + 0.1 * jax.random.normal(k1, (c,), jnp.float32),
                beta=0.1 * jax.random.normal(k2, (c,), jnp.float32),
                mean=0.1 * jax.random.normal(k3, (c,), jnp.float32),
                var=1.0 + 0.1 * jnp.abs(jax.random.normal(k4, (c,), jnp.float32)))


def _bn_fold(p, eps=1e-5):
    scale = p['gamma'] / jnp.sqrt(p['var'] + eps)
    bias = p['beta'] - p['mean'] * scale
    return scale, bias


def _conv_hwio(key, kh, kw, cin, cout):
    std = (2.0 / (kh * kw * cin)) ** 0.5
    return std * jax.random.normal(key, (kh, kw, cin, cout), jnp.float32)


def make_block_params(key, in_planes, planes, stride):
    cr = max(planes // 16, 1)
    ks = jax.random.split(key, 10)
    K1p = _round_up(9 * in_planes, 128)
    K2p = _round_up(9 * planes, 128)
    Np = _round_up(planes, 128)
    Crp = _round_up(cr, 128)

    bn1_s, bn1_b = _bn_fold(_bn_init(ks[0], in_planes))
    bn2_s, bn2_b = _bn_fold(_bn_init(ks[1], planes))

    # lane-tiled bn1 scale/bias precomputed once
    kf = 128 // in_planes if (in_planes < 128 and 128 % in_planes == 0) else 1
    bn1_s_t = jnp.tile(bn1_s, kf).reshape(1, in_planes * kf).astype(jnp.float32)
    bn1_b_t = jnp.tile(bn1_b, kf).reshape(1, in_planes * kf).astype(jnp.float32)

    def fold_conv(w, kp, np_):          # (3,3,cin,cout) -> (kp, np_) bf16, taps in K
        kh, kw, cin, cout = w.shape
        w = w.reshape(kh * kw * cin, cout)
        w = jnp.pad(w, ((0, kp - kh * kw * cin), (0, np_ - cout)))
        return w.astype(jnp.bfloat16)

    p = dict(
        stride=stride, in_planes=in_planes, planes=planes,
        bn1_scale=bn1_s, bn1_bias=bn1_b,
        bn1_scale_t=bn1_s_t, bn1_bias_t=bn1_b_t,
        conv1_w=fold_conv(_conv_hwio(ks[2], 3, 3, in_planes, planes), K1p, Np),
        conv2_w=fold_conv(_conv_hwio(ks[3], 3, 3, planes, planes), K2p, Np),
        # folded bn2, fused into conv1's matmul epilogue
        bn2_scale=jnp.pad(bn2_s.reshape(1, -1), ((0, 0), (0, Np - planes))),
        bn2_bias=jnp.pad(bn2_b.reshape(1, -1), ((0, 0), (0, Np - planes))),
        # SE gates (1x1 convs with bias), pre-padded to lane multiples
        fc1_w=jnp.pad((1.0 / planes ** 0.5)
                      * jax.random.normal(ks[4], (planes, cr), jnp.float32),
                      ((0, Np - planes), (0, Crp - cr))),
        fc1_b=jnp.pad(0.1 * jax.random.normal(ks[5], (1, cr), jnp.float32),
                      ((0, 0), (0, Crp - cr))),
        fc2_w=jnp.pad((1.0 / cr ** 0.5)
                      * jax.random.normal(ks[6], (cr, planes), jnp.float32),
                      ((0, Crp - cr), (0, Np - planes))),
        fc2_b=jnp.pad(0.1 * jax.random.normal(ks[7], (1, planes), jnp.float32),
                      ((0, 0), (0, Np - planes))),
        sc_w=None,
    )
    if stride != 1 or in_planes != planes:
        # 1x1 projection shortcut, embedded at the CENTER-tap rows of the folded
        # K axis so conv1's im2col block can be reused for it inside the kernel.
        w = (2.0 / in_planes) ** 0.5 * jax.random.normal(
            ks[8], (in_planes, planes), jnp.float32)
        sc = jnp.zeros((K1p, Np), jnp.float32)
        sc = sc.at[4 * in_planes:5 * in_planes, :planes].set(w)
        p['sc_w'] = sc.astype(jnp.bfloat16)
    return p


# ----------------------------------------------------------------------------
# PreActBlock forward (NHWC)
# ----------------------------------------------------------------------------
def preact_block(x, p):
    N, H, W, Cin = x.shape
    planes, stride = p['planes'], p['stride']
    Np = p['conv1_w'].shape[1]
    Ho = (H - 1) // stride + 1
    Wo = (W - 1) // stride + 1
    hw = Ho * Wo
    assert hw % 8 == 0, "per-image M tile must be a sublane multiple"

    # out = relu(bn1(x))   (pre-activation, bf16 for the MXU)
    pre = bn_relu(x, p['bn1_scale_t'], p['bn1_bias_t'],
                  p['bn1_scale'], p['bn1_bias'])

    # conv1 (+ fused bn2 affine + ReLU) and, if present, the fused 1x1
    # projection shortcut — both from one im2col with taps folded into K.
    a1 = _im2col_3x3(pre, stride, p['conv1_w'].shape[0])
    out1, sc = conv1_bn2_relu(a1, p['conv1_w'], p['bn2_scale'], p['bn2_bias'],
                              p['sc_w'], tm=hw)
    if sc is None:
        # identity shortcut: the raw input x (stride == 1 and Cin == planes)
        sc = x.reshape(N, hw, Cin).astype(jnp.float32)
        if Cin < Np:
            sc = jnp.pad(sc, ((0, 0), (0, 0), (0, Np - Cin)))
    else:
        sc = sc.reshape(N, hw, Np)

    # conv2 with the global average pool fused into its epilogue
    h2 = out1 if planes == Np else out1[:, :planes]
    h4 = h2.reshape(N, Ho, Wo, planes)
    a2 = _im2col_3x3(h4, 1, p['conv2_w'].shape[0])
    out2, pooled = conv2_gap(a2, p['conv2_w'], n_images=N, tm=hw)

    # SE gates, then out2 * gates + shortcut   (PreActBlock has no final ReLU)
    gates = se_gates(pooled, p)
    out = se_scale_add(out2.reshape(N, hw, Np), gates, sc, t_hw=hw)

    # depad only at the block output
    out = out if planes == Np else out[:, :, :planes]
    return out.reshape(N, Ho, Wo, planes)


# ----------------------------------------------------------------------------
if __name__ == "__main__":
    key = jax.random.PRNGKey(0)
    k1, k2, k3, kx = jax.random.split(key, 4)

    # Block A: channel change -> projection shortcut, stride 1.
    pA = make_block_params(k1, 32, 64, stride=1)
    # Block B: stride 2 + channel change -> strided projection shortcut.
    pB = make_block_params(k2, 64, 128, stride=2)
    # Block C: identity shortcut (same planes, stride 1).
    pC = make_block_params(k3, 128, 128, stride=1)

    x = jax.random.normal(kx, (2, 32, 16, 16), jnp.float32)   # NCHW like PyTorch

    @jax.jit
    def run(inp):
        # NCHW -> NHWC once at network entry; chain blocks in NHWC; convert
        # back to NCHW only for the returned tensors (not fed onward).
        h = jnp.transpose(inp, (0, 2, 3, 1))
        yA = preact_block(h, pA)
        yB = preact_block(yA, pB)
        yC = preact_block(yB, pC)
        return (jnp.transpose(yA, (0, 3, 1, 2)),
                jnp.transpose(yB, (0, 3, 1, 2)),
                jnp.transpose(yC, (0, 3, 1, 2)))

    yA, yB, yC = run(x)
    jax.block_until_ready(yA)
    jax.block_until_ready(yB)
    jax.block_until_ready(yC)

    assert yA.shape == (2, 64, 16, 16), yA.shape
    assert yB.shape == (2, 128, 8, 8), yB.shape
    assert yC.shape == (2, 128, 8, 8), yC.shape
    assert bool(jnp.all(jnp.isfinite(yA)))
    assert bool(jnp.all(jnp.isfinite(yB)))
    assert bool(jnp.all(jnp.isfinite(yC)))
    print("KERNEL_OK")
</pallas_src>

<mosaic_0001>
module attributes {stable_mosaic.version = 11 : i64} {
  func.func @_bn_relu_kernel(%arg0: i32, %arg1: memref<128x128xf32, #tpu.memory_space<vmem>>, %arg2: memref<1x128xf32, #tpu.memory_space<vmem>>, %arg3: memref<1x128xf32, #tpu.memory_space<vmem>>, %arg4: memref<128x128xbf16, #tpu.memory_space<vmem>>) attributes {dimension_semantics = [#tpu.dimension_semantics<parallel>], iteration_bounds = array<i64: 1>, scalar_prefetch = 0 : i64, scratch_operands = 0 : i64, tpu.core_type = #tpu.core_type<tc>, window_params = [{transform_indices = @transform_0, window_bounds = array<i64: 128, 128>}, {pipeline_mode = #tpu.pipeline_mode<synchronous>, transform_indices = @transform_1, window_bounds = array<i64: 1, 128>}, {pipeline_mode = #tpu.pipeline_mode<synchronous>, transform_indices = @transform_2, window_bounds = array<i64: 1, 128>}, {transform_indices = @transform_3, window_bounds = array<i64: 128, 128>}]} {
    %c0 = arith.constant 0 : index
    %c0_0 = arith.constant 0 : index
    %0 = vector.load %arg1[%c0, %c0_0] : memref<128x128xf32, #tpu.memory_space<vmem>>, vector<128x128xf32>
    %c0_1 = arith.constant 0 : index
    %c0_2 = arith.constant 0 : index
    %1 = vector.load %arg2[%c0_1, %c0_2] : memref<1x128xf32, #tpu.memory_space<vmem>>, vector<1x128xf32>
    %2 = vector.broadcast %1 : vector<1x128xf32> to vector<128x128xf32>
    %3 = arith.mulf %0, %2 : vector<128x128xf32>
    %c0_3 = arith.constant 0 : index
    %c0_4 = arith.constant 0 : index
    %4 = vector.load %arg3[%c0_3, %c0_4] : memref<1x128xf32, #tpu.memory_space<vmem>>, vector<1x128xf32>
    %5 = vector.broadcast %4 : vector<1x128xf32> to vector<128x128xf32>
    %6 = arith.addf %3, %5 : vector<128x128xf32>
    %cst = arith.constant 0.000000e+00 : f32
    %7 = vector.broadcast %cst : f32 to vector<128x128xf32>
    %8 = arith.maximumf %6, %7 : vector<128x128xf32>
    %9 = arith.truncf %8 : vector<128x128xf32> to vector<128x128xbf16>
    %c0_5 = arith.constant 0 : index
    %c0_6 = arith.constant 0 : index
    %10 = vector.load %arg4[%c0_5, %c0_6] : memref<128x128xbf16, #tpu.memory_space<vmem>>, vector<128x128xbf16>
    tpu.vector_store %arg4[%c0_5, %c0_6], %9 {strides = array<i32>} : memref<128x128xbf16, #tpu.memory_space<vmem>>, vector<128x128xbf16>,
    return
  }
  func.func @transform_0(%arg0: i32) -> (i32, i32) {
    %c0_i32 = arith.constant 0 : i32
    %c0_i32_0 = arith.constant 0 : i32
    return %arg0, %c0_i32 : i32, i32
  }
  func.func @transform_1(%arg0: i32) -> (i32, i32) {
    %c0_i32 = arith.constant 0 : i32
    %c0_i32_0 = arith.constant 0 : i32
    %c0_i32_1 = arith.constant 0 : i32
    return %c0_i32, %c0_i32_0 : i32, i32
  }
  func.func @transform_2(%arg0: i32) -> (i32, i32) {
    %c0_i32 = arith.constant 0 : i32
    %c0_i32_0 = arith.constant 0 : i32
    %c0_i32_1 = arith.constant 0 : i32
    return %c0_i32, %c0_i32_0 : i32, i32
  }
  func.func @transform_3(%arg0: i32) -> (i32, i32) {
    %c0_i32 = arith.constant 0 : i32
    %c0_i32_0 = arith.constant 0 : i32
    return %arg0, %c0_i32 : i32, i32
  }
}

module attributes {stable_mosaic.version = 11 : i64} {
  func.func @_conv1_kernel(%arg0: i32, %arg1: i32, %arg2: memref<256x384xbf16, #tpu.memory_space<vmem>>, %arg3: memref<384x128xbf16, #tpu.memory_space<vmem>>, %arg4: memref<1x128xf32, #tpu.memory_space<vmem>>, %arg5: memref<1x128xf32, #tpu.memory_space<vmem>>, %arg6: memref<384x128xbf16, #tpu.memory_space<vmem>>, %arg7: memref<256x128xbf16, #tpu.memory_space<vmem>>, %arg8: memref<256x128xf32, #tpu.memory_space<vmem>>) attributes {dimension_semantics = [#tpu.dimension_semantics<parallel>, #tpu.dimension_semantics<parallel>], iteration_bounds = array<i64: 2, 1>, scalar_prefetch = 0 : i64, scratch_operands = 0 : i64, tpu.core_type = #tpu.core_type<tc>, window_params = [{transform_indices = @transform_0, window_bounds = array<i64: 256, 384>}, {transform_indices = @transform_1, window_bounds = array<i64: 384, 128>}, {transform_indices = @transform_2, window_bounds = array<i64: 1, 128>}, {transform_indices = @transform_3, window_bounds = array<i64: 1, 128>}, {transform_indices = @transform_4, window_bounds = array<i64: 384, 128>}, {transform_indices = @transform_5, window_bounds = array<i64: 256, 128>}, {transform_indices = @transform_6, window_bounds = array<i64: 256, 128>}]} {
    %c0 = arith.constant 0 : index
    %c0_0 = arith.constant 0 : index
    %0 = vector.load %arg2[%c0, %c0_0] : memref<256x384xbf16, #tpu.memory_space<vmem>>, vector<256x384xbf16>
    %c0_1 = arith.constant 0 : index
    %c0_2 = arith.constant 0 : index
    %1 = vector.load %arg3[%c0_1, %c0_2] : memref<384x128xbf16, #tpu.memory_space<vmem>>, vector<384x128xbf16>
    %cst = arith.constant dense<0.000000e+00> : vector<256x128xf32>
    %2 = tpu.matmul %0, %1, %cst {dimension_numbers = #tpu.dot_dimension_numbers<[1], [0], [0], [1], [0, 0, 1, 1], [], []>} : vector<256x384xbf16>, vector<384x128xbf16>, vector<256x128xf32> -> vector<256x128xf32>
    %c0_3 = arith.constant 0 : index
    %c0_4 = arith.constant 0 : index
    %3 = vector.load %arg4[%c0_3, %c0_4] : memref<1x128xf32, #tpu.memory_space<vmem>>, vector<1x128xf32>
    %4 = vector.broadcast %3 : vector<1x128xf32> to vector<256x128xf32>
    %5 = arith.mulf %2, %4 : vector<256x128xf32>
    %c0_5 = arith.constant 0 : index
    %c0_6 = arith.constant 0 : index
    %6 = vector.load %arg5[%c0_5, %c0_6] : memref<1x128xf32, #tpu.memory_space<vmem>>, vector<1x128xf32>
    %7 = vector.broadcast %6 : vector<1x128xf32> to vector<256x128xf32>
    %8 = arith.addf %5, %7 : vector<256x128xf32>
    %cst_7 = arith.constant 0.000000e+00 : f32
    %9 = vector.broadcast %cst_7 : f32 to vector<256x128xf32>
    %10 = arith.maximumf %8, %9 : vector<256x128xf32>
    %11 = arith.truncf %10 : vector<256x128xf32> to vector<256x128xbf16>
    %c0_8 = arith.constant 0 : index
    %c0_9 = arith.constant 0 : index
    %12 = vector.load %arg7[%c0_8, %c0_9] : memref<256x128xbf16, #tpu.memory_space<vmem>>, vector<256x128xbf16>
    tpu.vector_store %arg7[%c0_8, %c0_9], %11 {strides = array<i32>} : memref<256x128xbf16, #tpu.memory_space<vmem>>, vector<256x128xbf16>,
    %c0_10 = arith.constant 0 : index
    %c0_11 = arith.constant 0 : index
    %13 = vector.load %arg2[%c0_10, %c0_11] : memref<256x384xbf16, #tpu.memory_space<vmem>>, vector<256x384xbf16>
    %c0_12 = arith.constant 0 : index
    %c0_13 = arith.constant 0 : index
    %14 = vector.load %arg6[%c0_12, %c0_13] : memref<384x128xbf16, #tpu.memory_space<vmem>>, vector<384x128xbf16>
    %cst_14 = arith.constant dense<0.000000e+00> : vector<256x128xf32>
    %15 = tpu.matmul %13, %14, %cst_14 {dimension_numbers = #tpu.dot_dimension_numbers<[1], [0], [0], [1], [0, 0, 1, 1], [], []>} : vector<256x384xbf16>, vector<384x128xbf16>, vector<256x128xf32> -> vector<256x128xf32>
    %c0_15 = arith.constant 0 : index
    %c0_16 = arith.constant 0 : index
    %16 = vector.load %arg8[%c0_15, %c0_16] : memref<256x128xf32, #tpu.memory_space<vmem>>, vector<256x128xf32>
    tpu.vector_store %arg8[%c0_15, %c0_16], %15 {strides = array<i32>} : memref<256x128xf32, #tpu.memory_space<vmem>>, vector<256x128xf32>,
    return
  }
  func.func @transform_0(%arg0: i32, %arg1: i32) -> (i32, i32) {
    %c0_i32 = arith.constant 0 : i32
    %c0_i32_0 = arith.constant 0 : i32
    return %arg0, %c0_i32 : i32, i32
  }
  func.func @transform_1(%arg0: i32, %arg1: i32) -> (i32, i32) {
    %c0_i32 = arith.constant 0 : i32
    %c0_i32_0 = arith.constant 0 : i32
    return %c0_i32, %arg1 : i32, i32
  }
  func.func @transform_2(%arg0: i32, %arg1: i32) -> (i32, i32) {
    %c0_i32 = arith.constant 0 : i32
    %c0_i32_0 = arith.constant 0 : i32
    return %c0_i32, %arg1 : i32, i32
  }
  func.func @transform_3(%arg0: i32, %arg1: i32) -> (i32, i32) {
    %c0_i32 = arith.constant 0 : i32
    %c0_i32_0 = arith.constant 0 : i32
    return %c0_i32, %arg1 : i32, i32
  }
  func.func @transform_4(%arg0: i32, %arg1: i32) -> (i32, i32) {
    %c0_i32 = arith.constant 0 : i32
    %c0_i32_0 = arith.constant 0 : i32
    return %c0_i32, %arg1 : i32, i32
  }
  func.func @transform_5(%arg0: i32, %arg1: i32) -> (i32, i32) {
    %c0_i32 = arith.constant 0 : i32
    return %arg0, %arg1 : i32, i32
  }
  func.func @transform_6(%arg0: i32, %arg1: i32) -> (i32, i32) {
    %c0_i32 = arith.constant 0 : i32
    return %arg0, %arg1 : i32, i32
  }
}

module attributes {stable_mosaic.version = 11 : i64} {
  func.func @_conv2_gap_kernel(%arg0: i32, %arg1: i32, %arg2: memref<256x640xbf16, #tpu.memory_space<vmem>>, %arg3: memref<640x128xbf16, #tpu.memory_space<vmem>>, %arg4: memref<256x128xbf16, #tpu.memory_space<vmem>>, %arg5: memref<1x8x128xf32, #tpu.memory_space<vmem>>) attributes {dimension_semantics = [#tpu.dimension_semantics<parallel>, #tpu.dimension_semantics<parallel>], iteration_bounds = array<i64: 2, 1>, scalar_prefetch = 0 : i64, scratch_operands = 0 : i64, tpu.core_type = #tpu.core_type<tc>, window_params = [{transform_indices = @transform_0, window_bounds = array<i64: 256, 640>}, {transform_indices = @transform_1, window_bounds = array<i64: 640, 128>}, {transform_indices = @transform_2, window_bounds = array<i64: 256, 128>}, {transform_indices = @transform_3, window_bounds = array<i64: 1, 8, 128>}]} {
    %c0 = arith.constant 0 : index
    %c0_0 = arith.constant 0 : index
    %0 = vector.load %arg2[%c0, %c0_0] : memref<256x640xbf16, #tpu.memory_space<vmem>>, vector<256x640xbf16>
    %c0_1 = arith.constant 0 : index
    %c0_2 = arith.constant 0 : index
    %1 = vector.load %arg3[%c0_1, %c0_2] : memref<640x128xbf16, #tpu.memory_space<vmem>>, vector<640x128xbf16>
    %cst = arith.constant dense<0.000000e+00> : vector<256x128xf32>
    %2 = tpu.matmul %0, %1, %cst {dimension_numbers = #tpu.dot_dimension_numbers<[1], [0], [0], [1], [0, 0, 1, 1], [], []>} : vector<256x640xbf16>, vector<640x128xbf16>, vector<256x128xf32> -> vector<256x128xf32>
    %3 = arith.truncf %2 : vector<256x128xf32> to vector<256x128xbf16>
    %c0_3 = arith.constant 0 : index
    %c0_4 = arith.constant 0 : index
    %4 = vector.load %arg4[%c0_3, %c0_4] : memref<256x128xbf16, #tpu.memory_space<vmem>>, vector<256x128xbf16>
    tpu.vector_store %arg4[%c0_3, %c0_4], %3 {strides = array<i32>} : memref<256x128xbf16, #tpu.memory_space<vmem>>, vector<256x128xbf16>,
    %cst_5 = arith.constant dense<0.000000e+00> : vector<128xf32>
    %5 = vector.multi_reduction <add>, %2, %cst_5 [0] : vector<256x128xf32> to vector<128xf32>
    %6 = vector.shape_cast %5 : vector<128xf32> to vector<1x128xf32>
    %cst_6 = arith.constant 3.906250e-03 : f32
    %7 = vector.broadcast %cst_6 : f32 to vector<1x128xf32>
    %8 = arith.mulf %6, %7 : vector<1x128xf32>
    %9 = vector.shape_cast %8 : vector<1x128xf32> to vector<1x1x128xf32>
    %10 = vector.shape_cast %9 : vector<1x1x128xf32> to vector<1x1x128xf32>
    %11 = vector.broadcast %10 : vector<1x1x128xf32> to vector<1x8x128xf32>
    %c0_7 = arith.constant 0 : index
    %c0_8 = arith.constant 0 : index
    %c0_9 = arith.constant 0 : index
    %12 = vector.load %arg5[%c0_7, %c0_8, %c0_9] : memref<1x8x128xf32, #tpu.memory_space<vmem>>, vector<1x8x128xf32>
    tpu.vector_store %arg5[%c0_7, %c0_8, %c0_9], %11 {strides = array<i32>} : memref<1x8x128xf32, #tpu.memory_space<vmem>>, vector<1x8x128xf32>,
    return
  }
  func.func @transform_0(%arg0: i32, %arg1: i32) -> (i32, i32) {
    %c0_i32 = arith.constant 0 : i32
    %c0_i32_0 = arith.constant 0 : i32
    return %arg0, %c0_i32 : i32, i32
  }
  func.func @transform_1(%arg0: i32, %arg1: i32) -> (i32, i32) {
    %c0_i32 = arith.constant 0 : i32
    %c0_i32_0 = arith.constant 0 : i32
    return %c0_i32, %arg1 : i32, i32
  }
  func.func @transform_2(%arg0: i32, %arg1: i32) -> (i32, i32) {
    %c0_i32 = arith.constant 0 : i32
    return %arg0, %arg1 : i32, i32
  }
  func.func @transform_3(%arg0: i32, %arg1: i32) -> (i32, i32, i32) {
    %c0_i32 = arith.constant 0 : i32
    %c0_i32_0 = arith.constant 0 : i32
    return %arg0, %c0_i32, %arg1 : i32, i32, i32
  }
}

module attributes {stable_mosaic.version = 11 : i64} {
  func.func @_se_mlp_kernel(%arg0: i32, %arg1: memref<8x128xf32, #tpu.memory_space<vmem>>, %arg2: memref<128x128xf32, #tpu.memory_space<vmem>>, %arg3: memref<1x128xf32, #tpu.memory_space<vmem>>, %arg4: memref<128x128xf32, #tpu.memory_space<vmem>>, %arg5: memref<1x128xf32, #tpu.memory_space<vmem>>, %arg6: memref<8x128xf32, #tpu.memory_space<vmem>>) attributes {dimension_semantics = [#tpu.dimension_semantics<arbitrary>], iteration_bounds = array<i64: 1>, scalar_prefetch = 0 : i64, scratch_operands = 0 : i64, tpu.core_type = #tpu.core_type<tc>, window_params = [{pipeline_mode = #tpu.pipeline_mode<synchronous>, transform_indices = @transform_0, window_bounds = array<i64: 8, 128>}, {pipeline_mode = #tpu.pipeline_mode<synchronous>, transform_indices = @transform_1, window_bounds = array<i64: 128, 128>}, {pipeline_mode = #tpu.pipeline_mode<synchronous>, transform_indices = @transform_2, window_bounds = array<i64: 1, 128>}, {pipeline_mode = #tpu.pipeline_mode<synchronous>, transform_indices = @transform_3, window_bounds = array<i64: 128, 128>}, {pipeline_mode = #tpu.pipeline_mode<synchronous>, transform_indices = @transform_4, window_bounds = array<i64: 1, 128>}, {pipeline_mode = #tpu.pipeline_mode<synchronous>, transform_indices = @transform_5, window_bounds = array<i64: 8, 128>}]} {
    %c0 = arith.constant 0 : index
    %c0_0 = arith.constant 0 : index
    %0 = vector.load %arg1[%c0, %c0_0] : memref<8x128xf32, #tpu.memory_space<vmem>>, vector<8x128xf32>
    %c0_1 = arith.constant 0 : index
    %c0_2 = arith.constant 0 : index
    %1 = vector.load %arg2[%c0_1, %c0_2] : memref<128x128xf32, #tpu.memory_space<vmem>>, vector<128x128xf32>
    %cst = arith.constant dense<0.000000e+00> : vector<8x128xf32>
    %2 = tpu.matmul %0, %1, %cst {dimension_numbers = #tpu.dot_dimension_numbers<[1], [0], [0], [1], [0, 0, 1, 1], [], []>} : vector<8x128xf32>, vector<128x128xf32>, vector<8x128xf32> -> vector<8x128xf32>
    %c0_3 = arith.constant 0 : index
    %c0_4 = arith.constant 0 : index
    %3 = vector.load %arg3[%c0_3, %c0_4] : memref<1x128xf32, #tpu.memory_space<vmem>>, vector<1x128xf32>
    %4 = vector.broadcast %3 : vector<1x128xf32> to vector<8x128xf32>
    %5 = arith.addf %2, %4 : vector<8x128xf32>
    %cst_5 = arith.constant 0.000000e+00 : f32
    %6 = vector.broadcast %cst_5 : f32 to vector<8x128xf32>
    %7 = arith.maximumf %5, %6 : vector<8x128xf32>
    %c0_6 = arith.constant 0 : index
    %c0_7 = arith.constant 0 : index
    %8 = vector.load %arg4[%c0_6, %c0_7] : memref<128x128xf32, #tpu.memory_space<vmem>>, vector<128x128xf32>
    %cst_8 = arith.constant dense<0.000000e+00> : vector<8x128xf32>
    %9 = tpu.matmul %7, %8, %cst_8 {dimension_numbers = #tpu.dot_dimension_numbers<[1], [0], [0], [1], [0, 0, 1, 1], [], []>} : vector<8x128xf32>, vector<128x128xf32>, vector<8x128xf32> -> vector<8x128xf32>
    %c0_9 = arith.constant 0 : index
    %c0_10 = arith.constant 0 : index
    %10 = vector.load %arg5[%c0_9, %c0_10] : memref<1x128xf32, #tpu.memory_space<vmem>>, vector<1x128xf32>
    %11 = vector.broadcast %10 : vector<1x128xf32> to vector<8x128xf32>
    %12 = arith.addf %9, %11 : vector<8x128xf32>
    %13 = arith.negf %12 : vector<8x128xf32>
    %14 = math.exp %13 : vector<8x128xf32>
    %cst_11 = arith.constant 1.000000e+00 : f32
    %15 = vector.broadcast %cst_11 : f32 to vector<8x128xf32>
    %16 = arith.addf %15, %14 : vector<8x128xf32>
    %17 = arith.divf %15, %16 : vector<8x128xf32>
    %c0_12 = arith.constant 0 : index
    %c0_13 = arith.constant 0 : index
    %18 = vector.load %arg6[%c0_12, %c0_13] : memref<8x128xf32, #tpu.memory_space<vmem>>, vector<8x128xf32>
    tpu.vector_store %arg6[%c0_12, %c0_13], %17 {strides = array<i32>} : memref<8x128xf32, #tpu.memory_space<vmem>>, vector<8x128xf32>,
    return
  }
  func.func @transform_0(%arg0: i32) -> (i32, i32) {
    %c0_i32 = arith.constant 0 : i32
    %c0_i32_0 = arith.constant 0 : i32
    %c0_i32_1 = arith.constant 0 : i32
    return %c0_i32, %c0_i32_0 : i32, i32
  }
  func.func @transform_1(%arg0: i32) -> (i32, i32) {
    %c0_i32 = arith.constant 0 : i32
    %c0_i32_0 = arith.constant 0 : i32
    %c0_i32_1 = arith.constant 0 : i32
    return %c0_i32, %c0_i32_0 : i32, i32
  }
  func.func @transform_2(%arg0: i32) -> (i32, i32) {
    %c0_i32 = arith.constant 0 : i32
    %c0_i32_0 = arith.constant 0 : i32
    %c0_i32_1 = arith.constant 0 : i32
    return %c0_i32, %c0_i32_0 : i32, i32
  }
  func.func @transform_3(%arg0: i32) -> (i32, i32) {
    %c0_i32 = arith.constant 0 : i32
    %c0_i32_0 = arith.constant 0 : i32
    %c0_i32_1 = arith.constant 0 : i32
    return %c0_i32, %c0_i32_0 : i32, i32
  }
  func.func @transform_4(%arg0: i32) -> (i32, i32) {
    %c0_i32 = arith.constant 0 : i32
    %c0_i32_0 = arith.constant 0 : i32
    %c0_i32_1 = arith.constant 0 : i32
    return %c0_i32, %c0_i32_0 : i32, i32
  }
  func.func @transform_5(%arg0: i32) -> (i32, i32) {
    %c0_i32 = arith.constant 0 : i32
    %c0_i32_0 = arith.constant 0 : i32
    %c0_i32_1 = arith.constant 0 : i32
    return %c0_i32, %c0_i32_0 : i32, i32
  }
}

module attributes {stable_mosaic.version = 11 : i64} {
  func.func @_scale_add_kernel(%arg0: i32, %arg1: i32, %arg2: memref<1x256x128xbf16, #tpu.memory_space<vmem>>, %arg3: memref<1x1x128xf32, #tpu.memory_space<vmem>>, %arg4: memref<1x256x128xf32, #tpu.memory_space<vmem>>, %arg5: memref<1x256x128xf32, #tpu.memory_space<vmem>>) attributes {dimension_semantics = [#tpu.dimension_semantics<parallel>, #tpu.dimension_semantics<parallel>], iteration_bounds = array<i64: 2, 1>, scalar_prefetch = 0 : i64, scratch_operands = 0 : i64, tpu.core_type = #tpu.core_type<tc>, window_params = [{transform_indices = @transform_0, window_bounds = array<i64: 1, 256, 128>}, {transform_indices = @transform_1, window_bounds = array<i64: 1, 1, 128>}, {transform_indices = @transform_2, window_bounds = array<i64: 1, 256, 128>}, {transform_indices = @transform_3, window_bounds = array<i64: 1, 256, 128>}]} {
    %c0 = arith.constant 0 : index
    %c0_0 = arith.constant 0 : index
    %c0_1 = arith.constant 0 : index
    %0 = vector.load %arg2[%c0, %c0_0, %c0_1] : memref<1x256x128xbf16, #tpu.memory_space<vmem>>, vector<1x256x128xbf16>
    %1 = arith.extf %0 : vector<1x256x128xbf16> to vector<1x256x128xf32>
    %c0_2 = arith.constant 0 : index
    %c0_3 = arith.constant 0 : index
    %c0_4 = arith.constant 0 : index
    %2 = vector.load %arg3[%c0_2, %c0_3, %c0_4] : memref<1x1x128xf32, #tpu.memory_space<vmem>>, vector<1x1x128xf32>
    %3 = vector.broadcast %2 : vector<1x1x128xf32> to vector<1x256x128xf32>
    %4 = arith.mulf %1, %3 : vector<1x256x128xf32>
    %c0_5 = arith.constant 0 : index
    %c0_6 = arith.constant 0 : index
    %c0_7 = arith.constant 0 : index
    %5 = vector.load %arg4[%c0_5, %c0_6, %c0_7] : memref<1x256x128xf32, #tpu.memory_space<vmem>>, vector<1x256x128xf32>
    %6 = arith.addf %4, %5 : vector<1x256x128xf32>
    %c0_8 = arith.constant 0 : index
    %c0_9 = arith.constant 0 : index
    %c0_10 = arith.constant 0 : index
    %7 = vector.load %arg5[%c0_8, %c0_9, %c0_10] : memref<1x256x128xf32, #tpu.memory_space<vmem>>, vector<1x256x128xf32>
    tpu.vector_store %arg5[%c0_8, %c0_9, %c0_10], %6 {strides = array<i32>} : memref<1x256x128xf32, #tpu.memory_space<vmem>>, vector<1x256x128xf32>,
    return
  }
  func.func @transform_0(%arg0: i32, %arg1: i32) -> (i32, i32, i32) {
    %c0_i32 = arith.constant 0 : i32
    %c0_i32_0 = arith.constant 0 : i32
    return %arg0, %arg1, %c0_i32 : i32, i32, i32
  }
  func.func @transform_1(%arg0: i32, %arg1: i32) -> (i32, i32, i32) {
    %c0_i32 = arith.constant 0 : i32
    %c0_i32_0 = arith.constant 0 : i32
    %c0_i32_1 = arith.constant 0 : i32
    return %arg0, %c0_i32, %c0_i32_0 : i32, i32, i32
  }
  func.func @transform_2(%arg0: i32, %arg1: i32) -> (i32, i32, i32) {
    %c0_i32 = arith.constant 0 : i32
    %c0_i32_0 = arith.constant 0 : i32
    return %arg0, %arg1, %c0_i32 : i32, i32, i32
  }
  func.func @transform_3(%arg0: i32, %arg1: i32) -> (i32, i32, i32) {
    %c0_i32 = arith.constant 0 : i32
    %c0_i32_0 = arith.constant 0 : i32
    return %arg0, %arg1, %c0_i32 : i32, i32, i32
  }
}

module attributes {stable_mosaic.version = 11 : i64} {
  func.func @_bn_relu_kernel(%arg0: i32, %arg1: memref<256x128xf32, #tpu.memory_space<vmem>>, %arg2: memref<1x128xf32, #tpu.memory_space<vmem>>, %arg3: memref<1x128xf32, #tpu.memory_space<vmem>>, %arg4: memref<256x128xbf16, #tpu.memory_space<vmem>>) attributes {dimension_semantics = [#tpu.dimension_semantics<parallel>], iteration_bounds = array<i64: 1>, scalar_prefetch = 0 : i64, scratch_operands = 0 : i64, tpu.core_type = #tpu.core_type<tc>, window_params = [{transform_indices = @transform_0, window_bounds = array<i64: 256, 128>}, {pipeline_mode = #tpu.pipeline_mode<synchronous>, transform_indices = @transform_1, window_bounds = array<i64: 1, 128>}, {pipeline_mode = #tpu.pipeline_mode<synchronous>, transform_indices = @transform_2, window_bounds = array<i64: 1, 128>}, {transform_indices = @transform_3, window_bounds = array<i64: 256, 128>}]} {
    %c0 = arith.constant 0 : index
    %c0_0 = arith.constant 0 : index
    %0 = vector.load %arg1[%c0, %c0_0] : memref<256x128xf32, #tpu.memory_space<vmem>>, vector<256x128xf32>
    %c0_1 = arith.constant 0 : index
    %c0_2 = arith.constant 0 : index
    %1 = vector.load %arg2[%c0_1, %c0_2] : memref<1x128xf32, #tpu.memory_space<vmem>>, vector<1x128xf32>
    %2 = vector.broadcast %1 : vector<1x128xf32> to vector<256x128xf32>
    %3 = arith.mulf %0, %2 : vector<256x128xf32>
    %c0_3 = arith.constant 0 : index
    %c0_4 = arith.constant 0 : index
    %4 = vector.load %arg3[%c0_3, %c0_4] : memref<1x128xf32, #tpu.memory_space<vmem>>, vector<1x128xf32>
    %5 = vector.broadcast %4 : vector<1x128xf32> to vector<256x128xf32>
    %6 = arith.addf %3, %5 : vector<256x128xf32>
    %cst = arith.constant 0.000000e+00 : f32
    %7 = vector.broadcast %cst : f32 to vector<256x128xf32>
    %8 = arith.maximumf %6, %7 : vector<256x128xf32>
    %9 = arith.truncf %8 : vector<256x128xf32> to vector<256x128xbf16>
    %c0_5 = arith.constant 0 : index
    %c0_6 = arith.constant 0 : index
    %10 = vector.load %arg4[%c0_5, %c0_6] : memref<256x128xbf16, #tpu.memory_space<vmem>>, vector<256x128xbf16>
    tpu.vector_store %arg4[%c0_5, %c0_6], %9 {strides = array<i32>} : memref<256x128xbf16, #tpu.memory_space<vmem>>, vector<256x128xbf16>,
    return
  }
  func.func @transform_0(%arg0: i32) -> (i32, i32) {
    %c0_i32 = arith.constant 0 : i32
    %c0_i32_0 = arith.constant 0 : i32
    return %arg0, %c0_i32 : i32, i32
  }
  func.func @transform_1(%arg0: i32) -> (i32, i32) {
    %c0_i32 = arith.constant 0 : i32
    %c0_i32_0 = arith.constant 0 : i32
    %c0_i32_1 = arith.constant 0 : i32
    return %c0_i32, %c0_i32_0 : i32, i32
  }
  func.func @transform_2(%arg0: i32) -> (i32, i32) {
    %c0_i32 = arith.constant 0 : i32
    %c0_i32_0 = arith.constant 0 : i32
    %c0_i32_1 = arith.constant 0 : i32
    return %c0_i32, %c0_i32_0 : i32, i32
  }
  func.func @transform_3(%arg0: i32) -> (i32, i32) {
    %c0_i32 = arith.constant 0 : i32
    %c0_i32_0 = arith.constant 0 : i32
    return %arg0, %c0_i32 : i32, i32
  }
}

module attributes {stable_mosaic.version = 11 : i64} {
  func.func @_conv1_kernel(%arg0: i32, %arg1: i32, %arg2: memref<64x640xbf16, #tpu.memory_space<vmem>>, %arg3: memref<640x128xbf16, #tpu.memory_space<vmem>>, %arg4: memref<1x128xf32, #tpu.memory_space<vmem>>, %arg5: memref<1x128xf32, #tpu.memory_space<vmem>>, %arg6: memref<640x128xbf16, #tpu.memory_space<vmem>>, %arg7: memref<64x128xbf16, #tpu.memory_space<vmem>>, %arg8: memref<64x128xf32, #tpu.memory_space<vmem>>) attributes {dimension_semantics = [#tpu.dimension_semantics<parallel>, #tpu.dimension_semantics<parallel>], iteration_bounds = array<i64: 2, 1>, scalar_prefetch = 0 : i64, scratch_operands = 0 : i64, tpu.core_type = #tpu.core_type<tc>, window_params = [{transform_indices = @transform_0, window_bounds = array<i64: 64, 640>}, {transform_indices = @transform_1, window_bounds = array<i64: 640, 128>}, {transform_indices = @transform_2, window_bounds = array<i64: 1, 128>}, {transform_indices = @transform_3, window_bounds = array<i64: 1, 128>}, {transform_indices = @transform_4, window_bounds = array<i64: 640, 128>}, {transform_indices = @transform_5, window_bounds = array<i64: 64, 128>}, {transform_indices = @transform_6, window_bounds = array<i64: 64, 128>}]} {
    %c0 = arith.constant 0 : index
    %c0_0 = arith.constant 0 : index
    %0 = vector.load %arg2[%c0, %c0_0] : memref<64x640xbf16, #tpu.memory_space<vmem>>, vector<64x640xbf16>
    %c0_1 = arith.constant 0 : index
    %c0_2 = arith.constant 0 : index
    %1 = vector.load %arg3[%c0_1, %c0_2] : memref<640x128xbf16, #tpu.memory_space<vmem>>, vector<640x128xbf16>
    %cst = arith.constant dense<0.000000e+00> : vector<64x128xf32>
    %2 = tpu.matmul %0, %1, %cst {dimension_numbers = #tpu.dot_dimension_numbers<[1], [0], [0], [1], [0, 0, 1, 1], [], []>} : vector<64x640xbf16>, vector<640x128xbf16>, vector<64x128xf32> -> vector<64x128xf32>
    %c0_3 = arith.constant 0 : index
    %c0_4 = arith.constant 0 : index
    %3 = vector.load %arg4[%c0_3, %c0_4] : memref<1x128xf32, #tpu.memory_space<vmem>>, vector<1x128xf32>
    %4 = vector.broadcast %3 : vector<1x128xf32> to vector<64x128xf32>
    %5 = arith.mulf %2, %4 : vector<64x128xf32>
    %c0_5 = arith.constant 0 : index
    %c0_6 = arith.constant 0 : index
    %6 = vector.load %arg5[%c0_5, %c0_6] : memref<1x128xf32, #tpu.memory_space<vmem>>, vector<1x128xf32>
    %7 = vector.broadcast %6 : vector<1x128xf32> to vector<64x128xf32>
    %8 = arith.addf %5, %7 : vector<64x128xf32>
    %cst_7 = arith.constant 0.000000e+00 : f32
    %9 = vector.broadcast %cst_7 : f32 to vector<64x128xf32>
    %10 = arith.maximumf %8, %9 : vector<64x128xf32>
    %11 = arith.truncf %10 : vector<64x128xf32> to vector<64x128xbf16>
    %c0_8 = arith.constant 0 : index
    %c0_9 = arith.constant 0 : index
    %12 = vector.load %arg7[%c0_8, %c0_9] : memref<64x128xbf16, #tpu.memory_space<vmem>>, vector<64x128xbf16>
    tpu.vector_store %arg7[%c0_8, %c0_9], %11 {strides = array<i32>} : memref<64x128xbf16, #tpu.memory_space<vmem>>, vector<64x128xbf16>,
    %c0_10 = arith.constant 0 : index
    %c0_11 = arith.constant 0 : index
    %13 = vector.load %arg2[%c0_10, %c0_11] : memref<64x640xbf16, #tpu.memory_space<vmem>>, vector<64x640xbf16>
    %c0_12 = arith.constant 0 : index
    %c0_13 = arith.constant 0 : index
    %14 = vector.load %arg6[%c0_12, %c0_13] : memref<640x128xbf16, #tpu.memory_space<vmem>>, vector<640x128xbf16>
    %cst_14 = arith.constant dense<0.000000e+00> : vector<64x128xf32>
    %15 = tpu.matmul %13, %14, %cst_14 {dimension_numbers = #tpu.dot_dimension_numbers<[1], [0], [0], [1], [0, 0, 1, 1], [], []>} : vector<64x640xbf16>, vector<640x128xbf16>, vector<64x128xf32> -> vector<64x128xf32>
    %c0_15 = arith.constant 0 : index
    %c0_16 = arith.constant 0 : index
    %16 = vector.load %arg8[%c0_15, %c0_16] : memref<64x128xf32, #tpu.memory_space<vmem>>, vector<64x128xf32>
    tpu.vector_store %arg8[%c0_15, %c0_16], %15 {strides = array<i32>} : memref<64x128xf32, #tpu.memory_space<vmem>>, vector<64x128xf32>,
    return
  }
  func.func @transform_0(%arg0: i32, %arg1: i32) -> (i32, i32) {
    %c0_i32 = arith.constant 0 : i32
    %c0_i32_0 = arith.constant 0 : i32
    return %arg0, %c0_i32 : i32, i32
  }
  func.func @transform_1(%arg0: i32, %arg1: i32) -> (i32, i32) {
    %c0_i32 = arith.constant 0 : i32
    %c0_i32_0 = arith.constant 0 : i32
    return %c0_i32, %arg1 : i32, i32
  }
  func.func @transform_2(%arg0: i32, %arg1: i32) -> (i32, i32) {
    %c0_i32 = arith.constant 0 : i32
    %c0_i32_0 = arith.constant 0 : i32
    return %c0_i32, %arg1 : i32, i32
  }
  func.func @transform_3(%arg0: i32, %arg1: i32) -> (i32, i32) {
    %c0_i32 = arith.constant 0 : i32
    %c0_i32_0 = arith.constant 0 : i32
    return %c0_i32, %arg1 : i32, i32
  }
  func.func @transform_4(%arg0: i32, %arg1: i32) -> (i32, i32) {
    %c0_i32 = arith.constant 0 : i32
    %c0_i32_0 = arith.constant 0 : i32
    return %c0_i32, %arg1 : i32, i32
  }
  func.func @transform_5(%arg0: i32, %arg1: i32) -> (i32, i32) {
    %c0_i32 = arith.constant 0 : i32
    return %arg0, %arg1 : i32, i32
  }
  func.func @transform_6(%arg0: i32, %arg1: i32) -> (i32, i32) {
    %c0_i32 = arith.constant 0 : i32
    return %arg0, %arg1 : i32, i32
  }
}

module attributes {stable_mosaic.version = 11 : i64} {
  func.func @_conv2_gap_kernel(%arg0: i32, %arg1: i32, %arg2: memref<64x1152xbf16, #tpu.memory_space<vmem>>, %arg3: memref<1152x128xbf16, #tpu.memory_space<vmem>>, %arg4: memref<64x128xbf16, #tpu.memory_space<vmem>>, %arg5: memref<1x8x128xf32, #tpu.memory_space<vmem>>) attributes {dimension_semantics = [#tpu.dimension_semantics<parallel>, #tpu.dimension_semantics<parallel>], iteration_bounds = array<i64: 2, 1>, scalar_prefetch = 0 : i64, scratch_operands = 0 : i64, tpu.core_type = #tpu.core_type<tc>, window_params = [{transform_indices = @transform_0, window_bounds = array<i64: 64, 1152>}, {transform_indices = @transform_1, window_bounds = array<i64: 1152, 128>}, {transform_indices = @transform_2, window_bounds = array<i64: 64, 128>}, {transform_indices = @transform_3, window_bounds = array<i64: 1, 8, 128>}]} {
    %c0 = arith.constant 0 : index
    %c0_0 = arith.constant 0 : index
    %0 = vector.load %arg2[%c0, %c0_0] : memref<64x1152xbf16, #tpu.memory_space<vmem>>, vector<64x1152xbf16>
    %c0_1 = arith.constant 0 : index
    %c0_2 = arith.constant 0 : index
    %1 = vector.load %arg3[%c0_1, %c0_2] : memref<1152x128xbf16, #tpu.memory_space<vmem>>, vector<1152x128xbf16>
    %cst = arith.constant dense<0.000000e+00> : vector<64x128xf32>
    %2 = tpu.matmul %0, %1, %cst {dimension_numbers = #tpu.dot_dimension_numbers<[1], [0], [0], [1], [0, 0, 1, 1], [], []>} : vector<64x1152xbf16>, vector<1152x128xbf16>, vector<64x128xf32> -> vector<64x128xf32>
    %3 = arith.truncf %2 : vector<64x128xf32> to vector<64x128xbf16>
    %c0_3 = arith.constant 0 : index
    %c0_4 = arith.constant 0 : index
    %4 = vector.load %arg4[%c0_3, %c0_4] : memref<64x128xbf16, #tpu.memory_space<vmem>>, vector<64x128xbf16>
    tpu.vector_store %arg4[%c0_3, %c0_4], %3 {strides = array<i32>} : memref<64x128xbf16, #tpu.memory_space<vmem>>, vector<64x128xbf16>,
    %cst_5 = arith.constant dense<0.000000e+00> : vector<128xf32>
    %5 = vector.multi_reduction <add>, %2, %cst_5 [0] : vector<64x128xf32> to vector<128xf32>
    %6 = vector.shape_cast %5 : vector<128xf32> to vector<1x128xf32>
    %cst_6 = arith.constant 1.562500e-02 : f32
    %7 = vector.broadcast %cst_6 : f32 to vector<1x128xf32>
    %8 = arith.mulf %6, %7 : vector<1x128xf32>
    %9 = vector.shape_cast %8 : vector<1x128xf32> to vector<1x1x128xf32>
    %10 = vector.shape_cast %9 : vector<1x1x128xf32> to vector<1x1x128xf32>
    %11 = vector.broadcast %10 : vector<1x1x128xf32> to vector<1x8x128xf32>
    %c0_7 = arith.constant 0 : index
    %c0_8 = arith.constant 0 : index
    %c0_9 = arith.constant 0 : index
    %12 = vector.load %arg5[%c0_7, %c0_8, %c0_9] : memref<1x8x128xf32, #tpu.memory_space<vmem>>, vector<1x8x128xf32>
    tpu.vector_store %arg5[%c0_7, %c0_8, %c0_9], %11 {strides = array<i32>} : memref<1x8x128xf32, #tpu.memory_space<vmem>>, vector<1x8x128xf32>,
    return
  }
  func.func @transform_0(%arg0: i32, %arg1: i32) -> (i32, i32) {
    %c0_i32 = arith.constant 0 : i32
    %c0_i32_0 = arith.constant 0 : i32
    return %arg0, %c0_i32 : i32, i32
  }
  func.func @transform_1(%arg0: i32, %arg1: i32) -> (i32, i32) {
    %c0_i32 = arith.constant 0 : i32
    %c0_i32_0 = arith.constant 0 : i32
    return %c0_i32, %arg1 : i32, i32
  }
  func.func @transform_2(%arg0: i32, %arg1: i32) -> (i32, i32) {
    %c0_i32 = arith.constant 0 : i32
    return %arg0, %arg1 : i32, i32
  }
  func.func @transform_3(%arg0: i32, %arg1: i32) -> (i32, i32, i32) {
    %c0_i32 = arith.constant 0 : i32
    %c0_i32_0 = arith.constant 0 : i32
    return %arg0, %c0_i32, %arg1 : i32, i32, i32
  }
}

module attributes {stable_mosaic.version = 11 : i64} {
  func.func @_conv1_kernel(%arg0: i32, %arg1: i32, %arg2: memref<64x1152xbf16, #tpu.memory_space<vmem>>, %arg3: memref<1152x128xbf16, #tpu.memory_space<vmem>>, %arg4: memref<1x128xf32, #tpu.memory_space<vmem>>, %arg5: memref<1x128xf32, #tpu.memory_space<vmem>>, %arg6: memref<64x128xbf16, #tpu.memory_space<vmem>>) attributes {dimension_semantics = [#tpu.dimension_semantics<parallel>, #tpu.dimension_semantics<parallel>], iteration_bounds = array<i64: 2, 1>, scalar_prefetch = 0 : i64, scratch_operands = 0 : i64, tpu.core_type = #tpu.core_type<tc>, window_params = [{transform_indices = @transform_0, window_bounds = array<i64: 64, 1152>}, {transform_indices = @transform_1, window_bounds = array<i64: 1152, 128>}, {transform_indices = @transform_2, window_bounds = array<i64: 1, 128>}, {transform_indices = @transform_3, window_bounds = array<i64: 1, 128>}, {transform_indices = @transform_4, window_bounds = array<i64: 64, 128>}]} {
    %c0 = arith.constant 0 : index
    %c0_0 = arith.constant 0 : index
    %0 = vector.load %arg2[%c0, %c0_0] : memref<64x1152xbf16, #tpu.memory_space<vmem>>, vector<64x1152xbf16>
    %c0_1 = arith.constant 0 : index
    %c0_2 = arith.constant 0 : index
    %1 = vector.load %arg3[%c0_1, %c0_2] : memref<1152x128xbf16, #tpu.memory_space<vmem>>, vector<1152x128xbf16>
    %cst = arith.constant dense<0.000000e+00> : vector<64x128xf32>
    %2 = tpu.matmul %0, %1, %cst {dimension_numbers = #tpu.dot_dimension_numbers<[1], [0], [0], [1], [0, 0, 1, 1], [], []>} : vector<64x1152xbf16>, vector<1152x128xbf16>, vector<64x128xf32> -> vector<64x128xf32>
    %c0_3 = arith.constant 0 : index
    %c0_4 = arith.constant 0 : index
    %3 = vector.load %arg4[%c0_3, %c0_4] : memref<1x128xf32, #tpu.memory_space<vmem>>, vector<1x128xf32>
    %4 = vector.broadcast %3 : vector<1x128xf32> to vector<64x128xf32>
    %5 = arith.mulf %2, %4 : vector<64x128xf32>
    %c0_5 = arith.constant 0 : index
    %c0_6 = arith.constant 0 : index
    %6 = vector.load %arg5[%c0_5, %c0_6] : memref<1x128xf32, #tpu.memory_space<vmem>>, vector<1x128xf32>
    %7 = vector.broadcast %6 : vector<1x128xf32> to vector<64x128xf32>
    %8 = arith.addf %5, %7 : vector<64x128xf32>
    %cst_7 = arith.constant 0.000000e+00 : f32
    %9 = vector.broadcast %cst_7 : f32 to vector<64x128xf32>
    %10 = arith.maximumf %8, %9 : vector<64x128xf32>
    %11 = arith.truncf %10 : vector<64x128xf32> to vector<64x128xbf16>
    %c0_8 = arith.constant 0 : index
    %c0_9 = arith.constant 0 : index
    %12 = vector.load %arg6[%c0_8, %c0_9] : memref<64x128xbf16, #tpu.memory_space<vmem>>, vector<64x128xbf16>
    tpu.vector_store %arg6[%c0_8, %c0_9], %11 {strides = array<i32>} : memref<64x128xbf16, #tpu.memory_space<vmem>>, vector<64x128xbf16>,
    return
  }
  func.func @transform_0(%arg0: i32, %arg1: i32) -> (i32, i32) {
    %c0_i32 = arith.constant 0 : i32
    %c0_i32_0 = arith.constant 0 : i32
    return %arg0, %c0_i32 : i32, i32
  }
  func.func @transform_1(%arg0: i32, %arg1: i32) -> (i32, i32) {
    %c0_i32 = arith.constant 0 : i32
    %c0_i32_0 = arith.constant 0 : i32
    return %c0_i32, %arg1 : i32, i32
  }
  func.func @transform_2(%arg0: i32, %arg1: i32) -> (i32, i32) {
    %c0_i32 = arith.constant 0 : i32
    %c0_i32_0 = arith.constant 0 : i32
    return %c0_i32, %arg1 : i32, i32
  }
  func.func @transform_3(%arg0: i32, %arg1: i32) -> (i32, i32) {
    %c0_i32 = arith.constant 0 : i32
    %c0_i32_0 = arith.constant 0 : i32
    return %c0_i32, %arg1 : i32, i32
  }
  func.func @transform_4(%arg0: i32, %arg1: i32) -> (i32, i32) {
    %c0_i32 = arith.constant 0 : i32
    return %arg0, %arg1 : i32, i32
  }
}

module attributes {stable_mosaic.version = 11 : i64} {
  func.func @_scale_add_kernel(%arg0: i32, %arg1: i32, %arg2: memref<1x64x128xbf16, #tpu.memory_space<vmem>>, %arg3: memref<1x1x128xf32, #tpu.memory_space<vmem>>, %arg4: memref<1x64x128xf32, #tpu.memory_space<vmem>>, %arg5: memref<1x64x128xf32, #tpu.memory_space<vmem>>) attributes {dimension_semantics = [#tpu.dimension_semantics<parallel>, #tpu.dimension_semantics<parallel>], iteration_bounds = array<i64: 2, 1>, scalar_prefetch = 0 : i64, scratch_operands = 0 : i64, tpu.core_type = #tpu.core_type<tc>, window_params = [{transform_indices = @transform_0, window_bounds = array<i64: 1, 64, 128>}, {transform_indices = @transform_1, window_bounds = array<i64: 1, 1, 128>}, {transform_indices = @transform_2, window_bounds = array<i64: 1, 64, 128>}, {transform_indices = @transform_3, window_bounds = array<i64: 1, 64, 128>}]} {
    %c0 = arith.constant 0 : index
    %c0_0 = arith.constant 0 : index
    %c0_1 = arith.constant 0 : index
    %0 = vector.load %arg2[%c0, %c0_0, %c0_1] : memref<1x64x128xbf16, #tpu.memory_space<vmem>>, vector<1x64x128xbf16>
    %1 = arith.extf %0 : vector<1x64x128xbf16> to vector<1x64x128xf32>
    %c0_2 = arith.constant 0 : index
    %c0_3 = arith.constant 0 : index
    %c0_4 = arith.constant 0 : index
    %2 = vector.load %arg3[%c0_2, %c0_3, %c0_4] : memref<1x1x128xf32, #tpu.memory_space<vmem>>, vector<1x1x128xf32>
    %3 = vector.broadcast %2 : vector<1x1x128xf32> to vector<1x64x128xf32>
    %4 = arith.mulf %1, %3 : vector<1x64x128xf32>
    %c0_5 = arith.constant 0 : index
    %c0_6 = arith.constant 0 : index
    %c0_7 = arith.constant 0 : index
    %5 = vector.load %arg4[%c0_5, %c0_6, %c0_7] : memref<1x64x128xf32, #tpu.memory_space<vmem>>, vector<1x64x128xf32>
    %6 = arith.addf %4, %5 : vector<1x64x128xf32>
    %c0_8 = arith.constant 0 : index
    %c0_9 = arith.constant 0 : index
    %c0_10 = arith.constant 0 : index
    %7 = vector.load %arg5[%c0_8, %c0_9, %c0_10] : memref<1x64x128xf32, #tpu.memory_space<vmem>>, vector<1x64x128xf32>
    tpu.vector_store %arg5[%c0_8, %c0_9, %c0_10], %6 {strides = array<i32>} : memref<1x64x128xf32, #tpu.memory_space<vmem>>, vector<1x64x128xf32>,
    return
  }
  func.func @transform_0(%arg0: i32, %arg1: i32) -> (i32, i32, i32) {
    %c0_i32 = arith.constant 0 : i32
    %c0_i32_0 = arith.constant 0 : i32
    return %arg0, %arg1, %c0_i32 : i32, i32, i32
  }
  func.func @transform_1(%arg0: i32, %arg1: i32) -> (i32, i32, i32) {
    %c0_i32 = arith.constant 0 : i32
    %c0_i32_0 = arith.constant 0 : i32
    %c0_i32_1 = arith.constant 0 : i32
    return %arg0, %c0_i32, %c0_i32_0 : i32, i32, i32
  }
  func.func @transform_2(%arg0: i32, %arg1: i32) -> (i32, i32, i32) {
    %c0_i32 = arith.constant 0 : i32
    %c0_i32_0 = arith.constant 0 : i32
    return %arg0, %arg1, %c0_i32 : i32, i32, i32
  }
  func.func @transform_3(%arg0: i32, %arg1: i32) -> (i32, i32, i32) {
    %c0_i32 = arith.constant 0 : i32
    %c0_i32_0 = arith.constant 0 : i32
    return %arg0, %arg1, %c0_i32 : i32, i32, i32
  }
}

module attributes {stable_mosaic.version = 11 : i64} {
  func.func @_scale_add_kernel(%arg0: i32, %arg1: i32, %arg2: memref<1x64x128xbf16, #tpu.memory_space<vmem>>, %arg3: memref<1x1x128xf32, #tpu.memory_space<vmem>>, %arg4: memref<1x64x128xf32, #tpu.memory_space<vmem>>, %arg5: memref<1x64x128xf32, #tpu.memory_space<vmem>>) attributes {dimension_semantics = [#tpu.dimension_semantics<parallel>, #tpu.dimension_semantics<parallel>], iteration_bounds = array<i64: 2, 1>, scalar_prefetch = 0 : i64, scratch_operands = 0 : i64, tpu.core_type = #tpu.core_type<tc>, window_params = [{transform_indices = @transform_0, window_bounds = array<i64: 1, 64, 128>}, {transform_indices = @transform_1, window_bounds = array<i64: 1, 1, 128>}, {transform_indices = @transform_2, window_bounds = array<i64: 1, 64, 128>}, {transform_indices = @transform_3, window_bounds = array<i64: 1, 64, 128>}]} {
    %c0 = arith.constant 0 : index
    %c0_0 = arith.constant 0 : index
    %c0_1 = arith.constant 0 : index
    %0 = vector.load %arg2[%c0, %c0_0, %c0_1] : memref<1x64x128xbf16, #tpu.memory_space<vmem>>, vector<1x64x128xbf16>
    %1 = arith.extf %0 : vector<1x64x128xbf16> to vector<1x64x128xf32>
    %c0_2 = arith.constant 0 : index
    %c0_3 = arith.constant 0 : index
    %c0_4 = arith.constant 0 : index
    %2 = vector.load %arg3[%c0_2, %c0_3, %c0_4] : memref<1x1x128xf32, #tpu.memory_space<vmem>>, vector<1x1x128xf32>
    %3 = vector.broadcast %2 : vector<1x1x128xf32> to vector<1x64x128xf32>
    %4 = arith.mulf %1, %3 : vector<1x64x128xf32>
    %c0_5 = arith.constant 0 : index
    %c0_6 = arith.constant 0 : index
    %c0_7 = arith.constant 0 : index
    %5 = vector.load %arg4[%c0_5, %c0_6, %c0_7] : memref<1x64x128xf32, #tpu.memory_space<vmem>>, vector<1x64x128xf32>
    %6 = arith.addf %4, %5 : vector<1x64x128xf32>
    %c0_8 = arith.constant 0 : index
    %c0_9 = arith.constant 0 : index
    %c0_10 = arith.constant 0 : index
    %7 = vector.load %arg5[%c0_8, %c0_9, %c0_10] : memref<1x64x128xf32, #tpu.memory_space<vmem>>, vector<1x64x128xf32>
    tpu.vector_store %arg5[%c0_8, %c0_9, %c0_10], %6 {strides = array<i32>} : memref<1x64x128xf32, #tpu.memory_space<vmem>>, vector<1x64x128xf32>,
    return
  }
  func.func @transform_0(%arg0: i32, %arg1: i32) -> (i32, i32, i32) {
    %c0_i32 = arith.constant 0 : i32
    %c0_i32_0 = arith.constant 0 : i32
    return %arg0, %arg1, %c0_i32 : i32, i32, i32
  }
  func.func @transform_1(%arg0: i32, %arg1: i32) -> (i32, i32, i32) {
    %c0_i32 = arith.constant 0 : i32
    %c0_i32_0 = arith.constant 0 : i32
    %c0_i32_1 = arith.constant 0 : i32
    return %arg0, %c0_i32, %c0_i32_0 : i32, i32, i32
  }
  func.func @transform_2(%arg0: i32, %arg1: i32) -> (i32, i32, i32) {
    %c0_i32 = arith.constant 0 : i32
    %c0_i32_0 = arith.constant 0 : i32
    return %arg0, %arg1, %c0_i32 : i32, i32, i32
  }
  func.func @transform_3(%arg0: i32, %arg1: i32) -> (i32, i32, i32) {
    %c0_i32 = arith.constant 0 : i32
    %c0_i32_0 = arith.constant 0 : i32
    return %arg0, %arg1, %c0_i32 : i32, i32, i32
  }
}

</mosaic_0001>

<llo_original>
// kernel: run.15
$region0: #{run.15}
  #allocation0 [shape = 'u32[]', space=smem, size = 0x4, offset = 0x4, fixed_abs, tag = 'smem constant byte address 0x4 - core index']
  #allocation1 [shape = 'u32[144,128]{1,0:T(1,128)}', space=vmem, size = 0x12000, scoped, tag = 'internal scratch']
  %s0 = inlined_call_operand.vmem [shape: f32[128,128], index: 0, kind: input, shape index: {}]
  %s1 = inlined_call_operand.vmem [shape: f32[1,128], index: 1, kind: input, shape index: {}]
  %s2 = inlined_call_operand.vmem [shape: f32[1,128], index: 2, kind: input, shape index: {}]
  %s3 = inlined_call_operand.vmem [shape: bf16[128,128], index: 3, kind: output, shape index: {}]
  %s4 = sld [smem:[#allocation0]]
  $region22: #{run.15} parent=0
    _
  %s6 = ssub.s32 1, %s4
  %s7 = scalar_select 0, %s6, %s4
  // Predicated region
  $region2: #{run.15} parent=0 // pred_check
    _
  $region3: #{run.15} parent=0 // pred_check_branch
    %9 = sbr.rel (0) target = $region5
  $region4: #{run.15} parent=0 // pred_region
    _
  $region5: #{run.15} parent=0 // pred_fallthru
    _
  // Predicated region
  $region6: #{run.15} parent=0 // pred_check
    _
  $region7: #{run.15} parent=0 // pred_check_branch
    %11 = sbr.rel (0) target = $region9
  $region8: #{run.15} parent=0 // pred_region
    _
  $region9: #{run.15} parent=0 // pred_fallthru
    _
  // Predicated region
  $region10: #{run.15} parent=0 // pred_check
    _
  $region11: #{run.15} parent=0 // pred_check_branch
    %13 = sbr.rel (0) target = $region13
  $region12: #{run.15} parent=0 // pred_region
    _
  $region13: #{run.15} parent=0 // pred_fallthru
    _
  %v14 = vld [vmem:[%s0] sm:$0xff]
  %v15 = vld [vmem:[%s0 + $0x8] sm:$0xff]
  %v16 = vld [vmem:[%s0 + $0x10] sm:$0xff]
  %v17 = vld [vmem:[%s0 + $0x18] sm:$0xff]
  %v18 = vld [vmem:[%s0 + $0x20] sm:$0xff]
  %v19 = vld [vmem:[%s0 + $0x28] sm:$0xff]
  %v20 = vld [vmem:[%s0 + $0x30] sm:$0xff]
  %v21 = vld [vmem:[%s0 + $0x38] sm:$0xff]
  %v22 = vld [vmem:[%s0 + $0x40] sm:$0xff]
  %v23 = vld [vmem:[%s0 + $0x48] sm:$0xff]
  %v24 = vld [vmem:[%s0 + $0x50] sm:$0xff]
  %v25 = vld [vmem:[%s0 + $0x58] sm:$0xff]
  %v26 = vld [vmem:[%s0 + $0x60] sm:$0xff]
  %v27 = vld [vmem:[%s0 + $0x68] sm:$0xff]
  %v28 = vld [vmem:[%s0 + $0x70] sm:$0xff]
  %v29 = vld [vmem:[%s0 + $0x78] sm:$0xff]
  %v30 = vld [vmem:[%s1] sm:$0x1]
  %v32 = vlaneseq
  %v33 = vshrl.u32 %v32, 7
  %v34 = vsub.s32 0, %v33
  %v35 = vrot.slane %v30, %v34
  %v37 = vmul.f32 %v14, %v35
  %v38 = vmul.f32 %v15, %v35
  %v39 = vmul.f32 %v16, %v35
  %v40 = vmul.f32 %v17, %v35
  %v41 = vmul.f32 %v18, %v35
  %v42 = vmul.f32 %v19, %v35
  %v43 = vmul.f32 %v20, %v35
  %v44 = vmul.f32 %v21, %v35
  %v45 = vmul.f32 %v22, %v35
  %v46 = vmul.f32 %v23, %v35
  %v47 = vmul.f32 %v24, %v35
  %v48 = vmul.f32 %v25, %v35
  %v49 = vmul.f32 %v26, %v35
  %v50 = vmul.f32 %v27, %v35
  %v51 = vmul.f32 %v28, %v35
  %v52 = vmul.f32 %v29, %v35
  %v53 = vld [vmem:[%s2] sm:$0x1]
  %v55 = vlaneseq
  %v56 = vshrl.u32 %v55, 7
  %v57 = vsub.s32 0, %v56
  %v58 = vrot.slane %v53, %v57
  %v60 = vadd.f32 %v37, %v58
  %v61 = vadd.f32 %v38, %v58
  %v62 = vadd.f32 %v39, %v58
  %v63 = vadd.f32 %v40, %v58
  %v64 = vadd.f32 %v41, %v58
  %v65 = vadd.f32 %v42, %v58
  %v66 = vadd.f32 %v43, %v58
  %v67 = vadd.f32 %v44, %v58
  %v68 = vadd.f32 %v45, %v58
  %v69 = vadd.f32 %v46, %v58
  %v70 = vadd.f32 %v47, %v58
  %v71 = vadd.f32 %v48, %v58
  %v72 = vadd.f32 %v49, %v58
  %v73 = vadd.f32 %v50, %v58
  %v74 = vadd.f32 %v51, %v58
  %v75 = vadd.f32 %v52, %v58
  %v76 = vmax.f32 %v60, 0.0
  %v77 = vmax.f32 %v61, 0.0
  %v78 = vmax.f32 %v62, 0.0
  %v79 = vmax.f32 %v63, 0.0
  %v80 = vmax.f32 %v64, 0.0
  %v81 = vmax.f32 %v65, 0.0
  %v82 = vmax.f32 %v66, 0.0
  %v83 = vmax.f32 %v67, 0.0
  %v84 = vmax.f32 %v68, 0.0
  %v85 = vmax.f32 %v69, 0.0
  %v86 = vmax.f32 %v70, 0.0
  %v87 = vmax.f32 %v71, 0.0
  %v88 = vmax.f32 %v72, 0.0
  %v89 = vmax.f32 %v73, 0.0
  %v90 = vmax.f32 %v74, 0.0
  %v91 = vmax.f32 %v75, 0.0
  %v92 = vpack.c.bf16 %v77, %v76
  %v93 = vpack.c.bf16 %v79, %v78
  %v94 = vpack.c.bf16 %v81, %v80
  %v95 = vpack.c.bf16 %v83, %v82
  %v96 = vpack.c.bf16 %v85, %v84
  %v97 = vpack.c.bf16 %v87, %v86
  %v98 = vpack.c.bf16 %v89, %v88
  %v99 = vpack.c.bf16 %v91, %v90
  %v108 = vunpack.c.l.b16 %v92
  %v109 = vunpack.c.h.b16 %v92
  %v110 = vunpack.c.l.b16 %v93
  %v111 = vunpack.c.h.b16 %v93
  %v112 = vunpack.c.l.b16 %v94
  %v113 = vunpack.c.h.b16 %v94
  %v114 = vunpack.c.l.b16 %v95
  %v115 = vunpack.c.h.b16 %v95
  %v116 = vunpack.c.l.b16 %v96
  %v117 = vunpack.c.h.b16 %v96
  %v118 = vunpack.c.l.b16 %v97
  %v119 = vunpack.c.h.b16 %v97
  %v120 = vunpack.c.l.b16 %v98
  %v121 = vunpack.c.h.b16 %v98
  %v122 = vunpack.c.l.b16 %v99
  %v123 = vunpack.c.h.b16 %v99
  %v124 = vpack.c.b16 %v108, %v108
  %v125 = vpack.c.b16 %v109, %v109
  %v126 = vpack.c.b16 %v110, %v110
  %v127 = vpack.c.b16 %v111, %v111
  %v128 = vpack.c.b16 %v112, %v112
  %v129 = vpack.c.b16 %v113, %v113
  %v130 = vpack.c.b16 %v114, %v114
  %v131 = vpack.c.b16 %v115, %v115
  %v132 = vpack.c.b16 %v116, %v116
  %v133 = vpack.c.b16 %v117, %v117
  %v134 = vpack.c.b16 %v118, %v118
  %v135 = vpack.c.b16 %v119, %v119
  %v136 = vpack.c.b16 %v120, %v120
  %v137 = vpack.c.b16 %v121, %v121
  %v138 = vpack.c.b16 %v122, %v122
  %v139 = vpack.c.b16 %v123, %v123
  %156 = vst [vmem:[%s3] sm:$0xf] %v124
  %157 = vst [vmem:[%s3 + $0x4] sm:$0xf] %v125
  %158 = vst [vmem:[%s3 + $0x8] sm:$0xf] %v126
  %159 = vst [vmem:[%s3 + $0xc] sm:$0xf] %v127
  %160 = vst [vmem:[%s3 + $0x10] sm:$0xf] %v128
  %161 = vst [vmem:[%s3 + $0x14] sm:$0xf] %v129
  %162 = vst [vmem:[%s3 + $0x18] sm:$0xf] %v130
  %163 = vst [vmem:[%s3 + $0x1c] sm:$0xf] %v131
  %164 = vst [vmem:[%s3 + $0x20] sm:$0xf] %v132
  %165 = vst [vmem:[%s3 + $0x24] sm:$0xf] %v133
  %166 = vst [vmem:[%s3 + $0x28] sm:$0xf] %v134
  %167 = vst [vmem:[%s3 + $0x2c] sm:$0xf] %v135
  %168 = vst [vmem:[%s3 + $0x30] sm:$0xf] %v136
  %169 = vst [vmem:[%s3 + $0x34] sm:$0xf] %v137
  %170 = vst [vmem:[%s3 + $0x38] sm:$0xf] %v138
  %171 = vst [vmem:[%s3 + $0x3c] sm:$0xf] %v139
  // Predicated region
  $region14: #{run.15} parent=0 // pred_check
    _
  $region15: #{run.15} parent=0 // pred_check_branch
    %173 = sbr.rel (0) target = $region17
  $region16: #{run.15} parent=0 // pred_region
    _
  $region17: #{run.15} parent=0 // pred_fallthru
    _
  // Predicated region
  $region18: #{run.15} parent=0 // pred_check
    _
  $region19: #{run.15} parent=0 // pred_check_branch
    %175 = sbr.rel (0) target = $region21
  $region20: #{run.15} parent=0 // pred_region
    _
  $region21: #{run.15} parent=0 // pred_fallthru
    _

// kernel: run.16
$region0: #{run.16}
  #allocation0 [shape = 'u32[]', space=smem, size = 0x4, offset = 0x4, fixed_abs, tag = 'smem constant byte address 0x4 - core index']
  #allocation1 [shape = 'u32[144,128]{1,0:T(1,128)}', space=vmem, size = 0x12000, scoped, tag = 'internal scratch']
  %s0 = inlined_call_operand.vmem [shape: bf16[512,384], index: 0, kind: input, shape index: {}]
  %s1 = inlined_call_operand.vmem [shape: bf16[384,128], index: 1, kind: input, shape index: {}]
  %s2 = inlined_call_operand.vmem [shape: f32[1,128], index: 2, kind: input, shape index: {}]
  %s3 = inlined_call_operand.vmem [shape: f32[1,128], index: 3, kind: input, shape index: {}]
  %s4 = inlined_call_operand.vmem [shape: bf16[384,128], index: 4, kind: input, shape index: {}]
  %s5 = inlined_call_operand.vmem [shape: bf16[512,128], index: 5, kind: output, shape index: {0}]
  %s6 = inlined_call_operand.vmem [shape: f32[512,128], index: 6, kind: output, shape index: {1}]
  %7 = xla_tuple %s5, %s6
  %s8 = sld [smem:[#allocation0]]
  $region61: #{run.16} parent=0
    _
  %s10 = ssub.s32 1, %s8
  %s11 = scalar_select 0, %s10, %s8
  loop: start=0, step=1, limit=4
  $region2: #{run.16} parent=0 // loop_pre_header
    _
  $region3: #{run.16} parent=0 // loop_header
    %s13 = sphi 0, %s17
    %p14 = scmp.ge.s32.totalorder %s13, 4
    %s20 = sphi 0, %s32
    %s21 = sphi 0, %s28
    %s22 = sphi 0, %s20
    %s23 = sphi 0, %s21
    %s24 = sphi 0, %s22
    %s25 = sphi 0, %s23
    %s35 = sphi 0, %s37
    %s38 = sphi 0, %s35
    %s39 = sphi 0, %s38
    %s55 = sphi 0, %s39
    %s61 = sphi 0, %s63
    %s64 = sphi 0, %s61
    %s65 = sphi 0, %s64
    %s81 = sphi 0, %s65
    %s87 = sphi 0, %s89
    %s90 = sphi 0, %s87
    %s91 = sphi 0, %s90
    %s107 = sphi 0, %s91
    %s113 = sphi 0, %s115
    %s116 = sphi 0, %s113
    %s117 = sphi 0, %s116
    %s133 = sphi 0, %s117
    %s139 = sphi 0, %s141
    %s142 = sphi 0, %s139
    %s143 = sphi 0, %s142
    %s159 = sphi 0, %s143
    %s167 = sphi 0, %s169
    %s170 = sphi 0, %s167
    %s171 = sphi 0, %s170
    %s187 = sphi 0, %s171
    %s195 = sphi 0, %s197
    %s198 = sphi 0, %s195
    %s199 = sphi 0, %s198
    %s215 = sphi 0, %s199
  $region4: #{run.16} parent=0 // loop_header_branch
    %16 = sbr.rel (%p14) target = $region8
  $region5: #{run.16} parent=0 // loop_body
    %s18 = ssub.s32 %s13, 1
    %s19 = ssub.s32 %s13, 2
    %s26 = sadd.s32 1, %s21
    %p27 = scmp.ge.s32.totalorder %s26, 1
    %s28 = scalar_select %p27, 0, %s26
    %s29 = sadd.s32 1, %s20
    %s30 = scalar_select %p27, %s29, %s20
    %p31 = scmp.ge.s32.totalorder %s30, 2
    %s32 = scalar_select %p31, 0, %s30
    %s33 = ssub.s32 %s20, %s32
    %p34 = scmp.eq.s32.totalorder %s33, 0
    %s36 = sadd.s32 %s35, 1
    %s37 = scalar_select %p34, %s35, %s36
    %p40 = pneg %p34
    %p41 = scmp.eq.s32.totalorder %s13, 1
    %p42 = por %p40, %p41
    %p43 = scmp.ne.s32.totalorder %s35, %s38
    %p44 = scmp.eq.s32.totalorder %s13, 0
    %p45 = por %p43, %p44
    %p46 = scmp.ne.s32.totalorder %s35, %s38
    %p47 = scmp.eq.s32.totalorder %s18, 1
    %p48 = por %p46, %p47
    %p49 = scmp.ne.s32.totalorder %s38, %s39
    %p50 = scmp.eq.s32.totalorder %s18, 0
    %p51 = por %p49, %p50
    %p52 = scmp.ne.s32.totalorder %s38, %s39
    %p53 = scmp.eq.s32.totalorder %s19, 1
    %p54 = por %p52, %p53
    %p56 = scmp.ne.s32.totalorder %s39, %s55
    %p57 = scmp.eq.s32.totalorder %s19, 0
    %p58 = por %p56, %p57
    %s59 = ssub.s32 %s21, %s28
    %p60 = scmp.eq.s32.totalorder %s59, 0
    %s62 = sadd.s32 %s61, 1
    %s63 = scalar_select %p60, %s61, %s62
    %p66 = pneg %p60
    %p67 = scmp.eq.s32.totalorder %s13, 1
    %p68 = por %p66, %p67
    %p69 = scmp.ne.s32.totalorder %s61, %s64
    %p70 = scmp.eq.s32.totalorder %s13, 0
    %p71 = por %p69, %p70
    %p72 = scmp.ne.s32.totalorder %s61, %s64
    %p73 = scmp.eq.s32.totalorder %s18, 1
    %p74 = por %p72, %p73
    %p75 = scmp.ne.s32.totalorder %s64, %s65
    %p76 = scmp.eq.s32.totalorder %s18, 0
    %p77 = por %p75, %p76
    %p78 = scmp.ne.s32.totalorder %s64, %s65
    %p79 = scmp.eq.s32.totalorder %s19, 1
    %p80 = por %p78, %p79
    %p82 = scmp.ne.s32.totalorder %s65, %s81
    %p83 = scmp.eq.s32.totalorder %s19, 0
    %p84 = por %p82, %p83
    %s85 = ssub.s32 %s21, %s28
    %p86 = scmp.eq.s32.totalorder %s85, 0
    %s88 = sadd.s32 %s87, 1
    %s89 = scalar_select %p86, %s87, %s88
    %p92 = pneg %p86
    %p93 = scmp.eq.s32.totalorder %s13, 1
    %p94 = por %p92, %p93
    %p95 = scmp.ne.s32.totalorder %s87, %s90
    %p96 = scmp.eq.s32.totalorder %s13, 0
    %p97 = por %p95, %p96
    %p98 = scmp.ne.s32.totalorder %s87, %s90
    %p99 = scmp.eq.s32.totalorder %s18, 1
    %p100 = por %p98, %p99
    %p101 = scmp.ne.s32.totalorder %s90, %s91
    %p102 = scmp.eq.s32.totalorder %s18, 0
    %p103 = por %p101, %p102
    %p104 = scmp.ne.s32.totalorder %s90, %s91
    %p105 = scmp.eq.s32.totalorder %s19, 1
    %p106 = por %p104, %p105
    %p108 = scmp.ne.s32.totalorder %s91, %s107
    %p109 = scmp.eq.s32.totalorder %s19, 0
    %p110 = por %p108, %p109
    %s111 = ssub.s32 %s21, %s28
    %p112 = scmp.eq.s32.totalorder %s111, 0
    %s114 = sadd.s32 %s113, 1
    %s115 = scalar_select %p112, %s113, %s114
    %p118 = pneg %p112
    %p119 = scmp.eq.s32.totalorder %s13, 1
    %p120 = por %p118, %p119
    %p121 = scmp.ne.s32.totalorder %s113, %s116
    %p122 = scmp.eq.s32.totalorder %s13, 0
    %p123 = por %p121, %p122
    %p124 = scmp.ne.s32.totalorder %s113, %s116
    %p125 = scmp.eq.s32.totalorder %s18, 1
    %p126 = por %p124, %p125
    %p127 = scmp.ne.s32.totalorder %s116, %s117
    %p128 = scmp.eq.s32.totalorder %s18, 0
    %p129 = por %p127, %p128
    %p130 = scmp.ne.s32.totalorder %s116, %s117
    %p131 = scmp.eq.s32.totalorder %s19, 1
    %p132 = por %p130, %p131
    %p134 = scmp.ne.s32.totalorder %s117, %s133
    %p135 = scmp.eq.s32.totalorder %s19, 0
    %p136 = por %p134, %p135
    %s137 = ssub.s32 %s21, %s28
    %p138 = scmp.eq.s32.totalorder %s137, 0
    %s140 = sadd.s32 %s139, 1
    %s141 = scalar_select %p138, %s139, %s140
    %p144 = pneg %p138
    %p145 = scmp.eq.s32.totalorder %s13, 1
    %p146 = por %p144, %p145
    %p147 = scmp.ne.s32.totalorder %s139, %s142
    %p148 = scmp.eq.s32.totalorder %s13, 0
    %p149 = por %p147, %p148
    %p150 = scmp.ne.s32.totalorder %s139, %s142
    %p151 = scmp.eq.s32.totalorder %s18, 1
    %p152 = por %p150, %p151
    %p153 = scmp.ne.s32.totalorder %s142, %s143
    %p154 = scmp.eq.s32.totalorder %s18, 0
    %p155 = por %p153, %p154
    %p156 = scmp.ne.s32.totalorder %s142, %s143
    %p157 = scmp.eq.s32.totalorder %s19, 1
    %p158 = por %p156, %p157
    %p160 = scmp.ne.s32.totalorder %s143, %s159
    %p161 = scmp.eq.s32.totalorder %s19, 0
    %p162 = por %p160, %p161
    %s163 = ssub.s32 %s20, %s32
    %s164 = ssub.s32 %s21, %s28
    %s165 = sor.u32 %s163, %s164
    %p166 = scmp.eq.s32.totalorder %s165, 0
    %s168 = sadd.s32 %s167, 1
    %s169 = scalar_select %p166, %s167, %s168
    %p172 = pneg %p166
    %p173 = scmp.eq.s32.totalorder %s13, 1
    %p174 = por %p172, %p173
    %p175 = scmp.ne.s32.totalorder %s167, %s170
    %p176 = scmp.eq.s32.totalorder %s13, 0
    %p177 = por %p175, %p176
    %p178 = scmp.ne.s32.totalorder %s167, %s170
    %p179 = scmp.eq.s32.totalorder %s18, 1
    %p180 = por %p178, %p179
    %p181 = scmp.ne.s32.totalorder %s170, %s171
    %p182 = scmp.eq.s32.totalorder %s18, 0
    %p183 = por %p181, %p182
    %p184 = scmp.ne.s32.totalorder %s170, %s171
    %p185 = scmp.eq.s32.totalorder %s19, 1
    %p186 = por %p184, %p185
    %p188 = scmp.ne.s32.totalorder %s171, %s187
    %p189 = scmp.eq.s32.totalorder %s19, 0
    %p190 = por %p188, %p189
    %s191 = ssub.s32 %s20, %s32
    %s192 = ssub.s32 %s21, %s28
    %s193 = sor.u32 %s191, %s192
    %p194 = scmp.eq.s32.totalorder %s193, 0
    %s196 = sadd.s32 %s195, 1
    %s197 = scalar_select %p194, %s195, %s196
    %p200 = pneg %p194
    %p201 = scmp.eq.s32.totalorder %s13, 1
    %p202 = por %p200, %p201
    %p203 = scmp.ne.s32.totalorder %s195, %s198
    %p204 = scmp.eq.s32.totalorder %s13, 0
    %p205 = por %p203, %p204
    %p206 = scmp.ne.s32.totalorder %s195, %s198
    %p207 = scmp.eq.s32.totalorder %s18, 1
    %p208 = por %p206, %p207
    %p209 = scmp.ne.s32.totalorder %s198, %s199
    %p210 = scmp.eq.s32.totalorder %s18, 0
    %p211 = por %p209, %p210
    %p212 = scmp.ne.s32.totalorder %s198, %s199
    %p213 = scmp.eq.s32.totalorder %s19, 1
    %p214 = por %p212, %p213
    %p216 = scmp.ne.s32.totalorder %s199, %s215
    %p217 = scmp.eq.s32.totalorder %s19, 0
    %p218 = por %p216, %p217
    %p219 = scmp.le.s32.totalorder 1, %s13
    %p220 = scmp.lt.s32.totalorder %s13, 3
    %p221 = pnand %p219, %p220
    %p222 = pneg %p221
    // Predicated region
    $region9: #{run.16} parent=5 // pred_check
      _
    $region10: #{run.16} parent=5 // pred_check_branch
      %224 = sbr.rel (%p221) target = $region12
    $region11: #{run.16} parent=5 // pred_region
      %s225 = ssub.s32 %s13, 1
      // Predicated region
      $region13: #{run.16} parent=11 // pred_check
        %p226 = pneg %p77
      $region14: #{run.16} parent=11 // pred_check_branch
        %228 = sbr.rel (%p226) target = $region16
      $region15: #{run.16} parent=11 // pred_region
        %p229 = scmp.lt.s32.totalorder %s23, 0
        %s230 = scalar_select %p229, %s23, 0
        %s231 = smul.addr %s230, 4
        %s232 = scalar_lea.vmem %s1, %s231
      $region16: #{run.16} parent=11 // pred_fallthru
        _
      // Predicated region
      $region17: #{run.16} parent=11 // pred_check
        %p233 = pneg %p103
      $region18: #{run.16} parent=11 // pred_check_branch
        %235 = sbr.rel (%p233) target = $region20
      $region19: #{run.16} parent=11 // pred_region
        %p236 = scmp.lt.s32.totalorder %s23, 0
        %s237 = scalar_select %p236, %s23, 0
        %s238 = scalar_lea.vmem %s2, %s237
      $region20: #{run.16} parent=11 // pred_fallthru
        _
      // Predicated region
      $region21: #{run.16} parent=11 // pred_check
        %p239 = pneg %p129
      $region22: #{run.16} parent=11 // pred_check_branch
        %241 = sbr.rel (%p239) target = $region24
      $region23: #{run.16} parent=11 // pred_region
        %p242 = scmp.lt.s32.totalorder %s23, 0
        %s243 = scalar_select %p242, %s23, 0
        %s244 = scalar_lea.vmem %s3, %s243
      $region24: #{run.16} parent=11 // pred_fallthru
        _
      // Predicated region
      $region25: #{run.16} parent=11 // pred_check
        %p245 = pneg %p155
      $region26: #{run.16} parent=11 // pred_check_branch
        %247 = sbr.rel (%p245) target = $region28
      $region27: #{run.16} parent=11 // pred_region
        %p248 = scmp.lt.s32.totalorder %s23, 0
        %s249 = scalar_select %p248, %s23, 0
        %s250 = smul.addr %s249, 4
        %s251 = scalar_lea.vmem %s4, %s250
      $region28: #{run.16} parent=11 // pred_fallthru
        _
    $region12: #{run.16} parent=5 // pred_fallthru
      _
    %p252 = scmp.lt.s32.totalorder %s13, 2
    // Predicated region
    $region29: #{run.16} parent=5 // pred_check
      %p253 = pneg %p252
    $region30: #{run.16} parent=5 // pred_check_branch
      %255 = sbr.rel (%p253) target = $region32
    $region31: #{run.16} parent=5 // pred_region
      // Predicated region
      $region33: #{run.16} parent=31 // pred_check
        %p256 = pneg %p45
      $region34: #{run.16} parent=31 // pred_check_branch
        %258 = sbr.rel (%p256) target = $region36
      $region35: #{run.16} parent=31 // pred_region
        %s259 = smul.u32 32, %s20
        %p260 = scmp.lt.s32.totalorder %s259, 63
        %s261 = scalar_select %p260, %s259, 63
        %s262 = smul.addr %s261, 3
        %s263 = smul.addr %s262, 4
        %s264 = scalar_lea.vmem %s0, %s263
        %s265 = smul.u32 32, %s20
      $region36: #{run.16} parent=31 // pred_fallthru
        _
    $region32: #{run.16} parent=5 // pred_fallthru
      _
    %p266 = scmp.le.s32.totalorder 1, %s13
    %p267 = scmp.lt.s32.totalorder %s13, 3
    %p268 = pnand %p266, %p267
    %p269 = pneg %p268
    // Predicated region
    $region37: #{run.16} parent=5 // pred_check
      _
    $region38: #{run.16} parent=5 // pred_check_branch
      %271 = sbr.rel (%p268) target = $region40
    $region39: #{run.16} parent=5 // pred_region
      %s272 = ssub.s32 %s13, 1
      %s273 = smul.u32 32, %s22
      %p274 = scmp.lt.s32.totalorder %s273, 63
      %s275 = scalar_select %p274, %s273, 63
      %s276 = smul.addr %s275, 3
      %s277 = smul.addr %s276, 4
      %s278 = scalar_lea.vmem %s0, %s277
      %p279 = pneg %p51
      %p280 = pneg %p48
      %p281 = scmp.lt.s32.totalorder %s23, 0
      %s282 = scalar_select %p281, %s23, 0
      %s283 = smul.addr %s282, 4
      %s284 = scalar_lea.vmem %s1, %s283
      %p285 = pneg %p77
      %p286 = pneg %p74
      %p287 = scmp.lt.s32.totalorder %s23, 0
      %s288 = scalar_select %p287, %s23, 0
      %s289 = scalar_lea.vmem %s2, %s288
      %p290 = pneg %p103
      %p291 = pneg %p100
      %p292 = scmp.lt.s32.totalorder %s23, 0
      %s293 = scalar_select %p292, %s23, 0
      %s294 = scalar_lea.vmem %s3, %s293
      %p295 = pneg %p129
      %p296 = pneg %p126
      %p297 = scmp.lt.s32.totalorder %s23, 0
      %s298 = scalar_select %p297, %s23, 0
      %s299 = smul.addr %s298, 4
      %s300 = scalar_lea.vmem %s4, %s299
      %p301 = pneg %p155
      %p302 = pneg %p152
      %p303 = pneg %p183
      %p304 = pneg %p180
      %s305 = smul.u32 32, %s22
      %p306 = scmp.lt.s32.totalorder %s305, 63
      %s307 = scalar_select %p306, %s305, 63
      %p308 = scmp.lt.s32.totalorder %s23, 0
      %s309 = scalar_select %p308, %s23, 0
      %s310 = sadd.s32 %s309, %s307
      %s311 = smul.addr %s310, 4
      %s312 = scalar_lea.vmem %s5, %s311
      %p313 = pneg %p211
      %p314 = pneg %p208
      %s315 = smul.u32 32, %s22
      %p316 = scmp.lt.s32.totalorder %s315, 63
      %s317 = scalar_select %p316, %s315, 63
      %p318 = scmp.lt.s32.totalorder %s23, 0
      %s319 = scalar_select %p318, %s23, 0
      %s320 = sadd.s32 %s319, %s317
      %s321 = smul.addr %s320, 8
      %s322 = scalar_lea.vmem %s6, %s321
      %s323 = smul.u32 32, %s22
      %p324 = scmp.lt.s32.totalorder %s323, 63
      %s325 = scalar_select %p324, %s323, 63
      %s326 = smul.addr %s325, 3
      %s327 = smul.addr %s326, 4
      %s328 = scalar_lea.vmem %s0, %s327
      %s329 = smul.u32 32, %s22
      %p330 = scmp.lt.s32.totalorder %s23, 0
      %s331 = scalar_select %p330, %s23, 0
      %s332 = smul.addr %s331, 4
      %s333 = scalar_lea.vmem %s1, %s332
      %p334 = scmp.lt.s32.totalorder %s23, 0
      %s335 = scalar_select %p334, %s23, 0
      %s336 = scalar_lea.vmem %s2, %s335
      %p337 = scmp.lt.s32.totalorder %s23, 0
      %s338 = scalar_select %p337, %s23, 0
      %s339 = scalar_lea.vmem %s3, %s338
      %p340 = scmp.lt.s32.totalorder %s23, 0
      %s341 = scalar_select %p340, %s23, 0
      %s342 = smul.addr %s341, 4
      %s343 = scalar_lea.vmem %s4, %s342
      %s344 = smul.u32 32, %s22
      %p345 = scmp.lt.s32.totalorder %s344, 63
      %s346 = scalar_select %p345, %s344, 63
      %p347 = scmp.lt.s32.totalorder %s23, 0
      %s348 = scalar_select %p347, %s23, 0
      %s349 = sadd.s32 %s348, %s346
      %s350 = smul.addr %s349, 4
      %s351 = scalar_lea.vmem %s5, %s350
      %s352 = smul.u32 32, %s22
      %s353 = smul.u32 32, %s22
      %p354 = scmp.lt.s32.totalorder %s353, 63
      %s355 = scalar_select %p354, %s353, 63
      %p356 = scmp.lt.s32.totalorder %s23, 0
      %s357 = scalar_select %p356, %s23, 0
      %s358 = sadd.s32 %s357, %s355
      %s359 = smul.addr %s358, 8
      %s360 = scalar_lea.vmem %s6, %s359
      %s361 = smul.u32 32, %s22
      %v363 = vld [vmem:[%s328] sm:$0xff]
      %v364 = vld [vmem:[%s328 + $0x8] sm:$0xf]
      %v365 = vld [vmem:[%s328 + $0xc] sm:$0xff]
      %v366 = vld [vmem:[%s328 + $0x14] sm:$0xf]
      %v367 = vld [vmem:[%s328 + $0x18] sm:$0xff]
      %v368 = vld [vmem:[%s328 + $0x20] sm:$0xf]
      %v369 = vld [vmem:[%s328 + $0x24] sm:$0xff]
      %v370 = vld [vmem:[%s328 + $0x2c] sm:$0xf]
      %v371 = vld [vmem:[%s328 + $0x30] sm:$0xff]
      %v372 = vld [vmem:[%s328 + $0x38] sm:$0xf]
      %v373 = vld [vmem:[%s328 + $0x3c] sm:$0xff]
      %v374 = vld [vmem:[%s328 + $0x44] sm:$0xf]
      %v375 = vld [vmem:[%s328 + $0x48] sm:$0xff]
      %v376 = vld [vmem:[%s328 + $0x50] sm:$0xf]
      %v377 = vld [vmem:[%s328 + $0x54] sm:$0xff]
      %v378 = vld [vmem:[%s328 + $0x5c] sm:$0xf]
      %v379 = vld [vmem:[%s328 + $0x60] sm:$0xff]
      %v380 = vld [vmem:[%s328 + $0x68] sm:$0xf]
      %v381 = vld [vmem:[%s328 + $0x6c] sm:$0xff]
      %v382 = vld [vmem:[%s328 + $0x74] sm:$0xf]
      %v383 = vld [vmem:[%s328 + $0x78] sm:$0xff]
      %v384 = vld [vmem:[%s328 + $0x80] sm:$0xf]
      %v385 = vld [vmem:[%s328 + $0x84] sm:$0xff]
      %v386 = vld [vmem:[%s328 + $0x8c] sm:$0xf]
      %v387 = vld [vmem:[%s328 + $0x90] sm:$0xff]
      %v388 = vld [vmem:[%s328 + $0x98] sm:$0xf]
      %v389 = vld [vmem:[%s328 + $0x9c] sm:$0xff]
      %v390 = vld [vmem:[%s328 + $0xa4] sm:$0xf]
      %v391 = vld [vmem:[%s328 + $0xa8] sm:$0xff]
      %v392 = vld [vmem:[%s328 + $0xb0] sm:$0xf]
      %v393 = vld [vmem:[%s328 + $0xb4] sm:$0xff]
      %v394 = vld [vmem:[%s328 + $0xbc] sm:$0xf]
      %v395 = vld [vmem:[%s328 + $0xc0] sm:$0xff]
      %v396 = vld [vmem:[%s328 + $0xc8] sm:$0xf]
      %v397 = vld [vmem:[%s328 + $0xcc] sm:$0xff]
      %v398 = vld [vmem:[%s328 + $0xd4] sm:$0xf]
      %v399 = vld [vmem:[%s328 + $0xd8] sm:$0xff]
      %v400 = vld [vmem:[%s328 + $0xe0] sm:$0xf]
      %v401 = vld [vmem:[%s328 + $0xe4] sm:$0xff]
      %v402 = vld [vmem:[%s328 + $0xec] sm:$0xf]
      %v403 = vld [vmem:[%s328 + $0xf0] sm:$0xff]
      %v404 = vld [vmem:[%s328 + $0xf8] sm:$0xf]
      %v405 = vld [vmem:[%s328 + $0xfc] sm:$0xff]
      %v406 = vld [vmem:[%s328 + $0x104] sm:$0xf]
      %v407 = vld [vmem:[%s328 + $0x108] sm:$0xff]
      %v408 = vld [vmem:[%s328 + $0x110] sm:$0xf]
      %v409 = vld [vmem:[%s328 + $0x114] sm:$0xff]
      %v410 = vld [vmem:[%s328 + $0x11c] sm:$0xf]
      %v411 = vld [vmem:[%s328 + $0x120] sm:$0xff]
      %v412 = vld [vmem:[%s328 + $0x128] sm:$0xf]
      %v413 = vld [vmem:[%s328 + $0x12c] sm:$0xff]
      %v414 = vld [vmem:[%s328 + $0x134] sm:$0xf]
      %v415 = vld [vmem:[%s328 + $0x138] sm:$0xff]
      %v416 = vld [vmem:[%s328 + $0x140] sm:$0xf]
      %v417 = vld [vmem:[%s328 + $0x144] sm:$0xff]
      %v418 = vld [vmem:[%s328 + $0x14c] sm:$0xf]
      %v419 = vld [vmem:[%s328 + $0x150] sm:$0xff]
      %v420 = vld [vmem:[%s328 + $0x158] sm:$0xf]
      %v421 = vld [vmem:[%s328 + $0x15c] sm:$0xff]
      %v422 = vld [vmem:[%s328 + $0x164] sm:$0xf]
      %v423 = vld [vmem:[%s328 + $0x168] sm:$0xff]
      %v424 = vld [vmem:[%s328 + $0x170] sm:$0xf]
      %v425 = vld [vmem:[%s328 + $0x174] sm:$0xff]
      %v426 = vld [vmem:[%s328 + $0x17c] sm:$0xf]
      %v427 = vld [vmem:[%s333] sm:$0xf]
      %v428 = vld [vmem:[%s333 + $0x4] sm:$0xf]
      %v429 = vld [vmem:[%s333 + $0x8] sm:$0xf]
      %v430 = vld [vmem:[%s333 + $0xc] sm:$0xf]
      %v431 = vld [vmem:[%s333 + $0x10] sm:$0xf]
      %v432 = vld [vmem:[%s333 + $0x14] sm:$0xf]
      %v433 = vld [vmem:[%s333 + $0x18] sm:$0xf]
      %v434 = vld [vmem:[%s333 + $0x1c] sm:$0xf]
      %v435 = vld [vmem:[%s333 + $0x20] sm:$0xf]
      %v436 = vld [vmem:[%s333 + $0x24] sm:$0xf]
      %v437 = vld [vmem:[%s333 + $0x28] sm:$0xf]
      %v438 = vld [vmem:[%s333 + $0x2c] sm:$0xf]
      %v439 = vld [vmem:[%s333 + $0x30] sm:$0xf]
      %v440 = vld [vmem:[%s333 + $0x34] sm:$0xf]
      %v441 = vld [vmem:[%s333 + $0x38] sm:$0xf]
      %v442 = vld [vmem:[%s333 + $0x3c] sm:$0xf]
      %v443 = vld [vmem:[%s333 + $0x40] sm:$0xf]
      %v444 = vld [vmem:[%s333 + $0x44] sm:$0xf]
      %v445 = vld [vmem:[%s333 + $0x48] sm:$0xf]
      %v446 = vld [vmem:[%s333 + $0x4c] sm:$0xf]
      %v447 = vld [vmem:[%s333 + $0x50] sm:$0xf]
      %v448 = vld [vmem:[%s333 + $0x54] sm:$0xf]
      %v449 = vld [vmem:[%s333 + $0x58] sm:$0xf]
      %v450 = vld [vmem:[%s333 + $0x5c] sm:$0xf]
      %v451 = vld [vmem:[%s333 + $0x60] sm:$0xf]
      %v452 = vld [vmem:[%s333 + $0x64] sm:$0xf]
      %v453 = vld [vmem:[%s333 + $0x68] sm:$0xf]
      %v454 = vld [vmem:[%s333 + $0x6c] sm:$0xf]
      %v455 = vld [vmem:[%s333 + $0x70] sm:$0xf]
      %v456 = vld [vmem:[%s333 + $0x74] sm:$0xf]
      %v457 = vld [vmem:[%s333 + $0x78] sm:$0xf]
      %v458 = vld [vmem:[%s333 + $0x7c] sm:$0xf]
      %v459 = vld [vmem:[%s333 + $0x80] sm:$0xf]
      %v460 = vld [vmem:[%s333 + $0x84] sm:$0xf]
      %v461 = vld [vmem:[%s333 + $0x88] sm:$0xf]
      %v462 = vld [vmem:[%s333 + $0x8c] sm:$0xf]
      %v463 = vld [vmem:[%s333 + $0x90] sm:$0xf]
      %v464 = vld [vmem:[%s333 + $0x94] sm:$0xf]
      %v465 = vld [vmem:[%s333 + $0x98] sm:$0xf]
      %v466 = vld [vmem:[%s333 + $0x9c] sm:$0xf]
      %v467 = vld [vmem:[%s333 + $0xa0] sm:$0xf]
      %v468 = vld [vmem:[%s333 + $0xa4] sm:$0xf]
      %v469 = vld [vmem:[%s333 + $0xa8] sm:$0xf]
      %v470 = vld [vmem:[%s333 + $0xac] sm:$0xf]
      %v471 = vld [vmem:[%s333 + $0xb0] sm:$0xf]
      %v472 = vld [vmem:[%s333 + $0xb4] sm:$0xf]
      %v473 = vld [vmem:[%s333 + $0xb8] sm:$0xf]
      %v474 = vld [vmem:[%s333 + $0xbc] sm:$0xf]
      %v539 = vunpack.c.l.b16 %v363
      %v540 = vunpack.c.h.b16 %v363
      %v541 = vunpack.c.l.b16 %v364
      %v542 = vunpack.c.l.b16 %v365
      %v543 = vunpack.c.h.b16 %v365
      %v544 = vunpack.c.l.b16 %v366
      %v545 = vunpack.c.l.b16 %v367
      %v546 = vunpack.c.h.b16 %v367
      %v547 = vunpack.c.l.b16 %v368
      %v548 = vunpack.c.l.b16 %v369
      %v549 = vunpack.c.h.b16 %v369
      %v550 = vunpack.c.l.b16 %v370
      %v551 = vunpack.c.l.b16 %v371
      %v552 = vunpack.c.h.b16 %v371
      %v553 = vunpack.c.l.b16 %v372
      %v554 = vunpack.c.l.b16 %v373
      %v555 = vunpack.c.h.b16 %v373
      %v556 = vunpack.c.l.b16 %v374
      %v557 = vunpack.c.l.b16 %v375
      %v558 = vunpack.c.h.b16 %v375
      %v559 = vunpack.c.l.b16 %v376
      %v560 = vunpack.c.l.b16 %v377
      %v561 = vunpack.c.h.b16 %v377
      %v562 = vunpack.c.l.b16 %v378
      %v563 = vunpack.c.l.b16 %v379
      %v564 = vunpack.c.h.b16 %v379
      %v565 = vunpack.c.l.b16 %v380
      %v566 = vunpack.c.l.b16 %v381
      %v567 = vunpack.c.h.b16 %v381
      %v568 = vunpack.c.l.b16 %v382
      %v569 = vunpack.c.l.b16 %v383
      %v570 = vunpack.c.h.b16 %v383
      %v571 = vunpack.c.l.b16 %v384
      %v572 = vunpack.c.l.b16 %v385
      %v573 = vunpack.c.h.b16 %v385
      %v574 = vunpack.c.l.b16 %v386
      %v575 = vunpack.c.l.b16 %v387
      %v576 = vunpack.c.h.b16 %v387
      %v577 = vunpack.c.l.b16 %v388
      %v578 = vunpack.c.l.b16 %v389
      %v579 = vunpack.c.h.b16 %v389
      %v580 = vunpack.c.l.b16 %v390
      %v581 = vunpack.c.l.b16 %v391
      %v582 = vunpack.c.h.b16 %v391
      %v583 = vunpack.c.l.b16 %v392
      %v584 = vunpack.c.l.b16 %v393
      %v585 = vunpack.c.h.b16 %v393
      %v586 = vunpack.c.l.b16 %v394
      %v587 = vunpack.c.l.b16 %v395
      %v588 = vunpack.c.h.b16 %v395
      %v589 = vunpack.c.l.b16 %v396
      %v590 = vunpack.c.l.b16 %v397
      %v591 = vunpack.c.h.b16 %v397
      %v592 = vunpack.c.l.b16 %v398
      %v593 = vunpack.c.l.b16 %v399
      %v594 = vunpack.c.h.b16 %v399
      %v595 = vunpack.c.l.b16 %v400
      %v596 = vunpack.c.l.b16 %v401
      %v597 = vunpack.c.h.b16 %v401
      %v598 = vunpack.c.l.b16 %v402
      %v599 = vunpack.c.l.b16 %v403
      %v600 = vunpack.c.h.b16 %v403
      %v601 = vunpack.c.l.b16 %v404
      %v602 = vunpack.c.l.b16 %v405
      %v603 = vunpack.c.h.b16 %v405
      %v604 = vunpack.c.l.b16 %v406
      %v605 = vunpack.c.l.b16 %v407
      %v606 = vunpack.c.h.b16 %v407
      %v607 = vunpack.c.l.b16 %v408
      %v608 = vunpack.c.l.b16 %v409
      %v609 = vunpack.c.h.b16 %v409
      %v610 = vunpack.c.l.b16 %v410
      %v611 = vunpack.c.l.b16 %v411
      %v612 = vunpack.c.h.b16 %v411
      %v613 = vunpack.c.l.b16 %v412
      %v614 = vunpack.c.l.b16 %v413
      %v615 = vunpack.c.h.b16 %v413
      %v616 = vunpack.c.l.b16 %v414
      %v617 = vunpack.c.l.b16 %v415
      %v618 = vunpack.c.h.b16 %v415
      %v619 = vunpack.c.l.b16 %v416
      %v620 = vunpack.c.l.b16 %v417
      %v621 = vunpack.c.h.b16 %v417
      %v622 = vunpack.c.l.b16 %v418
      %v623 = vunpack.c.l.b16 %v419
      %v624 = vunpack.c.h.b16 %v419
      %v625 = vunpack.c.l.b16 %v420
      %v626 = vunpack.c.l.b16 %v421
      %v627 = vunpack.c.h.b16 %v421
      %v628 = vunpack.c.l.b16 %v422
      %v629 = vunpack.c.l.b16 %v423
      %v630 = vunpack.c.h.b16 %v423
      %v631 = vunpack.c.l.b16 %v424
      %v632 = vunpack.c.l.b16 %v425
      %v633 = vunpack.c.h.b16 %v425
      %v634 = vunpack.c.l.b16 %v426
      %v635 = vpack.c.b16 %v542, %v539
      %v636 = vpack.c.b16 %v543, %v540
      %v637 = vpack.c.b16 %v544, %v541
      %v638 = vpack.c.b16 %v548, %v545
      %v639 = vpack.c.b16 %v549, %v546
      %v640 = vpack.c.b16 %v550, %v547
      %v641 = vpack.c.b16 %v554, %v551
      %v642 = vpack.c.b16 %v555, %v552
      %v643 = vpack.c.b16 %v556, %v553
      %v644 = vpack.c.b16 %v560, %v557
      %v645 = vpack.c.b16 %v561, %v558
      %v646 = vpack.c.b16 %v562, %v559
      %v647 = vpack.c.b16 %v566, %v563
      %v648 = vpack.c.b16 %v567, %v564
      %v649 = vpack.c.b16 %v568, %v565
      %v650 = vpack.c.b16 %v572, %v569
      %v651 = vpack.c.b16 %v573, %v570
      %v652 = vpack.c.b16 %v574, %v571
      %v653 = vpack.c.b16 %v578, %v575
      %v654 = vpack.c.b16 %v579, %v576
      %v655 = vpack.c.b16 %v580, %v577
      %v656 = vpack.c.b16 %v584, %v581
      %v657 = vpack.c.b16 %v585, %v582
      %v658 = vpack.c.b16 %v586, %v583
      %v659 = vpack.c.b16 %v590, %v587
      %v660 = vpack.c.b16 %v591, %v588
      %v661 = vpack.c.b16 %v592, %v589
      %v662 = vpack.c.b16 %v596, %v593
      %v663 = vpack.c.b16 %v597, %v594
      %v664 = vpack.c.b16 %v598, %v595
      %v665 = vpack.c.b16 %v602, %v599
      %v666 = vpack.c.b16 %v603, %v600
      %v667 = vpack.c.b16 %v604, %v601
      %v668 = vpack.c.b16 %v608, %v605
      %v669 = vpack.c.b16 %v609, %v606
      %v670 = vpack.c.b16 %v610, %v607
      %v671 = vpack.c.b16 %v614, %v611
      %v672 = vpack.c.b16 %v615, %v612
      %v673 = vpack.c.b16 %v616, %v613
      %v674 = vpack.c.b16 %v620, %v617
      %v675 = vpack.c.b16 %v621, %v618
      %v676 = vpack.c.b16 %v622, %v619
      %v677 = vpack.c.b16 %v626, %v623
      %v678 = vpack.c.b16 %v627, %v624
      %v679 = vpack.c.b16 %v628, %v625
      %v680 = vpack.c.b16 %v632, %v629
      %v681 = vpack.c.b16 %v633, %v630
      %v682 = vpack.c.b16 %v634, %v631
      %v779 = vunpack.c.l.b16 %v427
      %v780 = vunpack.c.l.b16 %v428
      %v781 = vunpack.c.l.b16 %v429
      %v782 = vunpack.c.l.b16 %v430
      %v783 = vunpack.c.l.b16 %v431
      %v784 = vunpack.c.l.b16 %v432
      %v785 = vunpack.c.l.b16 %v433
      %v786 = vunpack.c.l.b16 %v434
      %v787 = vunpack.c.l.b16 %v435
      %v788 = vunpack.c.l.b16 %v436
      %v789 = vunpack.c.l.b16 %v437
      %v790 = vunpack.c.l.b16 %v438
      %v791 = vunpack.c.l.b16 %v439
      %v792 = vunpack.c.l.b16 %v440
      %v793 = vunpack.c.l.b16 %v441
      %v794 = vunpack.c.l.b16 %v442
      %v795 = vunpack.c.l.b16 %v443
      %v796 = vunpack.c.l.b16 %v444
      %v797 = vunpack.c.l.b16 %v445
      %v798 = vunpack.c.l.b16 %v446
      %v799 = vunpack.c.l.b16 %v447
      %v800 = vunpack.c.l.b16 %v448
      %v801 = vunpack.c.l.b16 %v449
      %v802 = vunpack.c.l.b16 %v450
      %v803 = vunpack.c.l.b16 %v451
      %v804 = vunpack.c.l.b16 %v452
      %v805 = vunpack.c.l.b16 %v453
      %v806 = vunpack.c.l.b16 %v454
      %v807 = vunpack.c.l.b16 %v455
      %v808 = vunpack.c.l.b16 %v456
      %v809 = vunpack.c.l.b16 %v457
      %v810 = vunpack.c.l.b16 %v458
      %v811 = vunpack.c.l.b16 %v459
      %v812 = vunpack.c.l.b16 %v460
      %v813 = vunpack.c.l.b16 %v461
      %v814 = vunpack.c.l.b16 %v462
      %v815 = vunpack.c.l.b16 %v463
      %v816 = vunpack.c.l.b16 %v464
      %v817 = vunpack.c.l.b16 %v465
      %v818 = vunpack.c.l.b16 %v466
      %v819 = vunpack.c.l.b16 %v467
      %v820 = vunpack.c.l.b16 %v468
      %v821 = vunpack.c.l.b16 %v469
      %v822 = vunpack.c.l.b16 %v470
      %v823 = vunpack.c.l.b16 %v471
      %v824 = vunpack.c.l.b16 %v472
      %v825 = vunpack.c.l.b16 %v473
      %v826 = vunpack.c.l.b16 %v474
      %v827 = vpack.c.b16 %v780, %v779
      %v828 = vpack.c.b16 %v782, %v781
      %v829 = vpack.c.b16 %v784, %v783
      %v830 = vpack.c.b16 %v786, %v785
      %v831 = vpack.c.b16 %v788, %v787
      %v832 = vpack.c.b16 %v790, %v789
      %v833 = vpack.c.b16 %v792, %v791
      %v834 = vpack.c.b16 %v794, %v793
      %v835 = vpack.c.b16 %v796, %v795
      %v836 = vpack.c.b16 %v798, %v797
      %v837 = vpack.c.b16 %v800, %v799
      %v838 = vpack.c.b16 %v802, %v801
      %v839 = vpack.c.b16 %v804, %v803
      %v840 = vpack.c.b16 %v806, %v805
      %v841 = vpack.c.b16 %v808, %v807
      %v842 = vpack.c.b16 %v810, %v809
      %v843 = vpack.c.b16 %v812, %v811
      %v844 = vpack.c.b16 %v814, %v813
      %v845 = vpack.c.b16 %v816, %v815
      %v846 = vpack.c.b16 %v818, %v817
      %v847 = vpack.c.b16 %v820, %v819
      %v848 = vpack.c.b16 %v822, %v821
      %v849 = vpack.c.b16 %v824, %v823
      %v850 = vpack.c.b16 %v826, %v825
      %875 = vmatprep.subr.bf16.mxu0 0
      %876 = vmatpush1.bf16.msra.mxu0 %v834
      %877 = vmatprep.subr.bf16.mxu0 0
      %878 = vmatpush1.bf16.msra.mxu0 %v833
      %879 = vmatprep.subr.bf16.mxu0 0
      %880 = vmatpush1.bf16.msra.mxu0 %v832
      %881 = vmatprep.subr.bf16.mxu0 0
      %882 = vmatpush1.bf16.msra.mxu0 %v831
      %883 = vmatprep.subr.bf16.mxu0 0
      %884 = vmatpush1.bf16.msra.mxu0 %v830
      %885 = vmatprep.subr.bf16.mxu0 0
      %886 = vmatpush1.bf16.msra.mxu0 %v829
      %887 = vmatprep.subr.bf16.mxu0 0
      %888 = vmatpush1.bf16.msra.mxu0 %v828
      %889 = vmatprep.subr.bf16.mxu0 0
      %890 = vmatpush1.bf16.msra.mxu0 %v827
      %891 = vmatprep.subr.bf16.mxu0 0
      %892 = vmatpush2.bf16.msra.mxu0 %v842
      %893 = vmatprep.subr.bf16.mxu0 0
      %894 = vmatpush2.bf16.msra.mxu0 %v841
      %895 = vmatprep.subr.bf16.mxu0 0
      %896 = vmatpush2.bf16.msra.mxu0 %v840
      %897 = vmatprep.subr.bf16.mxu0 0
      %898 = vmatpush2.bf16.msra.mxu0 %v839
      %899 = vmatprep.subr.bf16.mxu0 0
      %900 = vmatpush2.bf16.msra.mxu0 %v838
      %901 = vmatprep.subr.bf16.mxu0 0
      %902 = vmatpush2.bf16.msra.mxu0 %v837
      %903 = vmatprep.subr.bf16.mxu0 0
      %904 = vmatpush2.bf16.msra.mxu0 %v836
      %905 = vmatprep.subr.bf16.mxu0 0
      %906 = vmatpush2.bf16.msra.mxu0 %v835
      %907 = vmatprep.mubr.bf16.mxu0 %v636
      %908 = vmatmul.mubr.bf16.gmra.mxu0 %v635
      %v909 = vpop.f32.mrf.mxu0
      %v910 = vadd.f32 0.0, %v909
      %v911 = vpop.f32.mrf.mxu0
      %v912 = vpop.f32.mrf.mxu0
      %v913 = vadd.f32 0.0, %v912
      %v914 = vpop.f32.mrf.mxu0
      %915 = vmatprep.mubr.bf16.mxu0 %v639
      %916 = vmatmul.mubr.bf16.gmra.mxu0 %v638
      %v917 = vpop.f32.mrf.mxu0
      %v918 = vadd.f32 0.0, %v917
      %v919 = vpop.f32.mrf.mxu0
      %v920 = vpop.f32.mrf.mxu0
      %v921 = vadd.f32 0.0, %v920
      %v922 = vpop.f32.mrf.mxu0
      %923 = vmatprep.mubr.bf16.mxu0 %v642
      %924 = vmatmul.mubr.bf16.gmra.mxu0 %v641
      %v925 = vpop.f32.mrf.mxu0
      %v926 = vadd.f32 0.0, %v925
      %v927 = vpop.f32.mrf.mxu0
      %v928 = vpop.f32.mrf.mxu0
      %v929 = vadd.f32 0.0, %v928
      %v930 = vpop.f32.mrf.mxu0
      %931 = vmatprep.mubr.bf16.mxu0 %v645
      %932 = vmatmul.mubr.bf16.gmra.mxu0 %v644
      %v933 = vpop.f32.mrf.mxu0
      %v934 = vadd.f32 0.0, %v933
      %v935 = vpop.f32.mrf.mxu0
      %v936 = vpop.f32.mrf.mxu0
      %v937 = vadd.f32 0.0, %v936
      %v938 = vpop.f32.mrf.mxu0
      %939 = vmatprep.mubr.bf16.mxu0 %v648
      %940 = vmatmul.mubr.bf16.gmra.mxu0 %v647
      %v941 = vpop.f32.mrf.mxu0
      %v942 = vadd.f32 0.0, %v941
      %v943 = vpop.f32.mrf.mxu0
      %v944 = vpop.f32.mrf.mxu0
      %v945 = vadd.f32 0.0, %v944
      %v946 = vpop.f32.mrf.mxu0
      %947 = vmatprep.mubr.bf16.mxu0 %v651
      %948 = vmatmul.mubr.bf16.gmra.mxu0 %v650
      %v949 = vpop.f32.mrf.mxu0
      %v950 = vadd.f32 0.0, %v949
      %v951 = vpop.f32.mrf.mxu0
      %v952 = vpop.f32.mrf.mxu0
      %v953 = vadd.f32 0.0, %v952
      %v954 = vpop.f32.mrf.mxu0
      %955 = vmatprep.mubr.bf16.mxu0 %v654
      %956 = vmatmul.mubr.bf16.gmra.mxu0 %v653
      %v957 = vpop.f32.mrf.mxu0
      %v958 = vadd.f32 0.0, %v957
      %v959 = vpop.f32.mrf.mxu0
      %v960 = vpop.f32.mrf.mxu0
      %v961 = vadd.f32 0.0, %v960
      %v962 = vpop.f32.mrf.mxu0
      %963 = vmatprep.mubr.bf16.mxu0 %v657
      %964 = vmatmul.mubr.bf16.gmra.mxu0 %v656
      %v965 = vpop.f32.mrf.mxu0
      %v966 = vadd.f32 0.0, %v965
      %v967 = vpop.f32.mrf.mxu0
      %v968 = vpop.f32.mrf.mxu0
      %v969 = vadd.f32 0.0, %v968
      %v970 = vpop.f32.mrf.mxu0
      %971 = vmatprep.mubr.bf16.mxu0 %v660
      %972 = vmatmul.mubr.bf16.gmra.mxu0 %v659
      %v973 = vpop.f32.mrf.mxu0
      %v974 = vadd.f32 0.0, %v973
      %v975 = vpop.f32.mrf.mxu0
      %v976 = vpop.f32.mrf.mxu0
      %v977 = vadd.f32 0.0, %v976
      %v978 = vpop.f32.mrf.mxu0
      %979 = vmatprep.mubr.bf16.mxu0 %v663
      %980 = vmatmul.mubr.bf16.gmra.mxu0 %v662
      %v981 = vpop.f32.mrf.mxu0
      %v982 = vadd.f32 0.0, %v981
      %v983 = vpop.f32.mrf.mxu0
      %v984 = vpop.f32.mrf.mxu0
      %v985 = vadd.f32 0.0, %v984
      %v986 = vpop.f32.mrf.mxu0
      %987 = vmatprep.mubr.bf16.mxu0 %v666
      %988 = vmatmul.mubr.bf16.gmra.mxu0 %v665
      %v989 = vpop.f32.mrf.mxu0
      %v990 = vadd.f32 0.0, %v989
      %v991 = vpop.f32.mrf.mxu0
      %v992 = vpop.f32.mrf.mxu0
      %v993 = vadd.f32 0.0, %v992
      %v994 = vpop.f32.mrf.mxu0
      %995 = vmatprep.mubr.bf16.mxu0 %v669
      %996 = vmatmul.mubr.bf16.gmra.mxu0 %v668
      %v997 = vpop.f32.mrf.mxu0
      %v998 = vadd.f32 0.0, %v997
      %v999 = vpop.f32.mrf.mxu0
      %v1000 = vpop.f32.mrf.mxu0
      %v1001 = vadd.f32 0.0, %v1000
      %v1002 = vpop.f32.mrf.mxu0
      %1003 = vmatprep.mubr.bf16.mxu0 %v672
      %1004 = vmatmul.mubr.bf16.gmra.mxu0 %v671
      %v1005 = vpop.f32.mrf.mxu0
      %v1006 = vadd.f32 0.0, %v1005
      %v1007 = vpop.f32.mrf.mxu0
      %v1008 = vpop.f32.mrf.mxu0
      %v1009 = vadd.f32 0.0, %v1008
      %v1010 = vpop.f32.mrf.mxu0
      %1011 = vmatprep.mubr.bf16.mxu0 %v675
      %1012 = vmatmul.mubr.bf16.gmra.mxu0 %v674
      %v1013 = vpop.f32.mrf.mxu0
      %v1014 = vadd.f32 0.0, %v1013
      %v1015 = vpop.f32.mrf.mxu0
      %v1016 = vpop.f32.mrf.mxu0
      %v1017 = vadd.f32 0.0, %v1016
      %v1018 = vpop.f32.mrf.mxu0
      %1019 = vmatprep.mubr.bf16.mxu0 %v678
      %1020 = vmatmul.mubr.bf16.gmra.mxu0 %v677
      %v1021 = vpop.f32.mrf.mxu0
      %v1022 = vadd.f32 0.0, %v1021
      %v1023 = vpop.f32.mrf.mxu0
      %v1024 = vpop.f32.mrf.mxu0
      %v1025 = vadd.f32 0.0, %v1024
      %v1026 = vpop.f32.mrf.mxu0
      %1027 = vmatprep.mubr.bf16.mxu0 %v681
      %1028 = vmatmul.mubr.bf16.gmra.mxu0 %v680
      %v1029 = vpop.f32.mrf.mxu0
      %v1030 = vadd.f32 0.0, %v1029
      %v1031 = vpop.f32.mrf.mxu0
      %v1032 = vpop.f32.mrf.mxu0
      %v1033 = vadd.f32 0.0, %v1032
      %v1034 = vpop.f32.mrf.mxu0
      %1035 = vdwg.mxu0
      %1036 = vmatprep.subr.bf16.mxu0 0
      %1037 = vmatpush1.bf16.msra.mxu0 %v850
      %1038 = vmatprep.subr.bf16.mxu0 0
      %1039 = vmatpush1.bf16.msra.mxu0 %v849
      %1040 = vmatprep.subr.bf16.mxu0 0
      %1041 = vmatpush1.bf16.msra.mxu0 %v848
      %1042 = vmatprep.subr.bf16.mxu0 0
      %1043 = vmatpush1.bf16.msra.mxu0 %v847
      %1044 = vmatprep.subr.bf16.mxu0 0
      %1045 = vmatpush1.bf16.msra.mxu0 %v846
      %1046 = vmatprep.subr.bf16.mxu0 0
      %1047 = vmatpush1.bf16.msra.mxu0 %v845
      %1048 = vmatprep.subr.bf16.mxu0 0
      %1049 = vmatpush1.bf16.msra.mxu0 %v844
      %1050 = vmatprep.subr.bf16.mxu0 0
      %1051 = vmatpush1.bf16.msra.mxu0 %v843
      %1052 = vmatprep.subr.bf16.mxu0 0
      %1053 = vmatpush2.bf16.msra.mxu0 0
      %1054 = vmatprep.subr.bf16.mxu0 0
      %1055 = vmatpush2.bf16.msra.mxu0 0
      %1056 = vmatprep.subr.bf16.mxu0 0
      %1057 = vmatpush2.bf16.msra.mxu0 0
      %1058 = vmatprep.subr.bf16.mxu0 0
      %1059 = vmatpush2.bf16.msra.mxu0 0
      %1060 = vmatprep.subr.bf16.mxu0 0
      %1061 = vmatpush2.bf16.msra.mxu0 0
      %1062 = vmatprep.subr.bf16.mxu0 0
      %1063 = vmatpush2.bf16.msra.mxu0 0
      %1064 = vmatprep.subr.bf16.mxu0 0
      %1065 = vmatpush2.bf16.msra.mxu0 0
      %1066 = vmatprep.subr.bf16.mxu0 0
      %1067 = vmatpush2.bf16.msra.mxu0 0
      %1068 = vmatprep.mubr.bf16.mxu0 0
      %1069 = vmatmul.mubr.bf16.gmra.mxu0 %v637
      %v1070 = vpop.f32.mrf.mxu0
      %v1071 = vadd.f32 %v910, %v1070
      %v1072 = vpop.f32.mrf.mxu0
      %v1073 = vpop.f32.mrf.mxu0
      %v1074 = vadd.f32 %v913, %v1073
      %v1075 = vpop.f32.mrf.mxu0
      %1076 = vmatprep.mubr.bf16.mxu0 0
      %1077 = vmatmul.mubr.bf16.gmra.mxu0 %v640
      %v1078 = vpop.f32.mrf.mxu0
      %v1079 = vadd.f32 %v918, %v1078
      %v1080 = vpop.f32.mrf.mxu0
      %v1081 = vpop.f32.mrf.mxu0
      %v1082 = vadd.f32 %v921, %v1081
      %v1083 = vpop.f32.mrf.mxu0
      %1084 = vmatprep.mubr.bf16.mxu0 0
      %1085 = vmatmul.mubr.bf16.gmra.mxu0 %v643
      %v1086 = vpop.f32.mrf.mxu0
      %v1087 = vadd.f32 %v926, %v1086
      %v1088 = vpop.f32.mrf.mxu0
      %v1089 = vpop.f32.mrf.mxu0
      %v1090 = vadd.f32 %v929, %v1089
      %v1091 = vpop.f32.mrf.mxu0
      %1092 = vmatprep.mubr.bf16.mxu0 0
      %1093 = vmatmul.mubr.bf16.gmra.mxu0 %v646
      %v1094 = vpop.f32.mrf.mxu0
      %v1095 = vadd.f32 %v934, %v1094
      %v1096 = vpop.f32.mrf.mxu0
      %v1097 = vpop.f32.mrf.mxu0
      %v1098 = vadd.f32 %v937, %v1097
      %v1099 = vpop.f32.mrf.mxu0
      %1100 = vmatprep.mubr.bf16.mxu0 0
      %1101 = vmatmul.mubr.bf16.gmra.mxu0 %v649
      %v1102 = vpop.f32.mrf.mxu0
      %v1103 = vadd.f32 %v942, %v1102
      %v1104 = vpop.f32.mrf.mxu0
      %v1105 = vpop.f32.mrf.mxu0
      %v1106 = vadd.f32 %v945, %v1105
      %v1107 = vpop.f32.mrf.mxu0
      %1108 = vmatprep.mubr.bf16.mxu0 0
      %1109 = vmatmul.mubr.bf16.gmra.mxu0 %v652
      %v1110 = vpop.f32.mrf.mxu0
      %v1111 = vadd.f32 %v950, %v1110
      %v1112 = vpop.f32.mrf.mxu0
      %v1113 = vpop.f32.mrf.mxu0
      %v1114 = vadd.f32 %v953, %v1113
      %v1115 = vpop.f32.mrf.mxu0
      %1116 = vmatprep.mubr.bf16.mxu0 0
      %1117 = vmatmul.mubr.bf16.gmra.mxu0 %v655
      %v1118 = vpop.f32.mrf.mxu0
      %v1119 = vadd.f32 %v958, %v1118
      %v1120 = vpop.f32.mrf.mxu0
      %v1121 = vpop.f32.mrf.mxu0
      %v1122 = vadd.f32 %v961, %v1121
      %v1123 = vpop.f32.mrf.mxu0
      %1124 = vmatprep.mubr.bf16.mxu0 0
      %1125 = vmatmul.mubr.bf16.gmra.mxu0 %v658
      %v1126 = vpop.f32.mrf.mxu0
      %v1127 = vadd.f32 %v966, %v1126
      %v1128 = vpop.f32.mrf.mxu0
      %v1129 = vpop.f32.mrf.mxu0
      %v1130 = vadd.f32 %v969, %v1129
      %v1131 = vpop.f32.mrf.mxu0
      %1132 = vmatprep.mubr.bf16.mxu0 0
      %1133 = vmatmul.mubr.bf16.gmra.mxu0 %v661
      %v1134 = vpop.f32.mrf.mxu0
      %v1135 = vadd.f32 %v974, %v1134
      %v1136 = vpop.f32.mrf.mxu0
      %v1137 = vpop.f32.mrf.mxu0
      %v1138 = vadd.f32 %v977, %v1137
      %v1139 = vpop.f32.mrf.mxu0
      %1140 = vmatprep.mubr.bf16.mxu0 0
      %1141 = vmatmul.mubr.bf16.gmra.mxu0 %v664
      %v1142 = vpop.f32.mrf.mxu0
      %v1143 = vadd.f32 %v982, %v1142
      %v1144 = vpop.f32.mrf.mxu0
      %v1145 = vpop.f32.mrf.mxu0
      %v1146 = vadd.f32 %v985, %v1145
      %v1147 = vpop.f32.mrf.mxu0
      %1148 = vmatprep.mubr.bf16.mxu0 0
      %1149 = vmatmul.mubr.bf16.gmra.mxu0 %v667
      %v1150 = vpop.f32.mrf.mxu0
      %v1151 = vadd.f32 %v990, %v1150
      %v1152 = vpop.f32.mrf.mxu0
      %v1153 = vpop.f32.mrf.mxu0
      %v1154 = vadd.f32 %v993, %v1153
      %v1155 = vpop.f32.mrf.mxu0
      %1156 = vmatprep.mubr.bf16.mxu0 0
      %1157 = vmatmul.mubr.bf16.gmra.mxu0 %v670
      %v1158 = vpop.f32.mrf.mxu0
      %v1159 = vadd.f32 %v998, %v1158
      %v1160 = vpop.f32.mrf.mxu0
      %v1161 = vpop.f32.mrf.mxu0
      %v1162 = vadd.f32 %v1001, %v1161
      %v1163 = vpop.f32.mrf.mxu0
      %1164 = vmatprep.mubr.bf16.mxu0 0
      %1165 = vmatmul.mubr.bf16.gmra.mxu0 %v673
      %v1166 = vpop.f32.mrf.mxu0
      %v1167 = vadd.f32 %v1006, %v1166
      %v1168 = vpop.f32.mrf.mxu0
      %v1169 = vpop.f32.mrf.mxu0
      %v1170 = vadd.f32 %v1009, %v1169
      %v1171 = vpop.f32.mrf.mxu0
      %1172 = vmatprep.mubr.bf16.mxu0 0
      %1173 = vmatmul.mubr.bf16.gmra.mxu0 %v676
      %v1174 = vpop.f32.mrf.mxu0
      %v1175 = vadd.f32 %v1014, %v1174
      %v1176 = vpop.f32.mrf.mxu0
      %v1177 = vpop.f32.mrf.mxu0
      %v1178 = vadd.f32 %v1017, %v1177
      %v1179 = vpop.f32.mrf.mxu0
      %1180 = vmatprep.mubr.bf16.mxu0 0
      %1181 = vmatmul.mubr.bf16.gmra.mxu0 %v679
      %v1182 = vpop.f32.mrf.mxu0
      %v1183 = vadd.f32 %v1022, %v1182
      %v1184 = vpop.f32.mrf.mxu0
      %v1185 = vpop.f32.mrf.mxu0
      %v1186 = vadd.f32 %v1025, %v1185
      %v1187 = vpop.f32.mrf.mxu0
      %1188 = vmatprep.mubr.bf16.mxu0 0
      %1189 = vmatmul.mubr.bf16.gmra.mxu0 %v682
      %v1190 = vpop.f32.mrf.mxu0
      %v1191 = vadd.f32 %v1030, %v1190
      %v1192 = vpop.f32.mrf.mxu0
      %v1193 = vpop.f32.mrf.mxu0
      %v1194 = vadd.f32 %v1033, %v1193
      %v1195 = vpop.f32.mrf.mxu0
      %1196 = vdwg.mxu0
      %v1197 = vld [vmem:[%s336] sm:$0x1]
      %v1199 = vlaneseq
      %v1200 = vshrl.u32 %v1199, 7
      %v1201 = vsub.s32 0, %v1200
      %v1202 = vrot.slane %v1197, %v1201
      %v1204 = vmul.f32 %v1071, %v1202
      %v1205 = vmul.f32 %v1074, %v1202
      %v1206 = vmul.f32 %v1079, %v1202
      %v1207 = vmul.f32 %v1082, %v1202
      %v1208 = vmul.f32 %v1087, %v1202
      %v1209 = vmul.f32 %v1090, %v1202
      %v1210 = vmul.f32 %v1095, %v1202
      %v1211 = vmul.f32 %v1098, %v1202
      %v1212 = vmul.f32 %v1103, %v1202
      %v1213 = vmul.f32 %v1106, %v1202
      %v1214 = vmul.f32 %v1111, %v1202
      %v1215 = vmul.f32 %v1114, %v1202
      %v1216 = vmul.f32 %v1119, %v1202
      %v1217 = vmul.f32 %v1122, %v1202
      %v1218 = vmul.f32 %v1127, %v1202
      %v1219 = vmul.f32 %v1130, %v1202
      %v1220 = vmul.f32 %v1135, %v1202
      %v1221 = vmul.f32 %v1138, %v1202
      %v1222 = vmul.f32 %v1143, %v1202
      %v1223 = vmul.f32 %v1146, %v1202
      %v1224 = vmul.f32 %v1151, %v1202
      %v1225 = vmul.f32 %v1154, %v1202
      %v1226 = vmul.f32 %v1159, %v1202
      %v1227 = vmul.f32 %v1162, %v1202
      %v1228 = vmul.f32 %v1167, %v1202
      %v1229 = vmul.f32 %v1170, %v1202
      %v1230 = vmul.f32 %v1175, %v1202
      %v1231 = vmul.f32 %v1178, %v1202
      %v1232 = vmul.f32 %v1183, %v1202
      %v1233 = vmul.f32 %v1186, %v1202
      %v1234 = vmul.f32 %v1191, %v1202
      %v1235 = vmul.f32 %v1194, %v1202
      %v1236 = vld [vmem:[%s339] sm:$0x1]
      %v1238 = vlaneseq
      %v1239 = vshrl.u32 %v1238, 7
      %v1240 = vsub.s32 0, %v1239
      %v1241 = vrot.slane %v1236, %v1240
      %v1243 = vadd.f32 %v1204, %v1241
      %v1244 = vadd.f32 %v1205, %v1241
      %v1245 = vadd.f32 %v1206, %v1241
      %v1246 = vadd.f32 %v1207, %v1241
      %v1247 = vadd.f32 %v1208, %v1241
      %v1248 = vadd.f32 %v1209, %v1241
      %v1249 = vadd.f32 %v1210, %v1241
      %v1250 = vadd.f32 %v1211, %v1241
      %v1251 = vadd.f32 %v1212, %v1241
      %v1252 = vadd.f32 %v1213, %v1241
      %v1253 = vadd.f32 %v1214, %v1241
      %v1254 = vadd.f32 %v1215, %v1241
      %v1255 = vadd.f32 %v1216, %v1241
      %v1256 = vadd.f32 %v1217, %v1241
      %v1257 = vadd.f32 %v1218, %v1241
      %v1258 = vadd.f32 %v1219, %v1241
      %v1259 = vadd.f32 %v1220, %v1241
      %v1260 = vadd.f32 %v1221, %v1241
      %v1261 = vadd.f32 %v1222, %v1241
      %v1262 = vadd.f32 %v1223, %v1241
      %v1263 = vadd.f32 %v1224, %v1241
      %v1264 = vadd.f32 %v1225, %v1241
      %v1265 = vadd.f32 %v1226, %v1241
      %v1266 = vadd.f32 %v1227, %v1241
      %v1267 = vadd.f32 %v1228, %v1241
      %v1268 = vadd.f32 %v1229, %v1241
      %v1269 = vadd.f32 %v1230, %v1241
      %v1270 = vadd.f32 %v1231, %v1241
      %v1271 = vadd.f32 %v1232, %v1241
      %v1272 = vadd.f32 %v1233, %v1241
      %v1273 = vadd.f32 %v1234, %v1241
      %v1274 = vadd.f32 %v1235, %v1241
      %v1275 = vmax.f32 %v1243, 0.0
      %v1276 = vmax.f32 %v1244, 0.0
      %v1277 = vmax.f32 %v1245, 0.0
      %v1278 = vmax.f32 %v1246, 0.0
      %v1279 = vmax.f32 %v1247, 0.0
      %v1280 = vmax.f32 %v1248, 0.0
      %v1281 = vmax.f32 %v1249, 0.0
      %v1282 = vmax.f32 %v1250, 0.0
      %v1283 = vmax.f32 %v1251, 0.0
      %v1284 = vmax.f32 %v1252, 0.0
      %v1285 = vmax.f32 %v1253, 0.0
      %v1286 = vmax.f32 %v1254, 0.0
      %v1287 = vmax.f32 %v1255, 0.0
      %v1288 = vmax.f32 %v1256, 0.0
      %v1289 = vmax.f32 %v1257, 0.0
      %v1290 = vmax.f32 %v1258, 0.0
      %v1291 = vmax.f32 %v1259, 0.0
      %v1292 = vmax.f32 %v1260, 0.0
      %v1293 = vmax.f32 %v1261, 0.0
      %v1294 = vmax.f32 %v1262, 0.0
      %v1295 = vmax.f32 %v1263, 0.0
      %v1296 = vmax.f32 %v1264, 0.0
      %v1297 = vmax.f32 %v1265, 0.0
      %v1298 = vmax.f32 %v1266, 0.0
      %v1299 = vmax.f32 %v1267, 0.0
      %v1300 = vmax.f32 %v1268, 0.0
      %v1301 = vmax.f32 %v1269, 0.0
      %v1302 = vmax.f32 %v1270, 0.0
      %v1303 = vmax.f32 %v1271, 0.0
      %v1304 = vmax.f32 %v1272, 0.0
      %v1305 = vmax.f32 %v1273, 0.0
      %v1306 = vmax.f32 %v1274, 0.0
      %v1307 = vpack.c.bf16 %v1276, %v1275
      %v1308 = vpack.c.bf16 %v1278, %v1277
      %v1309 = vpack.c.bf16 %v1280, %v1279
      %v1310 = vpack.c.bf16 %v1282, %v1281
      %v1311 = vpack.c.bf16 %v1284, %v1283
      %v1312 = vpack.c.bf16 %v1286, %v1285
      %v1313 = vpack.c.bf16 %v1288, %v1287
      %v1314 = vpack.c.bf16 %v1290, %v1289
      %v1315 = vpack.c.bf16 %v1292, %v1291
      %v1316 = vpack.c.bf16 %v1294, %v1293
      %v1317 = vpack.c.bf16 %v1296, %v1295
      %v1318 = vpack.c.bf16 %v1298, %v1297
      %v1319 = vpack.c.bf16 %v1300, %v1299
      %v1320 = vpack.c.bf16 %v1302, %v1301
      %v1321 = vpack.c.bf16 %v1304, %v1303
      %v1322 = vpack.c.bf16 %v1306, %v1305
      %v1339 = vunpack.c.l.b16 %v1307
      %v1340 = vunpack.c.h.b16 %v1307
      %v1341 = vunpack.c.l.b16 %v1308
      %v1342 = vunpack.c.h.b16 %v1308
      %v1343 = vunpack.c.l.b16 %v1309
      %v1344 = vunpack.c.h.b16 %v1309
      %v1345 = vunpack.c.l.b16 %v1310
      %v1346 = vunpack.c.h.b16 %v1310
      %v1347 = vunpack.c.l.b16 %v1311
      %v1348 = vunpack.c.h.b16 %v1311
      %v1349 = vunpack.c.l.b16 %v1312
      %v1350 = vunpack.c.h.b16 %v1312
      %v1351 = vunpack.c.l.b16 %v1313
      %v1352 = vunpack.c.h.b16 %v1313
      %v1353 = vunpack.c.l.b16 %v1314
      %v1354 = vunpack.c.h.b16 %v1314
      %v1355 = vunpack.c.l.b16 %v1315
      %v1356 = vunpack.c.h.b16 %v1315
      %v1357 = vunpack.c.l.b16 %v1316
      %v1358 = vunpack.c.h.b16 %v1316
      %v1359 = vunpack.c.l.b16 %v1317
      %v1360 = vunpack.c.h.b16 %v1317
      %v1361 = vunpack.c.l.b16 %v1318
      %v1362 = vunpack.c.h.b16 %v1318
      %v1363 = vunpack.c.l.b16 %v1319
      %v1364 = vunpack.c.h.b16 %v1319
      %v1365 = vunpack.c.l.b16 %v1320
      %v1366 = vunpack.c.h.b16 %v1320
      %v1367 = vunpack.c.l.b16 %v1321
      %v1368 = vunpack.c.h.b16 %v1321
      %v1369 = vunpack.c.l.b16 %v1322
      %v1370 = vunpack.c.h.b16 %v1322
      %v1371 = vpack.c.b16 %v1339, %v1339
      %v1372 = vpack.c.b16 %v1340, %v1340
      %v1373 = vpack.c.b16 %v1341, %v1341
      %v1374 = vpack.c.b16 %v1342, %v1342
      %v1375 = vpack.c.b16 %v1343, %v1343
      %v1376 = vpack.c.b16 %v1344, %v1344
      %v1377 = vpack.c.b16 %v1345, %v1345
      %v1378 = vpack.c.b16 %v1346, %v1346
      %v1379 = vpack.c.b16 %v1347, %v1347
      %v1380 = vpack.c.b16 %v1348, %v1348
      %v1381 = vpack.c.b16 %v1349, %v1349
      %v1382 = vpack.c.b16 %v1350, %v1350
      %v1383 = vpack.c.b16 %v1351, %v1351
      %v1384 = vpack.c.b16 %v1352, %v1352
      %v1385 = vpack.c.b16 %v1353, %v1353
      %v1386 = vpack.c.b16 %v1354, %v1354
      %v1387 = vpack.c.b16 %v1355, %v1355
      %v1388 = vpack.c.b16 %v1356, %v1356
      %v1389 = vpack.c.b16 %v1357, %v1357
      %v1390 = vpack.c.b16 %v1358, %v1358
      %v1391 = vpack.c.b16 %v1359, %v1359
      %v1392 = vpack.c.b16 %v1360, %v1360
      %v1393 = vpack.c.b16 %v1361, %v1361
      %v1394 = vpack.c.b16 %v1362, %v1362
      %v1395 = vpack.c.b16 %v1363, %v1363
      %v1396 = vpack.c.b16 %v1364, %v1364
      %v1397 = vpack.c.b16 %v1365, %v1365
      %v1398 = vpack.c.b16 %v1366, %v1366
      %v1399 = vpack.c.b16 %v1367, %v1367
      %v1400 = vpack.c.b16 %v1368, %v1368
      %v1401 = vpack.c.b16 %v1369, %v1369
      %v1402 = vpack.c.b16 %v1370, %v1370
      %1435 = vst [vmem:[%s351] sm:$0xf] %v1371
      %1436 = vst [vmem:[%s351 + $0x4] sm:$0xf] %v1372
      %1437 = vst [vmem:[%s351 + $0x8] sm:$0xf] %v1373
      %1438 = vst [vmem:[%s351 + $0xc] sm:$0xf] %v1374
      %1439 = vst [vmem:[%s351 + $0x10] sm:$0xf] %v1375
      %1440 = vst [vmem:[%s351 + $0x14] sm:$0xf] %v1376
      %1441 = vst [vmem:[%s351 + $0x18] sm:$0xf] %v1377
      %1442 = vst [vmem:[%s351 + $0x1c] sm:$0xf] %v1378
      %1443 = vst [vmem:[%s351 + $0x20] sm:$0xf] %v1379
      %1444 = vst [vmem:[%s351 + $0x24] sm:$0xf] %v1380
      %1445 = vst [vmem:[%s351 + $0x28] sm:$0xf] %v1381
      %1446 = vst [vmem:[%s351 + $0x2c] sm:$0xf] %v1382
      %1447 = vst [vmem:[%s351 + $0x30] sm:$0xf] %v1383
      %1448 = vst [vmem:[%s351 + $0x34] sm:$0xf] %v1384
      %1449 = vst [vmem:[%s351 + $0x38] sm:$0xf] %v1385
      %1450 = vst [vmem:[%s351 + $0x3c] sm:$0xf] %v1386
      %1451 = vst [vmem:[%s351 + $0x40] sm:$0xf] %v1387
      %1452 = vst [vmem:[%s351 + $0x44] sm:$0xf] %v1388
      %1453 = vst [vmem:[%s351 + $0x48] sm:$0xf] %v1389
      %1454 = vst [vmem:[%s351 + $0x4c] sm:$0xf] %v1390
      %1455 = vst [vmem:[%s351 + $0x50] sm:$0xf] %v1391
      %1456 = vst [vmem:[%s351 + $0x54] sm:$0xf] %v1392
      %1457 = vst [vmem:[%s351 + $0x58] sm:$0xf] %v1393
      %1458 = vst [vmem:[%s351 + $0x5c] sm:$0xf] %v1394
      %1459 = vst [vmem:[%s351 + $0x60] sm:$0xf] %v1395
      %1460 = vst [vmem:[%s351 + $0x64] sm:$0xf] %v1396
      %1461 = vst [vmem:[%s351 + $0x68] sm:$0xf] %v1397
      %1462 = vst [vmem:[%s351 + $0x6c] sm:$0xf] %v1398
      %1463 = vst [vmem:[%s351 + $0x70] sm:$0xf] %v1399
      %1464 = vst [vmem:[%s351 + $0x74] sm:$0xf] %v1400
      %1465 = vst [vmem:[%s351 + $0x78] sm:$0xf] %v1401
      %1466 = vst [vmem:[%s351 + $0x7c] sm:$0xf] %v1402
      %v1467 = vld [vmem:[%s328] sm:$0xff]
      %v1468 = vld [vmem:[%s328 + $0x8] sm:$0xf]
      %v1469 = vld [vmem:[%s328 + $0xc] sm:$0xff]
      %v1470 = vld [vmem:[%s328 + $0x14] sm:$0xf]
      %v1471 = vld [vmem:[%s328 + $0x18] sm:$0xff]
      %v1472 = vld [vmem:[%s328 + $0x20] sm:$0xf]
      %v1473 = vld [vmem:[%s328 + $0x24] sm:$0xff]
      %v1474 = vld [vmem:[%s328 + $0x2c] sm:$0xf]
      %v1475 = vld [vmem:[%s328 + $0x30] sm:$0xff]
      %v1476 = vld [vmem:[%s328 + $0x38] sm:$0xf]
      %v1477 = vld [vmem:[%s328 + $0x3c] sm:$0xff]
      %v1478 = vld [vmem:[%s328 + $0x44] sm:$0xf]
      %v1479 = vld [vmem:[%s328 + $0x48] sm:$0xff]
      %v1480 = vld [vmem:[%s328 + $0x50] sm:$0xf]
      %v1481 = vld [vmem:[%s328 + $0x54] sm:$0xff]
      %v1482 = vld [vmem:[%s328 + $0x5c] sm:$0xf]
      %v1483 = vld [vmem:[%s328 + $0x60] sm:$0xff]
      %v1484 = vld [vmem:[%s328 + $0x68] sm:$0xf]
      %v1485 = vld [vmem:[%s328 + $0x6c] sm:$0xff]
      %v1486 = vld [vmem:[%s328 + $0x74] sm:$0xf]
      %v1487 = vld [vmem:[%s328 + $0x78] sm:$0xff]
      %v1488 = vld [vmem:[%s328 + $0x80] sm:$0xf]
      %v1489 = vld [vmem:[%s328 + $0x84] sm:$0xff]
      %v1490 = vld [vmem:[%s328 + $0x8c] sm:$0xf]
      %v1491 = vld [vmem:[%s328 + $0x90] sm:$0xff]
      %v1492 = vld [vmem:[%s328 + $0x98] sm:$0xf]
      %v1493 = vld [vmem:[%s328 + $0x9c] sm:$0xff]
      %v1494 = vld [vmem:[%s328 + $0xa4] sm:$0xf]
      %v1495 = vld [vmem:[%s328 + $0xa8] sm:$0xff]
      %v1496 = vld [vmem:[%s328 + $0xb0] sm:$0xf]
      %v1497 = vld [vmem:[%s328 + $0xb4] sm:$0xff]
      %v1498 = vld [vmem:[%s328 + $0xbc] sm:$0xf]
      %v1499 = vld [vmem:[%s328 + $0xc0] sm:$0xff]
      %v1500 = vld [vmem:[%s328 + $0xc8] sm:$0xf]
      %v1501 = vld [vmem:[%s328 + $0xcc] sm:$0xff]
      %v1502 = vld [vmem:[%s328 + $0xd4] sm:$0xf]
      %v1503 = vld [vmem:[%s328 + $0xd8] sm:$0xff]
      %v1504 = vld [vmem:[%s328 + $0xe0] sm:$0xf]
      %v1505 = vld [vmem:[%s328 + $0xe4] sm:$0xff]
      %v1506 = vld [vmem:[%s328 + $0xec] sm:$0xf]
      %v1507 = vld [vmem:[%s328 + $0xf0] sm:$0xff]
      %v1508 = vld [vmem:[%s328 + $0xf8] sm:$0xf]
      %v1509 = vld [vmem:[%s328 + $0xfc] sm:$0xff]
      %v1510 = vld [vmem:[%s328 + $0x104] sm:$0xf]
      %v1511 = vld [vmem:[%s328 + $0x108] sm:$0xff]
      %v1512 = vld [vmem:[%s328 + $0x110] sm:$0xf]
      %v1513 = vld [vmem:[%s328 + $0x114] sm:$0xff]
      %v1514 = vld [vmem:[%s328 + $0x11c] sm:$0xf]
      %v1515 = vld [vmem:[%s328 + $0x120] sm:$0xff]
      %v1516 = vld [vmem:[%s328 + $0x128] sm:$0xf]
      %v1517 = vld [vmem:[%s328 + $0x12c] sm:$0xff]
      %v1518 = vld [vmem:[%s328 + $0x134] sm:$0xf]
      %v1519 = vld [vmem:[%s328 + $0x138] sm:$0xff]
      %v1520 = vld [vmem:[%s328 + $0x140] sm:$0xf]
      %v1521 = vld [vmem:[%s328 + $0x144] sm:$0xff]
      %v1522 = vld [vmem:[%s328 + $0x14c] sm:$0xf]
      %v1523 = vld [vmem:[%s328 + $0x150] sm:$0xff]
      %v1524 = vld [vmem:[%s328 + $0x158] sm:$0xf]
      %v1525 = vld [vmem:[%s328 + $0x15c] sm:$0xff]
      %v1526 = vld [vmem:[%s328 + $0x164] sm:$0xf]
      %v1527 = vld [vmem:[%s328 + $0x168] sm:$0xff]
      %v1528 = vld [vmem:[%s328 + $0x170] sm:$0xf]
      %v1529 = vld [vmem:[%s328 + $0x174] sm:$0xff]
      %v1530 = vld [vmem:[%s328 + $0x17c] sm:$0xf]
      %v1531 = vld [vmem:[%s343] sm:$0xf]
      %v1532 = vld [vmem:[%s343 + $0x4] sm:$0xf]
      %v1533 = vld [vmem:[%s343 + $0x8] sm:$0xf]
      %v1534 = vld [vmem:[%s343 + $0xc] sm:$0xf]
      %v1535 = vld [vmem:[%s343 + $0x10] sm:$0xf]
      %v1536 = vld [vmem:[%s343 + $0x14] sm:$0xf]
      %v1537 = vld [vmem:[%s343 + $0x18] sm:$0xf]
      %v1538 = vld [vmem:[%s343 + $0x1c] sm:$0xf]
      %v1539 = vld [vmem:[%s343 + $0x20] sm:$0xf]
      %v1540 = vld [vmem:[%s343 + $0x24] sm:$0xf]
      %v1541 = vld [vmem:[%s343 + $0x28] sm:$0xf]
      %v1542 = vld [vmem:[%s343 + $0x2c] sm:$0xf]
      %v1543 = vld [vmem:[%s343 + $0x30] sm:$0xf]
      %v1544 = vld [vmem:[%s343 + $0x34] sm:$0xf]
      %v1545 = vld [vmem:[%s343 + $0x38] sm:$0xf]
      %v1546 = vld [vmem:[%s343 + $0x3c] sm:$0xf]
      %v1547 = vld [vmem:[%s343 + $0x40] sm:$0xf]
      %v1548 = vld [vmem:[%s343 + $0x44] sm:$0xf]
      %v1549 = vld [vmem:[%s343 + $0x48] sm:$0xf]
      %v1550 = vld [vmem:[%s343 + $0x4c] sm:$0xf]
      %v1551 = vld [vmem:[%s343 + $0x50] sm:$0xf]
      %v1552 = vld [vmem:[%s343 + $0x54] sm:$0xf]
      %v1553 = vld [vmem:[%s343 + $0x58] sm:$0xf]
      %v1554 = vld [vmem:[%s343 + $0x5c] sm:$0xf]
      %v1555 = vld [vmem:[%s343 + $0x60] sm:$0xf]
      %v1556 = vld [vmem:[%s343 + $0x64] sm:$0xf]
      %v1557 = vld [vmem:[%s343 + $0x68] sm:$0xf]
      %v1558 = vld [vmem:[%s343 + $0x6c] sm:$0xf]
      %v1559 = vld [vmem:[%s343 + $0x70] sm:$0xf]
      %v1560 = vld [vmem:[%s343 + $0x74] sm:$0xf]
      %v1561 = vld [vmem:[%s343 + $0x78] sm:$0xf]
      %v1562 = vld [vmem:[%s343 + $0x7c] sm:$0xf]
      %v1563 = vld [vmem:[%s343 + $0x80] sm:$0xf]
      %v1564 = vld [vmem:[%s343 + $0x84] sm:$0xf]
      %v1565 = vld [vmem:[%s343 + $0x88] sm:$0xf]
      %v1566 = vld [vmem:[%s343 + $0x8c] sm:$0xf]
      %v1567 = vld [vmem:[%s343 + $0x90] sm:$0xf]
      %v1568 = vld [vmem:[%s343 + $0x94] sm:$0xf]
      %v1569 = vld [vmem:[%s343 + $0x98] sm:$0xf]
      %v1570 = vld [vmem:[%s343 + $0x9c] sm:$0xf]
      %v1571 = vld [vmem:[%s343 + $0xa0] sm:$0xf]
      %v1572 = vld [vmem:[%s343 + $0xa4] sm:$0xf]
      %v1573 = vld [vmem:[%s343 + $0xa8] sm:$0xf]
      %v1574 = vld [vmem:[%s343 + $0xac] sm:$0xf]
      %v1575 = vld [vmem:[%s343 + $0xb0] sm:$0xf]
      %v1576 = vld [vmem:[%s343 + $0xb4] sm:$0xf]
      %v1577 = vld [vmem:[%s343 + $0xb8] sm:$0xf]
      %v1578 = vld [vmem:[%s343 + $0xbc] sm:$0xf]
      %v1643 = vunpack.c.l.b16 %v1467
      %v1644 = vunpack.c.h.b16 %v1467
      %v1645 = vunpack.c.l.b16 %v1468
      %v1646 = vunpack.c.l.b16 %v1469
      %v1647 = vunpack.c.h.b16 %v1469
      %v1648 = vunpack.c.l.b16 %v1470
      %v1649 = vunpack.c.l.b16 %v1471
      %v1650 = vunpack.c.h.b16 %v1471
      %v1651 = vunpack.c.l.b16 %v1472
      %v1652 = vunpack.c.l.b16 %v1473
      %v1653 = vunpack.c.h.b16 %v1473
      %v1654 = vunpack.c.l.b16 %v1474
      %v1655 = vunpack.c.l.b16 %v1475
      %v1656 = vunpack.c.h.b16 %v1475
      %v1657 = vunpack.c.l.b16 %v1476
      %v1658 = vunpack.c.l.b16 %v1477
      %v1659 = vunpack.c.h.b16 %v1477
      %v1660 = vunpack.c.l.b16 %v1478
      %v1661 = vunpack.c.l.b16 %v1479
      %v1662 = vunpack.c.h.b16 %v1479
      %v1663 = vunpack.c.l.b16 %v1480
      %v1664 = vunpack.c.l.b16 %v1481
      %v1665 = vunpack.c.h.b16 %v1481
      %v1666 = vunpack.c.l.b16 %v1482
      %v1667 = vunpack.c.l.b16 %v1483
      %v1668 = vunpack.c.h.b16 %v1483
      %v1669 = vunpack.c.l.b16 %v1484
      %v1670 = vunpack.c.l.b16 %v1485
      %v1671 = vunpack.c.h.b16 %v1485
      %v1672 = vunpack.c.l.b16 %v1486
      %v1673 = vunpack.c.l.b16 %v1487
      %v1674 = vunpack.c.h.b16 %v1487
      %v1675 = vunpack.c.l.b16 %v1488
      %v1676 = vunpack.c.l.b16 %v1489
      %v1677 = vunpack.c.h.b16 %v1489
      %v1678 = vunpack.c.l.b16 %v1490
      %v1679 = vunpack.c.l.b16 %v1491
      %v1680 = vunpack.c.h.b16 %v1491
      %v1681 = vunpack.c.l.b16 %v1492
      %v1682 = vunpack.c.l.b16 %v1493
      %v1683 = vunpack.c.h.b16 %v1493
      %v1684 = vunpack.c.l.b16 %v1494
      %v1685 = vunpack.c.l.b16 %v1495
      %v1686 = vunpack.c.h.b16 %v1495
      %v1687 = vunpack.c.l.b16 %v1496
      %v1688 = vunpack.c.l.b16 %v1497
      %v1689 = vunpack.c.h.b16 %v1497
      %v1690 = vunpack.c.l.b16 %v1498
      %v1691 = vunpack.c.l.b16 %v1499
      %v1692 = vunpack.c.h.b16 %v1499
      %v1693 = vunpack.c.l.b16 %v1500
      %v1694 = vunpack.c.l.b16 %v1501
      %v1695 = vunpack.c.h.b16 %v1501
      %v1696 = vunpack.c.l.b16 %v1502
      %v1697 = vunpack.c.l.b16 %v1503
      %v1698 = vunpack.c.h.b16 %v1503
      %v1699 = vunpack.c.l.b16 %v1504
      %v1700 = vunpack.c.l.b16 %v1505
      %v1701 = vunpack.c.h.b16 %v1505
      %v1702 = vunpack.c.l.b16 %v1506
      %v1703 = vunpack.c.l.b16 %v1507
      %v1704 = vunpack.c.h.b16 %v1507
      %v1705 = vunpack.c.l.b16 %v1508
      %v1706 = vunpack.c.l.b16 %v1509
      %v1707 = vunpack.c.h.b16 %v1509
      %v1708 = vunpack.c.l.b16 %v1510
      %v1709 = vunpack.c.l.b16 %v1511
      %v1710 = vunpack.c.h.b16 %v1511
      %v1711 = vunpack.c.l.b16 %v1512
      %v1712 = vunpack.c.l.b16 %v1513
      %v1713 = vunpack.c.h.b16 %v1513
      %v1714 = vunpack.c.l.b16 %v1514
      %v1715 = vunpack.c.l.b16 %v1515
      %v1716 = vunpack.c.h.b16 %v1515
      %v1717 = vunpack.c.l.b16 %v1516
      %v1718 = vunpack.c.l.b16 %v1517
      %v1719 = vunpack.c.h.b16 %v1517
      %v1720 = vunpack.c.l.b16 %v1518
      %v1721 = vunpack.c.l.b16 %v1519
      %v1722 = vunpack.c.h.b16 %v1519
      %v1723 = vunpack.c.l.b16 %v1520
      %v1724 = vunpack.c.l.b16 %v1521
      %v1725 = vunpack.c.h.b16 %v1521
      %v1726 = vunpack.c.l.b16 %v1522
      %v1727 = vunpack.c.l.b16 %v1523
      %v1728 = vunpack.c.h.b16 %v1523
      %v1729 = vunpack.c.l.b16 %v1524
      %v1730 = vunpack.c.l.b16 %v1525
      %v1731 = vunpack.c.h.b16 %v1525
      %v1732 = vunpack.c.l.b16 %v1526
      %v1733 = vunpack.c.l.b16 %v1527
      %v1734 = vunpack.c.h.b16 %v1527
      %v1735 = vunpack.c.l.b16 %v1528
      %v1736 = vunpack.c.l.b16 %v1529
      %v1737 = vunpack.c.h.b16 %v1529
      %v1738 = vunpack.c.l.b16 %v1530
      %v1739 = vpack.c.b16 %v1646, %v1643
      %v1740 = vpack.c.b16 %v1647, %v1644
      %v1741 = vpack.c.b16 %v1648, %v1645
      %v1742 = vpack.c.b16 %v1652, %v1649
      %v1743 = vpack.c.b16 %v1653, %v1650
      %v1744 = vpack.c.b16 %v1654, %v1651
      %v1745 = vpack.c.b16 %v1658, %v1655
      %v1746 = vpack.c.b16 %v1659, %v1656
      %v1747 = vpack.c.b16 %v1660, %v1657
      %v1748 = vpack.c.b16 %v1664, %v1661
      %v1749 = vpack.c.b16 %v1665, %v1662
      %v1750 = vpack.c.b16 %v1666, %v1663
      %v1751 = vpack.c.b16 %v1670, %v1667
      %v1752 = vpack.c.b16 %v1671, %v1668
      %v1753 = vpack.c.b16 %v1672, %v1669
      %v1754 = vpack.c.b16 %v1676, %v1673
      %v1755 = vpack.c.b16 %v1677, %v1674
      %v1756 = vpack.c.b16 %v1678, %v1675
      %v1757 = vpack.c.b16 %v1682, %v1679
      %v1758 = vpack.c.b16 %v1683, %v1680
      %v1759 = vpack.c.b16 %v1684, %v1681
      %v1760 = vpack.c.b16 %v1688, %v1685
      %v1761 = vpack.c.b16 %v1689, %v1686
      %v1762 = vpack.c.b16 %v1690, %v1687
      %v1763 = vpack.c.b16 %v1694, %v1691
      %v1764 = vpack.c.b16 %v1695, %v1692
      %v1765 = vpack.c.b16 %v1696, %v1693
      %v1766 = vpack.c.b16 %v1700, %v1697
      %v1767 = vpack.c.b16 %v1701, %v1698
      %v1768 = vpack.c.b16 %v1702, %v1699
      %v1769 = vpack.c.b16 %v1706, %v1703
      %v1770 = vpack.c.b16 %v1707, %v1704
      %v1771 = vpack.c.b16 %v1708, %v1705
      %v1772 = vpack.c.b16 %v1712, %v1709
      %v1773 = vpack.c.b16 %v1713, %v1710
      %v1774 = vpack.c.b16 %v1714, %v1711
      %v1775 = vpack.c.b16 %v1718, %v1715
      %v1776 = vpack.c.b16 %v1719, %v1716
      %v1777 = vpack.c.b16 %v1720, %v1717
      %v1778 = vpack.c.b16 %v1724, %v1721
      %v1779 = vpack.c.b16 %v1725, %v1722
      %v1780 = vpack.c.b16 %v1726, %v1723
      %v1781 = vpack.c.b16 %v1730, %v1727
      %v1782 = vpack.c.b16 %v1731, %v1728
      %v1783 = vpack.c.b16 %v1732, %v1729
      %v1784 = vpack.c.b16 %v1736, %v1733
      %v1785 = vpack.c.b16 %v1737, %v1734
      %v1786 = vpack.c.b16 %v1738, %v1735
      %v1883 = vunpack.c.l.b16 %v1531
      %v1884 = vunpack.c.l.b16 %v1532
      %v1885 = vunpack.c.l.b16 %v1533
      %v1886 = vunpack.c.l.b16 %v1534
      %v1887 = vunpack.c.l.b16 %v1535
      %v1888 = vunpack.c.l.b16 %v1536
      %v1889 = vunpack.c.l.b16 %v1537
      %v1890 = vunpack.c.l.b16 %v1538
      %v1891 = vunpack.c.l.b16 %v1539
      %v1892 = vunpack.c.l.b16 %v1540
      %v1893 = vunpack.c.l.b16 %v1541
      %v1894 = vunpack.c.l.b16 %v1542
      %v1895 = vunpack.c.l.b16 %v1543
      %v1896 = vunpack.c.l.b16 %v1544
      %v1897 = vunpack.c.l.b16 %v1545
      %v1898 = vunpack.c.l.b16 %v1546
      %v1899 = vunpack.c.l.b16 %v1547
      %v1900 = vunpack.c.l.b16 %v1548
      %v1901 = vunpack.c.l.b16 %v1549
      %v1902 = vunpack.c.l.b16 %v1550
      %v1903 = vunpack.c.l.b16 %v1551
      %v1904 = vunpack.c.l.b16 %v1552
      %v1905 = vunpack.c.l.b16 %v1553
      %v1906 = vunpack.c.l.b16 %v1554
      %v1907 = vunpack.c.l.b16 %v1555
      %v1908 = vunpack.c.l.b16 %v1556
      %v1909 = vunpack.c.l.b16 %v1557
      %v1910 = vunpack.c.l.b16 %v1558
      %v1911 = vunpack.c.l.b16 %v1559
      %v1912 = vunpack.c.l.b16 %v1560
      %v1913 = vunpack.c.l.b16 %v1561
      %v1914 = vunpack.c.l.b16 %v1562
      %v1915 = vunpack.c.l.b16 %v1563
      %v1916 = vunpack.c.l.b16 %v1564
      %v1917 = vunpack.c.l.b16 %v1565
      %v1918 = vunpack.c.l.b16 %v1566
      %v1919 = vunpack.c.l.b16 %v1567
      %v1920 = vunpack.c.l.b16 %v1568
      %v1921 = vunpack.c.l.b16 %v1569
      %v1922 = vunpack.c.l.b16 %v1570
      %v1923 = vunpack.c.l.b16 %v1571
      %v1924 = vunpack.c.l.b16 %v1572
      %v1925 = vunpack.c.l.b16 %v1573
      %v1926 = vunpack.c.l.b16 %v1574
      %v1927 = vunpack.c.l.b16 %v1575
      %v1928 = vunpack.c.l.b16 %v1576
      %v1929 = vunpack.c.l.b16 %v1577
      %v1930 = vunpack.c.l.b16 %v1578
      %v1931 = vpack.c.b16 %v1884, %v1883
      %v1932 = vpack.c.b16 %v1886, %v1885
      %v1933 = vpack.c.b16 %v1888, %v1887
      %v1934 = vpack.c.b16 %v1890, %v1889
      %v1935 = vpack.c.b16 %v1892, %v1891
      %v1936 = vpack.c.b16 %v1894, %v1893
      %v1937 = vpack.c.b16 %v1896, %v1895
      %v1938 = vpack.c.b16 %v1898, %v1897
      %v1939 = vpack.c.b16 %v1900, %v1899
      %v1940 = vpack.c.b16 %v1902, %v1901
      %v1941 = vpack.c.b16 %v1904, %v1903
      %v1942 = vpack.c.b16 %v1906, %v1905
      %v1943 = vpack.c.b16 %v1908, %v1907
      %v1944 = vpack.c.b16 %v1910, %v1909
      %v1945 = vpack.c.b16 %v1912, %v1911
      %v1946 = vpack.c.b16 %v1914, %v1913
      %v1947 = vpack.c.b16 %v1916, %v1915
      %v1948 = vpack.c.b16 %v1918, %v1917
      %v1949 = vpack.c.b16 %v1920, %v1919
      %v1950 = vpack.c.b16 %v1922, %v1921
      %v1951 = vpack.c.b16 %v1924, %v1923
      %v1952 = vpack.c.b16 %v1926, %v1925
      %v1953 = vpack.c.b16 %v1928, %v1927
      %v1954 = vpack.c.b16 %v1930, %v1929
      %1979 = vmatprep.subr.bf16.mxu0 0
      %1980 = vmatpush1.bf16.msra.mxu0 %v1938
      %1981 = vmatprep.subr.bf16.mxu0 0
      %1982 = vmatpush1.bf16.msra.mxu0 %v1937
      %1983 = vmatprep.subr.bf16.mxu0 0
      %1984 = vmatpush1.bf16.msra.mxu0 %v1936
      %1985 = vmatprep.subr.bf16.mxu0 0
      %1986 = vmatpush1.bf16.msra.mxu0 %v1935
      %1987 = vmatprep.subr.bf16.mxu0 0
      %1988 = vmatpush1.bf16.msra.mxu0 %v1934
      %1989 = vmatprep.subr.bf16.mxu0 0
      %1990 = vmatpush1.bf16.msra.mxu0 %v1933
      %1991 = vmatprep.subr.bf16.mxu0 0
      %1992 = vmatpush1.bf16.msra.mxu0 %v1932
      %1993 = vmatprep.subr.bf16.mxu0 0
      %1994 = vmatpush1.bf16.msra.mxu0 %v1931
      %1995 = vmatprep.subr.bf16.mxu0 0
      %1996 = vmatpush2.bf16.msra.mxu0 %v1946
      %1997 = vmatprep.subr.bf16.mxu0 0
      %1998 = vmatpush2.bf16.msra.mxu0 %v1945
      %1999 = vmatprep.subr.bf16.mxu0 0
      %2000 = vmatpush2.bf16.msra.mxu0 %v1944
      %2001 = vmatprep.subr.bf16.mxu0 0
      %2002 = vmatpush2.bf16.msra.mxu0 %v1943
      %2003 = vmatprep.subr.bf16.mxu0 0
      %2004 = vmatpush2.bf16.msra.mxu0 %v1942
      %2005 = vmatprep.subr.bf16.mxu0 0
      %2006 = vmatpush2.bf16.msra.mxu0 %v1941
      %2007 = vmatprep.subr.bf16.mxu0 0
      %2008 = vmatpush2.bf16.msra.mxu0 %v1940
      %2009 = vmatprep.subr.bf16.mxu0 0
      %2010 = vmatpush2.bf16.msra.mxu0 %v1939
      %2011 = vmatprep.mubr.bf16.mxu0 %v1740
      %2012 = vmatmul.mubr.bf16.gmra.mxu0 %v1739
      %v2013 = vpop.f32.mrf.mxu0
      %v2014 = vadd.f32 0.0, %v2013
      %v2015 = vpop.f32.mrf.mxu0
      %v2016 = vpop.f32.mrf.mxu0
      %v2017 = vadd.f32 0.0, %v2016
      %v2018 = vpop.f32.mrf.mxu0
      %2019 = vmatprep.mubr.bf16.mxu0 %v1743
      %2020 = vmatmul.mubr.bf16.gmra.mxu0 %v1742
      %v2021 = vpop.f32.mrf.mxu0
      %v2022 = vadd.f32 0.0, %v2021
      %v2023 = vpop.f32.mrf.mxu0
      %v2024 = vpop.f32.mrf.mxu0
      %v2025 = vadd.f32 0.0, %v2024
      %v2026 = vpop.f32.mrf.mxu0
      %2027 = vmatprep.mubr.bf16.mxu0 %v1746
      %2028 = vmatmul.mubr.bf16.gmra.mxu0 %v1745
      %v2029 = vpop.f32.mrf.mxu0
      %v2030 = vadd.f32 0.0, %v2029
      %v2031 = vpop.f32.mrf.mxu0
      %v2032 = vpop.f32.mrf.mxu0
      %v2033 = vadd.f32 0.0, %v2032
      %v2034 = vpop.f32.mrf.mxu0
      %2035 = vmatprep.mubr.bf16.mxu0 %v1749
      %2036 = vmatmul.mubr.bf16.gmra.mxu0 %v1748
      %v2037 = vpop.f32.mrf.mxu0
      %v2038 = vadd.f32 0.0, %v2037
      %v2039 = vpop.f32.mrf.mxu0
      %v2040 = vpop.f32.mrf.mxu0
      %v2041 = vadd.f32 0.0, %v2040
      %v2042 = vpop.f32.mrf.mxu0
      %2043 = vmatprep.mubr.bf16.mxu0 %v1752
      %2044 = vmatmul.mubr.bf16.gmra.mxu0 %v1751
      %v2045 = vpop.f32.mrf.mxu0
      %v2046 = vadd.f32 0.0, %v2045
      %v2047 = vpop.f32.mrf.mxu0
      %v2048 = vpop.f32.mrf.mxu0
      %v2049 = vadd.f32 0.0, %v2048
      %v2050 = vpop.f32.mrf.mxu0
      %2051 = vmatprep.mubr.bf16.mxu0 %v1755
      %2052 = vmatmul.mubr.bf16.gmra.mxu0 %v1754
      %v2053 = vpop.f32.mrf.mxu0
      %v2054 = vadd.f32 0.0, %v2053
      %v2055 = vpop.f32.mrf.mxu0
      %v2056 = vpop.f32.mrf.mxu0
      %v2057 = vadd.f32 0.0, %v2056
      %v2058 = vpop.f32.mrf.mxu0
      %2059 = vmatprep.mubr.bf16.mxu0 %v1758
      %2060 = vmatmul.mubr.bf16.gmra.mxu0 %v1757
      %v2061 = vpop.f32.mrf.mxu0
      %v2062 = vadd.f32 0.0, %v2061
      %v2063 = vpop.f32.mrf.mxu0
      %v2064 = vpop.f32.mrf.mxu0
      %v2065 = vadd.f32 0.0, %v2064
      %v2066 = vpop.f32.mrf.mxu0
      %2067 = vmatprep.mubr.bf16.mxu0 %v1761
      %2068 = vmatmul.mubr.bf16.gmra.mxu0 %v1760
      %v2069 = vpop.f32.mrf.mxu0
      %v2070 = vadd.f32 0.0, %v2069
      %v2071 = vpop.f32.mrf.mxu0
      %v2072 = vpop.f32.mrf.mxu0
      %v2073 = vadd.f32 0.0, %v2072
      %v2074 = vpop.f32.mrf.mxu0
      %2075 = vmatprep.mubr.bf16.mxu0 %v1764
      %2076 = vmatmul.mubr.bf16.gmra.mxu0 %v1763
      %v2077 = vpop.f32.mrf.mxu0
      %v2078 = vadd.f32 0.0, %v2077
      %v2079 = vpop.f32.mrf.mxu0
      %v2080 = vpop.f32.mrf.mxu0
      %v2081 = vadd.f32 0.0, %v2080
      %v2082 = vpop.f32.mrf.mxu0
      %2083 = vmatprep.mubr.bf16.mxu0 %v1767
      %2084 = vmatmul.mubr.bf16.gmra.mxu0 %v1766
      %v2085 = vpop.f32.mrf.mxu0
      %v2086 = vadd.f32 0.0, %v2085
      %v2087 = vpop.f32.mrf.mxu0
      %v2088 = vpop.f32.mrf.mxu0
      %v2089 = vadd.f32 0.0, %v2088
      %v2090 = vpop.f32.mrf.mxu0
      %2091 = vmatprep.mubr.bf16.mxu0 %v1770
      %2092 = vmatmul.mubr.bf16.gmra.mxu0 %v1769
      %v2093 = vpop.f32.mrf.mxu0
      %v2094 = vadd.f32 0.0, %v2093
      %v2095 = vpop.f32.mrf.mxu0
      %v2096 = vpop.f32.mrf.mxu0
      %v2097 = vadd.f32 0.0, %v2096
      %v2098 = vpop.f32.mrf.mxu0
      %2099 = vmatprep.mubr.bf16.mxu0 %v1773
      %2100 = vmatmul.mubr.bf16.gmra.mxu0 %v1772
      %v2101 = vpop.f32.mrf.mxu0
      %v2102 = vadd.f32 0.0, %v2101
      %v2103 = vpop.f32.mrf.mxu0
      %v2104 = vpop.f32.mrf.mxu0
      %v2105 = vadd.f32 0.0, %v2104
      %v2106 = vpop.f32.mrf.mxu0
      %2107 = vmatprep.mubr.bf16.mxu0 %v1776
      %2108 = vmatmul.mubr.bf16.gmra.mxu0 %v1775
      %v2109 = vpop.f32.mrf.mxu0
      %v2110 = vadd.f32 0.0, %v2109
      %v2111 = vpop.f32.mrf.mxu0
      %v2112 = vpop.f32.mrf.mxu0
      %v2113 = vadd.f32 0.0, %v2112
      %v2114 = vpop.f32.mrf.mxu0
      %2115 = vmatprep.mubr.bf16.mxu0 %v1779
      %2116 = vmatmul.mubr.bf16.gmra.mxu0 %v1778
      %v2117 = vpop.f32.mrf.mxu0
      %v2118 = vadd.f32 0.0, %v2117
      %v2119 = vpop.f32.mrf.mxu0
      %v2120 = vpop.f32.mrf.mxu0
      %v2121 = vadd.f32 0.0, %v2120
      %v2122 = vpop.f32.mrf.mxu0
      %2123 = vmatprep.mubr.bf16.mxu0 %v1782
      %2124 = vmatmul.mubr.bf16.gmra.mxu0 %v1781
      %v2125 = vpop.f32.mrf.mxu0
      %v2126 = vadd.f32 0.0, %v2125
      %v2127 = vpop.f32.mrf.mxu0
      %v2128 = vpop.f32.mrf.mxu0
      %v2129 = vadd.f32 0.0, %v2128
      %v2130 = vpop.f32.mrf.mxu0
      %2131 = vmatprep.mubr.bf16.mxu0 %v1785
      %2132 = vmatmul.mubr.bf16.gmra.mxu0 %v1784
      %v2133 = vpop.f32.mrf.mxu0
      %v2134 = vadd.f32 0.0, %v2133
      %v2135 = vpop.f32.mrf.mxu0
      %v2136 = vpop.f32.mrf.mxu0
      %v2137 = vadd.f32 0.0, %v2136
      %v2138 = vpop.f32.mrf.mxu0
      %2139 = vdwg.mxu0
      %2140 = vmatprep.subr.bf16.mxu0 0
      %2141 = vmatpush1.bf16.msra.mxu0 %v1954
      %2142 = vmatprep.subr.bf16.mxu0 0
      %2143 = vmatpush1.bf16.msra.mxu0 %v1953
      %2144 = vmatprep.subr.bf16.mxu0 0
      %2145 = vmatpush1.bf16.msra.mxu0 %v1952
      %2146 = vmatprep.subr.bf16.mxu0 0
      %2147 = vmatpush1.bf16.msra.mxu0 %v1951
      %2148 = vmatprep.subr.bf16.mxu0 0
      %2149 = vmatpush1.bf16.msra.mxu0 %v1950
      %2150 = vmatprep.subr.bf16.mxu0 0
      %2151 = vmatpush1.bf16.msra.mxu0 %v1949
      %2152 = vmatprep.subr.bf16.mxu0 0
      %2153 = vmatpush1.bf16.msra.mxu0 %v1948
      %2154 = vmatprep.subr.bf16.mxu0 0
      %2155 = vmatpush1.bf16.msra.mxu0 %v1947
      %2156 = vmatprep.subr.bf16.mxu0 0
      %2157 = vmatpush2.bf16.msra.mxu0 0
      %2158 = vmatprep.subr.bf16.mxu0 0
      %2159 = vmatpush2.bf16.msra.mxu0 0
      %2160 = vmatprep.subr.bf16.mxu0 0
      %2161 = vmatpush2.bf16.msra.mxu0 0
      %2162 = vmatprep.subr.bf16.mxu0 0
      %2163 = vmatpush2.bf16.msra.mxu0 0
      %2164 = vmatprep.subr.bf16.mxu0 0
      %2165 = vmatpush2.bf16.msra.mxu0 0
      %2166 = vmatprep.subr.bf16.mxu0 0
      %2167 = vmatpush2.bf16.msra.mxu0 0
      %2168 = vmatprep.subr.bf16.mxu0 0
      %2169 = vmatpush2.bf16.msra.mxu0 0
      %2170 = vmatprep.subr.bf16.mxu0 0
      %2171 = vmatpush2.bf16.msra.mxu0 0
      %2172 = vmatprep.mubr.bf16.mxu0 0
      %2173 = vmatmul.mubr.bf16.gmra.mxu0 %v1741
      %v2174 = vpop.f32.mrf.mxu0
      %v2175 = vadd.f32 %v2014, %v2174
      %v2176 = vpop.f32.mrf.mxu0
      %v2177 = vpop.f32.mrf.mxu0
      %v2178 = vadd.f32 %v2017, %v2177
      %v2179 = vpop.f32.mrf.mxu0
      %2180 = vmatprep.mubr.bf16.mxu0 0
      %2181 = vmatmul.mubr.bf16.gmra.mxu0 %v1744
      %v2182 = vpop.f32.mrf.mxu0
      %v2183 = vadd.f32 %v2022, %v2182
      %v2184 = vpop.f32.mrf.mxu0
      %v2185 = vpop.f32.mrf.mxu0
      %v2186 = vadd.f32 %v2025, %v2185
      %v2187 = vpop.f32.mrf.mxu0
      %2188 = vmatprep.mubr.bf16.mxu0 0
      %2189 = vmatmul.mubr.bf16.gmra.mxu0 %v1747
      %v2190 = vpop.f32.mrf.mxu0
      %v2191 = vadd.f32 %v2030, %v2190
      %v2192 = vpop.f32.mrf.mxu0
      %v2193 = vpop.f32.mrf.mxu0
      %v2194 = vadd.f32 %v2033, %v2193
      %v2195 = vpop.f32.mrf.mxu0
      %2196 = vmatprep.mubr.bf16.mxu0 0
      %2197 = vmatmul.mubr.bf16.gmra.mxu0 %v1750
      %v2198 = vpop.f32.mrf.mxu0
      %v2199 = vadd.f32 %v2038, %v2198
      %v2200 = vpop.f32.mrf.mxu0
      %v2201 = vpop.f32.mrf.mxu0
      %v2202 = vadd.f32 %v2041, %v2201
      %v2203 = vpop.f32.mrf.mxu0
      %2204 = vmatprep.mubr.bf16.mxu0 0
      %2205 = vmatmul.mubr.bf16.gmra.mxu0 %v1753
      %v2206 = vpop.f32.mrf.mxu0
      %v2207 = vadd.f32 %v2046, %v2206
      %v2208 = vpop.f32.mrf.mxu0
      %v2209 = vpop.f32.mrf.mxu0
      %v2210 = vadd.f32 %v2049, %v2209
      %v2211 = vpop.f32.mrf.mxu0
      %2212 = vmatprep.mubr.bf16.mxu0 0
      %2213 = vmatmul.mubr.bf16.gmra.mxu0 %v1756
      %v2214 = vpop.f32.mrf.mxu0
      %v2215 = vadd.f32 %v2054, %v2214
      %v2216 = vpop.f32.mrf.mxu0
      %v2217 = vpop.f32.mrf.mxu0
      %v2218 = vadd.f32 %v2057, %v2217
      %v2219 = vpop.f32.mrf.mxu0
      %2220 = vmatprep.mubr.bf16.mxu0 0
      %2221 = vmatmul.mubr.bf16.gmra.mxu0 %v1759
      %v2222 = vpop.f32.mrf.mxu0
      %v2223 = vadd.f32 %v2062, %v2222
      %v2224 = vpop.f32.mrf.mxu0
      %v2225 = vpop.f32.mrf.mxu0
      %v2226 = vadd.f32 %v2065, %v2225
      %v2227 = vpop.f32.mrf.mxu0
      %2228 = vmatprep.mubr.bf16.mxu0 0
      %2229 = vmatmul.mubr.bf16.gmra.mxu0 %v1762
      %v2230 = vpop.f32.mrf.mxu0
      %v2231 = vadd.f32 %v2070, %v2230
      %v2232 = vpop.f32.mrf.mxu0
      %v2233 = vpop.f32.mrf.mxu0
      %v2234 = vadd.f32 %v2073, %v2233
      %v2235 = vpop.f32.mrf.mxu0
      %2236 = vmatprep.mubr.bf16.mxu0 0
      %2237 = vmatmul.mubr.bf16.gmra.mxu0 %v1765
      %v2238 = vpop.f32.mrf.mxu0
      %v2239 = vadd.f32 %v2078, %v2238
      %v2240 = vpop.f32.mrf.mxu0
      %v2241 = vpop.f32.mrf.mxu0
      %v2242 = vadd.f32 %v2081, %v2241
      %v2243 = vpop.f32.mrf.mxu0
      %2244 = vmatprep.mubr.bf16.mxu0 0
      %2245 = vmatmul.mubr.bf16.gmra.mxu0 %v1768
      %v2246 = vpop.f32.mrf.mxu0
      %v2247 = vadd.f32 %v2086, %v2246
      %v2248 = vpop.f32.mrf.mxu0
      %v2249 = vpop.f32.mrf.mxu0
      %v2250 = vadd.f32 %v2089, %v2249
      %v2251 = vpop.f32.mrf.mxu0
      %2252 = vmatprep.mubr.bf16.mxu0 0
      %2253 = vmatmul.mubr.bf16.gmra.mxu0 %v1771
      %v2254 = vpop.f32.mrf.mxu0
      %v2255 = vadd.f32 %v2094, %v2254
      %v2256 = vpop.f32.mrf.mxu0
      %v2257 = vpop.f32.mrf.mxu0
      %v2258 = vadd.f32 %v2097, %v2257
      %v2259 = vpop.f32.mrf.mxu0
      %2260 = vmatprep.mubr.bf16.mxu0 0
      %2261 = vmatmul.mubr.bf16.gmra.mxu0 %v1774
      %v2262 = vpop.f32.mrf.mxu0
      %v2263 = vadd.f32 %v2102, %v2262
      %v2264 = vpop.f32.mrf.mxu0
      %v2265 = vpop.f32.mrf.mxu0
      %v2266 = vadd.f32 %v2105, %v2265
      %v2267 = vpop.f32.mrf.mxu0
      %2268 = vmatprep.mubr.bf16.mxu0 0
      %2269 = vmatmul.mubr.bf16.gmra.mxu0 %v1777
      %v2270 = vpop.f32.mrf.mxu0
      %v2271 = vadd.f32 %v2110, %v2270
      %v2272 = vpop.f32.mrf.mxu0
      %v2273 = vpop.f32.mrf.mxu0
      %v2274 = vadd.f32 %v2113, %v2273
      %v2275 = vpop.f32.mrf.mxu0
      %2276 = vmatprep.mubr.bf16.mxu0 0
      %2277 = vmatmul.mubr.bf16.gmra.mxu0 %v1780
      %v2278 = vpop.f32.mrf.mxu0
      %v2279 = vadd.f32 %v2118, %v2278
      %v2280 = vpop.f32.mrf.mxu0
      %v2281 = vpop.f32.mrf.mxu0
      %v2282 = vadd.f32 %v2121, %v2281
      %v2283 = vpop.f32.mrf.mxu0
      %2284 = vmatprep.mubr.bf16.mxu0 0
      %2285 = vmatmul.mubr.bf16.gmra.mxu0 %v1783
      %v2286 = vpop.f32.mrf.mxu0
      %v2287 = vadd.f32 %v2126, %v2286
      %v2288 = vpop.f32.mrf.mxu0
      %v2289 = vpop.f32.mrf.mxu0
      %v2290 = vadd.f32 %v2129, %v2289
      %v2291 = vpop.f32.mrf.mxu0
      %2292 = vmatprep.mubr.bf16.mxu0 0
      %2293 = vmatmul.mubr.bf16.gmra.mxu0 %v1786
      %v2294 = vpop.f32.mrf.mxu0
      %v2295 = vadd.f32 %v2134, %v2294
      %v2296 = vpop.f32.mrf.mxu0
      %v2297 = vpop.f32.mrf.mxu0
      %v2298 = vadd.f32 %v2137, %v2297
      %v2299 = vpop.f32.mrf.mxu0
      %2300 = vdwg.mxu0
      %2301 = vst [vmem:[%s360] sm:$0xff] %v2175
      %2302 = vst [vmem:[%s360 + $0x8] sm:$0xff] %v2178
      %2303 = vst [vmem:[%s360 + $0x10] sm:$0xff] %v2183
      %2304 = vst [vmem:[%s360 + $0x18] sm:$0xff] %v2186
      %2305 = vst [vmem:[%s360 + $0x20] sm:$0xff] %v2191
      %2306 = vst [vmem:[%s360 + $0x28] sm:$0xff] %v2194
      %2307 = vst [vmem:[%s360 + $0x30] sm:$0xff] %v2199
      %2308 = vst [vmem:[%s360 + $0x38] sm:$0xff] %v2202
      %2309 = vst [vmem:[%s360 + $0x40] sm:$0xff] %v2207
      %2310 = vst [vmem:[%s360 + $0x48] sm:$0xff] %v2210
      %2311 = vst [vmem:[%s360 + $0x50] sm:$0xff] %v2215
      %2312 = vst [vmem:[%s360 + $0x58] sm:$0xff] %v2218
      %2313 = vst [vmem:[%s360 + $0x60] sm:$0xff] %v2223
      %2314 = vst [vmem:[%s360 + $0x68] sm:$0xff] %v2226
      %2315 = vst [vmem:[%s360 + $0x70] sm:$0xff] %v2231
      %2316 = vst [vmem:[%s360 + $0x78] sm:$0xff] %v2234
      %2317 = vst [vmem:[%s360 + $0x80] sm:$0xff] %v2239
      %2318 = vst [vmem:[%s360 + $0x88] sm:$0xff] %v2242
      %2319 = vst [vmem:[%s360 + $0x90] sm:$0xff] %v2247
      %2320 = vst [vmem:[%s360 + $0x98] sm:$0xff] %v2250
      %2321 = vst [vmem:[%s360 + $0xa0] sm:$0xff] %v2255
      %2322 = vst [vmem:[%s360 + $0xa8] sm:$0xff] %v2258
      %2323 = vst [vmem:[%s360 + $0xb0] sm:$0xff] %v2263
      %2324 = vst [vmem:[%s360 + $0xb8] sm:$0xff] %v2266
      %2325 = vst [vmem:[%s360 + $0xc0] sm:$0xff] %v2271
      %2326 = vst [vmem:[%s360 + $0xc8] sm:$0xff] %v2274
      %2327 = vst [vmem:[%s360 + $0xd0] sm:$0xff] %v2279
      %2328 = vst [vmem:[%s360 + $0xd8] sm:$0xff] %v2282
      %2329 = vst [vmem:[%s360 + $0xe0] sm:$0xff] %v2287
      %2330 = vst [vmem:[%s360 + $0xe8] sm:$0xff] %v2290
      %2331 = vst [vmem:[%s360 + $0xf0] sm:$0xff] %v2295
      %2332 = vst [vmem:[%s360 + $0xf8] sm:$0xff] %v2298
      %s2333 = smul.u32 32, %s22
      %p2334 = scmp.lt.s32.totalorder %s2333, 63
      %s2335 = scalar_select %p2334, %s2333, 63
      %p2336 = scmp.lt.s32.totalorder %s23, 0
      %s2337 = scalar_select %p2336, %s23, 0
      %s2338 = sadd.s32 %s2337, %s2335
      %s2339 = smul.addr %s2338, 4
      %s2340 = scalar_lea.vmem %s5, %s2339
      %s2341 = smul.u32 32, %s22
      %p2342 = scmp.lt.s32.totalorder %s2341, 63
      %s2343 = scalar_select %p2342, %s2341, 63
      %p2344 = scmp.lt.s32.totalorder %s23, 0
      %s2345 = scalar_select %p2344, %s23, 0
      %s2346 = sadd.s32 %s2345, %s2343
      %s2347 = smul.addr %s2346, 8
      %s2348 = scalar_lea.vmem %s6, %s2347
      // Predicated region
      $region41: #{run.16} parent=39 // pred_check
        %p2349 = pneg %p180
      $region42: #{run.16} parent=39 // pred_check_branch
        %2351 = sbr.rel (%p2349) target = $region44
      $region43: #{run.16} parent=39 // pred_region
        %s2352 = smul.u32 32, %s22
      $region44: #{run.16} parent=39 // pred_fallthru
        _
      // Predicated region
      $region45: #{run.16} parent=39 // pred_check
        %p2353 = pneg %p208
      $region46: #{run.16} parent=39 // pred_check_branch
        %2355 = sbr.rel (%p2353) target = $region48
      $region47: #{run.16} parent=39 // pred_region
        %s2356 = smul.u32 32, %s22
      $region48: #{run.16} parent=39 // pred_fallthru
        _
    $region40: #{run.16} parent=5 // pred_fallthru
      _
    %p2357 = scmp.le.s32.totalorder 2, %s13
    // Predicated region
    $region49: #{run.16} parent=5 // pred_check
      %p2358 = pneg %p2357
    $region50: #{run.16} parent=5 // pred_check_branch
      %2360 = sbr.rel (%p2358) target = $region52
    $region51: #{run.16} parent=5 // pred_region
      %s2361 = ssub.s32 %s13, 2
      // Predicated region
      $region53: #{run.16} parent=51 // pred_check
        %p2362 = pneg %p186
      $region54: #{run.16} parent=51 // pred_check_branch
        %2364 = sbr.rel (%p2362) target = $region56
      $region55: #{run.16} parent=51 // pred_region
        %s2365 = smul.u32 32, %s24
        %p2366 = scmp.lt.s32.totalorder %s2365, 63
        %s2367 = scalar_select %p2366, %s2365, 63
        %p2368 = scmp.lt.s32.totalorder %s25, 0
        %s2369 = scalar_select %p2368, %s25, 0
        %s2370 = sadd.s32 %s2369, %s2367
        %s2371 = smul.addr %s2370, 4
        %s2372 = scalar_lea.vmem %s5, %s2371
      $region56: #{run.16} parent=51 // pred_fallthru
        _
      // Predicated region
      $region57: #{run.16} parent=51 // pred_check
        %p2373 = pneg %p214
      $region58: #{run.16} parent=51 // pred_check_branch
        %2375 = sbr.rel (%p2373) target = $region60
      $region59: #{run.16} parent=51 // pred_region
        %s2376 = smul.u32 32, %s24
        %p2377 = scmp.lt.s32.totalorder %s2376, 63
        %s2378 = scalar_select %p2377, %s2376, 63
        %p2379 = scmp.lt.s32.totalorder %s25, 0
        %s2380 = scalar_select %p2379, %s25, 0
        %s2381 = sadd.s32 %s2380, %s2378
        %s2382 = smul.addr %s2381, 8
        %s2383 = scalar_lea.vmem %s6, %s2382
      $region60: #{run.16} parent=51 // pred_fallthru
        _
    $region52: #{run.16} parent=5 // pred_fallthru
      _
  $region6: #{run.16} parent=0 // loop_footer
    %s17 = sadd.s32 1, %s13
  $region7: #{run.16} parent=0 // loop_footer_branch
    %12 = sbr.rel target = $region3
  $region8: #{run.16} parent=0 // loop_exit
    _

// kernel: run.17
$region0: #{run.17}
  #allocation0 [shape = 'u32[]', space=smem, size = 0x4, offset = 0x4, fixed_abs, tag = 'smem constant byte address 0x4 - core index']
  #allocation1 [shape = 'u32[144,128]{1,0:T(1,128)}', space=vmem, size = 0x12000, scoped, tag = 'internal scratch']
  %s0 = inlined_call_operand.vmem [shape: bf16[512,640], index: 0, kind: input, shape index: {}]
  %s1 = inlined_call_operand.vmem [shape: bf16[640,128], index: 1, kind: input, shape index: {}]
  %s2 = inlined_call_operand.vmem [shape: bf16[512,128], index: 2, kind: output, shape index: {0}]
  %s3 = inlined_call_operand.vmem [shape: f32[2,8,128], index: 3, kind: output, shape index: {1}]
  %4 = xla_tuple %s2, %s3
  %s5 = sld [smem:[#allocation0]]
  $region49: #{run.17} parent=0
    _
  %s7 = ssub.s32 1, %s5
  %s8 = scalar_select 0, %s7, %s5
  loop: start=0, step=1, limit=4
  $region2: #{run.17} parent=0 // loop_pre_header
    _
  $region3: #{run.17} parent=0 // loop_header
    %s10 = sphi 0, %s14
    %p11 = scmp.ge.s32.totalorder %s10, 4
    %s17 = sphi 0, %s29
    %s18 = sphi 0, %s25
    %s19 = sphi 0, %s17
    %s20 = sphi 0, %s18
    %s21 = sphi 0, %s19
    %s22 = sphi 0, %s20
    %s32 = sphi 0, %s34
    %s35 = sphi 0, %s32
    %s36 = sphi 0, %s35
    %s52 = sphi 0, %s36
    %s58 = sphi 0, %s60
    %s61 = sphi 0, %s58
    %s62 = sphi 0, %s61
    %s78 = sphi 0, %s62
    %s86 = sphi 0, %s88
    %s89 = sphi 0, %s86
    %s90 = sphi 0, %s89
    %s106 = sphi 0, %s90
    %s114 = sphi 0, %s116
    %s117 = sphi 0, %s114
    %s118 = sphi 0, %s117
    %s134 = sphi 0, %s118
  $region4: #{run.17} parent=0 // loop_header_branch
    %13 = sbr.rel (%p11) target = $region8
  $region5: #{run.17} parent=0 // loop_body
    %s15 = ssub.s32 %s10, 1
    %s16 = ssub.s32 %s10, 2
    %s23 = sadd.s32 1, %s18
    %p24 = scmp.ge.s32.totalorder %s23, 1
    %s25 = scalar_select %p24, 0, %s23
    %s26 = sadd.s32 1, %s17
    %s27 = scalar_select %p24, %s26, %s17
    %p28 = scmp.ge.s32.totalorder %s27, 2
    %s29 = scalar_select %p28, 0, %s27
    %s30 = ssub.s32 %s17, %s29
    %p31 = scmp.eq.s32.totalorder %s30, 0
    %s33 = sadd.s32 %s32, 1
    %s34 = scalar_select %p31, %s32, %s33
    %p37 = pneg %p31
    %p38 = scmp.eq.s32.totalorder %s10, 1
    %p39 = por %p37, %p38
    %p40 = scmp.ne.s32.totalorder %s32, %s35
    %p41 = scmp.eq.s32.totalorder %s10, 0
    %p42 = por %p40, %p41
    %p43 = scmp.ne.s32.totalorder %s32, %s35
    %p44 = scmp.eq.s32.totalorder %s15, 1
    %p45 = por %p43, %p44
    %p46 = scmp.ne.s32.totalorder %s35, %s36
    %p47 = scmp.eq.s32.totalorder %s15, 0
    %p48 = por %p46, %p47
    %p49 = scmp.ne.s32.totalorder %s35, %s36
    %p50 = scmp.eq.s32.totalorder %s16, 1
    %p51 = por %p49, %p50
    %p53 = scmp.ne.s32.totalorder %s36, %s52
    %p54 = scmp.eq.s32.totalorder %s16, 0
    %p55 = por %p53, %p54
    %s56 = ssub.s32 %s18, %s25
    %p57 = scmp.eq.s32.totalorder %s56, 0
    %s59 = sadd.s32 %s58, 1
    %s60 = scalar_select %p57, %s58, %s59
    %p63 = pneg %p57
    %p64 = scmp.eq.s32.totalorder %s10, 1
    %p65 = por %p63, %p64
    %p66 = scmp.ne.s32.totalorder %s58, %s61
    %p67 = scmp.eq.s32.totalorder %s10, 0
    %p68 = por %p66, %p67
    %p69 = scmp.ne.s32.totalorder %s58, %s61
    %p70 = scmp.eq.s32.totalorder %s15, 1
    %p71 = por %p69, %p70
    %p72 = scmp.ne.s32.totalorder %s61, %s62
    %p73 = scmp.eq.s32.totalorder %s15, 0
    %p74 = por %p72, %p73
    %p75 = scmp.ne.s32.totalorder %s61, %s62
    %p76 = scmp.eq.s32.totalorder %s16, 1
    %p77 = por %p75, %p76
    %p79 = scmp.ne.s32.totalorder %s62, %s78
    %p80 = scmp.eq.s32.totalorder %s16, 0
    %p81 = por %p79, %p80
    %s82 = ssub.s32 %s17, %s29
    %s83 = ssub.s32 %s18, %s25
    %s84 = sor.u32 %s82, %s83
    %p85 = scmp.eq.s32.totalorder %s84, 0
    %s87 = sadd.s32 %s86, 1
    %s88 = scalar_select %p85, %s86, %s87
    %p91 = pneg %p85
    %p92 = scmp.eq.s32.totalorder %s10, 1
    %p93 = por %p91, %p92
    %p94 = scmp.ne.s32.totalorder %s86, %s89
    %p95 = scmp.eq.s32.totalorder %s10, 0
    %p96 = por %p94, %p95
    %p97 = scmp.ne.s32.totalorder %s86, %s89
    %p98 = scmp.eq.s32.totalorder %s15, 1
    %p99 = por %p97, %p98
    %p100 = scmp.ne.s32.totalorder %s89, %s90
    %p101 = scmp.eq.s32.totalorder %s15, 0
    %p102 = por %p100, %p101
    %p103 = scmp.ne.s32.totalorder %s89, %s90
    %p104 = scmp.eq.s32.totalorder %s16, 1
    %p105 = por %p103, %p104
    %p107 = scmp.ne.s32.totalorder %s90, %s106
    %p108 = scmp.eq.s32.totalorder %s16, 0
    %p109 = por %p107, %p108
    %s110 = ssub.s32 %s17, %s29
    %s111 = ssub.s32 %s18, %s25
    %s112 = sor.u32 %s110, %s111
    %p113 = scmp.eq.s32.totalorder %s112, 0
    %s115 = sadd.s32 %s114, 1
    %s116 = scalar_select %p113, %s114, %s115
    %p119 = pneg %p113
    %p120 = scmp.eq.s32.totalorder %s10, 1
    %p121 = por %p119, %p120
    %p122 = scmp.ne.s32.totalorder %s114, %s117
    %p123 = scmp.eq.s32.totalorder %s10, 0
    %p124 = por %p122, %p123
    %p125 = scmp.ne.s32.totalorder %s114, %s117
    %p126 = scmp.eq.s32.totalorder %s15, 1
    %p127 = por %p125, %p126
    %p128 = scmp.ne.s32.totalorder %s117, %s118
    %p129 = scmp.eq.s32.totalorder %s15, 0
    %p130 = por %p128, %p129
    %p131 = scmp.ne.s32.totalorder %s117, %s118
    %p132 = scmp.eq.s32.totalorder %s16, 1
    %p133 = por %p131, %p132
    %p135 = scmp.ne.s32.totalorder %s118, %s134
    %p136 = scmp.eq.s32.totalorder %s16, 0
    %p137 = por %p135, %p136
    %p138 = scmp.le.s32.totalorder 1, %s10
    %p139 = scmp.lt.s32.totalorder %s10, 3
    %p140 = pnand %p138, %p139
    %p141 = pneg %p140
    // Predicated region
    $region9: #{run.17} parent=5 // pred_check
      _
    $region10: #{run.17} parent=5 // pred_check_branch
      %143 = sbr.rel (%p140) target = $region12
    $region11: #{run.17} parent=5 // pred_region
      %s144 = ssub.s32 %s10, 1
      // Predicated region
      $region13: #{run.17} parent=11 // pred_check
        %p145 = pneg %p74
      $region14: #{run.17} parent=11 // pred_check_branch
        %147 = sbr.rel (%p145) target = $region16
      $region15: #{run.17} parent=11 // pred_region
        %p148 = scmp.lt.s32.totalorder %s20, 0
        %s149 = scalar_select %p148, %s20, 0
        %s150 = smul.addr %s149, 4
        %s151 = scalar_lea.vmem %s1, %s150
      $region16: #{run.17} parent=11 // pred_fallthru
        _
    $region12: #{run.17} parent=5 // pred_fallthru
      _
    %p152 = scmp.lt.s32.totalorder %s10, 2
    // Predicated region
    $region17: #{run.17} parent=5 // pred_check
      %p153 = pneg %p152
    $region18: #{run.17} parent=5 // pred_check_branch
      %155 = sbr.rel (%p153) target = $region20
    $region19: #{run.17} parent=5 // pred_region
      // Predicated region
      $region21: #{run.17} parent=19 // pred_check
        %p156 = pneg %p42
      $region22: #{run.17} parent=19 // pred_check_branch
        %158 = sbr.rel (%p156) target = $region24
      $region23: #{run.17} parent=19 // pred_region
        %s159 = smul.u32 32, %s17
        %p160 = scmp.lt.s32.totalorder %s159, 63
        %s161 = scalar_select %p160, %s159, 63
        %s162 = smul.addr %s161, 5
        %s163 = smul.addr %s162, 4
        %s164 = scalar_lea.vmem %s0, %s163
        %s165 = smul.u32 32, %s17
      $region24: #{run.17} parent=19 // pred_fallthru
        _
    $region20: #{run.17} parent=5 // pred_fallthru
      _
    %p166 = scmp.le.s32.totalorder 1, %s10
    %p167 = scmp.lt.s32.totalorder %s10, 3
    %p168 = pnand %p166, %p167
    %p169 = pneg %p168
    // Predicated region
    $region25: #{run.17} parent=5 // pred_check
      _
    $region26: #{run.17} parent=5 // pred_check_branch
      %171 = sbr.rel (%p168) target = $region28
    $region27: #{run.17} parent=5 // pred_region
      %s172 = ssub.s32 %s10, 1
      %s173 = smul.u32 32, %s19
      %p174 = scmp.lt.s32.totalorder %s173, 63
      %s175 = scalar_select %p174, %s173, 63
      %s176 = smul.addr %s175, 5
      %s177 = smul.addr %s176, 4
      %s178 = scalar_lea.vmem %s0, %s177
      %p179 = pneg %p48
      %p180 = pneg %p45
      %p181 = scmp.lt.s32.totalorder %s20, 0
      %s182 = scalar_select %p181, %s20, 0
      %s183 = smul.addr %s182, 4
      %s184 = scalar_lea.vmem %s1, %s183
      %p185 = pneg %p74
      %p186 = pneg %p71
      %p187 = pneg %p102
      %p188 = pneg %p99
      %s189 = smul.u32 32, %s19
      %p190 = scmp.lt.s32.totalorder %s189, 63
      %s191 = scalar_select %p190, %s189, 63
      %p192 = scmp.lt.s32.totalorder %s20, 0
      %s193 = scalar_select %p192, %s20, 0
      %s194 = sadd.s32 %s193, %s191
      %s195 = smul.addr %s194, 4
      %s196 = scalar_lea.vmem %s2, %s195
      %p197 = pneg %p130
      %p198 = pneg %p127
      %p199 = scmp.lt.s32.totalorder %s19, 1
      %s200 = scalar_select %p199, %s19, 1
      %p201 = scmp.lt.s32.totalorder %s20, 0
      %s202 = scalar_select %p201, %s20, 0
      %s203 = sadd.s32 %s202, %s200
      %s204 = smul.addr %s203, 8
      %s205 = scalar_lea.vmem %s3, %s204
      %s206 = smul.u32 32, %s19
      %p207 = scmp.lt.s32.totalorder %s206, 63
      %s208 = scalar_select %p207, %s206, 63
      %s209 = smul.addr %s208, 5
      %s210 = smul.addr %s209, 4
      %s211 = scalar_lea.vmem %s0, %s210
      %s212 = smul.u32 32, %s19
      %p213 = scmp.lt.s32.totalorder %s20, 0
      %s214 = scalar_select %p213, %s20, 0
      %s215 = smul.addr %s214, 4
      %s216 = scalar_lea.vmem %s1, %s215
      %s217 = smul.u32 32, %s19
      %p218 = scmp.lt.s32.totalorder %s217, 63
      %s219 = scalar_select %p218, %s217, 63
      %p220 = scmp.lt.s32.totalorder %s20, 0
      %s221 = scalar_select %p220, %s20, 0
      %s222 = sadd.s32 %s221, %s219
      %s223 = smul.addr %s222, 4
      %s224 = scalar_lea.vmem %s2, %s223
      %s225 = smul.u32 32, %s19
      %p226 = scmp.lt.s32.totalorder %s19, 1
      %s227 = scalar_select %p226, %s19, 1
      %p228 = scmp.lt.s32.totalorder %s20, 0
      %s229 = scalar_select %p228, %s20, 0
      %s230 = sadd.s32 %s229, %s227
      %s231 = smul.addr %s230, 8
      %s232 = scalar_lea.vmem %s3, %s231
      %v234 = vld [vmem:[%s211] sm:$0xff]
      %v235 = vld [vmem:[%s211 + $0x8] sm:$0xff]
      %v236 = vld [vmem:[%s211 + $0x10] sm:$0xf]
      %v237 = vld [vmem:[%s211 + $0x14] sm:$0xff]
      %v238 = vld [vmem:[%s211 + $0x1c] sm:$0xff]
      %v239 = vld [vmem:[%s211 + $0x24] sm:$0xf]
      %v240 = vld [vmem:[%s211 + $0x28] sm:$0xff]
      %v241 = vld [vmem:[%s211 + $0x30] sm:$0xff]
      %v242 = vld [vmem:[%s211 + $0x38] sm:$0xf]
      %v243 = vld [vmem:[%s211 + $0x3c] sm:$0xff]
      %v244 = vld [vmem:[%s211 + $0x44] sm:$0xff]
      %v245 = vld [vmem:[%s211 + $0x4c] sm:$0xf]
      %v246 = vld [vmem:[%s211 + $0x50] sm:$0xff]
      %v247 = vld [vmem:[%s211 + $0x58] sm:$0xff]
      %v248 = vld [vmem:[%s211 + $0x60] sm:$0xf]
      %v249 = vld [vmem:[%s211 + $0x64] sm:$0xff]
      %v250 = vld [vmem:[%s211 + $0x6c] sm:$0xff]
      %v251 = vld [vmem:[%s211 + $0x74] sm:$0xf]
      %v252 = vld [vmem:[%s211 + $0x78] sm:$0xff]
      %v253 = vld [vmem:[%s211 + $0x80] sm:$0xff]
      %v254 = vld [vmem:[%s211 + $0x88] sm:$0xf]
      %v255 = vld [vmem:[%s211 + $0x8c] sm:$0xff]
      %v256 = vld [vmem:[%s211 + $0x94] sm:$0xff]
      %v257 = vld [vmem:[%s211 + $0x9c] sm:$0xf]
      %v258 = vld [vmem:[%s211 + $0xa0] sm:$0xff]
      %v259 = vld [vmem:[%s211 + $0xa8] sm:$0xff]
      %v260 = vld [vmem:[%s211 + $0xb0] sm:$0xf]
      %v261 = vld [vmem:[%s211 + $0xb4] sm:$0xff]
      %v262 = vld [vmem:[%s211 + $0xbc] sm:$0xff]
      %v263 = vld [vmem:[%s211 + $0xc4] sm:$0xf]
      %v264 = vld [vmem:[%s211 + $0xc8] sm:$0xff]
      %v265 = vld [vmem:[%s211 + $0xd0] sm:$0xff]
      %v266 = vld [vmem:[%s211 + $0xd8] sm:$0xf]
      %v267 = vld [vmem:[%s211 + $0xdc] sm:$0xff]
      %v268 = vld [vmem:[%s211 + $0xe4] sm:$0xff]
      %v269 = vld [vmem:[%s211 + $0xec] sm:$0xf]
      %v270 = vld [vmem:[%s211 + $0xf0] sm:$0xff]
      %v271 = vld [vmem:[%s211 + $0xf8] sm:$0xff]
      %v272 = vld [vmem:[%s211 + $0x100] sm:$0xf]
      %v273 = vld [vmem:[%s211 + $0x104] sm:$0xff]
      %v274 = vld [vmem:[%s211 + $0x10c] sm:$0xff]
      %v275 = vld [vmem:[%s211 + $0x114] sm:$0xf]
      %v276 = vld [vmem:[%s211 + $0x118] sm:$0xff]
      %v277 = vld [vmem:[%s211 + $0x120] sm:$0xff]
      %v278 = vld [vmem:[%s211 + $0x128] sm:$0xf]
      %v279 = vld [vmem:[%s211 + $0x12c] sm:$0xff]
      %v280 = vld [vmem:[%s211 + $0x134] sm:$0xff]
      %v281 = vld [vmem:[%s211 + $0x13c] sm:$0xf]
      %v282 = vld [vmem:[%s211 + $0x140] sm:$0xff]
      %v283 = vld [vmem:[%s211 + $0x148] sm:$0xff]
      %v284 = vld [vmem:[%s211 + $0x150] sm:$0xf]
      %v285 = vld [vmem:[%s211 + $0x154] sm:$0xff]
      %v286 = vld [vmem:[%s211 + $0x15c] sm:$0xff]
      %v287 = vld [vmem:[%s211 + $0x164] sm:$0xf]
      %v288 = vld [vmem:[%s211 + $0x168] sm:$0xff]
      %v289 = vld [vmem:[%s211 + $0x170] sm:$0xff]
      %v290 = vld [vmem:[%s211 + $0x178] sm:$0xf]
      %v291 = vld [vmem:[%s211 + $0x17c] sm:$0xff]
      %v292 = vld [vmem:[%s211 + $0x184] sm:$0xff]
      %v293 = vld [vmem:[%s211 + $0x18c] sm:$0xf]
      %v294 = vld [vmem:[%s211 + $0x190] sm:$0xff]
      %v295 = vld [vmem:[%s211 + $0x198] sm:$0xff]
      %v296 = vld [vmem:[%s211 + $0x1a0] sm:$0xf]
      %v297 = vld [vmem:[%s211 + $0x1a4] sm:$0xff]
      %v298 = vld [vmem:[%s211 + $0x1ac] sm:$0xff]
      %v299 = vld [vmem:[%s211 + $0x1b4] sm:$0xf]
      %v300 = vld [vmem:[%s211 + $0x1b8] sm:$0xff]
      %v301 = vld [vmem:[%s211 + $0x1c0] sm:$0xff]
      %v302 = vld [vmem:[%s211 + $0x1c8] sm:$0xf]
      %v303 = vld [vmem:[%s211 + $0x1cc] sm:$0xff]
      %v304 = vld [vmem:[%s211 + $0x1d4] sm:$0xff]
      %v305 = vld [vmem:[%s211 + $0x1dc] sm:$0xf]
      %v306 = vld [vmem:[%s211 + $0x1e0] sm:$0xff]
      %v307 = vld [vmem:[%s211 + $0x1e8] sm:$0xff]
      %v308 = vld [vmem:[%s211 + $0x1f0] sm:$0xf]
      %v309 = vld [vmem:[%s211 + $0x1f4] sm:$0xff]
      %v310 = vld [vmem:[%s211 + $0x1fc] sm:$0xff]
      %v311 = vld [vmem:[%s211 + $0x204] sm:$0xf]
      %v312 = vld [vmem:[%s211 + $0x208] sm:$0xff]
      %v313 = vld [vmem:[%s211 + $0x210] sm:$0xff]
      %v314 = vld [vmem:[%s211 + $0x218] sm:$0xf]
      %v315 = vld [vmem:[%s211 + $0x21c] sm:$0xff]
      %v316 = vld [vmem:[%s211 + $0x224] sm:$0xff]
      %v317 = vld [vmem:[%s211 + $0x22c] sm:$0xf]
      %v318 = vld [vmem:[%s211 + $0x230] sm:$0xff]
      %v319 = vld [vmem:[%s211 + $0x238] sm:$0xff]
      %v320 = vld [vmem:[%s211 + $0x240] sm:$0xf]
      %v321 = vld [vmem:[%s211 + $0x244] sm:$0xff]
      %v322 = vld [vmem:[%s211 + $0x24c] sm:$0xff]
      %v323 = vld [vmem:[%s211 + $0x254] sm:$0xf]
      %v324 = vld [vmem:[%s211 + $0x258] sm:$0xff]
      %v325 = vld [vmem:[%s211 + $0x260] sm:$0xff]
      %v326 = vld [vmem:[%s211 + $0x268] sm:$0xf]
      %v327 = vld [vmem:[%s211 + $0x26c] sm:$0xff]
      %v328 = vld [vmem:[%s211 + $0x274] sm:$0xff]
      %v329 = vld [vmem:[%s211 + $0x27c] sm:$0xf]
      %v330 = vld [vmem:[%s216] sm:$0xf]
      %v331 = vld [vmem:[%s216 + $0x4] sm:$0xf]
      %v332 = vld [vmem:[%s216 + $0x8] sm:$0xf]
      %v333 = vld [vmem:[%s216 + $0xc] sm:$0xf]
      %v334 = vld [vmem:[%s216 + $0x10] sm:$0xf]
      %v335 = vld [vmem:[%s216 + $0x14] sm:$0xf]
      %v336 = vld [vmem:[%s216 + $0x18] sm:$0xf]
      %v337 = vld [vmem:[%s216 + $0x1c] sm:$0xf]
      %v338 = vld [vmem:[%s216 + $0x20] sm:$0xf]
      %v339 = vld [vmem:[%s216 + $0x24] sm:$0xf]
      %v340 = vld [vmem:[%s216 + $0x28] sm:$0xf]
      %v341 = vld [vmem:[%s216 + $0x2c] sm:$0xf]
      %v342 = vld [vmem:[%s216 + $0x30] sm:$0xf]
      %v343 = vld [vmem:[%s216 + $0x34] sm:$0xf]
      %v344 = vld [vmem:[%s216 + $0x38] sm:$0xf]
      %v345 = vld [vmem:[%s216 + $0x3c] sm:$0xf]
      %v346 = vld [vmem:[%s216 + $0x40] sm:$0xf]
      %v347 = vld [vmem:[%s216 + $0x44] sm:$0xf]
      %v348 = vld [vmem:[%s216 + $0x48] sm:$0xf]
      %v349 = vld [vmem:[%s216 + $0x4c] sm:$0xf]
      %v350 = vld [vmem:[%s216 + $0x50] sm:$0xf]
      %v351 = vld [vmem:[%s216 + $0x54] sm:$0xf]
      %v352 = vld [vmem:[%s216 + $0x58] sm:$0xf]
      %v353 = vld [vmem:[%s216 + $0x5c] sm:$0xf]
      %v354 = vld [vmem:[%s216 + $0x60] sm:$0xf]
      %v355 = vld [vmem:[%s216 + $0x64] sm:$0xf]
      %v356 = vld [vmem:[%s216 + $0x68] sm:$0xf]
      %v357 = vld [vmem:[%s216 + $0x6c] sm:$0xf]
      %v358 = vld [vmem:[%s216 + $0x70] sm:$0xf]
      %v359 = vld [vmem:[%s216 + $0x74] sm:$0xf]
      %v360 = vld [vmem:[%s216 + $0x78] sm:$0xf]
      %v361 = vld [vmem:[%s216 + $0x7c] sm:$0xf]
      %v362 = vld [vmem:[%s216 + $0x80] sm:$0xf]
      %v363 = vld [vmem:[%s216 + $0x84] sm:$0xf]
      %v364 = vld [vmem:[%s216 + $0x88] sm:$0xf]
      %v365 = vld [vmem:[%s216 + $0x8c] sm:$0xf]
      %v366 = vld [vmem:[%s216 + $0x90] sm:$0xf]
      %v367 = vld [vmem:[%s216 + $0x94] sm:$0xf]
      %v368 = vld [vmem:[%s216 + $0x98] sm:$0xf]
      %v369 = vld [vmem:[%s216 + $0x9c] sm:$0xf]
      %v370 = vld [vmem:[%s216 + $0xa0] sm:$0xf]
      %v371 = vld [vmem:[%s216 + $0xa4] sm:$0xf]
      %v372 = vld [vmem:[%s216 + $0xa8] sm:$0xf]
      %v373 = vld [vmem:[%s216 + $0xac] sm:$0xf]
      %v374 = vld [vmem:[%s216 + $0xb0] sm:$0xf]
      %v375 = vld [vmem:[%s216 + $0xb4] sm:$0xf]
      %v376 = vld [vmem:[%s216 + $0xb8] sm:$0xf]
      %v377 = vld [vmem:[%s216 + $0xbc] sm:$0xf]
      %v378 = vld [vmem:[%s216 + $0xc0] sm:$0xf]
      %v379 = vld [vmem:[%s216 + $0xc4] sm:$0xf]
      %v380 = vld [vmem:[%s216 + $0xc8] sm:$0xf]
      %v381 = vld [vmem:[%s216 + $0xcc] sm:$0xf]
      %v382 = vld [vmem:[%s216 + $0xd0] sm:$0xf]
      %v383 = vld [vmem:[%s216 + $0xd4] sm:$0xf]
      %v384 = vld [vmem:[%s216 + $0xd8] sm:$0xf]
      %v385 = vld [vmem:[%s216 + $0xdc] sm:$0xf]
      %v386 = vld [vmem:[%s216 + $0xe0] sm:$0xf]
      %v387 = vld [vmem:[%s216 + $0xe4] sm:$0xf]
      %v388 = vld [vmem:[%s216 + $0xe8] sm:$0xf]
      %v389 = vld [vmem:[%s216 + $0xec] sm:$0xf]
      %v390 = vld [vmem:[%s216 + $0xf0] sm:$0xf]
      %v391 = vld [vmem:[%s216 + $0xf4] sm:$0xf]
      %v392 = vld [vmem:[%s216 + $0xf8] sm:$0xf]
      %v393 = vld [vmem:[%s216 + $0xfc] sm:$0xf]
      %v394 = vld [vmem:[%s216 + $0x100] sm:$0xf]
      %v395 = vld [vmem:[%s216 + $0x104] sm:$0xf]
      %v396 = vld [vmem:[%s216 + $0x108] sm:$0xf]
      %v397 = vld [vmem:[%s216 + $0x10c] sm:$0xf]
      %v398 = vld [vmem:[%s216 + $0x110] sm:$0xf]
      %v399 = vld [vmem:[%s216 + $0x114] sm:$0xf]
      %v400 = vld [vmem:[%s216 + $0x118] sm:$0xf]
      %v401 = vld [vmem:[%s216 + $0x11c] sm:$0xf]
      %v402 = vld [vmem:[%s216 + $0x120] sm:$0xf]
      %v403 = vld [vmem:[%s216 + $0x124] sm:$0xf]
      %v404 = vld [vmem:[%s216 + $0x128] sm:$0xf]
      %v405 = vld [vmem:[%s216 + $0x12c] sm:$0xf]
      %v406 = vld [vmem:[%s216 + $0x130] sm:$0xf]
      %v407 = vld [vmem:[%s216 + $0x134] sm:$0xf]
      %v408 = vld [vmem:[%s216 + $0x138] sm:$0xf]
      %v409 = vld [vmem:[%s216 + $0x13c] sm:$0xf]
      %v506 = vunpack.c.l.b16 %v234
      %v507 = vunpack.c.h.b16 %v234
      %v508 = vunpack.c.l.b16 %v235
      %v509 = vunpack.c.h.b16 %v235
      %v510 = vunpack.c.l.b16 %v236
      %v511 = vunpack.c.l.b16 %v237
      %v512 = vunpack.c.h.b16 %v237
      %v513 = vunpack.c.l.b16 %v238
      %v514 = vunpack.c.h.b16 %v238
      %v515 = vunpack.c.l.b16 %v239
      %v516 = vunpack.c.l.b16 %v240
      %v517 = vunpack.c.h.b16 %v240
      %v518 = vunpack.c.l.b16 %v241
      %v519 = vunpack.c.h.b16 %v241
      %v520 = vunpack.c.l.b16 %v242
      %v521 = vunpack.c.l.b16 %v243
      %v522 = vunpack.c.h.b16 %v243
      %v523 = vunpack.c.l.b16 %v244
      %v524 = vunpack.c.h.b16 %v244
      %v525 = vunpack.c.l.b16 %v245
      %v526 = vunpack.c.l.b16 %v246
      %v527 = vunpack.c.h.b16 %v246
      %v528 = vunpack.c.l.b16 %v247
      %v529 = vunpack.c.h.b16 %v247
      %v530 = vunpack.c.l.b16 %v248
      %v531 = vunpack.c.l.b16 %v249
      %v532 = vunpack.c.h.b16 %v249
      %v533 = vunpack.c.l.b16 %v250
      %v534 = vunpack.c.h.b16 %v250
      %v535 = vunpack.c.l.b16 %v251
      %v536 = vunpack.c.l.b16 %v252
      %v537 = vunpack.c.h.b16 %v252
      %v538 = vunpack.c.l.b16 %v253
      %v539 = vunpack.c.h.b16 %v253
      %v540 = vunpack.c.l.b16 %v254
      %v541 = vunpack.c.l.b16 %v255
      %v542 = vunpack.c.h.b16 %v255
      %v543 = vunpack.c.l.b16 %v256
      %v544 = vunpack.c.h.b16 %v256
      %v545 = vunpack.c.l.b16 %v257
      %v546 = vunpack.c.l.b16 %v258
      %v547 = vunpack.c.h.b16 %v258
      %v548 = vunpack.c.l.b16 %v259
      %v549 = vunpack.c.h.b16 %v259
      %v550 = vunpack.c.l.b16 %v260
      %v551 = vunpack.c.l.b16 %v261
      %v552 = vunpack.c.h.b16 %v261
      %v553 = vunpack.c.l.b16 %v262
      %v554 = vunpack.c.h.b16 %v262
      %v555 = vunpack.c.l.b16 %v263
      %v556 = vunpack.c.l.b16 %v264
      %v557 = vunpack.c.h.b16 %v264
      %v558 = vunpack.c.l.b16 %v265
      %v559 = vunpack.c.h.b16 %v265
      %v560 = vunpack.c.l.b16 %v266
      %v561 = vunpack.c.l.b16 %v267
      %v562 = vunpack.c.h.b16 %v267
      %v563 = vunpack.c.l.b16 %v268
      %v564 = vunpack.c.h.b16 %v268
      %v565 = vunpack.c.l.b16 %v269
      %v566 = vunpack.c.l.b16 %v270
      %v567 = vunpack.c.h.b16 %v270
      %v568 = vunpack.c.l.b16 %v271
      %v569 = vunpack.c.h.b16 %v271
      %v570 = vunpack.c.l.b16 %v272
      %v571 = vunpack.c.l.b16 %v273
      %v572 = vunpack.c.h.b16 %v273
      %v573 = vunpack.c.l.b16 %v274
      %v574 = vunpack.c.h.b16 %v274
      %v575 = vunpack.c.l.b16 %v275
      %v576 = vunpack.c.l.b16 %v276
      %v577 = vunpack.c.h.b16 %v276
      %v578 = vunpack.c.l.b16 %v277
      %v579 = vunpack.c.h.b16 %v277
      %v580 = vunpack.c.l.b16 %v278
      %v581 = vunpack.c.l.b16 %v279
      %v582 = vunpack.c.h.b16 %v279
      %v583 = vunpack.c.l.b16 %v280
      %v584 = vunpack.c.h.b16 %v280
      %v585 = vunpack.c.l.b16 %v281
      %v586 = vunpack.c.l.b16 %v282
      %v587 = vunpack.c.h.b16 %v282
      %v588 = vunpack.c.l.b16 %v283
      %v589 = vunpack.c.h.b16 %v283
      %v590 = vunpack.c.l.b16 %v284
      %v591 = vunpack.c.l.b16 %v285
      %v592 = vunpack.c.h.b16 %v285
      %v593 = vunpack.c.l.b16 %v286
      %v594 = vunpack.c.h.b16 %v286
      %v595 = vunpack.c.l.b16 %v287
      %v596 = vunpack.c.l.b16 %v288
      %v597 = vunpack.c.h.b16 %v288
      %v598 = vunpack.c.l.b16 %v289
      %v599 = vunpack.c.h.b16 %v289
      %v600 = vunpack.c.l.b16 %v290
      %v601 = vunpack.c.l.b16 %v291
      %v602 = vunpack.c.h.b16 %v291
      %v603 = vunpack.c.l.b16 %v292
      %v604 = vunpack.c.h.b16 %v292
      %v605 = vunpack.c.l.b16 %v293
      %v606 = vunpack.c.l.b16 %v294
      %v607 = vunpack.c.h.b16 %v294
      %v608 = vunpack.c.l.b16 %v295
      %v609 = vunpack.c.h.b16 %v295
      %v610 = vunpack.c.l.b16 %v296
      %v611 = vunpack.c.l.b16 %v297
      %v612 = vunpack.c.h.b16 %v297
      %v613 = vunpack.c.l.b16 %v298
      %v614 = vunpack.c.h.b16 %v298
      %v615 = vunpack.c.l.b16 %v299
      %v616 = vunpack.c.l.b16 %v300
      %v617 = vunpack.c.h.b16 %v300
      %v618 = vunpack.c.l.b16 %v301
      %v619 = vunpack.c.h.b16 %v301
      %v620 = vunpack.c.l.b16 %v302
      %v621 = vunpack.c.l.b16 %v303
      %v622 = vunpack.c.h.b16 %v303
      %v623 = vunpack.c.l.b16 %v304
      %v624 = vunpack.c.h.b16 %v304
      %v625 = vunpack.c.l.b16 %v305
      %v626 = vunpack.c.l.b16 %v306
      %v627 = vunpack.c.h.b16 %v306
      %v628 = vunpack.c.l.b16 %v307
      %v629 = vunpack.c.h.b16 %v307
      %v630 = vunpack.c.l.b16 %v308
      %v631 = vunpack.c.l.b16 %v309
      %v632 = vunpack.c.h.b16 %v309
      %v633 = vunpack.c.l.b16 %v310
      %v634 = vunpack.c.h.b16 %v310
      %v635 = vunpack.c.l.b16 %v311
      %v636 = vunpack.c.l.b16 %v312
      %v637 = vunpack.c.h.b16 %v312
      %v638 = vunpack.c.l.b16 %v313
      %v639 = vunpack.c.h.b16 %v313
      %v640 = vunpack.c.l.b16 %v314
      %v641 = vunpack.c.l.b16 %v315
      %v642 = vunpack.c.h.b16 %v315
      %v643 = vunpack.c.l.b16 %v316
      %v644 = vunpack.c.h.b16 %v316
      %v645 = vunpack.c.l.b16 %v317
      %v646 = vunpack.c.l.b16 %v318
      %v647 = vunpack.c.h.b16 %v318
      %v648 = vunpack.c.l.b16 %v319
      %v649 = vunpack.c.h.b16 %v319
      %v650 = vunpack.c.l.b16 %v320
      %v651 = vunpack.c.l.b16 %v321
      %v652 = vunpack.c.h.b16 %v321
      %v653 = vunpack.c.l.b16 %v322
      %v654 = vunpack.c.h.b16 %v322
      %v655 = vunpack.c.l.b16 %v323
      %v656 = vunpack.c.l.b16 %v324
      %v657 = vunpack.c.h.b16 %v324
      %v658 = vunpack.c.l.b16 %v325
      %v659 = vunpack.c.h.b16 %v325
      %v660 = vunpack.c.l.b16 %v326
      %v661 = vunpack.c.l.b16 %v327
      %v662 = vunpack.c.h.b16 %v327
      %v663 = vunpack.c.l.b16 %v328
      %v664 = vunpack.c.h.b16 %v328
      %v665 = vunpack.c.l.b16 %v329
      %v666 = vpack.c.b16 %v511, %v506
      %v667 = vpack.c.b16 %v512, %v507
      %v668 = vpack.c.b16 %v513, %v508
      %v669 = vpack.c.b16 %v514, %v509
      %v670 = vpack.c.b16 %v515, %v510
      %v671 = vpack.c.b16 %v521, %v516
      %v672 = vpack.c.b16 %v522, %v517
      %v673 = vpack.c.b16 %v523, %v518
      %v674 = vpack.c.b16 %v524, %v519
      %v675 = vpack.c.b16 %v525, %v520
      %v676 = vpack.c.b16 %v531, %v526
      %v677 = vpack.c.b16 %v532, %v527
      %v678 = vpack.c.b16 %v533, %v528
      %v679 = vpack.c.b16 %v534, %v529
      %v680 = vpack.c.b16 %v535, %v530
      %v681 = vpack.c.b16 %v541, %v536
      %v682 = vpack.c.b16 %v542, %v537
      %v683 = vpack.c.b16 %v543, %v538
      %v684 = vpack.c.b16 %v544, %v539
      %v685 = vpack.c.b16 %v545, %v540
      %v686 = vpack.c.b16 %v551, %v546
      %v687 = vpack.c.b16 %v552, %v547
      %v688 = vpack.c.b16 %v553, %v548
      %v689 = vpack.c.b16 %v554, %v549
      %v690 = vpack.c.b16 %v555, %v550
      %v691 = vpack.c.b16 %v561, %v556
      %v692 = vpack.c.b16 %v562, %v557
      %v693 = vpack.c.b16 %v563, %v558
      %v694 = vpack.c.b16 %v564, %v559
      %v695 = vpack.c.b16 %v565, %v560
      %v696 = vpack.c.b16 %v571, %v566
      %v697 = vpack.c.b16 %v572, %v567
      %v698 = vpack.c.b16 %v573, %v568
      %v699 = vpack.c.b16 %v574, %v569
      %v700 = vpack.c.b16 %v575, %v570
      %v701 = vpack.c.b16 %v581, %v576
      %v702 = vpack.c.b16 %v582, %v577
      %v703 = vpack.c.b16 %v583, %v578
      %v704 = vpack.c.b16 %v584, %v579
      %v705 = vpack.c.b16 %v585, %v580
      %v706 = vpack.c.b16 %v591, %v586
      %v707 = vpack.c.b16 %v592, %v587
      %v708 = vpack.c.b16 %v593, %v588
      %v709 = vpack.c.b16 %v594, %v589
      %v710 = vpack.c.b16 %v595, %v590
      %v711 = vpack.c.b16 %v601, %v596
      %v712 = vpack.c.b16 %v602, %v597
      %v713 = vpack.c.b16 %v603, %v598
      %v714 = vpack.c.b16 %v604, %v599
      %v715 = vpack.c.b16 %v605, %v600
      %v716 = vpack.c.b16 %v611, %v606
      %v717 = vpack.c.b16 %v612, %v607
      %v718 = vpack.c.b16 %v613, %v608
      %v719 = vpack.c.b16 %v614, %v609
      %v720 = vpack.c.b16 %v615, %v610
      %v721 = vpack.c.b16 %v621, %v616
      %v722 = vpack.c.b16 %v622, %v617
      %v723 = vpack.c.b16 %v623, %v618
      %v724 = vpack.c.b16 %v624, %v619
      %v725 = vpack.c.b16 %v625, %v620
      %v726 = vpack.c.b16 %v631, %v626
      %v727 = vpack.c.b16 %v632, %v627
      %v728 = vpack.c.b16 %v633, %v628
      %v729 = vpack.c.b16 %v634, %v629
      %v730 = vpack.c.b16 %v635, %v630
      %v731 = vpack.c.b16 %v641, %v636
      %v732 = vpack.c.b16 %v642, %v637
      %v733 = vpack.c.b16 %v643, %v638
      %v734 = vpack.c.b16 %v644, %v639
      %v735 = vpack.c.b16 %v645, %v640
      %v736 = vpack.c.b16 %v651, %v646
      %v737 = vpack.c.b16 %v652, %v647
      %v738 = vpack.c.b16 %v653, %v648
      %v739 = vpack.c.b16 %v654, %v649
      %v740 = vpack.c.b16 %v655, %v650
      %v741 = vpack.c.b16 %v661, %v656
      %v742 = vpack.c.b16 %v662, %v657
      %v743 = vpack.c.b16 %v663, %v658
      %v744 = vpack.c.b16 %v664, %v659
      %v745 = vpack.c.b16 %v665, %v660
      %v906 = vunpack.c.l.b16 %v330
      %v907 = vunpack.c.l.b16 %v331
      %v908 = vunpack.c.l.b16 %v332
      %v909 = vunpack.c.l.b16 %v333
      %v910 = vunpack.c.l.b16 %v334
      %v911 = vunpack.c.l.b16 %v335
      %v912 = vunpack.c.l.b16 %v336
      %v913 = vunpack.c.l.b16 %v337
      %v914 = vunpack.c.l.b16 %v338
      %v915 = vunpack.c.l.b16 %v339
      %v916 = vunpack.c.l.b16 %v340
      %v917 = vunpack.c.l.b16 %v341
      %v918 = vunpack.c.l.b16 %v342
      %v919 = vunpack.c.l.b16 %v343
      %v920 = vunpack.c.l.b16 %v344
      %v921 = vunpack.c.l.b16 %v345
      %v922 = vunpack.c.l.b16 %v346
      %v923 = vunpack.c.l.b16 %v347
      %v924 = vunpack.c.l.b16 %v348
      %v925 = vunpack.c.l.b16 %v349
      %v926 = vunpack.c.l.b16 %v350
      %v927 = vunpack.c.l.b16 %v351
      %v928 = vunpack.c.l.b16 %v352
      %v929 = vunpack.c.l.b16 %v353
      %v930 = vunpack.c.l.b16 %v354
      %v931 = vunpack.c.l.b16 %v355
      %v932 = vunpack.c.l.b16 %v356
      %v933 = vunpack.c.l.b16 %v357
      %v934 = vunpack.c.l.b16 %v358
      %v935 = vunpack.c.l.b16 %v359
      %v936 = vunpack.c.l.b16 %v360
      %v937 = vunpack.c.l.b16 %v361
      %v938 = vunpack.c.l.b16 %v362
      %v939 = vunpack.c.l.b16 %v363
      %v940 = vunpack.c.l.b16 %v364
      %v941 = vunpack.c.l.b16 %v365
      %v942 = vunpack.c.l.b16 %v366
      %v943 = vunpack.c.l.b16 %v367
      %v944 = vunpack.c.l.b16 %v368
      %v945 = vunpack.c.l.b16 %v369
      %v946 = vunpack.c.l.b16 %v370
      %v947 = vunpack.c.l.b16 %v371
      %v948 = vunpack.c.l.b16 %v372
      %v949 = vunpack.c.l.b16 %v373
      %v950 = vunpack.c.l.b16 %v374
      %v951 = vunpack.c.l.b16 %v375
      %v952 = vunpack.c.l.b16 %v376
      %v953 = vunpack.c.l.b16 %v377
      %v954 = vunpack.c.l.b16 %v378
      %v955 = vunpack.c.l.b16 %v379
      %v956 = vunpack.c.l.b16 %v380
      %v957 = vunpack.c.l.b16 %v381
      %v958 = vunpack.c.l.b16 %v382
      %v959 = vunpack.c.l.b16 %v383
      %v960 = vunpack.c.l.b16 %v384
      %v961 = vunpack.c.l.b16 %v385
      %v962 = vunpack.c.l.b16 %v386
      %v963 = vunpack.c.l.b16 %v387
      %v964 = vunpack.c.l.b16 %v388
      %v965 = vunpack.c.l.b16 %v389
      %v966 = vunpack.c.l.b16 %v390
      %v967 = vunpack.c.l.b16 %v391
      %v968 = vunpack.c.l.b16 %v392
      %v969 = vunpack.c.l.b16 %v393
      %v970 = vunpack.c.l.b16 %v394
      %v971 = vunpack.c.l.b16 %v395
      %v972 = vunpack.c.l.b16 %v396
      %v973 = vunpack.c.l.b16 %v397
      %v974 = vunpack.c.l.b16 %v398
      %v975 = vunpack.c.l.b16 %v399
      %v976 = vunpack.c.l.b16 %v400
      %v977 = vunpack.c.l.b16 %v401
      %v978 = vunpack.c.l.b16 %v402
      %v979 = vunpack.c.l.b16 %v403
      %v980 = vunpack.c.l.b16 %v404
      %v981 = vunpack.c.l.b16 %v405
      %v982 = vunpack.c.l.b16 %v406
      %v983 = vunpack.c.l.b16 %v407
      %v984 = vunpack.c.l.b16 %v408
      %v985 = vunpack.c.l.b16 %v409
      %v986 = vpack.c.b16 %v907, %v906
      %v987 = vpack.c.b16 %v909, %v908
      %v988 = vpack.c.b16 %v911, %v910
      %v989 = vpack.c.b16 %v913, %v912
      %v990 = vpack.c.b16 %v915, %v914
      %v991 = vpack.c.b16 %v917, %v916
      %v992 = vpack.c.b16 %v919, %v918
      %v993 = vpack.c.b16 %v921, %v920
      %v994 = vpack.c.b16 %v923, %v922
      %v995 = vpack.c.b16 %v925, %v924
      %v996 = vpack.c.b16 %v927, %v926
      %v997 = vpack.c.b16 %v929, %v928
      %v998 = vpack.c.b16 %v931, %v930
      %v999 = vpack.c.b16 %v933, %v932
      %v1000 = vpack.c.b16 %v935, %v934
      %v1001 = vpack.c.b16 %v937, %v936
      %v1002 = vpack.c.b16 %v939, %v938
      %v1003 = vpack.c.b16 %v941, %v940
      %v1004 = vpack.c.b16 %v943, %v942
      %v1005 = vpack.c.b16 %v945, %v944
      %v1006 = vpack.c.b16 %v947, %v946
      %v1007 = vpack.c.b16 %v949, %v948
      %v1008 = vpack.c.b16 %v951, %v950
      %v1009 = vpack.c.b16 %v953, %v952
      %v1010 = vpack.c.b16 %v955, %v954
      %v1011 = vpack.c.b16 %v957, %v956
      %v1012 = vpack.c.b16 %v959, %v958
      %v1013 = vpack.c.b16 %v961, %v960
      %v1014 = vpack.c.b16 %v963, %v962
      %v1015 = vpack.c.b16 %v965, %v964
      %v1016 = vpack.c.b16 %v967, %v966
      %v1017 = vpack.c.b16 %v969, %v968
      %v1018 = vpack.c.b16 %v971, %v970
      %v1019 = vpack.c.b16 %v973, %v972
      %v1020 = vpack.c.b16 %v975, %v974
      %v1021 = vpack.c.b16 %v977, %v976
      %v1022 = vpack.c.b16 %v979, %v978
      %v1023 = vpack.c.b16 %v981, %v980
      %v1024 = vpack.c.b16 %v983, %v982
      %v1025 = vpack.c.b16 %v985, %v984
      %1066 = vmatprep.subr.bf16.mxu0 0
      %1067 = vmatpush1.bf16.msra.mxu0 %v993
      %1068 = vmatprep.subr.bf16.mxu0 0
      %1069 = vmatpush1.bf16.msra.mxu0 %v992
      %1070 = vmatprep.subr.bf16.mxu0 0
      %1071 = vmatpush1.bf16.msra.mxu0 %v991
      %1072 = vmatprep.subr.bf16.mxu0 0
      %1073 = vmatpush1.bf16.msra.mxu0 %v990
      %1074 = vmatprep.subr.bf16.mxu0 0
      %1075 = vmatpush1.bf16.msra.mxu0 %v989
      %1076 = vmatprep.subr.bf16.mxu0 0
      %1077 = vmatpush1.bf16.msra.mxu0 %v988
      %1078 = vmatprep.subr.bf16.mxu0 0
      %1079 = vmatpush1.bf16.msra.mxu0 %v987
      %1080 = vmatprep.subr.bf16.mxu0 0
      %1081 = vmatpush1.bf16.msra.mxu0 %v986
      %1082 = vmatprep.subr.bf16.mxu0 0
      %1083 = vmatpush2.bf16.msra.mxu0 %v1001
      %1084 = vmatprep.subr.bf16.mxu0 0
      %1085 = vmatpush2.bf16.msra.mxu0 %v1000
      %1086 = vmatprep.subr.bf16.mxu0 0
      %1087 = vmatpush2.bf16.msra.mxu0 %v999
      %1088 = vmatprep.subr.bf16.mxu0 0
      %1089 = vmatpush2.bf16.msra.mxu0 %v998
      %1090 = vmatprep.subr.bf16.mxu0 0
      %1091 = vmatpush2.bf16.msra.mxu0 %v997
      %1092 = vmatprep.subr.bf16.mxu0 0
      %1093 = vmatpush2.bf16.msra.mxu0 %v996
      %1094 = vmatprep.subr.bf16.mxu0 0
      %1095 = vmatpush2.bf16.msra.mxu0 %v995
      %1096 = vmatprep.subr.bf16.mxu0 0
      %1097 = vmatpush2.bf16.msra.mxu0 %v994
      %1098 = vmatprep.mubr.bf16.mxu0 %v667
      %1099 = vmatmul.mubr.bf16.gmra.mxu0 %v666
      %v1100 = vpop.f32.mrf.mxu0
      %v1101 = vadd.f32 0.0, %v1100
      %v1102 = vpop.f32.mrf.mxu0
      %v1103 = vpop.f32.mrf.mxu0
      %v1104 = vadd.f32 0.0, %v1103
      %v1105 = vpop.f32.mrf.mxu0
      %1106 = vmatprep.mubr.bf16.mxu0 %v672
      %1107 = vmatmul.mubr.bf16.gmra.mxu0 %v671
      %v1108 = vpop.f32.mrf.mxu0
      %v1109 = vadd.f32 0.0, %v1108
      %v1110 = vpop.f32.mrf.mxu0
      %v1111 = vpop.f32.mrf.mxu0
      %v1112 = vadd.f32 0.0, %v1111
      %v1113 = vpop.f32.mrf.mxu0
      %1114 = vmatprep.mubr.bf16.mxu0 %v677
      %1115 = vmatmul.mubr.bf16.gmra.mxu0 %v676
      %v1116 = vpop.f32.mrf.mxu0
      %v1117 = vadd.f32 0.0, %v1116
      %v1118 = vpop.f32.mrf.mxu0
      %v1119 = vpop.f32.mrf.mxu0
      %v1120 = vadd.f32 0.0, %v1119
      %v1121 = vpop.f32.mrf.mxu0
      %1122 = vmatprep.mubr.bf16.mxu0 %v682
      %1123 = vmatmul.mubr.bf16.gmra.mxu0 %v681
      %v1124 = vpop.f32.mrf.mxu0
      %v1125 = vadd.f32 0.0, %v1124
      %v1126 = vpop.f32.mrf.mxu0
      %v1127 = vpop.f32.mrf.mxu0
      %v1128 = vadd.f32 0.0, %v1127
      %v1129 = vpop.f32.mrf.mxu0
      %1130 = vmatprep.mubr.bf16.mxu0 %v687
      %1131 = vmatmul.mubr.bf16.gmra.mxu0 %v686
      %v1132 = vpop.f32.mrf.mxu0
      %v1133 = vadd.f32 0.0, %v1132
      %v1134 = vpop.f32.mrf.mxu0
      %v1135 = vpop.f32.mrf.mxu0
      %v1136 = vadd.f32 0.0, %v1135
      %v1137 = vpop.f32.mrf.mxu0
      %1138 = vmatprep.mubr.bf16.mxu0 %v692
      %1139 = vmatmul.mubr.bf16.gmra.mxu0 %v691
      %v1140 = vpop.f32.mrf.mxu0
      %v1141 = vadd.f32 0.0, %v1140
      %v1142 = vpop.f32.mrf.mxu0
      %v1143 = vpop.f32.mrf.mxu0
      %v1144 = vadd.f32 0.0, %v1143
      %v1145 = vpop.f32.mrf.mxu0
      %1146 = vmatprep.mubr.bf16.mxu0 %v697
      %1147 = vmatmul.mubr.bf16.gmra.mxu0 %v696
      %v1148 = vpop.f32.mrf.mxu0
      %v1149 = vadd.f32 0.0, %v1148
      %v1150 = vpop.f32.mrf.mxu0
      %v1151 = vpop.f32.mrf.mxu0
      %v1152 = vadd.f32 0.0, %v1151
      %v1153 = vpop.f32.mrf.mxu0
      %1154 = vmatprep.mubr.bf16.mxu0 %v702
      %1155 = vmatmul.mubr.bf16.gmra.mxu0 %v701
      %v1156 = vpop.f32.mrf.mxu0
      %v1157 = vadd.f32 0.0, %v1156
      %v1158 = vpop.f32.mrf.mxu0
      %v1159 = vpop.f32.mrf.mxu0
      %v1160 = vadd.f32 0.0, %v1159
      %v1161 = vpop.f32.mrf.mxu0
      %1162 = vmatprep.mubr.bf16.mxu0 %v707
      %1163 = vmatmul.mubr.bf16.gmra.mxu0 %v706
      %v1164 = vpop.f32.mrf.mxu0
      %v1165 = vadd.f32 0.0, %v1164
      %v1166 = vpop.f32.mrf.mxu0
      %v1167 = vpop.f32.mrf.mxu0
      %v1168 = vadd.f32 0.0, %v1167
      %v1169 = vpop.f32.mrf.mxu0
      %1170 = vmatprep.mubr.bf16.mxu0 %v712
      %1171 = vmatmul.mubr.bf16.gmra.mxu0 %v711
      %v1172 = vpop.f32.mrf.mxu0
      %v1173 = vadd.f32 0.0, %v1172
      %v1174 = vpop.f32.mrf.mxu0
      %v1175 = vpop.f32.mrf.mxu0
      %v1176 = vadd.f32 0.0, %v1175
      %v1177 = vpop.f32.mrf.mxu0
      %1178 = vmatprep.mubr.bf16.mxu0 %v717
      %1179 = vmatmul.mubr.bf16.gmra.mxu0 %v716
      %v1180 = vpop.f32.mrf.mxu0
      %v1181 = vadd.f32 0.0, %v1180
      %v1182 = vpop.f32.mrf.mxu0
      %v1183 = vpop.f32.mrf.mxu0
      %v1184 = vadd.f32 0.0, %v1183
      %v1185 = vpop.f32.mrf.mxu0
      %1186 = vmatprep.mubr.bf16.mxu0 %v722
      %1187 = vmatmul.mubr.bf16.gmra.mxu0 %v721
      %v1188 = vpop.f32.mrf.mxu0
      %v1189 = vadd.f32 0.0, %v1188
      %v1190 = vpop.f32.mrf.mxu0
      %v1191 = vpop.f32.mrf.mxu0
      %v1192 = vadd.f32 0.0, %v1191
      %v1193 = vpop.f32.mrf.mxu0
      %1194 = vmatprep.mubr.bf16.mxu0 %v727
      %1195 = vmatmul.mubr.bf16.gmra.mxu0 %v726
      %v1196 = vpop.f32.mrf.mxu0
      %v1197 = vadd.f32 0.0, %v1196
      %v1198 = vpop.f32.mrf.mxu0
      %v1199 = vpop.f32.mrf.mxu0
      %v1200 = vadd.f32 0.0, %v1199
      %v1201 = vpop.f32.mrf.mxu0
      %1202 = vmatprep.mubr.bf16.mxu0 %v732
      %1203 = vmatmul.mubr.bf16.gmra.mxu0 %v731
      %v1204 = vpop.f32.mrf.mxu0
      %v1205 = vadd.f32 0.0, %v1204
      %v1206 = vpop.f32.mrf.mxu0
      %v1207 = vpop.f32.mrf.mxu0
      %v1208 = vadd.f32 0.0, %v1207
      %v1209 = vpop.f32.mrf.mxu0
      %1210 = vmatprep.mubr.bf16.mxu0 %v737
      %1211 = vmatmul.mubr.bf16.gmra.mxu0 %v736
      %v1212 = vpop.f32.mrf.mxu0
      %v1213 = vadd.f32 0.0, %v1212
      %v1214 = vpop.f32.mrf.mxu0
      %v1215 = vpop.f32.mrf.mxu0
      %v1216 = vadd.f32 0.0, %v1215
      %v1217 = vpop.f32.mrf.mxu0
      %1218 = vmatprep.mubr.bf16.mxu0 %v742
      %1219 = vmatmul.mubr.bf16.gmra.mxu0 %v741
      %v1220 = vpop.f32.mrf.mxu0
      %v1221 = vadd.f32 0.0, %v1220
      %v1222 = vpop.f32.mrf.mxu0
      %v1223 = vpop.f32.mrf.mxu0
      %v1224 = vadd.f32 0.0, %v1223
      %v1225 = vpop.f32.mrf.mxu0
      %1226 = vdwg.mxu0
      %1227 = vmatprep.subr.bf16.mxu0 0
      %1228 = vmatpush1.bf16.msra.mxu0 %v1009
      %1229 = vmatprep.subr.bf16.mxu0 0
      %1230 = vmatpush1.bf16.msra.mxu0 %v1008
      %1231 = vmatprep.subr.bf16.mxu0 0
      %1232 = vmatpush1.bf16.msra.mxu0 %v1007
      %1233 = vmatprep.subr.bf16.mxu0 0
      %1234 = vmatpush1.bf16.msra.mxu0 %v1006
      %1235 = vmatprep.subr.bf16.mxu0 0
      %1236 = vmatpush1.bf16.msra.mxu0 %v1005
      %1237 = vmatprep.subr.bf16.mxu0 0
      %1238 = vmatpush1.bf16.msra.mxu0 %v1004
      %1239 = vmatprep.subr.bf16.mxu0 0
      %1240 = vmatpush1.bf16.msra.mxu0 %v1003
      %1241 = vmatprep.subr.bf16.mxu0 0
      %1242 = vmatpush1.bf16.msra.mxu0 %v1002
      %1243 = vmatprep.subr.bf16.mxu0 0
      %1244 = vmatpush2.bf16.msra.mxu0 %v1017
      %1245 = vmatprep.subr.bf16.mxu0 0
      %1246 = vmatpush2.bf16.msra.mxu0 %v1016
      %1247 = vmatprep.subr.bf16.mxu0 0
      %1248 = vmatpush2.bf16.msra.mxu0 %v1015
      %1249 = vmatprep.subr.bf16.mxu0 0
      %1250 = vmatpush2.bf16.msra.mxu0 %v1014
      %1251 = vmatprep.subr.bf16.mxu0 0
      %1252 = vmatpush2.bf16.msra.mxu0 %v1013
      %1253 = vmatprep.subr.bf16.mxu0 0
      %1254 = vmatpush2.bf16.msra.mxu0 %v1012
      %1255 = vmatprep.subr.bf16.mxu0 0
      %1256 = vmatpush2.bf16.msra.mxu0 %v1011
      %1257 = vmatprep.subr.bf16.mxu0 0
      %1258 = vmatpush2.bf16.msra.mxu0 %v1010
      %1259 = vmatprep.mubr.bf16.mxu0 %v669
      %1260 = vmatmul.mubr.bf16.gmra.mxu0 %v668
      %v1261 = vpop.f32.mrf.mxu0
      %v1262 = vadd.f32 %v1101, %v1261
      %v1263 = vpop.f32.mrf.mxu0
      %v1264 = vpop.f32.mrf.mxu0
      %v1265 = vadd.f32 %v1104, %v1264
      %v1266 = vpop.f32.mrf.mxu0
      %1267 = vmatprep.mubr.bf16.mxu0 %v674
      %1268 = vmatmul.mubr.bf16.gmra.mxu0 %v673
      %v1269 = vpop.f32.mrf.mxu0
      %v1270 = vadd.f32 %v1109, %v1269
      %v1271 = vpop.f32.mrf.mxu0
      %v1272 = vpop.f32.mrf.mxu0
      %v1273 = vadd.f32 %v1112, %v1272
      %v1274 = vpop.f32.mrf.mxu0
      %1275 = vmatprep.mubr.bf16.mxu0 %v679
      %1276 = vmatmul.mubr.bf16.gmra.mxu0 %v678
      %v1277 = vpop.f32.mrf.mxu0
      %v1278 = vadd.f32 %v1117, %v1277
      %v1279 = vpop.f32.mrf.mxu0
      %v1280 = vpop.f32.mrf.mxu0
      %v1281 = vadd.f32 %v1120, %v1280
      %v1282 = vpop.f32.mrf.mxu0
      %1283 = vmatprep.mubr.bf16.mxu0 %v684
      %1284 = vmatmul.mubr.bf16.gmra.mxu0 %v683
      %v1285 = vpop.f32.mrf.mxu0
      %v1286 = vadd.f32 %v1125, %v1285
      %v1287 = vpop.f32.mrf.mxu0
      %v1288 = vpop.f32.mrf.mxu0
      %v1289 = vadd.f32 %v1128, %v1288
      %v1290 = vpop.f32.mrf.mxu0
      %1291 = vmatprep.mubr.bf16.mxu0 %v689
      %1292 = vmatmul.mubr.bf16.gmra.mxu0 %v688
      %v1293 = vpop.f32.mrf.mxu0
      %v1294 = vadd.f32 %v1133, %v1293
      %v1295 = vpop.f32.mrf.mxu0
      %v1296 = vpop.f32.mrf.mxu0
      %v1297 = vadd.f32 %v1136, %v1296
      %v1298 = vpop.f32.mrf.mxu0
      %1299 = vmatprep.mubr.bf16.mxu0 %v694
      %1300 = vmatmul.mubr.bf16.gmra.mxu0 %v693
      %v1301 = vpop.f32.mrf.mxu0
      %v1302 = vadd.f32 %v1141, %v1301
      %v1303 = vpop.f32.mrf.mxu0
      %v1304 = vpop.f32.mrf.mxu0
      %v1305 = vadd.f32 %v1144, %v1304
      %v1306 = vpop.f32.mrf.mxu0
      %1307 = vmatprep.mubr.bf16.mxu0 %v699
      %1308 = vmatmul.mubr.bf16.gmra.mxu0 %v698
      %v1309 = vpop.f32.mrf.mxu0
      %v1310 = vadd.f32 %v1149, %v1309
      %v1311 = vpop.f32.mrf.mxu0
      %v1312 = vpop.f32.mrf.mxu0
      %v1313 = vadd.f32 %v1152, %v1312
      %v1314 = vpop.f32.mrf.mxu0
      %1315 = vmatprep.mubr.bf16.mxu0 %v704
      %1316 = vmatmul.mubr.bf16.gmra.mxu0 %v703
      %v1317 = vpop.f32.mrf.mxu0
      %v1318 = vadd.f32 %v1157, %v1317
      %v1319 = vpop.f32.mrf.mxu0
      %v1320 = vpop.f32.mrf.mxu0
      %v1321 = vadd.f32 %v1160, %v1320
      %v1322 = vpop.f32.mrf.mxu0
      %1323 = vmatprep.mubr.bf16.mxu0 %v709
      %1324 = vmatmul.mubr.bf16.gmra.mxu0 %v708
      %v1325 = vpop.f32.mrf.mxu0
      %v1326 = vadd.f32 %v1165, %v1325
      %v1327 = vpop.f32.mrf.mxu0
      %v1328 = vpop.f32.mrf.mxu0
      %v1329 = vadd.f32 %v1168, %v1328
      %v1330 = vpop.f32.mrf.mxu0
      %1331 = vmatprep.mubr.bf16.mxu0 %v714
      %1332 = vmatmul.mubr.bf16.gmra.mxu0 %v713
      %v1333 = vpop.f32.mrf.mxu0
      %v1334 = vadd.f32 %v1173, %v1333
      %v1335 = vpop.f32.mrf.mxu0
      %v1336 = vpop.f32.mrf.mxu0
      %v1337 = vadd.f32 %v1176, %v1336
      %v1338 = vpop.f32.mrf.mxu0
      %1339 = vmatprep.mubr.bf16.mxu0 %v719
      %1340 = vmatmul.mubr.bf16.gmra.mxu0 %v718
      %v1341 = vpop.f32.mrf.mxu0
      %v1342 = vadd.f32 %v1181, %v1341
      %v1343 = vpop.f32.mrf.mxu0
      %v1344 = vpop.f32.mrf.mxu0
      %v1345 = vadd.f32 %v1184, %v1344
      %v1346 = vpop.f32.mrf.mxu0
      %1347 = vmatprep.mubr.bf16.mxu0 %v724
      %1348 = vmatmul.mubr.bf16.gmra.mxu0 %v723
      %v1349 = vpop.f32.mrf.mxu0
      %v1350 = vadd.f32 %v1189, %v1349
      %v1351 = vpop.f32.mrf.mxu0
      %v1352 = vpop.f32.mrf.mxu0
      %v1353 = vadd.f32 %v1192, %v1352
      %v1354 = vpop.f32.mrf.mxu0
      %1355 = vmatprep.mubr.bf16.mxu0 %v729
      %1356 = vmatmul.mubr.bf16.gmra.mxu0 %v728
      %v1357 = vpop.f32.mrf.mxu0
      %v1358 = vadd.f32 %v1197, %v1357
      %v1359 = vpop.f32.mrf.mxu0
      %v1360 = vpop.f32.mrf.mxu0
      %v1361 = vadd.f32 %v1200, %v1360
      %v1362 = vpop.f32.mrf.mxu0
      %1363 = vmatprep.mubr.bf16.mxu0 %v734
      %1364 = vmatmul.mubr.bf16.gmra.mxu0 %v733
      %v1365 = vpop.f32.mrf.mxu0
      %v1366 = vadd.f32 %v1205, %v1365
      %v1367 = vpop.f32.mrf.mxu0
      %v1368 = vpop.f32.mrf.mxu0
      %v1369 = vadd.f32 %v1208, %v1368
      %v1370 = vpop.f32.mrf.mxu0
      %1371 = vmatprep.mubr.bf16.mxu0 %v739
      %1372 = vmatmul.mubr.bf16.gmra.mxu0 %v738
      %v1373 = vpop.f32.mrf.mxu0
      %v1374 = vadd.f32 %v1213, %v1373
      %v1375 = vpop.f32.mrf.mxu0
      %v1376 = vpop.f32.mrf.mxu0
      %v1377 = vadd.f32 %v1216, %v1376
      %v1378 = vpop.f32.mrf.mxu0
      %1379 = vmatprep.mubr.bf16.mxu0 %v744
      %1380 = vmatmul.mubr.bf16.gmra.mxu0 %v743
      %v1381 = vpop.f32.mrf.mxu0
      %v1382 = vadd.f32 %v1221, %v1381
      %v1383 = vpop.f32.mrf.mxu0
      %v1384 = vpop.f32.mrf.mxu0
      %v1385 = vadd.f32 %v1224, %v1384
      %v1386 = vpop.f32.mrf.mxu0
      %1387 = vdwg.mxu0
      %1388 = vmatprep.subr.bf16.mxu0 0
      %1389 = vmatpush1.bf16.msra.mxu0 %v1025
      %1390 = vmatprep.subr.bf16.mxu0 0
      %1391 = vmatpush1.bf16.msra.mxu0 %v1024
      %1392 = vmatprep.subr.bf16.mxu0 0
      %1393 = vmatpush1.bf16.msra.mxu0 %v1023
      %1394 = vmatprep.subr.bf16.mxu0 0
      %1395 = vmatpush1.bf16.msra.mxu0 %v1022
      %1396 = vmatprep.subr.bf16.mxu0 0
      %1397 = vmatpush1.bf16.msra.mxu0 %v1021
      %1398 = vmatprep.subr.bf16.mxu0 0
      %1399 = vmatpush1.bf16.msra.mxu0 %v1020
      %1400 = vmatprep.subr.bf16.mxu0 0
      %1401 = vmatpush1.bf16.msra.mxu0 %v1019
      %1402 = vmatprep.subr.bf16.mxu0 0
      %1403 = vmatpush1.bf16.msra.mxu0 %v1018
      %1404 = vmatprep.subr.bf16.mxu0 0
      %1405 = vmatpush2.bf16.msra.mxu0 0
      %1406 = vmatprep.subr.bf16.mxu0 0
      %1407 = vmatpush2.bf16.msra.mxu0 0
      %1408 = vmatprep.subr.bf16.mxu0 0
      %1409 = vmatpush2.bf16.msra.mxu0 0
      %1410 = vmatprep.subr.bf16.mxu0 0
      %1411 = vmatpush2.bf16.msra.mxu0 0
      %1412 = vmatprep.subr.bf16.mxu0 0
      %1413 = vmatpush2.bf16.msra.mxu0 0
      %1414 = vmatprep.subr.bf16.mxu0 0
      %1415 = vmatpush2.bf16.msra.mxu0 0
      %1416 = vmatprep.subr.bf16.mxu0 0
      %1417 = vmatpush2.bf16.msra.mxu0 0
      %1418 = vmatprep.subr.bf16.mxu0 0
      %1419 = vmatpush2.bf16.msra.mxu0 0
      %1420 = vmatprep.mubr.bf16.mxu0 0
      %1421 = vmatmul.mubr.bf16.gmra.mxu0 %v670
      %v1422 = vpop.f32.mrf.mxu0
      %v1423 = vadd.f32 %v1262, %v1422
      %v1424 = vpop.f32.mrf.mxu0
      %v1425 = vpop.f32.mrf.mxu0
      %v1426 = vadd.f32 %v1265, %v1425
      %v1427 = vpop.f32.mrf.mxu0
      %1428 = vmatprep.mubr.bf16.mxu0 0
      %1429 = vmatmul.mubr.bf16.gmra.mxu0 %v675
      %v1430 = vpop.f32.mrf.mxu0
      %v1431 = vadd.f32 %v1270, %v1430
      %v1432 = vpop.f32.mrf.mxu0
      %v1433 = vpop.f32.mrf.mxu0
      %v1434 = vadd.f32 %v1273, %v1433
      %v1435 = vpop.f32.mrf.mxu0
      %1436 = vmatprep.mubr.bf16.mxu0 0
      %1437 = vmatmul.mubr.bf16.gmra.mxu0 %v680
      %v1438 = vpop.f32.mrf.mxu0
      %v1439 = vadd.f32 %v1278, %v1438
      %v1440 = vpop.f32.mrf.mxu0
      %v1441 = vpop.f32.mrf.mxu0
      %v1442 = vadd.f32 %v1281, %v1441
      %v1443 = vpop.f32.mrf.mxu0
      %1444 = vmatprep.mubr.bf16.mxu0 0
      %1445 = vmatmul.mubr.bf16.gmra.mxu0 %v685
      %v1446 = vpop.f32.mrf.mxu0
      %v1447 = vadd.f32 %v1286, %v1446
      %v1448 = vpop.f32.mrf.mxu0
      %v1449 = vpop.f32.mrf.mxu0
      %v1450 = vadd.f32 %v1289, %v1449
      %v1451 = vpop.f32.mrf.mxu0
      %1452 = vmatprep.mubr.bf16.mxu0 0
      %1453 = vmatmul.mubr.bf16.gmra.mxu0 %v690
      %v1454 = vpop.f32.mrf.mxu0
      %v1455 = vadd.f32 %v1294, %v1454
      %v1456 = vpop.f32.mrf.mxu0
      %v1457 = vpop.f32.mrf.mxu0
      %v1458 = vadd.f32 %v1297, %v1457
      %v1459 = vpop.f32.mrf.mxu0
      %1460 = vmatprep.mubr.bf16.mxu0 0
      %1461 = vmatmul.mubr.bf16.gmra.mxu0 %v695
      %v1462 = vpop.f32.mrf.mxu0
      %v1463 = vadd.f32 %v1302, %v1462
      %v1464 = vpop.f32.mrf.mxu0
      %v1465 = vpop.f32.mrf.mxu0
      %v1466 = vadd.f32 %v1305, %v1465
      %v1467 = vpop.f32.mrf.mxu0
      %1468 = vmatprep.mubr.bf16.mxu0 0
      %1469 = vmatmul.mubr.bf16.gmra.mxu0 %v700
      %v1470 = vpop.f32.mrf.mxu0
      %v1471 = vadd.f32 %v1310, %v1470
      %v1472 = vpop.f32.mrf.mxu0
      %v1473 = vpop.f32.mrf.mxu0
      %v1474 = vadd.f32 %v1313, %v1473
      %v1475 = vpop.f32.mrf.mxu0
      %1476 = vmatprep.mubr.bf16.mxu0 0
      %1477 = vmatmul.mubr.bf16.gmra.mxu0 %v705
      %v1478 = vpop.f32.mrf.mxu0
      %v1479 = vadd.f32 %v1318, %v1478
      %v1480 = vpop.f32.mrf.mxu0
      %v1481 = vpop.f32.mrf.mxu0
      %v1482 = vadd.f32 %v1321, %v1481
      %v1483 = vpop.f32.mrf.mxu0
      %1484 = vmatprep.mubr.bf16.mxu0 0
      %1485 = vmatmul.mubr.bf16.gmra.mxu0 %v710
      %v1486 = vpop.f32.mrf.mxu0
      %v1487 = vadd.f32 %v1326, %v1486
      %v1488 = vpop.f32.mrf.mxu0
      %v1489 = vpop.f32.mrf.mxu0
      %v1490 = vadd.f32 %v1329, %v1489
      %v1491 = vpop.f32.mrf.mxu0
      %1492 = vmatprep.mubr.bf16.mxu0 0
      %1493 = vmatmul.mubr.bf16.gmra.mxu0 %v715
      %v1494 = vpop.f32.mrf.mxu0
      %v1495 = vadd.f32 %v1334, %v1494
      %v1496 = vpop.f32.mrf.mxu0
      %v1497 = vpop.f32.mrf.mxu0
      %v1498 = vadd.f32 %v1337, %v1497
      %v1499 = vpop.f32.mrf.mxu0
      %1500 = vmatprep.mubr.bf16.mxu0 0
      %1501 = vmatmul.mubr.bf16.gmra.mxu0 %v720
      %v1502 = vpop.f32.mrf.mxu0
      %v1503 = vadd.f32 %v1342, %v1502
      %v1504 = vpop.f32.mrf.mxu0
      %v1505 = vpop.f32.mrf.mxu0
      %v1506 = vadd.f32 %v1345, %v1505
      %v1507 = vpop.f32.mrf.mxu0
      %1508 = vmatprep.mubr.bf16.mxu0 0
      %1509 = vmatmul.mubr.bf16.gmra.mxu0 %v725
      %v1510 = vpop.f32.mrf.mxu0
      %v1511 = vadd.f32 %v1350, %v1510
      %v1512 = vpop.f32.mrf.mxu0
      %v1513 = vpop.f32.mrf.mxu0
      %v1514 = vadd.f32 %v1353, %v1513
      %v1515 = vpop.f32.mrf.mxu0
      %1516 = vmatprep.mubr.bf16.mxu0 0
      %1517 = vmatmul.mubr.bf16.gmra.mxu0 %v730
      %v1518 = vpop.f32.mrf.mxu0
      %v1519 = vadd.f32 %v1358, %v1518
      %v1520 = vpop.f32.mrf.mxu0
      %v1521 = vpop.f32.mrf.mxu0
      %v1522 = vadd.f32 %v1361, %v1521
      %v1523 = vpop.f32.mrf.mxu0
      %1524 = vmatprep.mubr.bf16.mxu0 0
      %1525 = vmatmul.mubr.bf16.gmra.mxu0 %v735
      %v1526 = vpop.f32.mrf.mxu0
      %v1527 = vadd.f32 %v1366, %v1526
      %v1528 = vpop.f32.mrf.mxu0
      %v1529 = vpop.f32.mrf.mxu0
      %v1530 = vadd.f32 %v1369, %v1529
      %v1531 = vpop.f32.mrf.mxu0
      %1532 = vmatprep.mubr.bf16.mxu0 0
      %1533 = vmatmul.mubr.bf16.gmra.mxu0 %v740
      %v1534 = vpop.f32.mrf.mxu0
      %v1535 = vadd.f32 %v1374, %v1534
      %v1536 = vpop.f32.mrf.mxu0
      %v1537 = vpop.f32.mrf.mxu0
      %v1538 = vadd.f32 %v1377, %v1537
      %v1539 = vpop.f32.mrf.mxu0
      %1540 = vmatprep.mubr.bf16.mxu0 0
      %1541 = vmatmul.mubr.bf16.gmra.mxu0 %v745
      %v1542 = vpop.f32.mrf.mxu0
      %v1543 = vadd.f32 %v1382, %v1542
      %v1544 = vpop.f32.mrf.mxu0
      %v1545 = vpop.f32.mrf.mxu0
      %v1546 = vadd.f32 %v1385, %v1545
      %v1547 = vpop.f32.mrf.mxu0
      %1548 = vdwg.mxu0
      %v1549 = vpack.c.bf16 %v1426, %v1423
      %v1550 = vpack.c.bf16 %v1434, %v1431
      %v1551 = vpack.c.bf16 %v1442, %v1439
      %v1552 = vpack.c.bf16 %v1450, %v1447
      %v1553 = vpack.c.bf16 %v1458, %v1455
      %v1554 = vpack.c.bf16 %v1466, %v1463
      %v1555 = vpack.c.bf16 %v1474, %v1471
      %v1556 = vpack.c.bf16 %v1482, %v1479
      %v1557 = vpack.c.bf16 %v1490, %v1487
      %v1558 = vpack.c.bf16 %v1498, %v1495
      %v1559 = vpack.c.bf16 %v1506, %v1503
      %v1560 = vpack.c.bf16 %v1514, %v1511
      %v1561 = vpack.c.bf16 %v1522, %v1519
      %v1562 = vpack.c.bf16 %v1530, %v1527
      %v1563 = vpack.c.bf16 %v1538, %v1535
      %v1564 = vpack.c.bf16 %v1546, %v1543
      %v1581 = vunpack.c.l.b16 %v1549
      %v1582 = vunpack.c.h.b16 %v1549
      %v1583 = vunpack.c.l.b16 %v1550
      %v1584 = vunpack.c.h.b16 %v1550
      %v1585 = vunpack.c.l.b16 %v1551
      %v1586 = vunpack.c.h.b16 %v1551
      %v1587 = vunpack.c.l.b16 %v1552
      %v1588 = vunpack.c.h.b16 %v1552
      %v1589 = vunpack.c.l.b16 %v1553
      %v1590 = vunpack.c.h.b16 %v1553
      %v1591 = vunpack.c.l.b16 %v1554
      %v1592 = vunpack.c.h.b16 %v1554
      %v1593 = vunpack.c.l.b16 %v1555
      %v1594 = vunpack.c.h.b16 %v1555
      %v1595 = vunpack.c.l.b16 %v1556
      %v1596 = vunpack.c.h.b16 %v1556
      %v1597 = vunpack.c.l.b16 %v1557
      %v1598 = vunpack.c.h.b16 %v1557
      %v1599 = vunpack.c.l.b16 %v1558
      %v1600 = vunpack.c.h.b16 %v1558
      %v1601 = vunpack.c.l.b16 %v1559
      %v1602 = vunpack.c.h.b16 %v1559
      %v1603 = vunpack.c.l.b16 %v1560
      %v1604 = vunpack.c.h.b16 %v1560
      %v1605 = vunpack.c.l.b16 %v1561
      %v1606 = vunpack.c.h.b16 %v1561
      %v1607 = vunpack.c.l.b16 %v1562
      %v1608 = vunpack.c.h.b16 %v1562
      %v1609 = vunpack.c.l.b16 %v1563
      %v1610 = vunpack.c.h.b16 %v1563
      %v1611 = vunpack.c.l.b16 %v1564
      %v1612 = vunpack.c.h.b16 %v1564
      %v1613 = vpack.c.b16 %v1581, %v1581
      %v1614 = vpack.c.b16 %v1582, %v1582
      %v1615 = vpack.c.b16 %v1583, %v1583
      %v1616 = vpack.c.b16 %v1584, %v1584
      %v1617 = vpack.c.b16 %v1585, %v1585
      %v1618 = vpack.c.b16 %v1586, %v1586
      %v1619 = vpack.c.b16 %v1587, %v1587
      %v1620 = vpack.c.b16 %v1588, %v1588
      %v1621 = vpack.c.b16 %v1589, %v1589
      %v1622 = vpack.c.b16 %v1590, %v1590
      %v1623 = vpack.c.b16 %v1591, %v1591
      %v1624 = vpack.c.b16 %v1592, %v1592
      %v1625 = vpack.c.b16 %v1593, %v1593
      %v1626 = vpack.c.b16 %v1594, %v1594
      %v1627 = vpack.c.b16 %v1595, %v1595
      %v1628 = vpack.c.b16 %v1596, %v1596
      %v1629 = vpack.c.b16 %v1597, %v1597
      %v1630 = vpack.c.b16 %v1598, %v1598
      %v1631 = vpack.c.b16 %v1599, %v1599
      %v1632 = vpack.c.b16 %v1600, %v1600
      %v1633 = vpack.c.b16 %v1601, %v1601
      %v1634 = vpack.c.b16 %v1602, %v1602
      %v1635 = vpack.c.b16 %v1603, %v1603
      %v1636 = vpack.c.b16 %v1604, %v1604
      %v1637 = vpack.c.b16 %v1605, %v1605
      %v1638 = vpack.c.b16 %v1606, %v1606
      %v1639 = vpack.c.b16 %v1607, %v1607
      %v1640 = vpack.c.b16 %v1608, %v1608
      %v1641 = vpack.c.b16 %v1609, %v1609
      %v1642 = vpack.c.b16 %v1610, %v1610
      %v1643 = vpack.c.b16 %v1611, %v1611
      %v1644 = vpack.c.b16 %v1612, %v1612
      %1677 = vst [vmem:[%s224] sm:$0xf] %v1613
      %1678 = vst [vmem:[%s224 + $0x4] sm:$0xf] %v1614
      %1679 = vst [vmem:[%s224 + $0x8] sm:$0xf] %v1615
      %1680 = vst [vmem:[%s224 + $0xc] sm:$0xf] %v1616
      %1681 = vst [vmem:[%s224 + $0x10] sm:$0xf] %v1617
      %1682 = vst [vmem:[%s224 + $0x14] sm:$0xf] %v1618
      %1683 = vst [vmem:[%s224 + $0x18] sm:$0xf] %v1619
      %1684 = vst [vmem:[%s224 + $0x1c] sm:$0xf] %v1620
      %1685 = vst [vmem:[%s224 + $0x20] sm:$0xf] %v1621
      %1686 = vst [vmem:[%s224 + $0x24] sm:$0xf] %v1622
      %1687 = vst [vmem:[%s224 + $0x28] sm:$0xf] %v1623
      %1688 = vst [vmem:[%s224 + $0x2c] sm:$0xf] %v1624
      %1689 = vst [vmem:[%s224 + $0x30] sm:$0xf] %v1625
      %1690 = vst [vmem:[%s224 + $0x34] sm:$0xf] %v1626
      %1691 = vst [vmem:[%s224 + $0x38] sm:$0xf] %v1627
      %1692 = vst [vmem:[%s224 + $0x3c] sm:$0xf] %v1628
      %1693 = vst [vmem:[%s224 + $0x40] sm:$0xf] %v1629
      %1694 = vst [vmem:[%s224 + $0x44] sm:$0xf] %v1630
      %1695 = vst [vmem:[%s224 + $0x48] sm:$0xf] %v1631
      %1696 = vst [vmem:[%s224 + $0x4c] sm:$0xf] %v1632
      %1697 = vst [vmem:[%s224 + $0x50] sm:$0xf] %v1633
      %1698 = vst [vmem:[%s224 + $0x54] sm:$0xf] %v1634
      %1699 = vst [vmem:[%s224 + $0x58] sm:$0xf] %v1635
      %1700 = vst [vmem:[%s224 + $0x5c] sm:$0xf] %v1636
      %1701 = vst [vmem:[%s224 + $0x60] sm:$0xf] %v1637
      %1702 = vst [vmem:[%s224 + $0x64] sm:$0xf] %v1638
      %1703 = vst [vmem:[%s224 + $0x68] sm:$0xf] %v1639
      %1704 = vst [vmem:[%s224 + $0x6c] sm:$0xf] %v1640
      %1705 = vst [vmem:[%s224 + $0x70] sm:$0xf] %v1641
      %1706 = vst [vmem:[%s224 + $0x74] sm:$0xf] %v1642
      %1707 = vst [vmem:[%s224 + $0x78] sm:$0xf] %v1643
      %1708 = vst [vmem:[%s224 + $0x7c] sm:$0xf] %v1644
      %v1709 = vadd.f32 %v1423, %v1426
      %v1710 = vadd.f32 %v1709, %v1431
      %v1711 = vadd.f32 %v1710, %v1434
      %v1712 = vadd.f32 %v1711, %v1439
      %v1713 = vadd.f32 %v1712, %v1442
      %v1714 = vadd.f32 %v1713, %v1447
      %v1715 = vadd.f32 %v1714, %v1450
      %v1716 = vadd.f32 %v1715, %v1455
      %v1717 = vadd.f32 %v1716, %v1458
      %v1718 = vadd.f32 %v1717, %v1463
      %v1719 = vadd.f32 %v1718, %v1466
      %v1720 = vadd.f32 %v1719, %v1471
      %v1721 = vadd.f32 %v1720, %v1474
      %v1722 = vadd.f32 %v1721, %v1479
      %v1723 = vadd.f32 %v1722, %v1482
      %v1724 = vadd.f32 %v1723, %v1487
      %v1725 = vadd.f32 %v1724, %v1490
      %v1726 = vadd.f32 %v1725, %v1495
      %v1727 = vadd.f32 %v1726, %v1498
      %v1728 = vadd.f32 %v1727, %v1503
      %v1729 = vadd.f32 %v1728, %v1506
      %v1730 = vadd.f32 %v1729, %v1511
      %v1731 = vadd.f32 %v1730, %v1514
      %v1732 = vadd.f32 %v1731, %v1519
      %v1733 = vadd.f32 %v1732, %v1522
      %v1734 = vadd.f32 %v1733, %v1527
      %v1735 = vadd.f32 %v1734, %v1530
      %v1736 = vadd.f32 %v1735, %v1535
      %v1737 = vadd.f32 %v1736, %v1538
      %v1738 = vadd.f32 %v1737, %v1543
      %v1739 = vadd.f32 %v1738, %v1546
      %v1740 = vrot.slane %v1739, 4
      %v1741 = vadd.f32 %v1739, %v1740
      %v1742 = vrot.slane %v1741, 2
      %v1743 = vadd.f32 %v1741, %v1742
      %v1744 = vrot.slane %v1743, 1
      %v1745 = vadd.f32 %v1743, %v1744
      %v1746 = vmul.f32 %v1745, 0.00390625
      %1747 = vst [vmem:[%s232] sm:$0xff] %v1746
      %s1748 = smul.u32 32, %s19
      %p1749 = scmp.lt.s32.totalorder %s1748, 63
      %s1750 = scalar_select %p1749, %s1748, 63
      %p1751 = scmp.lt.s32.totalorder %s20, 0
      %s1752 = scalar_select %p1751, %s20, 0
      %s1753 = sadd.s32 %s1752, %s1750
      %s1754 = smul.addr %s1753, 4
      %s1755 = scalar_lea.vmem %s2, %s1754
      %p1756 = scmp.lt.s32.totalorder %s19, 1
      %s1757 = scalar_select %p1756, %s19, 1
      %p1758 = scmp.lt.s32.totalorder %s20, 0
      %s1759 = scalar_select %p1758, %s20, 0
      %s1760 = sadd.s32 %s1759, %s1757
      %s1761 = smul.addr %s1760, 8
      %s1762 = scalar_lea.vmem %s3, %s1761
      // Predicated region
      $region29: #{run.17} parent=27 // pred_check
        %p1763 = pneg %p99
      $region30: #{run.17} parent=27 // pred_check_branch
        %1765 = sbr.rel (%p1763) target = $region32
      $region31: #{run.17} parent=27 // pred_region
        %s1766 = smul.u32 32, %s19
      $region32: #{run.17} parent=27 // pred_fallthru
        _
      // Predicated region
      $region33: #{run.17} parent=27 // pred_check
        %p1767 = pneg %p127
      $region34: #{run.17} parent=27 // pred_check_branch
        %1769 = sbr.rel (%p1767) target = $region36
      $region35: #{run.17} parent=27 // pred_region
        _
      $region36: #{run.17} parent=27 // pred_fallthru
        _
    $region28: #{run.17} parent=5 // pred_fallthru
      _
    %p1770 = scmp.le.s32.totalorder 2, %s10
    // Predicated region
    $region37: #{run.17} parent=5 // pred_check
      %p1771 = pneg %p1770
    $region38: #{run.17} parent=5 // pred_check_branch
      %1773 = sbr.rel (%p1771) target = $region40
    $region39: #{run.17} parent=5 // pred_region
      %s1774 = ssub.s32 %s10, 2
      // Predicated region
      $region41: #{run.17} parent=39 // pred_check
        %p1775 = pneg %p105
      $region42: #{run.17} parent=39 // pred_check_branch
        %1777 = sbr.rel (%p1775) target = $region44
      $region43: #{run.17} parent=39 // pred_region
        %s1778 = smul.u32 32, %s21
        %p1779 = scmp.lt.s32.totalorder %s1778, 63
        %s1780 = scalar_select %p1779, %s1778, 63
        %p1781 = scmp.lt.s32.totalorder %s22, 0
        %s1782 = scalar_select %p1781, %s22, 0
        %s1783 = sadd.s32 %s1782, %s1780
        %s1784 = smul.addr %s1783, 4
        %s1785 = scalar_lea.vmem %s2, %s1784
      $region44: #{run.17} parent=39 // pred_fallthru
        _
      // Predicated region
      $region45: #{run.17} parent=39 // pred_check
        %p1786 = pneg %p133
      $region46: #{run.17} parent=39 // pred_check_branch
        %1788 = sbr.rel (%p1786) target = $region48
      $region47: #{run.17} parent=39 // pred_region
        %p1789 = scmp.lt.s32.totalorder %s21, 1
        %s1790 = scalar_select %p1789, %s21, 1
        %p1791 = scmp.lt.s32.totalorder %s22, 0
        %s1792 = scalar_select %p1791, %s22, 0
        %s1793 = sadd.s32 %s1792, %s1790
        %s1794 = smul.addr %s1793, 8
        %s1795 = scalar_lea.vmem %s3, %s1794
      $region48: #{run.17} parent=39 // pred_fallthru
        _
    $region40: #{run.17} parent=5 // pred_fallthru
      _
  $region6: #{run.17} parent=0 // loop_footer
    %s14 = sadd.s32 1, %s10
  $region7: #{run.17} parent=0 // loop_footer_branch
    %9 = sbr.rel target = $region3
  $region8: #{run.17} parent=0 // loop_exit
    _

// kernel: run.19
$region0: #{run.19}
  #allocation0 [shape = 'u32[]', space=smem, size = 0x4, offset = 0x4, fixed_abs, tag = 'smem constant byte address 0x4 - core index']
  #allocation1 [shape = 'u32[144,128]{1,0:T(1,128)}', space=vmem, size = 0x12000, scoped, tag = 'internal scratch']
  %s0 = inlined_call_operand.vmem [shape: bf16[2,256,128], index: 0, kind: input, shape index: {}]
  %s1 = inlined_call_operand.vmem [shape: f32[2,1,128], index: 1, kind: input, shape index: {}]
  %s2 = inlined_call_operand.vmem [shape: f32[2,256,128], index: 2, kind: input, shape index: {}]
  %s3 = inlined_call_operand.vmem [shape: f32[2,256,128], index: 3, kind: output, shape index: {}]
  %s4 = sld [smem:[#allocation0]]
  $region45: #{run.19} parent=0
    _
  %s6 = ssub.s32 1, %s4
  %s7 = scalar_select 0, %s6, %s4
  loop: start=0, step=1, limit=4
  $region2: #{run.19} parent=0 // loop_pre_header
    _
  $region3: #{run.19} parent=0 // loop_header
    %s9 = sphi 0, %s13
    %p10 = scmp.ge.s32.totalorder %s9, 4
    %s16 = sphi 0, %s28
    %s17 = sphi 0, %s24
    %s18 = sphi 0, %s16
    %s19 = sphi 0, %s17
    %s20 = sphi 0, %s18
    %s21 = sphi 0, %s19
    %s33 = sphi 0, %s35
    %s36 = sphi 0, %s33
    %s37 = sphi 0, %s36
    %s53 = sphi 0, %s37
    %s59 = sphi 0, %s61
    %s62 = sphi 0, %s59
    %s63 = sphi 0, %s62
    %s79 = sphi 0, %s63
    %s87 = sphi 0, %s89
    %s90 = sphi 0, %s87
    %s91 = sphi 0, %s90
    %s107 = sphi 0, %s91
    %s115 = sphi 0, %s117
    %s118 = sphi 0, %s115
    %s119 = sphi 0, %s118
    %s135 = sphi 0, %s119
  $region4: #{run.19} parent=0 // loop_header_branch
    %12 = sbr.rel (%p10) target = $region8
  $region5: #{run.19} parent=0 // loop_body
    %s14 = ssub.s32 %s9, 1
    %s15 = ssub.s32 %s9, 2
    %s22 = sadd.s32 1, %s17
    %p23 = scmp.ge.s32.totalorder %s22, 1
    %s24 = scalar_select %p23, 0, %s22
    %s25 = sadd.s32 1, %s16
    %s26 = scalar_select %p23, %s25, %s16
    %p27 = scmp.ge.s32.totalorder %s26, 2
    %s28 = scalar_select %p27, 0, %s26
    %s29 = ssub.s32 %s16, %s28
    %s30 = ssub.s32 %s17, %s24
    %s31 = sor.u32 %s29, %s30
    %p32 = scmp.eq.s32.totalorder %s31, 0
    %s34 = sadd.s32 %s33, 1
    %s35 = scalar_select %p32, %s33, %s34
    %p38 = pneg %p32
    %p39 = scmp.eq.s32.totalorder %s9, 1
    %p40 = por %p38, %p39
    %p41 = scmp.ne.s32.totalorder %s33, %s36
    %p42 = scmp.eq.s32.totalorder %s9, 0
    %p43 = por %p41, %p42
    %p44 = scmp.ne.s32.totalorder %s33, %s36
    %p45 = scmp.eq.s32.totalorder %s14, 1
    %p46 = por %p44, %p45
    %p47 = scmp.ne.s32.totalorder %s36, %s37
    %p48 = scmp.eq.s32.totalorder %s14, 0
    %p49 = por %p47, %p48
    %p50 = scmp.ne.s32.totalorder %s36, %s37
    %p51 = scmp.eq.s32.totalorder %s15, 1
    %p52 = por %p50, %p51
    %p54 = scmp.ne.s32.totalorder %s37, %s53
    %p55 = scmp.eq.s32.totalorder %s15, 0
    %p56 = por %p54, %p55
    %s57 = ssub.s32 %s16, %s28
    %p58 = scmp.eq.s32.totalorder %s57, 0
    %s60 = sadd.s32 %s59, 1
    %s61 = scalar_select %p58, %s59, %s60
    %p64 = pneg %p58
    %p65 = scmp.eq.s32.totalorder %s9, 1
    %p66 = por %p64, %p65
    %p67 = scmp.ne.s32.totalorder %s59, %s62
    %p68 = scmp.eq.s32.totalorder %s9, 0
    %p69 = por %p67, %p68
    %p70 = scmp.ne.s32.totalorder %s59, %s62
    %p71 = scmp.eq.s32.totalorder %s14, 1
    %p72 = por %p70, %p71
    %p73 = scmp.ne.s32.totalorder %s62, %s63
    %p74 = scmp.eq.s32.totalorder %s14, 0
    %p75 = por %p73, %p74
    %p76 = scmp.ne.s32.totalorder %s62, %s63
    %p77 = scmp.eq.s32.totalorder %s15, 1
    %p78 = por %p76, %p77
    %p80 = scmp.ne.s32.totalorder %s63, %s79
    %p81 = scmp.eq.s32.totalorder %s15, 0
    %p82 = por %p80, %p81
    %s83 = ssub.s32 %s16, %s28
    %s84 = ssub.s32 %s17, %s24
    %s85 = sor.u32 %s83, %s84
    %p86 = scmp.eq.s32.totalorder %s85, 0
    %s88 = sadd.s32 %s87, 1
    %s89 = scalar_select %p86, %s87, %s88
    %p92 = pneg %p86
    %p93 = scmp.eq.s32.totalorder %s9, 1
    %p94 = por %p92, %p93
    %p95 = scmp.ne.s32.totalorder %s87, %s90
    %p96 = scmp.eq.s32.totalorder %s9, 0
    %p97 = por %p95, %p96
    %p98 = scmp.ne.s32.totalorder %s87, %s90
    %p99 = scmp.eq.s32.totalorder %s14, 1
    %p100 = por %p98, %p99
    %p101 = scmp.ne.s32.totalorder %s90, %s91
    %p102 = scmp.eq.s32.totalorder %s14, 0
    %p103 = por %p101, %p102
    %p104 = scmp.ne.s32.totalorder %s90, %s91
    %p105 = scmp.eq.s32.totalorder %s15, 1
    %p106 = por %p104, %p105
    %p108 = scmp.ne.s32.totalorder %s91, %s107
    %p109 = scmp.eq.s32.totalorder %s15, 0
    %p110 = por %p108, %p109
    %s111 = ssub.s32 %s16, %s28
    %s112 = ssub.s32 %s17, %s24
    %s113 = sor.u32 %s111, %s112
    %p114 = scmp.eq.s32.totalorder %s113, 0
    %s116 = sadd.s32 %s115, 1
    %s117 = scalar_select %p114, %s115, %s116
    %p120 = pneg %p114
    %p121 = scmp.eq.s32.totalorder %s9, 1
    %p122 = por %p120, %p121
    %p123 = scmp.ne.s32.totalorder %s115, %s118
    %p124 = scmp.eq.s32.totalorder %s9, 0
    %p125 = por %p123, %p124
    %p126 = scmp.ne.s32.totalorder %s115, %s118
    %p127 = scmp.eq.s32.totalorder %s14, 1
    %p128 = por %p126, %p127
    %p129 = scmp.ne.s32.totalorder %s118, %s119
    %p130 = scmp.eq.s32.totalorder %s14, 0
    %p131 = por %p129, %p130
    %p132 = scmp.ne.s32.totalorder %s118, %s119
    %p133 = scmp.eq.s32.totalorder %s15, 1
    %p134 = por %p132, %p133
    %p136 = scmp.ne.s32.totalorder %s119, %s135
    %p137 = scmp.eq.s32.totalorder %s15, 0
    %p138 = por %p136, %p137
    %p139 = scmp.le.s32.totalorder 1, %s9
    %p140 = scmp.lt.s32.totalorder %s9, 3
    %p141 = pnand %p139, %p140
    %p142 = pneg %p141
    // Predicated region
    $region9: #{run.19} parent=5 // pred_check
      _
    $region10: #{run.19} parent=5 // pred_check_branch
      %144 = sbr.rel (%p141) target = $region12
    $region11: #{run.19} parent=5 // pred_region
      %s145 = ssub.s32 %s9, 1
    $region12: #{run.19} parent=5 // pred_fallthru
      _
    %p146 = scmp.lt.s32.totalorder %s9, 2
    // Predicated region
    $region13: #{run.19} parent=5 // pred_check
      %p147 = pneg %p146
    $region14: #{run.19} parent=5 // pred_check_branch
      %149 = sbr.rel (%p147) target = $region16
    $region15: #{run.19} parent=5 // pred_region
      // Predicated region
      $region17: #{run.19} parent=15 // pred_check
        %p150 = pneg %p43
      $region18: #{run.19} parent=15 // pred_check_branch
        %152 = sbr.rel (%p150) target = $region20
      $region19: #{run.19} parent=15 // pred_region
        %s153 = smul.u32 32, %s17
        %p154 = scmp.lt.s32.totalorder %s16, 1
        %s155 = scalar_select %p154, %s16, 1
        %p156 = scmp.lt.s32.totalorder %s153, 31
        %s157 = scalar_select %p156, %s153, 31
        %s158 = smul.addr %s155, 32
        %s159 = sadd.s32 %s157, %s158
        %s160 = smul.addr %s159, 4
        %s161 = scalar_lea.vmem %s0, %s160
        %s162 = smul.u32 32, %s17
      $region20: #{run.19} parent=15 // pred_fallthru
        _
      // Predicated region
      $region21: #{run.19} parent=15 // pred_check
        %p163 = pneg %p69
      $region22: #{run.19} parent=15 // pred_check_branch
        %165 = sbr.rel (%p163) target = $region24
      $region23: #{run.19} parent=15 // pred_region
        %p166 = scmp.lt.s32.totalorder %s16, 1
        %s167 = scalar_select %p166, %s16, 1
        %s168 = scalar_lea.vmem %s1, %s167
      $region24: #{run.19} parent=15 // pred_fallthru
        _
      // Predicated region
      $region25: #{run.19} parent=15 // pred_check
        %p169 = pneg %p97
      $region26: #{run.19} parent=15 // pred_check_branch
        %171 = sbr.rel (%p169) target = $region28
      $region27: #{run.19} parent=15 // pred_region
        %s172 = smul.u32 32, %s17
        %p173 = scmp.lt.s32.totalorder %s16, 1
        %s174 = scalar_select %p173, %s16, 1
        %p175 = scmp.lt.s32.totalorder %s172, 31
        %s176 = scalar_select %p175, %s172, 31
        %s177 = smul.addr %s174, 32
        %s178 = sadd.s32 %s176, %s177
        %s179 = smul.addr %s178, 8
        %s180 = scalar_lea.vmem %s2, %s179
        %s181 = smul.u32 32, %s17
      $region28: #{run.19} parent=15 // pred_fallthru
        _
    $region16: #{run.19} parent=5 // pred_fallthru
      _
    %p182 = scmp.le.s32.totalorder 1, %s9
    %p183 = scmp.lt.s32.totalorder %s9, 3
    %p184 = pnand %p182, %p183
    %p185 = pneg %p184
    // Predicated region
    $region29: #{run.19} parent=5 // pred_check
      _
    $region30: #{run.19} parent=5 // pred_check_branch
      %187 = sbr.rel (%p184) target = $region32
    $region31: #{run.19} parent=5 // pred_region
      %s188 = ssub.s32 %s9, 1
      %s189 = smul.u32 32, %s19
      %p190 = scmp.lt.s32.totalorder %s18, 1
      %s191 = scalar_select %p190, %s18, 1
      %p192 = scmp.lt.s32.totalorder %s189, 31
      %s193 = scalar_select %p192, %s189, 31
      %s194 = smul.addr %s191, 32
      %s195 = sadd.s32 %s193, %s194
      %s196 = smul.addr %s195, 4
      %s197 = scalar_lea.vmem %s0, %s196
      %p198 = pneg %p49
      %p199 = pneg %p46
      %p200 = scmp.lt.s32.totalorder %s18, 1
      %s201 = scalar_select %p200, %s18, 1
      %s202 = scalar_lea.vmem %s1, %s201
      %p203 = pneg %p75
      %p204 = pneg %p72
      %s205 = smul.u32 32, %s19
      %p206 = scmp.lt.s32.totalorder %s18, 1
      %s207 = scalar_select %p206, %s18, 1
      %p208 = scmp.lt.s32.totalorder %s205, 31
      %s209 = scalar_select %p208, %s205, 31
      %s210 = smul.addr %s207, 32
      %s211 = sadd.s32 %s209, %s210
      %s212 = smul.addr %s211, 8
      %s213 = scalar_lea.vmem %s2, %s212
      %p214 = pneg %p103
      %p215 = pneg %p100
      %p216 = pneg %p131
      %p217 = pneg %p128
      %s218 = smul.u32 32, %s19
      %p219 = scmp.lt.s32.totalorder %s18, 1
      %s220 = scalar_select %p219, %s18, 1
      %p221 = scmp.lt.s32.totalorder %s218, 31
      %s222 = scalar_select %p221, %s218, 31
      %s223 = smul.addr %s220, 32
      %s224 = sadd.s32 %s222, %s223
      %s225 = smul.addr %s224, 8
      %s226 = scalar_lea.vmem %s3, %s225
      %s227 = smul.u32 32, %s19
      %p228 = scmp.lt.s32.totalorder %s18, 1
      %s229 = scalar_select %p228, %s18, 1
      %p230 = scmp.lt.s32.totalorder %s227, 31
      %s231 = scalar_select %p230, %s227, 31
      %s232 = smul.addr %s229, 32
      %s233 = sadd.s32 %s231, %s232
      %s234 = smul.addr %s233, 4
      %s235 = scalar_lea.vmem %s0, %s234
      %s236 = smul.u32 32, %s19
      %p237 = scmp.lt.s32.totalorder %s18, 1
      %s238 = scalar_select %p237, %s18, 1
      %s239 = scalar_lea.vmem %s1, %s238
      %s240 = smul.u32 32, %s19
      %p241 = scmp.lt.s32.totalorder %s18, 1
      %s242 = scalar_select %p241, %s18, 1
      %p243 = scmp.lt.s32.totalorder %s240, 31
      %s244 = scalar_select %p243, %s240, 31
      %s245 = smul.addr %s242, 32
      %s246 = sadd.s32 %s244, %s245
      %s247 = smul.addr %s246, 8
      %s248 = scalar_lea.vmem %s2, %s247
      %s249 = smul.u32 32, %s19
      %s250 = smul.u32 32, %s19
      %p251 = scmp.lt.s32.totalorder %s18, 1
      %s252 = scalar_select %p251, %s18, 1
      %p253 = scmp.lt.s32.totalorder %s250, 31
      %s254 = scalar_select %p253, %s250, 31
      %s255 = smul.addr %s252, 32
      %s256 = sadd.s32 %s254, %s255
      %s257 = smul.addr %s256, 8
      %s258 = scalar_lea.vmem %s3, %s257
      %s259 = smul.u32 32, %s19
      %v260 = vld [vmem:[%s235] sm:$0xf]
      %v261 = vld [vmem:[%s235 + $0x4] sm:$0xf]
      %v262 = vld [vmem:[%s235 + $0x8] sm:$0xf]
      %v263 = vld [vmem:[%s235 + $0xc] sm:$0xf]
      %v264 = vld [vmem:[%s235 + $0x10] sm:$0xf]
      %v265 = vld [vmem:[%s235 + $0x14] sm:$0xf]
      %v266 = vld [vmem:[%s235 + $0x18] sm:$0xf]
      %v267 = vld [vmem:[%s235 + $0x1c] sm:$0xf]
      %v268 = vld [vmem:[%s235 + $0x20] sm:$0xf]
      %v269 = vld [vmem:[%s235 + $0x24] sm:$0xf]
      %v270 = vld [vmem:[%s235 + $0x28] sm:$0xf]
      %v271 = vld [vmem:[%s235 + $0x2c] sm:$0xf]
      %v272 = vld [vmem:[%s235 + $0x30] sm:$0xf]
      %v273 = vld [vmem:[%s235 + $0x34] sm:$0xf]
      %v274 = vld [vmem:[%s235 + $0x38] sm:$0xf]
      %v275 = vld [vmem:[%s235 + $0x3c] sm:$0xf]
      %v276 = vld [vmem:[%s235 + $0x40] sm:$0xf]
      %v277 = vld [vmem:[%s235 + $0x44] sm:$0xf]
      %v278 = vld [vmem:[%s235 + $0x48] sm:$0xf]
      %v279 = vld [vmem:[%s235 + $0x4c] sm:$0xf]
      %v280 = vld [vmem:[%s235 + $0x50] sm:$0xf]
      %v281 = vld [vmem:[%s235 + $0x54] sm:$0xf]
      %v282 = vld [vmem:[%s235 + $0x58] sm:$0xf]
      %v283 = vld [vmem:[%s235 + $0x5c] sm:$0xf]
      %v284 = vld [vmem:[%s235 + $0x60] sm:$0xf]
      %v285 = vld [vmem:[%s235 + $0x64] sm:$0xf]
      %v286 = vld [vmem:[%s235 + $0x68] sm:$0xf]
      %v287 = vld [vmem:[%s235 + $0x6c] sm:$0xf]
      %v288 = vld [vmem:[%s235 + $0x70] sm:$0xf]
      %v289 = vld [vmem:[%s235 + $0x74] sm:$0xf]
      %v290 = vld [vmem:[%s235 + $0x78] sm:$0xf]
      %v291 = vld [vmem:[%s235 + $0x7c] sm:$0xf]
      %v292 = vunpack.c.l.bf16 %v260
      %v293 = vunpack.c.l.bf16 %v261
      %v294 = vunpack.c.l.bf16 %v262
      %v295 = vunpack.c.l.bf16 %v263
      %v296 = vunpack.c.l.bf16 %v264
      %v297 = vunpack.c.l.bf16 %v265
      %v298 = vunpack.c.l.bf16 %v266
      %v299 = vunpack.c.l.bf16 %v267
      %v300 = vunpack.c.l.bf16 %v268
      %v301 = vunpack.c.l.bf16 %v269
      %v302 = vunpack.c.l.bf16 %v270
      %v303 = vunpack.c.l.bf16 %v271
      %v304 = vunpack.c.l.bf16 %v272
      %v305 = vunpack.c.l.bf16 %v273
      %v306 = vunpack.c.l.bf16 %v274
      %v307 = vunpack.c.l.bf16 %v275
      %v308 = vunpack.c.l.bf16 %v276
      %v309 = vunpack.c.l.bf16 %v277
      %v310 = vunpack.c.l.bf16 %v278
      %v311 = vunpack.c.l.bf16 %v279
      %v312 = vunpack.c.l.bf16 %v280
      %v313 = vunpack.c.l.bf16 %v281
      %v314 = vunpack.c.l.bf16 %v282
      %v315 = vunpack.c.l.bf16 %v283
      %v316 = vunpack.c.l.bf16 %v284
      %v317 = vunpack.c.l.bf16 %v285
      %v318 = vunpack.c.l.bf16 %v286
      %v319 = vunpack.c.l.bf16 %v287
      %v320 = vunpack.c.l.bf16 %v288
      %v321 = vunpack.c.l.bf16 %v289
      %v322 = vunpack.c.l.bf16 %v290
      %v323 = vunpack.c.l.bf16 %v291
      %v324 = vld [vmem:[%s239] sm:$0x1]
      %v326 = vlaneseq
      %v327 = vshrl.u32 %v326, 7
      %v328 = vsub.s32 0, %v327
      %v329 = vrot.slane %v324, %v328
      %v331 = vmul.f32 %v292, %v329
      %v332 = vmul.f32 %v293, %v329
      %v333 = vmul.f32 %v294, %v329
      %v334 = vmul.f32 %v295, %v329
      %v335 = vmul.f32 %v296, %v329
      %v336 = vmul.f32 %v297, %v329
      %v337 = vmul.f32 %v298, %v329
      %v338 = vmul.f32 %v299, %v329
      %v339 = vmul.f32 %v300, %v329
      %v340 = vmul.f32 %v301, %v329
      %v341 = vmul.f32 %v302, %v329
      %v342 = vmul.f32 %v303, %v329
      %v343 = vmul.f32 %v304, %v329
      %v344 = vmul.f32 %v305, %v329
      %v345 = vmul.f32 %v306, %v329
      %v346 = vmul.f32 %v307, %v329
      %v347 = vmul.f32 %v308, %v329
      %v348 = vmul.f32 %v309, %v329
      %v349 = vmul.f32 %v310, %v329
      %v350 = vmul.f32 %v311, %v329
      %v351 = vmul.f32 %v312, %v329
      %v352 = vmul.f32 %v313, %v329
      %v353 = vmul.f32 %v314, %v329
      %v354 = vmul.f32 %v315, %v329
      %v355 = vmul.f32 %v316, %v329
      %v356 = vmul.f32 %v317, %v329
      %v357 = vmul.f32 %v318, %v329
      %v358 = vmul.f32 %v319, %v329
      %v359 = vmul.f32 %v320, %v329
      %v360 = vmul.f32 %v321, %v329
      %v361 = vmul.f32 %v322, %v329
      %v362 = vmul.f32 %v323, %v329
      %v363 = vld [vmem:[%s248] sm:$0xff]
      %v364 = vld [vmem:[%s248 + $0x8] sm:$0xff]
      %v365 = vld [vmem:[%s248 + $0x10] sm:$0xff]
      %v366 = vld [vmem:[%s248 + $0x18] sm:$0xff]
      %v367 = vld [vmem:[%s248 + $0x20] sm:$0xff]
      %v368 = vld [vmem:[%s248 + $0x28] sm:$0xff]
      %v369 = vld [vmem:[%s248 + $0x30] sm:$0xff]
      %v370 = vld [vmem:[%s248 + $0x38] sm:$0xff]
      %v371 = vld [vmem:[%s248 + $0x40] sm:$0xff]
      %v372 = vld [vmem:[%s248 + $0x48] sm:$0xff]
      %v373 = vld [vmem:[%s248 + $0x50] sm:$0xff]
      %v374 = vld [vmem:[%s248 + $0x58] sm:$0xff]
      %v375 = vld [vmem:[%s248 + $0x60] sm:$0xff]
      %v376 = vld [vmem:[%s248 + $0x68] sm:$0xff]
      %v377 = vld [vmem:[%s248 + $0x70] sm:$0xff]
      %v378 = vld [vmem:[%s248 + $0x78] sm:$0xff]
      %v379 = vld [vmem:[%s248 + $0x80] sm:$0xff]
      %v380 = vld [vmem:[%s248 + $0x88] sm:$0xff]
      %v381 = vld [vmem:[%s248 + $0x90] sm:$0xff]
      %v382 = vld [vmem:[%s248 + $0x98] sm:$0xff]
      %v383 = vld [vmem:[%s248 + $0xa0] sm:$0xff]
      %v384 = vld [vmem:[%s248 + $0xa8] sm:$0xff]
      %v385 = vld [vmem:[%s248 + $0xb0] sm:$0xff]
      %v386 = vld [vmem:[%s248 + $0xb8] sm:$0xff]
      %v387 = vld [vmem:[%s248 + $0xc0] sm:$0xff]
      %v388 = vld [vmem:[%s248 + $0xc8] sm:$0xff]
      %v389 = vld [vmem:[%s248 + $0xd0] sm:$0xff]
      %v390 = vld [vmem:[%s248 + $0xd8] sm:$0xff]
      %v391 = vld [vmem:[%s248 + $0xe0] sm:$0xff]
      %v392 = vld [vmem:[%s248 + $0xe8] sm:$0xff]
      %v393 = vld [vmem:[%s248 + $0xf0] sm:$0xff]
      %v394 = vld [vmem:[%s248 + $0xf8] sm:$0xff]
      %v395 = vadd.f32 %v331, %v363
      %v396 = vadd.f32 %v332, %v364
      %v397 = vadd.f32 %v333, %v365
      %v398 = vadd.f32 %v334, %v366
      %v399 = vadd.f32 %v335, %v367
      %v400 = vadd.f32 %v336, %v368
      %v401 = vadd.f32 %v337, %v369
      %v402 = vadd.f32 %v338, %v370
      %v403 = vadd.f32 %v339, %v371
      %v404 = vadd.f32 %v340, %v372
      %v405 = vadd.f32 %v341, %v373
      %v406 = vadd.f32 %v342, %v374
      %v407 = vadd.f32 %v343, %v375
      %v408 = vadd.f32 %v344, %v376
      %v409 = vadd.f32 %v345, %v377
      %v410 = vadd.f32 %v346, %v378
      %v411 = vadd.f32 %v347, %v379
      %v412 = vadd.f32 %v348, %v380
      %v413 = vadd.f32 %v349, %v381
      %v414 = vadd.f32 %v350, %v382
      %v415 = vadd.f32 %v351, %v383
      %v416 = vadd.f32 %v352, %v384
      %v417 = vadd.f32 %v353, %v385
      %v418 = vadd.f32 %v354, %v386
      %v419 = vadd.f32 %v355, %v387
      %v420 = vadd.f32 %v356, %v388
      %v421 = vadd.f32 %v357, %v389
      %v422 = vadd.f32 %v358, %v390
      %v423 = vadd.f32 %v359, %v391
      %v424 = vadd.f32 %v360, %v392
      %v425 = vadd.f32 %v361, %v393
      %v426 = vadd.f32 %v362, %v394
      %427 = vst [vmem:[%s258] sm:$0xff] %v395
      %428 = vst [vmem:[%s258 + $0x8] sm:$0xff] %v396
      %429 = vst [vmem:[%s258 + $0x10] sm:$0xff] %v397
      %430 = vst [vmem:[%s258 + $0x18] sm:$0xff] %v398
      %431 = vst [vmem:[%s258 + $0x20] sm:$0xff] %v399
      %432 = vst [vmem:[%s258 + $0x28] sm:$0xff] %v400
      %433 = vst [vmem:[%s258 + $0x30] sm:$0xff] %v401
      %434 = vst [vmem:[%s258 + $0x38] sm:$0xff] %v402
      %435 = vst [vmem:[%s258 + $0x40] sm:$0xff] %v403
      %436 = vst [vmem:[%s258 + $0x48] sm:$0xff] %v404
      %437 = vst [vmem:[%s258 + $0x50] sm:$0xff] %v405
      %438 = vst [vmem:[%s258 + $0x58] sm:$0xff] %v406
      %439 = vst [vmem:[%s258 + $0x60] sm:$0xff] %v407
      %440 = vst [vmem:[%s258 + $0x68] sm:$0xff] %v408
      %441 = vst [vmem:[%s258 + $0x70] sm:$0xff] %v409
      %442 = vst [vmem:[%s258 + $0x78] sm:$0xff] %v410
      %443 = vst [vmem:[%s258 + $0x80] sm:$0xff] %v411
      %444 = vst [vmem:[%s258 + $0x88] sm:$0xff] %v412
      %445 = vst [vmem:[%s258 + $0x90] sm:$0xff] %v413
      %446 = vst [vmem:[%s258 + $0x98] sm:$0xff] %v414
      %447 = vst [vmem:[%s258 + $0xa0] sm:$0xff] %v415
      %448 = vst [vmem:[%s258 + $0xa8] sm:$0xff] %v416
      %449 = vst [vmem:[%s258 + $0xb0] sm:$0xff] %v417
      %450 = vst [vmem:[%s258 + $0xb8] sm:$0xff] %v418
      %451 = vst [vmem:[%s258 + $0xc0] sm:$0xff] %v419
      %452 = vst [vmem:[%s258 + $0xc8] sm:$0xff] %v420
      %453 = vst [vmem:[%s258 + $0xd0] sm:$0xff] %v421
      %454 = vst [vmem:[%s258 + $0xd8] sm:$0xff] %v422
      %455 = vst [vmem:[%s258 + $0xe0] sm:$0xff] %v423
      %456 = vst [vmem:[%s258 + $0xe8] sm:$0xff] %v424
      %457 = vst [vmem:[%s258 + $0xf0] sm:$0xff] %v425
      %458 = vst [vmem:[%s258 + $0xf8] sm:$0xff] %v426
      %s459 = smul.u32 32, %s19
      %p460 = scmp.lt.s32.totalorder %s18, 1
      %s461 = scalar_select %p460, %s18, 1
      %p462 = scmp.lt.s32.totalorder %s459, 31
      %s463 = scalar_select %p462, %s459, 31
      %s464 = smul.addr %s461, 32
      %s465 = sadd.s32 %s463, %s464
      %s466 = smul.addr %s465, 8
      %s467 = scalar_lea.vmem %s3, %s466
      // Predicated region
      $region33: #{run.19} parent=31 // pred_check
        %p468 = pneg %p128
      $region34: #{run.19} parent=31 // pred_check_branch
        %470 = sbr.rel (%p468) target = $region36
      $region35: #{run.19} parent=31 // pred_region
        %s471 = smul.u32 32, %s19
      $region36: #{run.19} parent=31 // pred_fallthru
        _
    $region32: #{run.19} parent=5 // pred_fallthru
      _
    %p472 = scmp.le.s32.totalorder 2, %s9
    // Predicated region
    $region37: #{run.19} parent=5 // pred_check
      %p473 = pneg %p472
    $region38: #{run.19} parent=5 // pred_check_branch
      %475 = sbr.rel (%p473) target = $region40
    $region39: #{run.19} parent=5 // pred_region
      %s476 = ssub.s32 %s9, 2
      // Predicated region
      $region41: #{run.19} parent=39 // pred_check
        %p477 = pneg %p134
      $region42: #{run.19} parent=39 // pred_check_branch
        %479 = sbr.rel (%p477) target = $region44
      $region43: #{run.19} parent=39 // pred_region
        %s480 = smul.u32 32, %s21
        %p481 = scmp.lt.s32.totalorder %s20, 1
        %s482 = scalar_select %p481, %s20, 1
        %p483 = scmp.lt.s32.totalorder %s480, 31
        %s484 = scalar_select %p483, %s480, 31
        %s485 = smul.addr %s482, 32
        %s486 = sadd.s32 %s484, %s485
        %s487 = smul.addr %s486, 8
        %s488 = scalar_lea.vmem %s3, %s487
      $region44: #{run.19} parent=39 // pred_fallthru
        _
    $region40: #{run.19} parent=5 // pred_fallthru
      _
  $region6: #{run.19} parent=0 // loop_footer
    %s13 = sadd.s32 1, %s9
  $region7: #{run.19} parent=0 // loop_footer_branch
    %8 = sbr.rel target = $region3
  $region8: #{run.19} parent=0 // loop_exit
    _

// kernel: run.18
$region0: #{run.18}
  #allocation0 [shape = 'u32[]', space=smem, size = 0x4, offset = 0x4, fixed_abs, tag = 'smem constant byte address 0x4 - core index']
  #allocation1 [shape = 'u32[144,128]{1,0:T(1,128)}', space=vmem, size = 0x12000, scoped, tag = 'internal scratch']
  %s0 = inlined_call_operand.vmem [shape: f32[8,128], index: 0, kind: input, shape index: {}]
  %s1 = inlined_call_operand.vmem [shape: f32[128,128], index: 1, kind: input, shape index: {}]
  %s2 = inlined_call_operand.vmem [shape: f32[1,128], index: 2, kind: input, shape index: {}]
  %s3 = inlined_call_operand.vmem [shape: f32[128,128], index: 3, kind: input, shape index: {}]
  %s4 = inlined_call_operand.vmem [shape: f32[1,128], index: 4, kind: input, shape index: {}]
  %s5 = inlined_call_operand.vmem [shape: f32[8,128], index: 5, kind: output, shape index: {}]
  %s6 = sld [smem:[#allocation0]]
  $region30: #{run.18} parent=0
    _
  %s8 = ssub.s32 1, %s6
  %s9 = scalar_select 0, %s8, %s6
  // Predicated region
  $region2: #{run.18} parent=0 // pred_check
    _
  $region3: #{run.18} parent=0 // pred_check_branch
    %11 = sbr.rel (0) target = $region5
  $region4: #{run.18} parent=0 // pred_region
    _
  $region5: #{run.18} parent=0 // pred_fallthru
    _
  // Predicated region
  $region6: #{run.18} parent=0 // pred_check
    _
  $region7: #{run.18} parent=0 // pred_check_branch
    %13 = sbr.rel (0) target = $region9
  $region8: #{run.18} parent=0 // pred_region
    _
  $region9: #{run.18} parent=0 // pred_fallthru
    _
  // Predicated region
  $region10: #{run.18} parent=0 // pred_check
    _
  $region11: #{run.18} parent=0 // pred_check_branch
    %15 = sbr.rel (0) target = $region13
  $region12: #{run.18} parent=0 // pred_region
    _
  $region13: #{run.18} parent=0 // pred_fallthru
    _
  // Predicated region
  $region14: #{run.18} parent=0 // pred_check
    _
  $region15: #{run.18} parent=0 // pred_check_branch
    %17 = sbr.rel (0) target = $region17
  $region16: #{run.18} parent=0 // pred_region
    _
  $region17: #{run.18} parent=0 // pred_fallthru
    _
  // Predicated region
  $region18: #{run.18} parent=0 // pred_check
    _
  $region19: #{run.18} parent=0 // pred_check_branch
    %19 = sbr.rel (0) target = $region21
  $region20: #{run.18} parent=0 // pred_region
    _
  $region21: #{run.18} parent=0 // pred_fallthru
    _
  %v20 = vld [vmem:[%s0] sm:$0xff]
  %v21 = vld [vmem:[%s1] sm:$0xff]
  %v22 = vld [vmem:[%s1 + $0x8] sm:$0xff]
  %v23 = vld [vmem:[%s1 + $0x10] sm:$0xff]
  %v24 = vld [vmem:[%s1 + $0x18] sm:$0xff]
  %v25 = vld [vmem:[%s1 + $0x20] sm:$0xff]
  %v26 = vld [vmem:[%s1 + $0x28] sm:$0xff]
  %v27 = vld [vmem:[%s1 + $0x30] sm:$0xff]
  %v28 = vld [vmem:[%s1 + $0x38] sm:$0xff]
  %v29 = vld [vmem:[%s1 + $0x40] sm:$0xff]
  %v30 = vld [vmem:[%s1 + $0x48] sm:$0xff]
  %v31 = vld [vmem:[%s1 + $0x50] sm:$0xff]
  %v32 = vld [vmem:[%s1 + $0x58] sm:$0xff]
  %v33 = vld [vmem:[%s1 + $0x60] sm:$0xff]
  %v34 = vld [vmem:[%s1 + $0x68] sm:$0xff]
  %v35 = vld [vmem:[%s1 + $0x70] sm:$0xff]
  %v36 = vld [vmem:[%s1 + $0x78] sm:$0xff]
  %v37 = vld [vmem:[%s2] sm:$0x1]
  %v39 = vlaneseq
  %v40 = vshrl.u32 %v39, 7
  %v41 = vsub.s32 0, %v40
  %v42 = vrot.slane %v37, %v41
  %44 = vmatprep.subr.mxu0 0.0
  %45 = vmatpush1.msra.mxu0 %v36
  %46 = vmatprep.subr.mxu0 0.0
  %47 = vmatpush1.msra.mxu0 %v35
  %48 = vmatprep.subr.mxu0 0.0
  %49 = vmatpush1.msra.mxu0 %v34
  %50 = vmatprep.subr.mxu0 0.0
  %51 = vmatpush1.msra.mxu0 %v33
  %52 = vmatprep.subr.mxu0 0.0
  %53 = vmatpush1.msra.mxu0 %v32
  %54 = vmatprep.subr.mxu0 0.0
  %55 = vmatpush1.msra.mxu0 %v31
  %56 = vmatprep.subr.mxu0 0.0
  %57 = vmatpush1.msra.mxu0 %v30
  %58 = vmatprep.subr.mxu0 0.0
  %59 = vmatpush1.msra.mxu0 %v29
  %60 = vmatprep.subr.mxu0 0.0
  %61 = vmatpush1.msra.mxu0 %v28
  %62 = vmatprep.subr.mxu0 0.0
  %63 = vmatpush1.msra.mxu0 %v27
  %64 = vmatprep.subr.mxu0 0.0
  %65 = vmatpush1.msra.mxu0 %v26
  %66 = vmatprep.subr.mxu0 0.0
  %67 = vmatpush1.msra.mxu0 %v25
  %68 = vmatprep.subr.mxu0 0.0
  %69 = vmatpush1.msra.mxu0 %v24
  %70 = vmatprep.subr.mxu0 0.0
  %71 = vmatpush1.msra.mxu0 %v23
  %72 = vmatprep.subr.mxu0 0.0
  %73 = vmatpush1.msra.mxu0 %v22
  %74 = vmatprep.subr.mxu0 0.0
  %75 = vmatpush1.msra.mxu0 %v21
  %76 = vmatprep.subr.mxu0 0.0
  %77 = vmatpush2.msra.mxu0 0.0
  %78 = vmatprep.subr.mxu0 0.0
  %79 = vmatpush2.msra.mxu0 0.0
  %80 = vmatprep.subr.mxu0 0.0
  %81 = vmatpush2.msra.mxu0 0.0
  %82 = vmatprep.subr.mxu0 0.0
  %83 = vmatpush2.msra.mxu0 0.0
  %84 = vmatprep.subr.mxu0 0.0
  %85 = vmatpush2.msra.mxu0 0.0
  %86 = vmatprep.subr.mxu0 0.0
  %87 = vmatpush2.msra.mxu0 0.0
  %88 = vmatprep.subr.mxu0 0.0
  %89 = vmatpush2.msra.mxu0 0.0
  %90 = vmatprep.subr.mxu0 0.0
  %91 = vmatpush2.msra.mxu0 0.0
  %92 = vmatprep.subr.mxu0 0.0
  %93 = vmatpush2.msra.mxu0 0.0
  %94 = vmatprep.subr.mxu0 0.0
  %95 = vmatpush2.msra.mxu0 0.0
  %96 = vmatprep.subr.mxu0 0.0
  %97 = vmatpush2.msra.mxu0 0.0
  %98 = vmatprep.subr.mxu0 0.0
  %99 = vmatpush2.msra.mxu0 0.0
  %100 = vmatprep.subr.mxu0 0.0
  %101 = vmatpush2.msra.mxu0 0.0
  %102 = vmatprep.subr.mxu0 0.0
  %103 = vmatpush2.msra.mxu0 0.0
  %104 = vmatprep.subr.mxu0 0.0
  %105 = vmatpush2.msra.mxu0 0.0
  %106 = vmatprep.subr.mxu0 0.0
  %107 = vmatpush2.msra.mxu0 0.0
  %108 = vmatprep.mubr.f32.mxu0 0.0
  %109 = vmatmul.mubr.f32.gmra.mxu0 %v20
  %v110 = vpop.f32.mrf.mxu0
  %v111 = vadd.f32 %v42, %v110
  %v112 = vpop.f32.mrf.mxu0
  %113 = vdwg.mxu0
  %v114 = vmax.f32 %v111, 0.0
  %v115 = vld [vmem:[%s3] sm:$0xff]
  %v116 = vld [vmem:[%s3 + $0x8] sm:$0xff]
  %v117 = vld [vmem:[%s3 + $0x10] sm:$0xff]
  %v118 = vld [vmem:[%s3 + $0x18] sm:$0xff]
  %v119 = vld [vmem:[%s3 + $0x20] sm:$0xff]
  %v120 = vld [vmem:[%s3 + $0x28] sm:$0xff]
  %v121 = vld [vmem:[%s3 + $0x30] sm:$0xff]
  %v122 = vld [vmem:[%s3 + $0x38] sm:$0xff]
  %v123 = vld [vmem:[%s3 + $0x40] sm:$0xff]
  %v124 = vld [vmem:[%s3 + $0x48] sm:$0xff]
  %v125 = vld [vmem:[%s3 + $0x50] sm:$0xff]
  %v126 = vld [vmem:[%s3 + $0x58] sm:$0xff]
  %v127 = vld [vmem:[%s3 + $0x60] sm:$0xff]
  %v128 = vld [vmem:[%s3 + $0x68] sm:$0xff]
  %v129 = vld [vmem:[%s3 + $0x70] sm:$0xff]
  %v130 = vld [vmem:[%s3 + $0x78] sm:$0xff]
  %v131 = vld [vmem:[%s4] sm:$0x1]
  %v133 = vlaneseq
  %v134 = vshrl.u32 %v133, 7
  %v135 = vsub.s32 0, %v134
  %v136 = vrot.slane %v131, %v135
  %138 = vmatprep.subr.mxu0 0.0
  %139 = vmatpush1.msra.mxu0 %v130
  %140 = vmatprep.subr.mxu0 0.0
  %141 = vmatpush1.msra.mxu0 %v129
  %142 = vmatprep.subr.mxu0 0.0
  %143 = vmatpush1.msra.mxu0 %v128
  %144 = vmatprep.subr.mxu0 0.0
  %145 = vmatpush1.msra.mxu0 %v127
  %146 = vmatprep.subr.mxu0 0.0
  %147 = vmatpush1.msra.mxu0 %v126
  %148 = vmatprep.subr.mxu0 0.0
  %149 = vmatpush1.msra.mxu0 %v125
  %150 = vmatprep.subr.mxu0 0.0
  %151 = vmatpush1.msra.mxu0 %v124
  %152 = vmatprep.subr.mxu0 0.0
  %153 = vmatpush1.msra.mxu0 %v123
  %154 = vmatprep.subr.mxu0 0.0
  %155 = vmatpush1.msra.mxu0 %v122
  %156 = vmatprep.subr.mxu0 0.0
  %157 = vmatpush1.msra.mxu0 %v121
  %158 = vmatprep.subr.mxu0 0.0
  %159 = vmatpush1.msra.mxu0 %v120
  %160 = vmatprep.subr.mxu0 0.0
  %161 = vmatpush1.msra.mxu0 %v119
  %162 = vmatprep.subr.mxu0 0.0
  %163 = vmatpush1.msra.mxu0 %v118
  %164 = vmatprep.subr.mxu0 0.0
  %165 = vmatpush1.msra.mxu0 %v117
  %166 = vmatprep.subr.mxu0 0.0
  %167 = vmatpush1.msra.mxu0 %v116
  %168 = vmatprep.subr.mxu0 0.0
  %169 = vmatpush1.msra.mxu0 %v115
  %170 = vmatprep.subr.mxu0 0.0
  %171 = vmatpush2.msra.mxu0 0.0
  %172 = vmatprep.subr.mxu0 0.0
  %173 = vmatpush2.msra.mxu0 0.0
  %174 = vmatprep.subr.mxu0 0.0
  %175 = vmatpush2.msra.mxu0 0.0
  %176 = vmatprep.subr.mxu0 0.0
  %177 = vmatpush2.msra.mxu0 0.0
  %178 = vmatprep.subr.mxu0 0.0
  %179 = vmatpush2.msra.mxu0 0.0
  %180 = vmatprep.subr.mxu0 0.0
  %181 = vmatpush2.msra.mxu0 0.0
  %182 = vmatprep.subr.mxu0 0.0
  %183 = vmatpush2.msra.mxu0 0.0
  %184 = vmatprep.subr.mxu0 0.0
  %185 = vmatpush2.msra.mxu0 0.0
  %186 = vmatprep.subr.mxu0 0.0
  %187 = vmatpush2.msra.mxu0 0.0
  %188 = vmatprep.subr.mxu0 0.0
  %189 = vmatpush2.msra.mxu0 0.0
  %190 = vmatprep.subr.mxu0 0.0
  %191 = vmatpush2.msra.mxu0 0.0
  %192 = vmatprep.subr.mxu0 0.0
  %193 = vmatpush2.msra.mxu0 0.0
  %194 = vmatprep.subr.mxu0 0.0
  %195 = vmatpush2.msra.mxu0 0.0
  %196 = vmatprep.subr.mxu0 0.0
  %197 = vmatpush2.msra.mxu0 0.0
  %198 = vmatprep.subr.mxu0 0.0
  %199 = vmatpush2.msra.mxu0 0.0
  %200 = vmatprep.subr.mxu0 0.0
  %201 = vmatpush2.msra.mxu0 0.0
  %202 = vmatprep.mubr.f32.mxu0 0.0
  %203 = vmatmul.mubr.f32.gmra.mxu0 %v114
  %v204 = vpop.f32.mrf.mxu0
  %v205 = vadd.f32 %v136, %v204
  %v206 = vpop.f32.mrf.mxu0
  %207 = vdwg.mxu0
  %v208 = vxor.u32 %v205, 2147483648
  %v209 = vmul.f32 %v208, 1.442695
  %v210 = vpow.pop %v209
  %v211 = vadd.f32 %v210, 1.0
  %v212 = vrcp.pop %v211
  %v213 = vmul.f32 1.0, %v212
  %214 = vst [vmem:[%s5] sm:$0xff] %v213
  // Predicated region
  $region22: #{run.18} parent=0 // pred_check
    _
  $region23: #{run.18} parent=0 // pred_check_branch
    %216 = sbr.rel (0) target = $region25
  $region24: #{run.18} parent=0 // pred_region
    _
  $region25: #{run.18} parent=0 // pred_fallthru
    _
  // Predicated region
  $region26: #{run.18} parent=0 // pred_check
    _
  $region27: #{run.18} parent=0 // pred_check_branch
    %218 = sbr.rel (0) target = $region29
  $region28: #{run.18} parent=0 // pred_region
    _
  $region29: #{run.18} parent=0 // pred_fallthru
    _

// kernel: run.20
$region0: #{run.20}
  #allocation0 [shape = 'u32[]', space=smem, size = 0x4, offset = 0x4, fixed_abs, tag = 'smem constant byte address 0x4 - core index']
  #allocation1 [shape = 'u32[144,128]{1,0:T(1,128)}', space=vmem, size = 0x12000, scoped, tag = 'internal scratch']
  %s0 = inlined_call_operand.vmem [shape: f32[256,128], index: 0, kind: input, shape index: {}]
  %s1 = inlined_call_operand.vmem [shape: f32[1,128], index: 1, kind: input, shape index: {}]
  %s2 = inlined_call_operand.vmem [shape: f32[1,128], index: 2, kind: input, shape index: {}]
  %s3 = inlined_call_operand.vmem [shape: bf16[256,128], index: 3, kind: output, shape index: {}]
  %s4 = sld [smem:[#allocation0]]
  $region22: #{run.20} parent=0
    _
  %s6 = ssub.s32 1, %s4
  %s7 = scalar_select 0, %s6, %s4
  // Predicated region
  $region2: #{run.20} parent=0 // pred_check
    _
  $region3: #{run.20} parent=0 // pred_check_branch
    %9 = sbr.rel (0) target = $region5
  $region4: #{run.20} parent=0 // pred_region
    _
  $region5: #{run.20} parent=0 // pred_fallthru
    _
  // Predicated region
  $region6: #{run.20} parent=0 // pred_check
    _
  $region7: #{run.20} parent=0 // pred_check_branch
    %11 = sbr.rel (0) target = $region9
  $region8: #{run.20} parent=0 // pred_region
    _
  $region9: #{run.20} parent=0 // pred_fallthru
    _
  // Predicated region
  $region10: #{run.20} parent=0 // pred_check
    _
  $region11: #{run.20} parent=0 // pred_check_branch
    %13 = sbr.rel (0) target = $region13
  $region12: #{run.20} parent=0 // pred_region
    _
  $region13: #{run.20} parent=0 // pred_fallthru
    _
  %v14 = vld [vmem:[%s0] sm:$0xff]
  %v15 = vld [vmem:[%s0 + $0x8] sm:$0xff]
  %v16 = vld [vmem:[%s0 + $0x10] sm:$0xff]
  %v17 = vld [vmem:[%s0 + $0x18] sm:$0xff]
  %v18 = vld [vmem:[%s0 + $0x20] sm:$0xff]
  %v19 = vld [vmem:[%s0 + $0x28] sm:$0xff]
  %v20 = vld [vmem:[%s0 + $0x30] sm:$0xff]
  %v21 = vld [vmem:[%s0 + $0x38] sm:$0xff]
  %v22 = vld [vmem:[%s0 + $0x40] sm:$0xff]
  %v23 = vld [vmem:[%s0 + $0x48] sm:$0xff]
  %v24 = vld [vmem:[%s0 + $0x50] sm:$0xff]
  %v25 = vld [vmem:[%s0 + $0x58] sm:$0xff]
  %v26 = vld [vmem:[%s0 + $0x60] sm:$0xff]
  %v27 = vld [vmem:[%s0 + $0x68] sm:$0xff]
  %v28 = vld [vmem:[%s0 + $0x70] sm:$0xff]
  %v29 = vld [vmem:[%s0 + $0x78] sm:$0xff]
  %v30 = vld [vmem:[%s0 + $0x80] sm:$0xff]
  %v31 = vld [vmem:[%s0 + $0x88] sm:$0xff]
  %v32 = vld [vmem:[%s0 + $0x90] sm:$0xff]
  %v33 = vld [vmem:[%s0 + $0x98] sm:$0xff]
  %v34 = vld [vmem:[%s0 + $0xa0] sm:$0xff]
  %v35 = vld [vmem:[%s0 + $0xa8] sm:$0xff]
  %v36 = vld [vmem:[%s0 + $0xb0] sm:$0xff]
  %v37 = vld [vmem:[%s0 + $0xb8] sm:$0xff]
  %v38 = vld [vmem:[%s0 + $0xc0] sm:$0xff]
  %v39 = vld [vmem:[%s0 + $0xc8] sm:$0xff]
  %v40 = vld [vmem:[%s0 + $0xd0] sm:$0xff]
  %v41 = vld [vmem:[%s0 + $0xd8] sm:$0xff]
  %v42 = vld [vmem:[%s0 + $0xe0] sm:$0xff]
  %v43 = vld [vmem:[%s0 + $0xe8] sm:$0xff]
  %v44 = vld [vmem:[%s0 + $0xf0] sm:$0xff]
  %v45 = vld [vmem:[%s0 + $0xf8] sm:$0xff]
  %v46 = vld [vmem:[%s1] sm:$0x1]
  %v48 = vlaneseq
  %v49 = vshrl.u32 %v48, 7
  %v50 = vsub.s32 0, %v49
  %v51 = vrot.slane %v46, %v50
  %v53 = vmul.f32 %v14, %v51
  %v54 = vmul.f32 %v15, %v51
  %v55 = vmul.f32 %v16, %v51
  %v56 = vmul.f32 %v17, %v51
  %v57 = vmul.f32 %v18, %v51
  %v58 = vmul.f32 %v19, %v51
  %v59 = vmul.f32 %v20, %v51
  %v60 = vmul.f32 %v21, %v51
  %v61 = vmul.f32 %v22, %v51
  %v62 = vmul.f32 %v23, %v51
  %v63 = vmul.f32 %v24, %v51
  %v64 = vmul.f32 %v25, %v51
  %v65 = vmul.f32 %v26, %v51
  %v66 = vmul.f32 %v27, %v51
  %v67 = vmul.f32 %v28, %v51
  %v68 = vmul.f32 %v29, %v51
  %v69 = vmul.f32 %v30, %v51
  %v70 = vmul.f32 %v31, %v51
  %v71 = vmul.f32 %v32, %v51
  %v72 = vmul.f32 %v33, %v51
  %v73 = vmul.f32 %v34, %v51
  %v74 = vmul.f32 %v35, %v51
  %v75 = vmul.f32 %v36, %v51
  %v76 = vmul.f32 %v37, %v51
  %v77 = vmul.f32 %v38, %v51
  %v78 = vmul.f32 %v39, %v51
  %v79 = vmul.f32 %v40, %v51
  %v80 = vmul.f32 %v41, %v51
  %v81 = vmul.f32 %v42, %v51
  %v82 = vmul.f32 %v43, %v51
  %v83 = vmul.f32 %v44, %v51
  %v84 = vmul.f32 %v45, %v51
  %v85 = vld [vmem:[%s2] sm:$0x1]
  %v87 = vlaneseq
  %v88 = vshrl.u32 %v87, 7
  %v89 = vsub.s32 0, %v88
  %v90 = vrot.slane %v85, %v89
  %v92 = vadd.f32 %v53, %v90
  %v93 = vadd.f32 %v54, %v90
  %v94 = vadd.f32 %v55, %v90
  %v95 = vadd.f32 %v56, %v90
  %v96 = vadd.f32 %v57, %v90
  %v97 = vadd.f32 %v58, %v90
  %v98 = vadd.f32 %v59, %v90
  %v99 = vadd.f32 %v60, %v90
  %v100 = vadd.f32 %v61, %v90
  %v101 = vadd.f32 %v62, %v90
  %v102 = vadd.f32 %v63, %v90
  %v103 = vadd.f32 %v64, %v90
  %v104 = vadd.f32 %v65, %v90
  %v105 = vadd.f32 %v66, %v90
  %v106 = vadd.f32 %v67, %v90
  %v107 = vadd.f32 %v68, %v90
  %v108 = vadd.f32 %v69, %v90
  %v109 = vadd.f32 %v70, %v90
  %v110 = vadd.f32 %v71, %v90
  %v111 = vadd.f32 %v72, %v90
  %v112 = vadd.f32 %v73, %v90
  %v113 = vadd.f32 %v74, %v90
  %v114 = vadd.f32 %v75, %v90
  %v115 = vadd.f32 %v76, %v90
  %v116 = vadd.f32 %v77, %v90
  %v117 = vadd.f32 %v78, %v90
  %v118 = vadd.f32 %v79, %v90
  %v119 = vadd.f32 %v80, %v90
  %v120 = vadd.f32 %v81, %v90
  %v121 = vadd.f32 %v82, %v90
  %v122 = vadd.f32 %v83, %v90
  %v123 = vadd.f32 %v84, %v90
  %v124 = vmax.f32 %v92, 0.0
  %v125 = vmax.f32 %v93, 0.0
  %v126 = vmax.f32 %v94, 0.0
  %v127 = vmax.f32 %v95, 0.0
  %v128 = vmax.f32 %v96, 0.0
  %v129 = vmax.f32 %v97, 0.0
  %v130 = vmax.f32 %v98, 0.0
  %v131 = vmax.f32 %v99, 0.0
  %v132 = vmax.f32 %v100, 0.0
  %v133 = vmax.f32 %v101, 0.0
  %v134 = vmax.f32 %v102, 0.0
  %v135 = vmax.f32 %v103, 0.0
  %v136 = vmax.f32 %v104, 0.0
  %v137 = vmax.f32 %v105, 0.0
  %v138 = vmax.f32 %v106, 0.0
  %v139 = vmax.f32 %v107, 0.0
  %v140 = vmax.f32 %v108, 0.0
  %v141 = vmax.f32 %v109, 0.0
  %v142 = vmax.f32 %v110, 0.0
  %v143 = vmax.f32 %v111, 0.0
  %v144 = vmax.f32 %v112, 0.0
  %v145 = vmax.f32 %v113, 0.0
  %v146 = vmax.f32 %v114, 0.0
  %v147 = vmax.f32 %v115, 0.0
  %v148 = vmax.f32 %v116, 0.0
  %v149 = vmax.f32 %v117, 0.0
  %v150 = vmax.f32 %v118, 0.0
  %v151 = vmax.f32 %v119, 0.0
  %v152 = vmax.f32 %v120, 0.0
  %v153 = vmax.f32 %v121, 0.0
  %v154 = vmax.f32 %v122, 0.0
  %v155 = vmax.f32 %v123, 0.0
  %v156 = vpack.c.bf16 %v125, %v124
  %v157 = vpack.c.bf16 %v127, %v126
  %v158 = vpack.c.bf16 %v129, %v128
  %v159 = vpack.c.bf16 %v131, %v130
  %v160 = vpack.c.bf16 %v133, %v132
  %v161 = vpack.c.bf16 %v135, %v134
  %v162 = vpack.c.bf16 %v137, %v136
  %v163 = vpack.c.bf16 %v139, %v138
  %v164 = vpack.c.bf16 %v141, %v140
  %v165 = vpack.c.bf16 %v143, %v142
  %v166 = vpack.c.bf16 %v145, %v144
  %v167 = vpack.c.bf16 %v147, %v146
  %v168 = vpack.c.bf16 %v149, %v148
  %v169 = vpack.c.bf16 %v151, %v150
  %v170 = vpack.c.bf16 %v153, %v152
  %v171 = vpack.c.bf16 %v155, %v154
  %v188 = vunpack.c.l.b16 %v156
  %v189 = vunpack.c.h.b16 %v156
  %v190 = vunpack.c.l.b16 %v157
  %v191 = vunpack.c.h.b16 %v157
  %v192 = vunpack.c.l.b16 %v158
  %v193 = vunpack.c.h.b16 %v158
  %v194 = vunpack.c.l.b16 %v159
  %v195 = vunpack.c.h.b16 %v159
  %v196 = vunpack.c.l.b16 %v160
  %v197 = vunpack.c.h.b16 %v160
  %v198 = vunpack.c.l.b16 %v161
  %v199 = vunpack.c.h.b16 %v161
  %v200 = vunpack.c.l.b16 %v162
  %v201 = vunpack.c.h.b16 %v162
  %v202 = vunpack.c.l.b16 %v163
  %v203 = vunpack.c.h.b16 %v163
  %v204 = vunpack.c.l.b16 %v164
  %v205 = vunpack.c.h.b16 %v164
  %v206 = vunpack.c.l.b16 %v165
  %v207 = vunpack.c.h.b16 %v165
  %v208 = vunpack.c.l.b16 %v166
  %v209 = vunpack.c.h.b16 %v166
  %v210 = vunpack.c.l.b16 %v167
  %v211 = vunpack.c.h.b16 %v167
  %v212 = vunpack.c.l.b16 %v168
  %v213 = vunpack.c.h.b16 %v168
  %v214 = vunpack.c.l.b16 %v169
  %v215 = vunpack.c.h.b16 %v169
  %v216 = vunpack.c.l.b16 %v170
  %v217 = vunpack.c.h.b16 %v170
  %v218 = vunpack.c.l.b16 %v171
  %v219 = vunpack.c.h.b16 %v171
  %v220 = vpack.c.b16 %v188, %v188
  %v221 = vpack.c.b16 %v189, %v189
  %v222 = vpack.c.b16 %v190, %v190
  %v223 = vpack.c.b16 %v191, %v191
  %v224 = vpack.c.b16 %v192, %v192
  %v225 = vpack.c.b16 %v193, %v193
  %v226 = vpack.c.b16 %v194, %v194
  %v227 = vpack.c.b16 %v195, %v195
  %v228 = vpack.c.b16 %v196, %v196
  %v229 = vpack.c.b16 %v197, %v197
  %v230 = vpack.c.b16 %v198, %v198
  %v231 = vpack.c.b16 %v199, %v199
  %v232 = vpack.c.b16 %v200, %v200
  %v233 = vpack.c.b16 %v201, %v201
  %v234 = vpack.c.b16 %v202, %v202
  %v235 = vpack.c.b16 %v203, %v203
  %v236 = vpack.c.b16 %v204, %v204
  %v237 = vpack.c.b16 %v205, %v205
  %v238 = vpack.c.b16 %v206, %v206
  %v239 = vpack.c.b16 %v207, %v207
  %v240 = vpack.c.b16 %v208, %v208
  %v241 = vpack.c.b16 %v209, %v209
  %v242 = vpack.c.b16 %v210, %v210
  %v243 = vpack.c.b16 %v211, %v211
  %v244 = vpack.c.b16 %v212, %v212
  %v245 = vpack.c.b16 %v213, %v213
  %v246 = vpack.c.b16 %v214, %v214
  %v247 = vpack.c.b16 %v215, %v215
  %v248 = vpack.c.b16 %v216, %v216
  %v249 = vpack.c.b16 %v217, %v217
  %v250 = vpack.c.b16 %v218, %v218
  %v251 = vpack.c.b16 %v219, %v219
  %284 = vst [vmem:[%s3] sm:$0xf] %v220
  %285 = vst [vmem:[%s3 + $0x4] sm:$0xf] %v221
  %286 = vst [vmem:[%s3 + $0x8] sm:$0xf] %v222
  %287 = vst [vmem:[%s3 + $0xc] sm:$0xf] %v223
  %288 = vst [vmem:[%s3 + $0x10] sm:$0xf] %v224
  %289 = vst [vmem:[%s3 + $0x14] sm:$0xf] %v225
  %290 = vst [vmem:[%s3 + $0x18] sm:$0xf] %v226
  %291 = vst [vmem:[%s3 + $0x1c] sm:$0xf] %v227
  %292 = vst [vmem:[%s3 + $0x20] sm:$0xf] %v228
  %293 = vst [vmem:[%s3 + $0x24] sm:$0xf] %v229
  %294 = vst [vmem:[%s3 + $0x28] sm:$0xf] %v230
  %295 = vst [vmem:[%s3 + $0x2c] sm:$0xf] %v231
  %296 = vst [vmem:[%s3 + $0x30] sm:$0xf] %v232
  %297 = vst [vmem:[%s3 + $0x34] sm:$0xf] %v233
  %298 = vst [vmem:[%s3 + $0x38] sm:$0xf] %v234
  %299 = vst [vmem:[%s3 + $0x3c] sm:$0xf] %v235
  %300 = vst [vmem:[%s3 + $0x40] sm:$0xf] %v236
  %301 = vst [vmem:[%s3 + $0x44] sm:$0xf] %v237
  %302 = vst [vmem:[%s3 + $0x48] sm:$0xf] %v238
  %303 = vst [vmem:[%s3 + $0x4c] sm:$0xf] %v239
  %304 = vst [vmem:[%s3 + $0x50] sm:$0xf] %v240
  %305 = vst [vmem:[%s3 + $0x54] sm:$0xf] %v241
  %306 = vst [vmem:[%s3 + $0x58] sm:$0xf] %v242
  %307 = vst [vmem:[%s3 + $0x5c] sm:$0xf] %v243
  %308 = vst [vmem:[%s3 + $0x60] sm:$0xf] %v244
  %309 = vst [vmem:[%s3 + $0x64] sm:$0xf] %v245
  %310 = vst [vmem:[%s3 + $0x68] sm:$0xf] %v246
  %311 = vst [vmem:[%s3 + $0x6c] sm:$0xf] %v247
  %312 = vst [vmem:[%s3 + $0x70] sm:$0xf] %v248
  %313 = vst [vmem:[%s3 + $0x74] sm:$0xf] %v249
  %314 = vst [vmem:[%s3 + $0x78] sm:$0xf] %v250
  %315 = vst [vmem:[%s3 + $0x7c] sm:$0xf] %v251
  // Predicated region
  $region14: #{run.20} parent=0 // pred_check
    _
  $region15: #{run.20} parent=0 // pred_check_branch
    %317 = sbr.rel (0) target = $region17
  $region16: #{run.20} parent=0 // pred_region
    _
  $region17: #{run.20} parent=0 // pred_fallthru
    _
  // Predicated region
  $region18: #{run.20} parent=0 // pred_check
    _
  $region19: #{run.20} parent=0 // pred_check_branch
    %319 = sbr.rel (0) target = $region21
  $region20: #{run.20} parent=0 // pred_region
    _
  $region21: #{run.20} parent=0 // pred_fallthru
    _

// kernel: run.21
$region0: #{run.21}
  #allocation0 [shape = 'u32[]', space=smem, size = 0x4, offset = 0x4, fixed_abs, tag = 'smem constant byte address 0x4 - core index']
  #allocation1 [shape = 'u32[144,128]{1,0:T(1,128)}', space=vmem, size = 0x12000, scoped, tag = 'internal scratch']
  %s0 = inlined_call_operand.vmem [shape: bf16[128,640], index: 0, kind: input, shape index: {}]
  %s1 = inlined_call_operand.vmem [shape: bf16[640,128], index: 1, kind: input, shape index: {}]
  %s2 = inlined_call_operand.vmem [shape: f32[1,128], index: 2, kind: input, shape index: {}]
  %s3 = inlined_call_operand.vmem [shape: f32[1,128], index: 3, kind: input, shape index: {}]
  %s4 = inlined_call_operand.vmem [shape: bf16[640,128], index: 4, kind: input, shape index: {}]
  %s5 = inlined_call_operand.vmem [shape: bf16[128,128], index: 5, kind: output, shape index: {0}]
  %s6 = inlined_call_operand.vmem [shape: f32[128,128], index: 6, kind: output, shape index: {1}]
  %7 = xla_tuple %s5, %s6
  %s8 = sld [smem:[#allocation0]]
  $region61: #{run.21} parent=0
    _
  %s10 = ssub.s32 1, %s8
  %s11 = scalar_select 0, %s10, %s8
  loop: start=0, step=1, limit=4
  $region2: #{run.21} parent=0 // loop_pre_header
    _
  $region3: #{run.21} parent=0 // loop_header
    %s13 = sphi 0, %s17
    %p14 = scmp.ge.s32.totalorder %s13, 4
    %s20 = sphi 0, %s32
    %s21 = sphi 0, %s28
    %s22 = sphi 0, %s20
    %s23 = sphi 0, %s21
    %s24 = sphi 0, %s22
    %s25 = sphi 0, %s23
    %s35 = sphi 0, %s37
    %s38 = sphi 0, %s35
    %s39 = sphi 0, %s38
    %s55 = sphi 0, %s39
    %s61 = sphi 0, %s63
    %s64 = sphi 0, %s61
    %s65 = sphi 0, %s64
    %s81 = sphi 0, %s65
    %s87 = sphi 0, %s89
    %s90 = sphi 0, %s87
    %s91 = sphi 0, %s90
    %s107 = sphi 0, %s91
    %s113 = sphi 0, %s115
    %s116 = sphi 0, %s113
    %s117 = sphi 0, %s116
    %s133 = sphi 0, %s117
    %s139 = sphi 0, %s141
    %s142 = sphi 0, %s139
    %s143 = sphi 0, %s142
    %s159 = sphi 0, %s143
    %s167 = sphi 0, %s169
    %s170 = sphi 0, %s167
    %s171 = sphi 0, %s170
    %s187 = sphi 0, %s171
    %s195 = sphi 0, %s197
    %s198 = sphi 0, %s195
    %s199 = sphi 0, %s198
    %s215 = sphi 0, %s199
  $region4: #{run.21} parent=0 // loop_header_branch
    %16 = sbr.rel (%p14) target = $region8
  $region5: #{run.21} parent=0 // loop_body
    %s18 = ssub.s32 %s13, 1
    %s19 = ssub.s32 %s13, 2
    %s26 = sadd.s32 1, %s21
    %p27 = scmp.ge.s32.totalorder %s26, 1
    %s28 = scalar_select %p27, 0, %s26
    %s29 = sadd.s32 1, %s20
    %s30 = scalar_select %p27, %s29, %s20
    %p31 = scmp.ge.s32.totalorder %s30, 2
    %s32 = scalar_select %p31, 0, %s30
    %s33 = ssub.s32 %s20, %s32
    %p34 = scmp.eq.s32.totalorder %s33, 0
    %s36 = sadd.s32 %s35, 1
    %s37 = scalar_select %p34, %s35, %s36
    %p40 = pneg %p34
    %p41 = scmp.eq.s32.totalorder %s13, 1
    %p42 = por %p40, %p41
    %p43 = scmp.ne.s32.totalorder %s35, %s38
    %p44 = scmp.eq.s32.totalorder %s13, 0
    %p45 = por %p43, %p44
    %p46 = scmp.ne.s32.totalorder %s35, %s38
    %p47 = scmp.eq.s32.totalorder %s18, 1
    %p48 = por %p46, %p47
    %p49 = scmp.ne.s32.totalorder %s38, %s39
    %p50 = scmp.eq.s32.totalorder %s18, 0
    %p51 = por %p49, %p50
    %p52 = scmp.ne.s32.totalorder %s38, %s39
    %p53 = scmp.eq.s32.totalorder %s19, 1
    %p54 = por %p52, %p53
    %p56 = scmp.ne.s32.totalorder %s39, %s55
    %p57 = scmp.eq.s32.totalorder %s19, 0
    %p58 = por %p56, %p57
    %s59 = ssub.s32 %s21, %s28
    %p60 = scmp.eq.s32.totalorder %s59, 0
    %s62 = sadd.s32 %s61, 1
    %s63 = scalar_select %p60, %s61, %s62
    %p66 = pneg %p60
    %p67 = scmp.eq.s32.totalorder %s13, 1
    %p68 = por %p66, %p67
    %p69 = scmp.ne.s32.totalorder %s61, %s64
    %p70 = scmp.eq.s32.totalorder %s13, 0
    %p71 = por %p69, %p70
    %p72 = scmp.ne.s32.totalorder %s61, %s64
    %p73 = scmp.eq.s32.totalorder %s18, 1
    %p74 = por %p72, %p73
    %p75 = scmp.ne.s32.totalorder %s64, %s65
    %p76 = scmp.eq.s32.totalorder %s18, 0
    %p77 = por %p75, %p76
    %p78 = scmp.ne.s32.totalorder %s64, %s65
    %p79 = scmp.eq.s32.totalorder %s19, 1
    %p80 = por %p78, %p79
    %p82 = scmp.ne.s32.totalorder %s65, %s81
    %p83 = scmp.eq.s32.totalorder %s19, 0
    %p84 = por %p82, %p83
    %s85 = ssub.s32 %s21, %s28
    %p86 = scmp.eq.s32.totalorder %s85, 0
    %s88 = sadd.s32 %s87, 1
    %s89 = scalar_select %p86, %s87, %s88
    %p92 = pneg %p86
    %p93 = scmp.eq.s32.totalorder %s13, 1
    %p94 = por %p92, %p93
    %p95 = scmp.ne.s32.totalorder %s87, %s90
    %p96 = scmp.eq.s32.totalorder %s13, 0
    %p97 = por %p95, %p96
    %p98 = scmp.ne.s32.totalorder %s87, %s90
    %p99 = scmp.eq.s32.totalorder %s18, 1
    %p100 = por %p98, %p99
    %p101 = scmp.ne.s32.totalorder %s90, %s91
    %p102 = scmp.eq.s32.totalorder %s18, 0
    %p103 = por %p101, %p102
    %p104 = scmp.ne.s32.totalorder %s90, %s91
    %p105 = scmp.eq.s32.totalorder %s19, 1
    %p106 = por %p104, %p105
    %p108 = scmp.ne.s32.totalorder %s91, %s107
    %p109 = scmp.eq.s32.totalorder %s19, 0
    %p110 = por %p108, %p109
    %s111 = ssub.s32 %s21, %s28
    %p112 = scmp.eq.s32.totalorder %s111, 0
    %s114 = sadd.s32 %s113, 1
    %s115 = scalar_select %p112, %s113, %s114
    %p118 = pneg %p112
    %p119 = scmp.eq.s32.totalorder %s13, 1
    %p120 = por %p118, %p119
    %p121 = scmp.ne.s32.totalorder %s113, %s116
    %p122 = scmp.eq.s32.totalorder %s13, 0
    %p123 = por %p121, %p122
    %p124 = scmp.ne.s32.totalorder %s113, %s116
    %p125 = scmp.eq.s32.totalorder %s18, 1
    %p126 = por %p124, %p125
    %p127 = scmp.ne.s32.totalorder %s116, %s117
    %p128 = scmp.eq.s32.totalorder %s18, 0
    %p129 = por %p127, %p128
    %p130 = scmp.ne.s32.totalorder %s116, %s117
    %p131 = scmp.eq.s32.totalorder %s19, 1
    %p132 = por %p130, %p131
    %p134 = scmp.ne.s32.totalorder %s117, %s133
    %p135 = scmp.eq.s32.totalorder %s19, 0
    %p136 = por %p134, %p135
    %s137 = ssub.s32 %s21, %s28
    %p138 = scmp.eq.s32.totalorder %s137, 0
    %s140 = sadd.s32 %s139, 1
    %s141 = scalar_select %p138, %s139, %s140
    %p144 = pneg %p138
    %p145 = scmp.eq.s32.totalorder %s13, 1
    %p146 = por %p144, %p145
    %p147 = scmp.ne.s32.totalorder %s139, %s142
    %p148 = scmp.eq.s32.totalorder %s13, 0
    %p149 = por %p147, %p148
    %p150 = scmp.ne.s32.totalorder %s139, %s142
    %p151 = scmp.eq.s32.totalorder %s18, 1
    %p152 = por %p150, %p151
    %p153 = scmp.ne.s32.totalorder %s142, %s143
    %p154 = scmp.eq.s32.totalorder %s18, 0
    %p155 = por %p153, %p154
    %p156 = scmp.ne.s32.totalorder %s142, %s143
    %p157 = scmp.eq.s32.totalorder %s19, 1
    %p158 = por %p156, %p157
    %p160 = scmp.ne.s32.totalorder %s143, %s159
    %p161 = scmp.eq.s32.totalorder %s19, 0
    %p162 = por %p160, %p161
    %s163 = ssub.s32 %s20, %s32
    %s164 = ssub.s32 %s21, %s28
    %s165 = sor.u32 %s163, %s164
    %p166 = scmp.eq.s32.totalorder %s165, 0
    %s168 = sadd.s32 %s167, 1
    %s169 = scalar_select %p166, %s167, %s168
    %p172 = pneg %p166
    %p173 = scmp.eq.s32.totalorder %s13, 1
    %p174 = por %p172, %p173
    %p175 = scmp.ne.s32.totalorder %s167, %s170
    %p176 = scmp.eq.s32.totalorder %s13, 0
    %p177 = por %p175, %p176
    %p178 = scmp.ne.s32.totalorder %s167, %s170
    %p179 = scmp.eq.s32.totalorder %s18, 1
    %p180 = por %p178, %p179
    %p181 = scmp.ne.s32.totalorder %s170, %s171
    %p182 = scmp.eq.s32.totalorder %s18, 0
    %p183 = por %p181, %p182
    %p184 = scmp.ne.s32.totalorder %s170, %s171
    %p185 = scmp.eq.s32.totalorder %s19, 1
    %p186 = por %p184, %p185
    %p188 = scmp.ne.s32.totalorder %s171, %s187
    %p189 = scmp.eq.s32.totalorder %s19, 0
    %p190 = por %p188, %p189
    %s191 = ssub.s32 %s20, %s32
    %s192 = ssub.s32 %s21, %s28
    %s193 = sor.u32 %s191, %s192
    %p194 = scmp.eq.s32.totalorder %s193, 0
    %s196 = sadd.s32 %s195, 1
    %s197 = scalar_select %p194, %s195, %s196
    %p200 = pneg %p194
    %p201 = scmp.eq.s32.totalorder %s13, 1
    %p202 = por %p200, %p201
    %p203 = scmp.ne.s32.totalorder %s195, %s198
    %p204 = scmp.eq.s32.totalorder %s13, 0
    %p205 = por %p203, %p204
    %p206 = scmp.ne.s32.totalorder %s195, %s198
    %p207 = scmp.eq.s32.totalorder %s18, 1
    %p208 = por %p206, %p207
    %p209 = scmp.ne.s32.totalorder %s198, %s199
    %p210 = scmp.eq.s32.totalorder %s18, 0
    %p211 = por %p209, %p210
    %p212 = scmp.ne.s32.totalorder %s198, %s199
    %p213 = scmp.eq.s32.totalorder %s19, 1
    %p214 = por %p212, %p213
    %p216 = scmp.ne.s32.totalorder %s199, %s215
    %p217 = scmp.eq.s32.totalorder %s19, 0
    %p218 = por %p216, %p217
    %p219 = scmp.le.s32.totalorder 1, %s13
    %p220 = scmp.lt.s32.totalorder %s13, 3
    %p221 = pnand %p219, %p220
    %p222 = pneg %p221
    // Predicated region
    $region9: #{run.21} parent=5 // pred_check
      _
    $region10: #{run.21} parent=5 // pred_check_branch
      %224 = sbr.rel (%p221) target = $region12
    $region11: #{run.21} parent=5 // pred_region
      %s225 = ssub.s32 %s13, 1
      // Predicated region
      $region13: #{run.21} parent=11 // pred_check
        %p226 = pneg %p77
      $region14: #{run.21} parent=11 // pred_check_branch
        %228 = sbr.rel (%p226) target = $region16
      $region15: #{run.21} parent=11 // pred_region
        %p229 = scmp.lt.s32.totalorder %s23, 0
        %s230 = scalar_select %p229, %s23, 0
        %s231 = smul.addr %s230, 4
        %s232 = scalar_lea.vmem %s1, %s231
      $region16: #{run.21} parent=11 // pred_fallthru
        _
      // Predicated region
      $region17: #{run.21} parent=11 // pred_check
        %p233 = pneg %p103
      $region18: #{run.21} parent=11 // pred_check_branch
        %235 = sbr.rel (%p233) target = $region20
      $region19: #{run.21} parent=11 // pred_region
        %p236 = scmp.lt.s32.totalorder %s23, 0
        %s237 = scalar_select %p236, %s23, 0
        %s238 = scalar_lea.vmem %s2, %s237
      $region20: #{run.21} parent=11 // pred_fallthru
        _
      // Predicated region
      $region21: #{run.21} parent=11 // pred_check
        %p239 = pneg %p129
      $region22: #{run.21} parent=11 // pred_check_branch
        %241 = sbr.rel (%p239) target = $region24
      $region23: #{run.21} parent=11 // pred_region
        %p242 = scmp.lt.s32.totalorder %s23, 0
        %s243 = scalar_select %p242, %s23, 0
        %s244 = scalar_lea.vmem %s3, %s243
      $region24: #{run.21} parent=11 // pred_fallthru
        _
      // Predicated region
      $region25: #{run.21} parent=11 // pred_check
        %p245 = pneg %p155
      $region26: #{run.21} parent=11 // pred_check_branch
        %247 = sbr.rel (%p245) target = $region28
      $region27: #{run.21} parent=11 // pred_region
        %p248 = scmp.lt.s32.totalorder %s23, 0
        %s249 = scalar_select %p248, %s23, 0
        %s250 = smul.addr %s249, 4
        %s251 = scalar_lea.vmem %s4, %s250
      $region28: #{run.21} parent=11 // pred_fallthru
        _
    $region12: #{run.21} parent=5 // pred_fallthru
      _
    %p252 = scmp.lt.s32.totalorder %s13, 2
    // Predicated region
    $region29: #{run.21} parent=5 // pred_check
      %p253 = pneg %p252
    $region30: #{run.21} parent=5 // pred_check_branch
      %255 = sbr.rel (%p253) target = $region32
    $region31: #{run.21} parent=5 // pred_region
      // Predicated region
      $region33: #{run.21} parent=31 // pred_check
        %p256 = pneg %p45
      $region34: #{run.21} parent=31 // pred_check_branch
        %258 = sbr.rel (%p256) target = $region36
      $region35: #{run.21} parent=31 // pred_region
        %s259 = smul.u32 8, %s20
        %p260 = scmp.lt.s32.totalorder %s259, 15
        %s261 = scalar_select %p260, %s259, 15
        %s262 = smul.addr %s261, 5
        %s263 = smul.addr %s262, 4
        %s264 = scalar_lea.vmem %s0, %s263
        %s265 = smul.u32 8, %s20
      $region36: #{run.21} parent=31 // pred_fallthru
        _
    $region32: #{run.21} parent=5 // pred_fallthru
      _
    %p266 = scmp.le.s32.totalorder 1, %s13
    %p267 = scmp.lt.s32.totalorder %s13, 3
    %p268 = pnand %p266, %p267
    %p269 = pneg %p268
    // Predicated region
    $region37: #{run.21} parent=5 // pred_check
      _
    $region38: #{run.21} parent=5 // pred_check_branch
      %271 = sbr.rel (%p268) target = $region40
    $region39: #{run.21} parent=5 // pred_region
      %s272 = ssub.s32 %s13, 1
      %s273 = smul.u32 8, %s22
      %p274 = scmp.lt.s32.totalorder %s273, 15
      %s275 = scalar_select %p274, %s273, 15
      %s276 = smul.addr %s275, 5
      %s277 = smul.addr %s276, 4
      %s278 = scalar_lea.vmem %s0, %s277
      %p279 = pneg %p51
      %p280 = pneg %p48
      %p281 = scmp.lt.s32.totalorder %s23, 0
      %s282 = scalar_select %p281, %s23, 0
      %s283 = smul.addr %s282, 4
      %s284 = scalar_lea.vmem %s1, %s283
      %p285 = pneg %p77
      %p286 = pneg %p74
      %p287 = scmp.lt.s32.totalorder %s23, 0
      %s288 = scalar_select %p287, %s23, 0
      %s289 = scalar_lea.vmem %s2, %s288
      %p290 = pneg %p103
      %p291 = pneg %p100
      %p292 = scmp.lt.s32.totalorder %s23, 0
      %s293 = scalar_select %p292, %s23, 0
      %s294 = scalar_lea.vmem %s3, %s293
      %p295 = pneg %p129
      %p296 = pneg %p126
      %p297 = scmp.lt.s32.totalorder %s23, 0
      %s298 = scalar_select %p297, %s23, 0
      %s299 = smul.addr %s298, 4
      %s300 = scalar_lea.vmem %s4, %s299
      %p301 = pneg %p155
      %p302 = pneg %p152
      %p303 = pneg %p183
      %p304 = pneg %p180
      %s305 = smul.u32 8, %s22
      %p306 = scmp.lt.s32.totalorder %s305, 15
      %s307 = scalar_select %p306, %s305, 15
      %p308 = scmp.lt.s32.totalorder %s23, 0
      %s309 = scalar_select %p308, %s23, 0
      %s310 = sadd.s32 %s309, %s307
      %s311 = smul.addr %s310, 4
      %s312 = scalar_lea.vmem %s5, %s311
      %p313 = pneg %p211
      %p314 = pneg %p208
      %s315 = smul.u32 8, %s22
      %p316 = scmp.lt.s32.totalorder %s315, 15
      %s317 = scalar_select %p316, %s315, 15
      %p318 = scmp.lt.s32.totalorder %s23, 0
      %s319 = scalar_select %p318, %s23, 0
      %s320 = sadd.s32 %s319, %s317
      %s321 = smul.addr %s320, 8
      %s322 = scalar_lea.vmem %s6, %s321
      %s323 = smul.u32 8, %s22
      %p324 = scmp.lt.s32.totalorder %s323, 15
      %s325 = scalar_select %p324, %s323, 15
      %s326 = smul.addr %s325, 5
      %s327 = smul.addr %s326, 4
      %s328 = scalar_lea.vmem %s0, %s327
      %s329 = smul.u32 8, %s22
      %p330 = scmp.lt.s32.totalorder %s23, 0
      %s331 = scalar_select %p330, %s23, 0
      %s332 = smul.addr %s331, 4
      %s333 = scalar_lea.vmem %s1, %s332
      %p334 = scmp.lt.s32.totalorder %s23, 0
      %s335 = scalar_select %p334, %s23, 0
      %s336 = scalar_lea.vmem %s2, %s335
      %p337 = scmp.lt.s32.totalorder %s23, 0
      %s338 = scalar_select %p337, %s23, 0
      %s339 = scalar_lea.vmem %s3, %s338
      %p340 = scmp.lt.s32.totalorder %s23, 0
      %s341 = scalar_select %p340, %s23, 0
      %s342 = smul.addr %s341, 4
      %s343 = scalar_lea.vmem %s4, %s342
      %s344 = smul.u32 8, %s22
      %p345 = scmp.lt.s32.totalorder %s344, 15
      %s346 = scalar_select %p345, %s344, 15
      %p347 = scmp.lt.s32.totalorder %s23, 0
      %s348 = scalar_select %p347, %s23, 0
      %s349 = sadd.s32 %s348, %s346
      %s350 = smul.addr %s349, 4
      %s351 = scalar_lea.vmem %s5, %s350
      %s352 = smul.u32 8, %s22
      %s353 = smul.u32 8, %s22
      %p354 = scmp.lt.s32.totalorder %s353, 15
      %s355 = scalar_select %p354, %s353, 15
      %p356 = scmp.lt.s32.totalorder %s23, 0
      %s357 = scalar_select %p356, %s23, 0
      %s358 = sadd.s32 %s357, %s355
      %s359 = smul.addr %s358, 8
      %s360 = scalar_lea.vmem %s6, %s359
      %s361 = smul.u32 8, %s22
      %v363 = vld [vmem:[%s328] sm:$0xff]
      %v364 = vld [vmem:[%s328 + $0x8] sm:$0xff]
      %v365 = vld [vmem:[%s328 + $0x10] sm:$0xf]
      %v366 = vld [vmem:[%s328 + $0x14] sm:$0xff]
      %v367 = vld [vmem:[%s328 + $0x1c] sm:$0xff]
      %v368 = vld [vmem:[%s328 + $0x24] sm:$0xf]
      %v369 = vld [vmem:[%s328 + $0x28] sm:$0xff]
      %v370 = vld [vmem:[%s328 + $0x30] sm:$0xff]
      %v371 = vld [vmem:[%s328 + $0x38] sm:$0xf]
      %v372 = vld [vmem:[%s328 + $0x3c] sm:$0xff]
      %v373 = vld [vmem:[%s328 + $0x44] sm:$0xff]
      %v374 = vld [vmem:[%s328 + $0x4c] sm:$0xf]
      %v375 = vld [vmem:[%s328 + $0x50] sm:$0xff]
      %v376 = vld [vmem:[%s328 + $0x58] sm:$0xff]
      %v377 = vld [vmem:[%s328 + $0x60] sm:$0xf]
      %v378 = vld [vmem:[%s328 + $0x64] sm:$0xff]
      %v379 = vld [vmem:[%s328 + $0x6c] sm:$0xff]
      %v380 = vld [vmem:[%s328 + $0x74] sm:$0xf]
      %v381 = vld [vmem:[%s328 + $0x78] sm:$0xff]
      %v382 = vld [vmem:[%s328 + $0x80] sm:$0xff]
      %v383 = vld [vmem:[%s328 + $0x88] sm:$0xf]
      %v384 = vld [vmem:[%s328 + $0x8c] sm:$0xff]
      %v385 = vld [vmem:[%s328 + $0x94] sm:$0xff]
      %v386 = vld [vmem:[%s328 + $0x9c] sm:$0xf]
      %v387 = vld [vmem:[%s333] sm:$0xf]
      %v388 = vld [vmem:[%s333 + $0x4] sm:$0xf]
      %v389 = vld [vmem:[%s333 + $0x8] sm:$0xf]
      %v390 = vld [vmem:[%s333 + $0xc] sm:$0xf]
      %v391 = vld [vmem:[%s333 + $0x10] sm:$0xf]
      %v392 = vld [vmem:[%s333 + $0x14] sm:$0xf]
      %v393 = vld [vmem:[%s333 + $0x18] sm:$0xf]
      %v394 = vld [vmem:[%s333 + $0x1c] sm:$0xf]
      %v395 = vld [vmem:[%s333 + $0x20] sm:$0xf]
      %v396 = vld [vmem:[%s333 + $0x24] sm:$0xf]
      %v397 = vld [vmem:[%s333 + $0x28] sm:$0xf]
      %v398 = vld [vmem:[%s333 + $0x2c] sm:$0xf]
      %v399 = vld [vmem:[%s333 + $0x30] sm:$0xf]
      %v400 = vld [vmem:[%s333 + $0x34] sm:$0xf]
      %v401 = vld [vmem:[%s333 + $0x38] sm:$0xf]
      %v402 = vld [vmem:[%s333 + $0x3c] sm:$0xf]
      %v403 = vld [vmem:[%s333 + $0x40] sm:$0xf]
      %v404 = vld [vmem:[%s333 + $0x44] sm:$0xf]
      %v405 = vld [vmem:[%s333 + $0x48] sm:$0xf]
      %v406 = vld [vmem:[%s333 + $0x4c] sm:$0xf]
      %v407 = vld [vmem:[%s333 + $0x50] sm:$0xf]
      %v408 = vld [vmem:[%s333 + $0x54] sm:$0xf]
      %v409 = vld [vmem:[%s333 + $0x58] sm:$0xf]
      %v410 = vld [vmem:[%s333 + $0x5c] sm:$0xf]
      %v411 = vld [vmem:[%s333 + $0x60] sm:$0xf]
      %v412 = vld [vmem:[%s333 + $0x64] sm:$0xf]
      %v413 = vld [vmem:[%s333 + $0x68] sm:$0xf]
      %v414 = vld [vmem:[%s333 + $0x6c] sm:$0xf]
      %v415 = vld [vmem:[%s333 + $0x70] sm:$0xf]
      %v416 = vld [vmem:[%s333 + $0x74] sm:$0xf]
      %v417 = vld [vmem:[%s333 + $0x78] sm:$0xf]
      %v418 = vld [vmem:[%s333 + $0x7c] sm:$0xf]
      %v419 = vld [vmem:[%s333 + $0x80] sm:$0xf]
      %v420 = vld [vmem:[%s333 + $0x84] sm:$0xf]
      %v421 = vld [vmem:[%s333 + $0x88] sm:$0xf]
      %v422 = vld [vmem:[%s333 + $0x8c] sm:$0xf]
      %v423 = vld [vmem:[%s333 + $0x90] sm:$0xf]
      %v424 = vld [vmem:[%s333 + $0x94] sm:$0xf]
      %v425 = vld [vmem:[%s333 + $0x98] sm:$0xf]
      %v426 = vld [vmem:[%s333 + $0x9c] sm:$0xf]
      %v427 = vld [vmem:[%s333 + $0xa0] sm:$0xf]
      %v428 = vld [vmem:[%s333 + $0xa4] sm:$0xf]
      %v429 = vld [vmem:[%s333 + $0xa8] sm:$0xf]
      %v430 = vld [vmem:[%s333 + $0xac] sm:$0xf]
      %v431 = vld [vmem:[%s333 + $0xb0] sm:$0xf]
      %v432 = vld [vmem:[%s333 + $0xb4] sm:$0xf]
      %v433 = vld [vmem:[%s333 + $0xb8] sm:$0xf]
      %v434 = vld [vmem:[%s333 + $0xbc] sm:$0xf]
      %v435 = vld [vmem:[%s333 + $0xc0] sm:$0xf]
      %v436 = vld [vmem:[%s333 + $0xc4] sm:$0xf]
      %v437 = vld [vmem:[%s333 + $0xc8] sm:$0xf]
      %v438 = vld [vmem:[%s333 + $0xcc] sm:$0xf]
      %v439 = vld [vmem:[%s333 + $0xd0] sm:$0xf]
      %v440 = vld [vmem:[%s333 + $0xd4] sm:$0xf]
      %v441 = vld [vmem:[%s333 + $0xd8] sm:$0xf]
      %v442 = vld [vmem:[%s333 + $0xdc] sm:$0xf]
      %v443 = vld [vmem:[%s333 + $0xe0] sm:$0xf]
      %v444 = vld [vmem:[%s333 + $0xe4] sm:$0xf]
      %v445 = vld [vmem:[%s333 + $0xe8] sm:$0xf]
      %v446 = vld [vmem:[%s333 + $0xec] sm:$0xf]
      %v447 = vld [vmem:[%s333 + $0xf0] sm:$0xf]
      %v448 = vld [vmem:[%s333 + $0xf4] sm:$0xf]
      %v449 = vld [vmem:[%s333 + $0xf8] sm:$0xf]
      %v450 = vld [vmem:[%s333 + $0xfc] sm:$0xf]
      %v451 = vld [vmem:[%s333 + $0x100] sm:$0xf]
      %v452 = vld [vmem:[%s333 + $0x104] sm:$0xf]
      %v453 = vld [vmem:[%s333 + $0x108] sm:$0xf]
      %v454 = vld [vmem:[%s333 + $0x10c] sm:$0xf]
      %v455 = vld [vmem:[%s333 + $0x110] sm:$0xf]
      %v456 = vld [vmem:[%s333 + $0x114] sm:$0xf]
      %v457 = vld [vmem:[%s333 + $0x118] sm:$0xf]
      %v458 = vld [vmem:[%s333 + $0x11c] sm:$0xf]
      %v459 = vld [vmem:[%s333 + $0x120] sm:$0xf]
      %v460 = vld [vmem:[%s333 + $0x124] sm:$0xf]
      %v461 = vld [vmem:[%s333 + $0x128] sm:$0xf]
      %v462 = vld [vmem:[%s333 + $0x12c] sm:$0xf]
      %v463 = vld [vmem:[%s333 + $0x130] sm:$0xf]
      %v464 = vld [vmem:[%s333 + $0x134] sm:$0xf]
      %v465 = vld [vmem:[%s333 + $0x138] sm:$0xf]
      %v466 = vld [vmem:[%s333 + $0x13c] sm:$0xf]
      %v491 = vunpack.c.l.b16 %v363
      %v492 = vunpack.c.h.b16 %v363
      %v493 = vunpack.c.l.b16 %v364
      %v494 = vunpack.c.h.b16 %v364
      %v495 = vunpack.c.l.b16 %v365
      %v496 = vunpack.c.l.b16 %v366
      %v497 = vunpack.c.h.b16 %v366
      %v498 = vunpack.c.l.b16 %v367
      %v499 = vunpack.c.h.b16 %v367
      %v500 = vunpack.c.l.b16 %v368
      %v501 = vunpack.c.l.b16 %v369
      %v502 = vunpack.c.h.b16 %v369
      %v503 = vunpack.c.l.b16 %v370
      %v504 = vunpack.c.h.b16 %v370
      %v505 = vunpack.c.l.b16 %v371
      %v506 = vunpack.c.l.b16 %v372
      %v507 = vunpack.c.h.b16 %v372
      %v508 = vunpack.c.l.b16 %v373
      %v509 = vunpack.c.h.b16 %v373
      %v510 = vunpack.c.l.b16 %v374
      %v511 = vunpack.c.l.b16 %v375
      %v512 = vunpack.c.h.b16 %v375
      %v513 = vunpack.c.l.b16 %v376
      %v514 = vunpack.c.h.b16 %v376
      %v515 = vunpack.c.l.b16 %v377
      %v516 = vunpack.c.l.b16 %v378
      %v517 = vunpack.c.h.b16 %v378
      %v518 = vunpack.c.l.b16 %v379
      %v519 = vunpack.c.h.b16 %v379
      %v520 = vunpack.c.l.b16 %v380
      %v521 = vunpack.c.l.b16 %v381
      %v522 = vunpack.c.h.b16 %v381
      %v523 = vunpack.c.l.b16 %v382
      %v524 = vunpack.c.h.b16 %v382
      %v525 = vunpack.c.l.b16 %v383
      %v526 = vunpack.c.l.b16 %v384
      %v527 = vunpack.c.h.b16 %v384
      %v528 = vunpack.c.l.b16 %v385
      %v529 = vunpack.c.h.b16 %v385
      %v530 = vunpack.c.l.b16 %v386
      %v531 = vpack.c.b16 %v496, %v491
      %v532 = vpack.c.b16 %v497, %v492
      %v533 = vpack.c.b16 %v498, %v493
      %v534 = vpack.c.b16 %v499, %v494
      %v535 = vpack.c.b16 %v500, %v495
      %v536 = vpack.c.b16 %v506, %v501
      %v537 = vpack.c.b16 %v507, %v502
      %v538 = vpack.c.b16 %v508, %v503
      %v539 = vpack.c.b16 %v509, %v504
      %v540 = vpack.c.b16 %v510, %v505
      %v541 = vpack.c.b16 %v516, %v511
      %v542 = vpack.c.b16 %v517, %v512
      %v543 = vpack.c.b16 %v518, %v513
      %v544 = vpack.c.b16 %v519, %v514
      %v545 = vpack.c.b16 %v520, %v515
      %v546 = vpack.c.b16 %v526, %v521
      %v547 = vpack.c.b16 %v527, %v522
      %v548 = vpack.c.b16 %v528, %v523
      %v549 = vpack.c.b16 %v529, %v524
      %v550 = vpack.c.b16 %v530, %v525
      %v651 = vunpack.c.l.b16 %v387
      %v652 = vunpack.c.l.b16 %v388
      %v653 = vunpack.c.l.b16 %v389
      %v654 = vunpack.c.l.b16 %v390
      %v655 = vunpack.c.l.b16 %v391
      %v656 = vunpack.c.l.b16 %v392
      %v657 = vunpack.c.l.b16 %v393
      %v658 = vunpack.c.l.b16 %v394
      %v659 = vunpack.c.l.b16 %v395
      %v660 = vunpack.c.l.b16 %v396
      %v661 = vunpack.c.l.b16 %v397
      %v662 = vunpack.c.l.b16 %v398
      %v663 = vunpack.c.l.b16 %v399
      %v664 = vunpack.c.l.b16 %v400
      %v665 = vunpack.c.l.b16 %v401
      %v666 = vunpack.c.l.b16 %v402
      %v667 = vunpack.c.l.b16 %v403
      %v668 = vunpack.c.l.b16 %v404
      %v669 = vunpack.c.l.b16 %v405
      %v670 = vunpack.c.l.b16 %v406
      %v671 = vunpack.c.l.b16 %v407
      %v672 = vunpack.c.l.b16 %v408
      %v673 = vunpack.c.l.b16 %v409
      %v674 = vunpack.c.l.b16 %v410
      %v675 = vunpack.c.l.b16 %v411
      %v676 = vunpack.c.l.b16 %v412
      %v677 = vunpack.c.l.b16 %v413
      %v678 = vunpack.c.l.b16 %v414
      %v679 = vunpack.c.l.b16 %v415
      %v680 = vunpack.c.l.b16 %v416
      %v681 = vunpack.c.l.b16 %v417
      %v682 = vunpack.c.l.b16 %v418
      %v683 = vunpack.c.l.b16 %v419
      %v684 = vunpack.c.l.b16 %v420
      %v685 = vunpack.c.l.b16 %v421
      %v686 = vunpack.c.l.b16 %v422
      %v687 = vunpack.c.l.b16 %v423
      %v688 = vunpack.c.l.b16 %v424
      %v689 = vunpack.c.l.b16 %v425
      %v690 = vunpack.c.l.b16 %v426
      %v691 = vunpack.c.l.b16 %v427
      %v692 = vunpack.c.l.b16 %v428
      %v693 = vunpack.c.l.b16 %v429
      %v694 = vunpack.c.l.b16 %v430
      %v695 = vunpack.c.l.b16 %v431
      %v696 = vunpack.c.l.b16 %v432
      %v697 = vunpack.c.l.b16 %v433
      %v698 = vunpack.c.l.b16 %v434
      %v699 = vunpack.c.l.b16 %v435
      %v700 = vunpack.c.l.b16 %v436
      %v701 = vunpack.c.l.b16 %v437
      %v702 = vunpack.c.l.b16 %v438
      %v703 = vunpack.c.l.b16 %v439
      %v704 = vunpack.c.l.b16 %v440
      %v705 = vunpack.c.l.b16 %v441
      %v706 = vunpack.c.l.b16 %v442
      %v707 = vunpack.c.l.b16 %v443
      %v708 = vunpack.c.l.b16 %v444
      %v709 = vunpack.c.l.b16 %v445
      %v710 = vunpack.c.l.b16 %v446
      %v711 = vunpack.c.l.b16 %v447
      %v712 = vunpack.c.l.b16 %v448
      %v713 = vunpack.c.l.b16 %v449
      %v714 = vunpack.c.l.b16 %v450
      %v715 = vunpack.c.l.b16 %v451
      %v716 = vunpack.c.l.b16 %v452
      %v717 = vunpack.c.l.b16 %v453
      %v718 = vunpack.c.l.b16 %v454
      %v719 = vunpack.c.l.b16 %v455
      %v720 = vunpack.c.l.b16 %v456
      %v721 = vunpack.c.l.b16 %v457
      %v722 = vunpack.c.l.b16 %v458
      %v723 = vunpack.c.l.b16 %v459
      %v724 = vunpack.c.l.b16 %v460
      %v725 = vunpack.c.l.b16 %v461
      %v726 = vunpack.c.l.b16 %v462
      %v727 = vunpack.c.l.b16 %v463
      %v728 = vunpack.c.l.b16 %v464
      %v729 = vunpack.c.l.b16 %v465
      %v730 = vunpack.c.l.b16 %v466
      %v731 = vpack.c.b16 %v652, %v651
      %v732 = vpack.c.b16 %v654, %v653
      %v733 = vpack.c.b16 %v656, %v655
      %v734 = vpack.c.b16 %v658, %v657
      %v735 = vpack.c.b16 %v660, %v659
      %v736 = vpack.c.b16 %v662, %v661
      %v737 = vpack.c.b16 %v664, %v663
      %v738 = vpack.c.b16 %v666, %v665
      %v739 = vpack.c.b16 %v668, %v667
      %v740 = vpack.c.b16 %v670, %v669
      %v741 = vpack.c.b16 %v672, %v671
      %v742 = vpack.c.b16 %v674, %v673
      %v743 = vpack.c.b16 %v676, %v675
      %v744 = vpack.c.b16 %v678, %v677
      %v745 = vpack.c.b16 %v680, %v679
      %v746 = vpack.c.b16 %v682, %v681
      %v747 = vpack.c.b16 %v684, %v683
      %v748 = vpack.c.b16 %v686, %v685
      %v749 = vpack.c.b16 %v688, %v687
      %v750 = vpack.c.b16 %v690, %v689
      %v751 = vpack.c.b16 %v692, %v691
      %v752 = vpack.c.b16 %v694, %v693
      %v753 = vpack.c.b16 %v696, %v695
      %v754 = vpack.c.b16 %v698, %v697
      %v755 = vpack.c.b16 %v700, %v699
      %v756 = vpack.c.b16 %v702, %v701
      %v757 = vpack.c.b16 %v704, %v703
      %v758 = vpack.c.b16 %v706, %v705
      %v759 = vpack.c.b16 %v708, %v707
      %v760 = vpack.c.b16 %v710, %v709
      %v761 = vpack.c.b16 %v712, %v711
      %v762 = vpack.c.b16 %v714, %v713
      %v763 = vpack.c.b16 %v716, %v715
      %v764 = vpack.c.b16 %v718, %v717
      %v765 = vpack.c.b16 %v720, %v719
      %v766 = vpack.c.b16 %v722, %v721
      %v767 = vpack.c.b16 %v724, %v723
      %v768 = vpack.c.b16 %v726, %v725
      %v769 = vpack.c.b16 %v728, %v727
      %v770 = vpack.c.b16 %v730, %v729
      %811 = vmatprep.subr.bf16.mxu0 0
      %812 = vmatpush1.bf16.msra.mxu0 %v738
      %813 = vmatprep.subr.bf16.mxu0 0
      %814 = vmatpush1.bf16.msra.mxu0 %v737
      %815 = vmatprep.subr.bf16.mxu0 0
      %816 = vmatpush1.bf16.msra.mxu0 %v736
      %817 = vmatprep.subr.bf16.mxu0 0
      %818 = vmatpush1.bf16.msra.mxu0 %v735
      %819 = vmatprep.subr.bf16.mxu0 0
      %820 = vmatpush1.bf16.msra.mxu0 %v734
      %821 = vmatprep.subr.bf16.mxu0 0
      %822 = vmatpush1.bf16.msra.mxu0 %v733
      %823 = vmatprep.subr.bf16.mxu0 0
      %824 = vmatpush1.bf16.msra.mxu0 %v732
      %825 = vmatprep.subr.bf16.mxu0 0
      %826 = vmatpush1.bf16.msra.mxu0 %v731
      %827 = vmatprep.subr.bf16.mxu0 0
      %828 = vmatpush2.bf16.msra.mxu0 %v746
      %829 = vmatprep.subr.bf16.mxu0 0
      %830 = vmatpush2.bf16.msra.mxu0 %v745
      %831 = vmatprep.subr.bf16.mxu0 0
      %832 = vmatpush2.bf16.msra.mxu0 %v744
      %833 = vmatprep.subr.bf16.mxu0 0
      %834 = vmatpush2.bf16.msra.mxu0 %v743
      %835 = vmatprep.subr.bf16.mxu0 0
      %836 = vmatpush2.bf16.msra.mxu0 %v742
      %837 = vmatprep.subr.bf16.mxu0 0
      %838 = vmatpush2.bf16.msra.mxu0 %v741
      %839 = vmatprep.subr.bf16.mxu0 0
      %840 = vmatpush2.bf16.msra.mxu0 %v740
      %841 = vmatprep.subr.bf16.mxu0 0
      %842 = vmatpush2.bf16.msra.mxu0 %v739
      %843 = vmatprep.mubr.bf16.mxu0 %v532
      %844 = vmatmul.mubr.bf16.gmra.mxu0 %v531
      %v845 = vpop.f32.mrf.mxu0
      %v846 = vadd.f32 0.0, %v845
      %v847 = vpop.f32.mrf.mxu0
      %v848 = vpop.f32.mrf.mxu0
      %v849 = vadd.f32 0.0, %v848
      %v850 = vpop.f32.mrf.mxu0
      %851 = vmatprep.mubr.bf16.mxu0 %v537
      %852 = vmatmul.mubr.bf16.gmra.mxu0 %v536
      %v853 = vpop.f32.mrf.mxu0
      %v854 = vadd.f32 0.0, %v853
      %v855 = vpop.f32.mrf.mxu0
      %v856 = vpop.f32.mrf.mxu0
      %v857 = vadd.f32 0.0, %v856
      %v858 = vpop.f32.mrf.mxu0
      %859 = vmatprep.mubr.bf16.mxu0 %v542
      %860 = vmatmul.mubr.bf16.gmra.mxu0 %v541
      %v861 = vpop.f32.mrf.mxu0
      %v862 = vadd.f32 0.0, %v861
      %v863 = vpop.f32.mrf.mxu0
      %v864 = vpop.f32.mrf.mxu0
      %v865 = vadd.f32 0.0, %v864
      %v866 = vpop.f32.mrf.mxu0
      %867 = vmatprep.mubr.bf16.mxu0 %v547
      %868 = vmatmul.mubr.bf16.gmra.mxu0 %v546
      %v869 = vpop.f32.mrf.mxu0
      %v870 = vadd.f32 0.0, %v869
      %v871 = vpop.f32.mrf.mxu0
      %v872 = vpop.f32.mrf.mxu0
      %v873 = vadd.f32 0.0, %v872
      %v874 = vpop.f32.mrf.mxu0
      %875 = vdwg.mxu0
      %876 = vmatprep.subr.bf16.mxu0 0
      %877 = vmatpush1.bf16.msra.mxu0 %v754
      %878 = vmatprep.subr.bf16.mxu0 0
      %879 = vmatpush1.bf16.msra.mxu0 %v753
      %880 = vmatprep.subr.bf16.mxu0 0
      %881 = vmatpush1.bf16.msra.mxu0 %v752
      %882 = vmatprep.subr.bf16.mxu0 0
      %883 = vmatpush1.bf16.msra.mxu0 %v751
      %884 = vmatprep.subr.bf16.mxu0 0
      %885 = vmatpush1.bf16.msra.mxu0 %v750
      %886 = vmatprep.subr.bf16.mxu0 0
      %887 = vmatpush1.bf16.msra.mxu0 %v749
      %888 = vmatprep.subr.bf16.mxu0 0
      %889 = vmatpush1.bf16.msra.mxu0 %v748
      %890 = vmatprep.subr.bf16.mxu0 0
      %891 = vmatpush1.bf16.msra.mxu0 %v747
      %892 = vmatprep.subr.bf16.mxu0 0
      %893 = vmatpush2.bf16.msra.mxu0 %v762
      %894 = vmatprep.subr.bf16.mxu0 0
      %895 = vmatpush2.bf16.msra.mxu0 %v761
      %896 = vmatprep.subr.bf16.mxu0 0
      %897 = vmatpush2.bf16.msra.mxu0 %v760
      %898 = vmatprep.subr.bf16.mxu0 0
      %899 = vmatpush2.bf16.msra.mxu0 %v759
      %900 = vmatprep.subr.bf16.mxu0 0
      %901 = vmatpush2.bf16.msra.mxu0 %v758
      %902 = vmatprep.subr.bf16.mxu0 0
      %903 = vmatpush2.bf16.msra.mxu0 %v757
      %904 = vmatprep.subr.bf16.mxu0 0
      %905 = vmatpush2.bf16.msra.mxu0 %v756
      %906 = vmatprep.subr.bf16.mxu0 0
      %907 = vmatpush2.bf16.msra.mxu0 %v755
      %908 = vmatprep.mubr.bf16.mxu0 %v534
      %909 = vmatmul.mubr.bf16.gmra.mxu0 %v533
      %v910 = vpop.f32.mrf.mxu0
      %v911 = vadd.f32 %v846, %v910
      %v912 = vpop.f32.mrf.mxu0
      %v913 = vpop.f32.mrf.mxu0
      %v914 = vadd.f32 %v849, %v913
      %v915 = vpop.f32.mrf.mxu0
      %916 = vmatprep.mubr.bf16.mxu0 %v539
      %917 = vmatmul.mubr.bf16.gmra.mxu0 %v538
      %v918 = vpop.f32.mrf.mxu0
      %v919 = vadd.f32 %v854, %v918
      %v920 = vpop.f32.mrf.mxu0
      %v921 = vpop.f32.mrf.mxu0
      %v922 = vadd.f32 %v857, %v921
      %v923 = vpop.f32.mrf.mxu0
      %924 = vmatprep.mubr.bf16.mxu0 %v544
      %925 = vmatmul.mubr.bf16.gmra.mxu0 %v543
      %v926 = vpop.f32.mrf.mxu0
      %v927 = vadd.f32 %v862, %v926
      %v928 = vpop.f32.mrf.mxu0
      %v929 = vpop.f32.mrf.mxu0
      %v930 = vadd.f32 %v865, %v929
      %v931 = vpop.f32.mrf.mxu0
      %932 = vmatprep.mubr.bf16.mxu0 %v549
      %933 = vmatmul.mubr.bf16.gmra.mxu0 %v548
      %v934 = vpop.f32.mrf.mxu0
      %v935 = vadd.f32 %v870, %v934
      %v936 = vpop.f32.mrf.mxu0
      %v937 = vpop.f32.mrf.mxu0
      %v938 = vadd.f32 %v873, %v937
      %v939 = vpop.f32.mrf.mxu0
      %940 = vdwg.mxu0
      %941 = vmatprep.subr.bf16.mxu0 0
      %942 = vmatpush1.bf16.msra.mxu0 %v770
      %943 = vmatprep.subr.bf16.mxu0 0
      %944 = vmatpush1.bf16.msra.mxu0 %v769
      %945 = vmatprep.subr.bf16.mxu0 0
      %946 = vmatpush1.bf16.msra.mxu0 %v768
      %947 = vmatprep.subr.bf16.mxu0 0
      %948 = vmatpush1.bf16.msra.mxu0 %v767
      %949 = vmatprep.subr.bf16.mxu0 0
      %950 = vmatpush1.bf16.msra.mxu0 %v766
      %951 = vmatprep.subr.bf16.mxu0 0
      %952 = vmatpush1.bf16.msra.mxu0 %v765
      %953 = vmatprep.subr.bf16.mxu0 0
      %954 = vmatpush1.bf16.msra.mxu0 %v764
      %955 = vmatprep.subr.bf16.mxu0 0
      %956 = vmatpush1.bf16.msra.mxu0 %v763
      %957 = vmatprep.subr.bf16.mxu0 0
      %958 = vmatpush2.bf16.msra.mxu0 0
      %959 = vmatprep.subr.bf16.mxu0 0
      %960 = vmatpush2.bf16.msra.mxu0 0
      %961 = vmatprep.subr.bf16.mxu0 0
      %962 = vmatpush2.bf16.msra.mxu0 0
      %963 = vmatprep.subr.bf16.mxu0 0
      %964 = vmatpush2.bf16.msra.mxu0 0
      %965 = vmatprep.subr.bf16.mxu0 0
      %966 = vmatpush2.bf16.msra.mxu0 0
      %967 = vmatprep.subr.bf16.mxu0 0
      %968 = vmatpush2.bf16.msra.mxu0 0
      %969 = vmatprep.subr.bf16.mxu0 0
      %970 = vmatpush2.bf16.msra.mxu0 0
      %971 = vmatprep.subr.bf16.mxu0 0
      %972 = vmatpush2.bf16.msra.mxu0 0
      %973 = vmatprep.mubr.bf16.mxu0 0
      %974 = vmatmul.mubr.bf16.gmra.mxu0 %v535
      %v975 = vpop.f32.mrf.mxu0
      %v976 = vadd.f32 %v911, %v975
      %v977 = vpop.f32.mrf.mxu0
      %v978 = vpop.f32.mrf.mxu0
      %v979 = vadd.f32 %v914, %v978
      %v980 = vpop.f32.mrf.mxu0
      %981 = vmatprep.mubr.bf16.mxu0 0
      %982 = vmatmul.mubr.bf16.gmra.mxu0 %v540
      %v983 = vpop.f32.mrf.mxu0
      %v984 = vadd.f32 %v919, %v983
      %v985 = vpop.f32.mrf.mxu0
      %v986 = vpop.f32.mrf.mxu0
      %v987 = vadd.f32 %v922, %v986
      %v988 = vpop.f32.mrf.mxu0
      %989 = vmatprep.mubr.bf16.mxu0 0
      %990 = vmatmul.mubr.bf16.gmra.mxu0 %v545
      %v991 = vpop.f32.mrf.mxu0
      %v992 = vadd.f32 %v927, %v991
      %v993 = vpop.f32.mrf.mxu0
      %v994 = vpop.f32.mrf.mxu0
      %v995 = vadd.f32 %v930, %v994
      %v996 = vpop.f32.mrf.mxu0
      %997 = vmatprep.mubr.bf16.mxu0 0
      %998 = vmatmul.mubr.bf16.gmra.mxu0 %v550
      %v999 = vpop.f32.mrf.mxu0
      %v1000 = vadd.f32 %v935, %v999
      %v1001 = vpop.f32.mrf.mxu0
      %v1002 = vpop.f32.mrf.mxu0
      %v1003 = vadd.f32 %v938, %v1002
      %v1004 = vpop.f32.mrf.mxu0
      %1005 = vdwg.mxu0
      %v1006 = vld [vmem:[%s336] sm:$0x1]
      %v1008 = vlaneseq
      %v1009 = vshrl.u32 %v1008, 7
      %v1010 = vsub.s32 0, %v1009
      %v1011 = vrot.slane %v1006, %v1010
      %v1013 = vmul.f32 %v976, %v1011
      %v1014 = vmul.f32 %v979, %v1011
      %v1015 = vmul.f32 %v984, %v1011
      %v1016 = vmul.f32 %v987, %v1011
      %v1017 = vmul.f32 %v992, %v1011
      %v1018 = vmul.f32 %v995, %v1011
      %v1019 = vmul.f32 %v1000, %v1011
      %v1020 = vmul.f32 %v1003, %v1011
      %v1021 = vld [vmem:[%s339] sm:$0x1]
      %v1023 = vlaneseq
      %v1024 = vshrl.u32 %v1023, 7
      %v1025 = vsub.s32 0, %v1024
      %v1026 = vrot.slane %v1021, %v1025
      %v1028 = vadd.f32 %v1013, %v1026
      %v1029 = vadd.f32 %v1014, %v1026
      %v1030 = vadd.f32 %v1015, %v1026
      %v1031 = vadd.f32 %v1016, %v1026
      %v1032 = vadd.f32 %v1017, %v1026
      %v1033 = vadd.f32 %v1018, %v1026
      %v1034 = vadd.f32 %v1019, %v1026
      %v1035 = vadd.f32 %v1020, %v1026
      %v1036 = vmax.f32 %v1028, 0.0
      %v1037 = vmax.f32 %v1029, 0.0
      %v1038 = vmax.f32 %v1030, 0.0
      %v1039 = vmax.f32 %v1031, 0.0
      %v1040 = vmax.f32 %v1032, 0.0
      %v1041 = vmax.f32 %v1033, 0.0
      %v1042 = vmax.f32 %v1034, 0.0
      %v1043 = vmax.f32 %v1035, 0.0
      %v1044 = vpack.c.bf16 %v1037, %v1036
      %v1045 = vpack.c.bf16 %v1039, %v1038
      %v1046 = vpack.c.bf16 %v1041, %v1040
      %v1047 = vpack.c.bf16 %v1043, %v1042
      %v1052 = vunpack.c.l.b16 %v1044
      %v1053 = vunpack.c.h.b16 %v1044
      %v1054 = vunpack.c.l.b16 %v1045
      %v1055 = vunpack.c.h.b16 %v1045
      %v1056 = vunpack.c.l.b16 %v1046
      %v1057 = vunpack.c.h.b16 %v1046
      %v1058 = vunpack.c.l.b16 %v1047
      %v1059 = vunpack.c.h.b16 %v1047
      %v1060 = vpack.c.b16 %v1052, %v1052
      %v1061 = vpack.c.b16 %v1053, %v1053
      %v1062 = vpack.c.b16 %v1054, %v1054
      %v1063 = vpack.c.b16 %v1055, %v1055
      %v1064 = vpack.c.b16 %v1056, %v1056
      %v1065 = vpack.c.b16 %v1057, %v1057
      %v1066 = vpack.c.b16 %v1058, %v1058
      %v1067 = vpack.c.b16 %v1059, %v1059
      %1076 = vst [vmem:[%s351] sm:$0xf] %v1060
      %1077 = vst [vmem:[%s351 + $0x4] sm:$0xf] %v1061
      %1078 = vst [vmem:[%s351 + $0x8] sm:$0xf] %v1062
      %1079 = vst [vmem:[%s351 + $0xc] sm:$0xf] %v1063
      %1080 = vst [vmem:[%s351 + $0x10] sm:$0xf] %v1064
      %1081 = vst [vmem:[%s351 + $0x14] sm:$0xf] %v1065
      %1082 = vst [vmem:[%s351 + $0x18] sm:$0xf] %v1066
      %1083 = vst [vmem:[%s351 + $0x1c] sm:$0xf] %v1067
      %v1084 = vld [vmem:[%s328] sm:$0xff]
      %v1085 = vld [vmem:[%s328 + $0x8] sm:$0xff]
      %v1086 = vld [vmem:[%s328 + $0x10] sm:$0xf]
      %v1087 = vld [vmem:[%s328 + $0x14] sm:$0xff]
      %v1088 = vld [vmem:[%s328 + $0x1c] sm:$0xff]
      %v1089 = vld [vmem:[%s328 + $0x24] sm:$0xf]
      %v1090 = vld [vmem:[%s328 + $0x28] sm:$0xff]
      %v1091 = vld [vmem:[%s328 + $0x30] sm:$0xff]
      %v1092 = vld [vmem:[%s328 + $0x38] sm:$0xf]
      %v1093 = vld [vmem:[%s328 + $0x3c] sm:$0xff]
      %v1094 = vld [vmem:[%s328 + $0x44] sm:$0xff]
      %v1095 = vld [vmem:[%s328 + $0x4c] sm:$0xf]
      %v1096 = vld [vmem:[%s328 + $0x50] sm:$0xff]
      %v1097 = vld [vmem:[%s328 + $0x58] sm:$0xff]
      %v1098 = vld [vmem:[%s328 + $0x60] sm:$0xf]
      %v1099 = vld [vmem:[%s328 + $0x64] sm:$0xff]
      %v1100 = vld [vmem:[%s328 + $0x6c] sm:$0xff]
      %v1101 = vld [vmem:[%s328 + $0x74] sm:$0xf]
      %v1102 = vld [vmem:[%s328 + $0x78] sm:$0xff]
      %v1103 = vld [vmem:[%s328 + $0x80] sm:$0xff]
      %v1104 = vld [vmem:[%s328 + $0x88] sm:$0xf]
      %v1105 = vld [vmem:[%s328 + $0x8c] sm:$0xff]
      %v1106 = vld [vmem:[%s328 + $0x94] sm:$0xff]
      %v1107 = vld [vmem:[%s328 + $0x9c] sm:$0xf]
      %v1108 = vld [vmem:[%s343] sm:$0xf]
      %v1109 = vld [vmem:[%s343 + $0x4] sm:$0xf]
      %v1110 = vld [vmem:[%s343 + $0x8] sm:$0xf]
      %v1111 = vld [vmem:[%s343 + $0xc] sm:$0xf]
      %v1112 = vld [vmem:[%s343 + $0x10] sm:$0xf]
      %v1113 = vld [vmem:[%s343 + $0x14] sm:$0xf]
      %v1114 = vld [vmem:[%s343 + $0x18] sm:$0xf]
      %v1115 = vld [vmem:[%s343 + $0x1c] sm:$0xf]
      %v1116 = vld [vmem:[%s343 + $0x20] sm:$0xf]
      %v1117 = vld [vmem:[%s343 + $0x24] sm:$0xf]
      %v1118 = vld [vmem:[%s343 + $0x28] sm:$0xf]
      %v1119 = vld [vmem:[%s343 + $0x2c] sm:$0xf]
      %v1120 = vld [vmem:[%s343 + $0x30] sm:$0xf]
      %v1121 = vld [vmem:[%s343 + $0x34] sm:$0xf]
      %v1122 = vld [vmem:[%s343 + $0x38] sm:$0xf]
      %v1123 = vld [vmem:[%s343 + $0x3c] sm:$0xf]
      %v1124 = vld [vmem:[%s343 + $0x40] sm:$0xf]
      %v1125 = vld [vmem:[%s343 + $0x44] sm:$0xf]
      %v1126 = vld [vmem:[%s343 + $0x48] sm:$0xf]
      %v1127 = vld [vmem:[%s343 + $0x4c] sm:$0xf]
      %v1128 = vld [vmem:[%s343 + $0x50] sm:$0xf]
      %v1129 = vld [vmem:[%s343 + $0x54] sm:$0xf]
      %v1130 = vld [vmem:[%s343 + $0x58] sm:$0xf]
      %v1131 = vld [vmem:[%s343 + $0x5c] sm:$0xf]
      %v1132 = vld [vmem:[%s343 + $0x60] sm:$0xf]
      %v1133 = vld [vmem:[%s343 + $0x64] sm:$0xf]
      %v1134 = vld [vmem:[%s343 + $0x68] sm:$0xf]
      %v1135 = vld [vmem:[%s343 + $0x6c] sm:$0xf]
      %v1136 = vld [vmem:[%s343 + $0x70] sm:$0xf]
      %v1137 = vld [vmem:[%s343 + $0x74] sm:$0xf]
      %v1138 = vld [vmem:[%s343 + $0x78] sm:$0xf]
      %v1139 = vld [vmem:[%s343 + $0x7c] sm:$0xf]
      %v1140 = vld [vmem:[%s343 + $0x80] sm:$0xf]
      %v1141 = vld [vmem:[%s343 + $0x84] sm:$0xf]
      %v1142 = vld [vmem:[%s343 + $0x88] sm:$0xf]
      %v1143 = vld [vmem:[%s343 + $0x8c] sm:$0xf]
      %v1144 = vld [vmem:[%s343 + $0x90] sm:$0xf]
      %v1145 = vld [vmem:[%s343 + $0x94] sm:$0xf]
      %v1146 = vld [vmem:[%s343 + $0x98] sm:$0xf]
      %v1147 = vld [vmem:[%s343 + $0x9c] sm:$0xf]
      %v1148 = vld [vmem:[%s343 + $0xa0] sm:$0xf]
      %v1149 = vld [vmem:[%s343 + $0xa4] sm:$0xf]
      %v1150 = vld [vmem:[%s343 + $0xa8] sm:$0xf]
      %v1151 = vld [vmem:[%s343 + $0xac] sm:$0xf]
      %v1152 = vld [vmem:[%s343 + $0xb0] sm:$0xf]
      %v1153 = vld [vmem:[%s343 + $0xb4] sm:$0xf]
      %v1154 = vld [vmem:[%s343 + $0xb8] sm:$0xf]
      %v1155 = vld [vmem:[%s343 + $0xbc] sm:$0xf]
      %v1156 = vld [vmem:[%s343 + $0xc0] sm:$0xf]
      %v1157 = vld [vmem:[%s343 + $0xc4] sm:$0xf]
      %v1158 = vld [vmem:[%s343 + $0xc8] sm:$0xf]
      %v1159 = vld [vmem:[%s343 + $0xcc] sm:$0xf]
      %v1160 = vld [vmem:[%s343 + $0xd0] sm:$0xf]
      %v1161 = vld [vmem:[%s343 + $0xd4] sm:$0xf]
      %v1162 = vld [vmem:[%s343 + $0xd8] sm:$0xf]
      %v1163 = vld [vmem:[%s343 + $0xdc] sm:$0xf]
      %v1164 = vld [vmem:[%s343 + $0xe0] sm:$0xf]
      %v1165 = vld [vmem:[%s343 + $0xe4] sm:$0xf]
      %v1166 = vld [vmem:[%s343 + $0xe8] sm:$0xf]
      %v1167 = vld [vmem:[%s343 + $0xec] sm:$0xf]
      %v1168 = vld [vmem:[%s343 + $0xf0] sm:$0xf]
      %v1169 = vld [vmem:[%s343 + $0xf4] sm:$0xf]
      %v1170 = vld [vmem:[%s343 + $0xf8] sm:$0xf]
      %v1171 = vld [vmem:[%s343 + $0xfc] sm:$0xf]
      %v1172 = vld [vmem:[%s343 + $0x100] sm:$0xf]
      %v1173 = vld [vmem:[%s343 + $0x104] sm:$0xf]
      %v1174 = vld [vmem:[%s343 + $0x108] sm:$0xf]
      %v1175 = vld [vmem:[%s343 + $0x10c] sm:$0xf]
      %v1176 = vld [vmem:[%s343 + $0x110] sm:$0xf]
      %v1177 = vld [vmem:[%s343 + $0x114] sm:$0xf]
      %v1178 = vld [vmem:[%s343 + $0x118] sm:$0xf]
      %v1179 = vld [vmem:[%s343 + $0x11c] sm:$0xf]
      %v1180 = vld [vmem:[%s343 + $0x120] sm:$0xf]
      %v1181 = vld [vmem:[%s343 + $0x124] sm:$0xf]
      %v1182 = vld [vmem:[%s343 + $0x128] sm:$0xf]
      %v1183 = vld [vmem:[%s343 + $0x12c] sm:$0xf]
      %v1184 = vld [vmem:[%s343 + $0x130] sm:$0xf]
      %v1185 = vld [vmem:[%s343 + $0x134] sm:$0xf]
      %v1186 = vld [vmem:[%s343 + $0x138] sm:$0xf]
      %v1187 = vld [vmem:[%s343 + $0x13c] sm:$0xf]
      %v1212 = vunpack.c.l.b16 %v1084
      %v1213 = vunpack.c.h.b16 %v1084
      %v1214 = vunpack.c.l.b16 %v1085
      %v1215 = vunpack.c.h.b16 %v1085
      %v1216 = vunpack.c.l.b16 %v1086
      %v1217 = vunpack.c.l.b16 %v1087
      %v1218 = vunpack.c.h.b16 %v1087
      %v1219 = vunpack.c.l.b16 %v1088
      %v1220 = vunpack.c.h.b16 %v1088
      %v1221 = vunpack.c.l.b16 %v1089
      %v1222 = vunpack.c.l.b16 %v1090
      %v1223 = vunpack.c.h.b16 %v1090
      %v1224 = vunpack.c.l.b16 %v1091
      %v1225 = vunpack.c.h.b16 %v1091
      %v1226 = vunpack.c.l.b16 %v1092
      %v1227 = vunpack.c.l.b16 %v1093
      %v1228 = vunpack.c.h.b16 %v1093
      %v1229 = vunpack.c.l.b16 %v1094
      %v1230 = vunpack.c.h.b16 %v1094
      %v1231 = vunpack.c.l.b16 %v1095
      %v1232 = vunpack.c.l.b16 %v1096
      %v1233 = vunpack.c.h.b16 %v1096
      %v1234 = vunpack.c.l.b16 %v1097
      %v1235 = vunpack.c.h.b16 %v1097
      %v1236 = vunpack.c.l.b16 %v1098
      %v1237 = vunpack.c.l.b16 %v1099
      %v1238 = vunpack.c.h.b16 %v1099
      %v1239 = vunpack.c.l.b16 %v1100
      %v1240 = vunpack.c.h.b16 %v1100
      %v1241 = vunpack.c.l.b16 %v1101
      %v1242 = vunpack.c.l.b16 %v1102
      %v1243 = vunpack.c.h.b16 %v1102
      %v1244 = vunpack.c.l.b16 %v1103
      %v1245 = vunpack.c.h.b16 %v1103
      %v1246 = vunpack.c.l.b16 %v1104
      %v1247 = vunpack.c.l.b16 %v1105
      %v1248 = vunpack.c.h.b16 %v1105
      %v1249 = vunpack.c.l.b16 %v1106
      %v1250 = vunpack.c.h.b16 %v1106
      %v1251 = vunpack.c.l.b16 %v1107
      %v1252 = vpack.c.b16 %v1217, %v1212
      %v1253 = vpack.c.b16 %v1218, %v1213
      %v1254 = vpack.c.b16 %v1219, %v1214
      %v1255 = vpack.c.b16 %v1220, %v1215
      %v1256 = vpack.c.b16 %v1221, %v1216
      %v1257 = vpack.c.b16 %v1227, %v1222
      %v1258 = vpack.c.b16 %v1228, %v1223
      %v1259 = vpack.c.b16 %v1229, %v1224
      %v1260 = vpack.c.b16 %v1230, %v1225
      %v1261 = vpack.c.b16 %v1231, %v1226
      %v1262 = vpack.c.b16 %v1237, %v1232
      %v1263 = vpack.c.b16 %v1238, %v1233
      %v1264 = vpack.c.b16 %v1239, %v1234
      %v1265 = vpack.c.b16 %v1240, %v1235
      %v1266 = vpack.c.b16 %v1241, %v1236
      %v1267 = vpack.c.b16 %v1247, %v1242
      %v1268 = vpack.c.b16 %v1248, %v1243
      %v1269 = vpack.c.b16 %v1249, %v1244
      %v1270 = vpack.c.b16 %v1250, %v1245
      %v1271 = vpack.c.b16 %v1251, %v1246
      %v1372 = vunpack.c.l.b16 %v1108
      %v1373 = vunpack.c.l.b16 %v1109
      %v1374 = vunpack.c.l.b16 %v1110
      %v1375 = vunpack.c.l.b16 %v1111
      %v1376 = vunpack.c.l.b16 %v1112
      %v1377 = vunpack.c.l.b16 %v1113
      %v1378 = vunpack.c.l.b16 %v1114
      %v1379 = vunpack.c.l.b16 %v1115
      %v1380 = vunpack.c.l.b16 %v1116
      %v1381 = vunpack.c.l.b16 %v1117
      %v1382 = vunpack.c.l.b16 %v1118
      %v1383 = vunpack.c.l.b16 %v1119
      %v1384 = vunpack.c.l.b16 %v1120
      %v1385 = vunpack.c.l.b16 %v1121
      %v1386 = vunpack.c.l.b16 %v1122
      %v1387 = vunpack.c.l.b16 %v1123
      %v1388 = vunpack.c.l.b16 %v1124
      %v1389 = vunpack.c.l.b16 %v1125
      %v1390 = vunpack.c.l.b16 %v1126
      %v1391 = vunpack.c.l.b16 %v1127
      %v1392 = vunpack.c.l.b16 %v1128
      %v1393 = vunpack.c.l.b16 %v1129
      %v1394 = vunpack.c.l.b16 %v1130
      %v1395 = vunpack.c.l.b16 %v1131
      %v1396 = vunpack.c.l.b16 %v1132
      %v1397 = vunpack.c.l.b16 %v1133
      %v1398 = vunpack.c.l.b16 %v1134
      %v1399 = vunpack.c.l.b16 %v1135
      %v1400 = vunpack.c.l.b16 %v1136
      %v1401 = vunpack.c.l.b16 %v1137
      %v1402 = vunpack.c.l.b16 %v1138
      %v1403 = vunpack.c.l.b16 %v1139
      %v1404 = vunpack.c.l.b16 %v1140
      %v1405 = vunpack.c.l.b16 %v1141
      %v1406 = vunpack.c.l.b16 %v1142
      %v1407 = vunpack.c.l.b16 %v1143
      %v1408 = vunpack.c.l.b16 %v1144
      %v1409 = vunpack.c.l.b16 %v1145
      %v1410 = vunpack.c.l.b16 %v1146
      %v1411 = vunpack.c.l.b16 %v1147
      %v1412 = vunpack.c.l.b16 %v1148
      %v1413 = vunpack.c.l.b16 %v1149
      %v1414 = vunpack.c.l.b16 %v1150
      %v1415 = vunpack.c.l.b16 %v1151
      %v1416 = vunpack.c.l.b16 %v1152
      %v1417 = vunpack.c.l.b16 %v1153
      %v1418 = vunpack.c.l.b16 %v1154
      %v1419 = vunpack.c.l.b16 %v1155
      %v1420 = vunpack.c.l.b16 %v1156
      %v1421 = vunpack.c.l.b16 %v1157
      %v1422 = vunpack.c.l.b16 %v1158
      %v1423 = vunpack.c.l.b16 %v1159
      %v1424 = vunpack.c.l.b16 %v1160
      %v1425 = vunpack.c.l.b16 %v1161
      %v1426 = vunpack.c.l.b16 %v1162
      %v1427 = vunpack.c.l.b16 %v1163
      %v1428 = vunpack.c.l.b16 %v1164
      %v1429 = vunpack.c.l.b16 %v1165
      %v1430 = vunpack.c.l.b16 %v1166
      %v1431 = vunpack.c.l.b16 %v1167
      %v1432 = vunpack.c.l.b16 %v1168
      %v1433 = vunpack.c.l.b16 %v1169
      %v1434 = vunpack.c.l.b16 %v1170
      %v1435 = vunpack.c.l.b16 %v1171
      %v1436 = vunpack.c.l.b16 %v1172
      %v1437 = vunpack.c.l.b16 %v1173
      %v1438 = vunpack.c.l.b16 %v1174
      %v1439 = vunpack.c.l.b16 %v1175
      %v1440 = vunpack.c.l.b16 %v1176
      %v1441 = vunpack.c.l.b16 %v1177
      %v1442 = vunpack.c.l.b16 %v1178
      %v1443 = vunpack.c.l.b16 %v1179
      %v1444 = vunpack.c.l.b16 %v1180
      %v1445 = vunpack.c.l.b16 %v1181
      %v1446 = vunpack.c.l.b16 %v1182
      %v1447 = vunpack.c.l.b16 %v1183
      %v1448 = vunpack.c.l.b16 %v1184
      %v1449 = vunpack.c.l.b16 %v1185
      %v1450 = vunpack.c.l.b16 %v1186
      %v1451 = vunpack.c.l.b16 %v1187
      %v1452 = vpack.c.b16 %v1373, %v1372
      %v1453 = vpack.c.b16 %v1375, %v1374
      %v1454 = vpack.c.b16 %v1377, %v1376
      %v1455 = vpack.c.b16 %v1379, %v1378
      %v1456 = vpack.c.b16 %v1381, %v1380
      %v1457 = vpack.c.b16 %v1383, %v1382
      %v1458 = vpack.c.b16 %v1385, %v1384
      %v1459 = vpack.c.b16 %v1387, %v1386
      %v1460 = vpack.c.b16 %v1389, %v1388
      %v1461 = vpack.c.b16 %v1391, %v1390
      %v1462 = vpack.c.b16 %v1393, %v1392
      %v1463 = vpack.c.b16 %v1395, %v1394
      %v1464 = vpack.c.b16 %v1397, %v1396
      %v1465 = vpack.c.b16 %v1399, %v1398
      %v1466 = vpack.c.b16 %v1401, %v1400
      %v1467 = vpack.c.b16 %v1403, %v1402
      %v1468 = vpack.c.b16 %v1405, %v1404
      %v1469 = vpack.c.b16 %v1407, %v1406
      %v1470 = vpack.c.b16 %v1409, %v1408
      %v1471 = vpack.c.b16 %v1411, %v1410
      %v1472 = vpack.c.b16 %v1413, %v1412
      %v1473 = vpack.c.b16 %v1415, %v1414
      %v1474 = vpack.c.b16 %v1417, %v1416
      %v1475 = vpack.c.b16 %v1419, %v1418
      %v1476 = vpack.c.b16 %v1421, %v1420
      %v1477 = vpack.c.b16 %v1423, %v1422
      %v1478 = vpack.c.b16 %v1425, %v1424
      %v1479 = vpack.c.b16 %v1427, %v1426
      %v1480 = vpack.c.b16 %v1429, %v1428
      %v1481 = vpack.c.b16 %v1431, %v1430
      %v1482 = vpack.c.b16 %v1433, %v1432
      %v1483 = vpack.c.b16 %v1435, %v1434
      %v1484 = vpack.c.b16 %v1437, %v1436
      %v1485 = vpack.c.b16 %v1439, %v1438
      %v1486 = vpack.c.b16 %v1441, %v1440
      %v1487 = vpack.c.b16 %v1443, %v1442
      %v1488 = vpack.c.b16 %v1445, %v1444
      %v1489 = vpack.c.b16 %v1447, %v1446
      %v1490 = vpack.c.b16 %v1449, %v1448
      %v1491 = vpack.c.b16 %v1451, %v1450
      %1532 = vmatprep.subr.bf16.mxu0 0
      %1533 = vmatpush1.bf16.msra.mxu0 %v1459
      %1534 = vmatprep.subr.bf16.mxu0 0
      %1535 = vmatpush1.bf16.msra.mxu0 %v1458
      %1536 = vmatprep.subr.bf16.mxu0 0
      %1537 = vmatpush1.bf16.msra.mxu0 %v1457
      %1538 = vmatprep.subr.bf16.mxu0 0
      %1539 = vmatpush1.bf16.msra.mxu0 %v1456
      %1540 = vmatprep.subr.bf16.mxu0 0
      %1541 = vmatpush1.bf16.msra.mxu0 %v1455
      %1542 = vmatprep.subr.bf16.mxu0 0
      %1543 = vmatpush1.bf16.msra.mxu0 %v1454
      %1544 = vmatprep.subr.bf16.mxu0 0
      %1545 = vmatpush1.bf16.msra.mxu0 %v1453
      %1546 = vmatprep.subr.bf16.mxu0 0
      %1547 = vmatpush1.bf16.msra.mxu0 %v1452
      %1548 = vmatprep.subr.bf16.mxu0 0
      %1549 = vmatpush2.bf16.msra.mxu0 %v1467
      %1550 = vmatprep.subr.bf16.mxu0 0
      %1551 = vmatpush2.bf16.msra.mxu0 %v1466
      %1552 = vmatprep.subr.bf16.mxu0 0
      %1553 = vmatpush2.bf16.msra.mxu0 %v1465
      %1554 = vmatprep.subr.bf16.mxu0 0
      %1555 = vmatpush2.bf16.msra.mxu0 %v1464
      %1556 = vmatprep.subr.bf16.mxu0 0
      %1557 = vmatpush2.bf16.msra.mxu0 %v1463
      %1558 = vmatprep.subr.bf16.mxu0 0
      %1559 = vmatpush2.bf16.msra.mxu0 %v1462
      %1560 = vmatprep.subr.bf16.mxu0 0
      %1561 = vmatpush2.bf16.msra.mxu0 %v1461
      %1562 = vmatprep.subr.bf16.mxu0 0
      %1563 = vmatpush2.bf16.msra.mxu0 %v1460
      %1564 = vmatprep.mubr.bf16.mxu0 %v1253
      %1565 = vmatmul.mubr.bf16.gmra.mxu0 %v1252
      %v1566 = vpop.f32.mrf.mxu0
      %v1567 = vadd.f32 0.0, %v1566
      %v1568 = vpop.f32.mrf.mxu0
      %v1569 = vpop.f32.mrf.mxu0
      %v1570 = vadd.f32 0.0, %v1569
      %v1571 = vpop.f32.mrf.mxu0
      %1572 = vmatprep.mubr.bf16.mxu0 %v1258
      %1573 = vmatmul.mubr.bf16.gmra.mxu0 %v1257
      %v1574 = vpop.f32.mrf.mxu0
      %v1575 = vadd.f32 0.0, %v1574
      %v1576 = vpop.f32.mrf.mxu0
      %v1577 = vpop.f32.mrf.mxu0
      %v1578 = vadd.f32 0.0, %v1577
      %v1579 = vpop.f32.mrf.mxu0
      %1580 = vmatprep.mubr.bf16.mxu0 %v1263
      %1581 = vmatmul.mubr.bf16.gmra.mxu0 %v1262
      %v1582 = vpop.f32.mrf.mxu0
      %v1583 = vadd.f32 0.0, %v1582
      %v1584 = vpop.f32.mrf.mxu0
      %v1585 = vpop.f32.mrf.mxu0
      %v1586 = vadd.f32 0.0, %v1585
      %v1587 = vpop.f32.mrf.mxu0
      %1588 = vmatprep.mubr.bf16.mxu0 %v1268
      %1589 = vmatmul.mubr.bf16.gmra.mxu0 %v1267
      %v1590 = vpop.f32.mrf.mxu0
      %v1591 = vadd.f32 0.0, %v1590
      %v1592 = vpop.f32.mrf.mxu0
      %v1593 = vpop.f32.mrf.mxu0
      %v1594 = vadd.f32 0.0, %v1593
      %v1595 = vpop.f32.mrf.mxu0
      %1596 = vdwg.mxu0
      %1597 = vmatprep.subr.bf16.mxu0 0
      %1598 = vmatpush1.bf16.msra.mxu0 %v1475
      %1599 = vmatprep.subr.bf16.mxu0 0
      %1600 = vmatpush1.bf16.msra.mxu0 %v1474
      %1601 = vmatprep.subr.bf16.mxu0 0
      %1602 = vmatpush1.bf16.msra.mxu0 %v1473
      %1603 = vmatprep.subr.bf16.mxu0 0
      %1604 = vmatpush1.bf16.msra.mxu0 %v1472
      %1605 = vmatprep.subr.bf16.mxu0 0
      %1606 = vmatpush1.bf16.msra.mxu0 %v1471
      %1607 = vmatprep.subr.bf16.mxu0 0
      %1608 = vmatpush1.bf16.msra.mxu0 %v1470
      %1609 = vmatprep.subr.bf16.mxu0 0
      %1610 = vmatpush1.bf16.msra.mxu0 %v1469
      %1611 = vmatprep.subr.bf16.mxu0 0
      %1612 = vmatpush1.bf16.msra.mxu0 %v1468
      %1613 = vmatprep.subr.bf16.mxu0 0
      %1614 = vmatpush2.bf16.msra.mxu0 %v1483
      %1615 = vmatprep.subr.bf16.mxu0 0
      %1616 = vmatpush2.bf16.msra.mxu0 %v1482
      %1617 = vmatprep.subr.bf16.mxu0 0
      %1618 = vmatpush2.bf16.msra.mxu0 %v1481
      %1619 = vmatprep.subr.bf16.mxu0 0
      %1620 = vmatpush2.bf16.msra.mxu0 %v1480
      %1621 = vmatprep.subr.bf16.mxu0 0
      %1622 = vmatpush2.bf16.msra.mxu0 %v1479
      %1623 = vmatprep.subr.bf16.mxu0 0
      %1624 = vmatpush2.bf16.msra.mxu0 %v1478
      %1625 = vmatprep.subr.bf16.mxu0 0
      %1626 = vmatpush2.bf16.msra.mxu0 %v1477
      %1627 = vmatprep.subr.bf16.mxu0 0
      %1628 = vmatpush2.bf16.msra.mxu0 %v1476
      %1629 = vmatprep.mubr.bf16.mxu0 %v1255
      %1630 = vmatmul.mubr.bf16.gmra.mxu0 %v1254
      %v1631 = vpop.f32.mrf.mxu0
      %v1632 = vadd.f32 %v1567, %v1631
      %v1633 = vpop.f32.mrf.mxu0
      %v1634 = vpop.f32.mrf.mxu0
      %v1635 = vadd.f32 %v1570, %v1634
      %v1636 = vpop.f32.mrf.mxu0
      %1637 = vmatprep.mubr.bf16.mxu0 %v1260
      %1638 = vmatmul.mubr.bf16.gmra.mxu0 %v1259
      %v1639 = vpop.f32.mrf.mxu0
      %v1640 = vadd.f32 %v1575, %v1639
      %v1641 = vpop.f32.mrf.mxu0
      %v1642 = vpop.f32.mrf.mxu0
      %v1643 = vadd.f32 %v1578, %v1642
      %v1644 = vpop.f32.mrf.mxu0
      %1645 = vmatprep.mubr.bf16.mxu0 %v1265
      %1646 = vmatmul.mubr.bf16.gmra.mxu0 %v1264
      %v1647 = vpop.f32.mrf.mxu0
      %v1648 = vadd.f32 %v1583, %v1647
      %v1649 = vpop.f32.mrf.mxu0
      %v1650 = vpop.f32.mrf.mxu0
      %v1651 = vadd.f32 %v1586, %v1650
      %v1652 = vpop.f32.mrf.mxu0
      %1653 = vmatprep.mubr.bf16.mxu0 %v1270
      %1654 = vmatmul.mubr.bf16.gmra.mxu0 %v1269
      %v1655 = vpop.f32.mrf.mxu0
      %v1656 = vadd.f32 %v1591, %v1655
      %v1657 = vpop.f32.mrf.mxu0
      %v1658 = vpop.f32.mrf.mxu0
      %v1659 = vadd.f32 %v1594, %v1658
      %v1660 = vpop.f32.mrf.mxu0
      %1661 = vdwg.mxu0
      %1662 = vmatprep.subr.bf16.mxu0 0
      %1663 = vmatpush1.bf16.msra.mxu0 %v1491
      %1664 = vmatprep.subr.bf16.mxu0 0
      %1665 = vmatpush1.bf16.msra.mxu0 %v1490
      %1666 = vmatprep.subr.bf16.mxu0 0
      %1667 = vmatpush1.bf16.msra.mxu0 %v1489
      %1668 = vmatprep.subr.bf16.mxu0 0
      %1669 = vmatpush1.bf16.msra.mxu0 %v1488
      %1670 = vmatprep.subr.bf16.mxu0 0
      %1671 = vmatpush1.bf16.msra.mxu0 %v1487
      %1672 = vmatprep.subr.bf16.mxu0 0
      %1673 = vmatpush1.bf16.msra.mxu0 %v1486
      %1674 = vmatprep.subr.bf16.mxu0 0
      %1675 = vmatpush1.bf16.msra.mxu0 %v1485
      %1676 = vmatprep.subr.bf16.mxu0 0
      %1677 = vmatpush1.bf16.msra.mxu0 %v1484
      %1678 = vmatprep.subr.bf16.mxu0 0
      %1679 = vmatpush2.bf16.msra.mxu0 0
      %1680 = vmatprep.subr.bf16.mxu0 0
      %1681 = vmatpush2.bf16.msra.mxu0 0
      %1682 = vmatprep.subr.bf16.mxu0 0
      %1683 = vmatpush2.bf16.msra.mxu0 0
      %1684 = vmatprep.subr.bf16.mxu0 0
      %1685 = vmatpush2.bf16.msra.mxu0 0
      %1686 = vmatprep.subr.bf16.mxu0 0
      %1687 = vmatpush2.bf16.msra.mxu0 0
      %1688 = vmatprep.subr.bf16.mxu0 0
      %1689 = vmatpush2.bf16.msra.mxu0 0
      %1690 = vmatprep.subr.bf16.mxu0 0
      %1691 = vmatpush2.bf16.msra.mxu0 0
      %1692 = vmatprep.subr.bf16.mxu0 0
      %1693 = vmatpush2.bf16.msra.mxu0 0
      %1694 = vmatprep.mubr.bf16.mxu0 0
      %1695 = vmatmul.mubr.bf16.gmra.mxu0 %v1256
      %v1696 = vpop.f32.mrf.mxu0
      %v1697 = vadd.f32 %v1632, %v1696
      %v1698 = vpop.f32.mrf.mxu0
      %v1699 = vpop.f32.mrf.mxu0
      %v1700 = vadd.f32 %v1635, %v1699
      %v1701 = vpop.f32.mrf.mxu0
      %1702 = vmatprep.mubr.bf16.mxu0 0
      %1703 = vmatmul.mubr.bf16.gmra.mxu0 %v1261
      %v1704 = vpop.f32.mrf.mxu0
      %v1705 = vadd.f32 %v1640, %v1704
      %v1706 = vpop.f32.mrf.mxu0
      %v1707 = vpop.f32.mrf.mxu0
      %v1708 = vadd.f32 %v1643, %v1707
      %v1709 = vpop.f32.mrf.mxu0
      %1710 = vmatprep.mubr.bf16.mxu0 0
      %1711 = vmatmul.mubr.bf16.gmra.mxu0 %v1266
      %v1712 = vpop.f32.mrf.mxu0
      %v1713 = vadd.f32 %v1648, %v1712
      %v1714 = vpop.f32.mrf.mxu0
      %v1715 = vpop.f32.mrf.mxu0
      %v1716 = vadd.f32 %v1651, %v1715
      %v1717 = vpop.f32.mrf.mxu0
      %1718 = vmatprep.mubr.bf16.mxu0 0
      %1719 = vmatmul.mubr.bf16.gmra.mxu0 %v1271
      %v1720 = vpop.f32.mrf.mxu0
      %v1721 = vadd.f32 %v1656, %v1720
      %v1722 = vpop.f32.mrf.mxu0
      %v1723 = vpop.f32.mrf.mxu0
      %v1724 = vadd.f32 %v1659, %v1723
      %v1725 = vpop.f32.mrf.mxu0
      %1726 = vdwg.mxu0
      %1727 = vst [vmem:[%s360] sm:$0xff] %v1697
      %1728 = vst [vmem:[%s360 + $0x8] sm:$0xff] %v1700
      %1729 = vst [vmem:[%s360 + $0x10] sm:$0xff] %v1705
      %1730 = vst [vmem:[%s360 + $0x18] sm:$0xff] %v1708
      %1731 = vst [vmem:[%s360 + $0x20] sm:$0xff] %v1713
      %1732 = vst [vmem:[%s360 + $0x28] sm:$0xff] %v1716
      %1733 = vst [vmem:[%s360 + $0x30] sm:$0xff] %v1721
      %1734 = vst [vmem:[%s360 + $0x38] sm:$0xff] %v1724
      %s1735 = smul.u32 8, %s22
      %p1736 = scmp.lt.s32.totalorder %s1735, 15
      %s1737 = scalar_select %p1736, %s1735, 15
      %p1738 = scmp.lt.s32.totalorder %s23, 0
      %s1739 = scalar_select %p1738, %s23, 0
      %s1740 = sadd.s32 %s1739, %s1737
      %s1741 = smul.addr %s1740, 4
      %s1742 = scalar_lea.vmem %s5, %s1741
      %s1743 = smul.u32 8, %s22
      %p1744 = scmp.lt.s32.totalorder %s1743, 15
      %s1745 = scalar_select %p1744, %s1743, 15
      %p1746 = scmp.lt.s32.totalorder %s23, 0
      %s1747 = scalar_select %p1746, %s23, 0
      %s1748 = sadd.s32 %s1747, %s1745
      %s1749 = smul.addr %s1748, 8
      %s1750 = scalar_lea.vmem %s6, %s1749
      // Predicated region
      $region41: #{run.21} parent=39 // pred_check
        %p1751 = pneg %p180
      $region42: #{run.21} parent=39 // pred_check_branch
        %1753 = sbr.rel (%p1751) target = $region44
      $region43: #{run.21} parent=39 // pred_region
        %s1754 = smul.u32 8, %s22
      $region44: #{run.21} parent=39 // pred_fallthru
        _
      // Predicated region
      $region45: #{run.21} parent=39 // pred_check
        %p1755 = pneg %p208
      $region46: #{run.21} parent=39 // pred_check_branch
        %1757 = sbr.rel (%p1755) target = $region48
      $region47: #{run.21} parent=39 // pred_region
        %s1758 = smul.u32 8, %s22
      $region48: #{run.21} parent=39 // pred_fallthru
        _
    $region40: #{run.21} parent=5 // pred_fallthru
      _
    %p1759 = scmp.le.s32.totalorder 2, %s13
    // Predicated region
    $region49: #{run.21} parent=5 // pred_check
      %p1760 = pneg %p1759
    $region50: #{run.21} parent=5 // pred_check_branch
      %1762 = sbr.rel (%p1760) target = $region52
    $region51: #{run.21} parent=5 // pred_region
      %s1763 = ssub.s32 %s13, 2
      // Predicated region
      $region53: #{run.21} parent=51 // pred_check
        %p1764 = pneg %p186
      $region54: #{run.21} parent=51 // pred_check_branch
        %1766 = sbr.rel (%p1764) target = $region56
      $region55: #{run.21} parent=51 // pred_region
        %s1767 = smul.u32 8, %s24
        %p1768 = scmp.lt.s32.totalorder %s1767, 15
        %s1769 = scalar_select %p1768, %s1767, 15
        %p1770 = scmp.lt.s32.totalorder %s25, 0
        %s1771 = scalar_select %p1770, %s25, 0
        %s1772 = sadd.s32 %s1771, %s1769
        %s1773 = smul.addr %s1772, 4
        %s1774 = scalar_lea.vmem %s5, %s1773
      $region56: #{run.21} parent=51 // pred_fallthru
        _
      // Predicated region
      $region57: #{run.21} parent=51 // pred_check
        %p1775 = pneg %p214
      $region58: #{run.21} parent=51 // pred_check_branch
        %1777 = sbr.rel (%p1775) target = $region60
      $region59: #{run.21} parent=51 // pred_region
        %s1778 = smul.u32 8, %s24
        %p1779 = scmp.lt.s32.totalorder %s1778, 15
        %s1780 = scalar_select %p1779, %s1778, 15
        %p1781 = scmp.lt.s32.totalorder %s25, 0
        %s1782 = scalar_select %p1781, %s25, 0
        %s1783 = sadd.s32 %s1782, %s1780
        %s1784 = smul.addr %s1783, 8
        %s1785 = scalar_lea.vmem %s6, %s1784
      $region60: #{run.21} parent=51 // pred_fallthru
        _
    $region52: #{run.21} parent=5 // pred_fallthru
      _
  $region6: #{run.21} parent=0 // loop_footer
    %s17 = sadd.s32 1, %s13
  $region7: #{run.21} parent=0 // loop_footer_branch
    %12 = sbr.rel target = $region3
  $region8: #{run.21} parent=0 // loop_exit
    _

// kernel: run.24
$region0: #{run.24}
  #allocation0 [shape = 'u32[]', space=smem, size = 0x4, offset = 0x4, fixed_abs, tag = 'smem constant byte address 0x4 - core index']
  #allocation1 [shape = 'u32[144,128]{1,0:T(1,128)}', space=vmem, size = 0x12000, scoped, tag = 'internal scratch']
  %s0 = inlined_call_operand.vmem [shape: bf16[2,64,128], index: 0, kind: input, shape index: {}]
  %s1 = inlined_call_operand.vmem [shape: f32[2,1,128], index: 1, kind: input, shape index: {}]
  %s2 = inlined_call_operand.vmem [shape: f32[2,64,128], index: 2, kind: input, shape index: {}]
  %s3 = inlined_call_operand.vmem [shape: f32[2,64,128], index: 3, kind: output, shape index: {}]
  %s4 = sld [smem:[#allocation0]]
  $region45: #{run.24} parent=0
    _
  %s6 = ssub.s32 1, %s4
  %s7 = scalar_select 0, %s6, %s4
  loop: start=0, step=1, limit=4
  $region2: #{run.24} parent=0 // loop_pre_header
    _
  $region3: #{run.24} parent=0 // loop_header
    %s9 = sphi 0, %s13
    %p10 = scmp.ge.s32.totalorder %s9, 4
    %s16 = sphi 0, %s28
    %s17 = sphi 0, %s24
    %s18 = sphi 0, %s16
    %s19 = sphi 0, %s17
    %s20 = sphi 0, %s18
    %s21 = sphi 0, %s19
    %s33 = sphi 0, %s35
    %s36 = sphi 0, %s33
    %s37 = sphi 0, %s36
    %s53 = sphi 0, %s37
    %s59 = sphi 0, %s61
    %s62 = sphi 0, %s59
    %s63 = sphi 0, %s62
    %s79 = sphi 0, %s63
    %s87 = sphi 0, %s89
    %s90 = sphi 0, %s87
    %s91 = sphi 0, %s90
    %s107 = sphi 0, %s91
    %s115 = sphi 0, %s117
    %s118 = sphi 0, %s115
    %s119 = sphi 0, %s118
    %s135 = sphi 0, %s119
  $region4: #{run.24} parent=0 // loop_header_branch
    %12 = sbr.rel (%p10) target = $region8
  $region5: #{run.24} parent=0 // loop_body
    %s14 = ssub.s32 %s9, 1
    %s15 = ssub.s32 %s9, 2
    %s22 = sadd.s32 1, %s17
    %p23 = scmp.ge.s32.totalorder %s22, 1
    %s24 = scalar_select %p23, 0, %s22
    %s25 = sadd.s32 1, %s16
    %s26 = scalar_select %p23, %s25, %s16
    %p27 = scmp.ge.s32.totalorder %s26, 2
    %s28 = scalar_select %p27, 0, %s26
    %s29 = ssub.s32 %s16, %s28
    %s30 = ssub.s32 %s17, %s24
    %s31 = sor.u32 %s29, %s30
    %p32 = scmp.eq.s32.totalorder %s31, 0
    %s34 = sadd.s32 %s33, 1
    %s35 = scalar_select %p32, %s33, %s34
    %p38 = pneg %p32
    %p39 = scmp.eq.s32.totalorder %s9, 1
    %p40 = por %p38, %p39
    %p41 = scmp.ne.s32.totalorder %s33, %s36
    %p42 = scmp.eq.s32.totalorder %s9, 0
    %p43 = por %p41, %p42
    %p44 = scmp.ne.s32.totalorder %s33, %s36
    %p45 = scmp.eq.s32.totalorder %s14, 1
    %p46 = por %p44, %p45
    %p47 = scmp.ne.s32.totalorder %s36, %s37
    %p48 = scmp.eq.s32.totalorder %s14, 0
    %p49 = por %p47, %p48
    %p50 = scmp.ne.s32.totalorder %s36, %s37
    %p51 = scmp.eq.s32.totalorder %s15, 1
    %p52 = por %p50, %p51
    %p54 = scmp.ne.s32.totalorder %s37, %s53
    %p55 = scmp.eq.s32.totalorder %s15, 0
    %p56 = por %p54, %p55
    %s57 = ssub.s32 %s16, %s28
    %p58 = scmp.eq.s32.totalorder %s57, 0
    %s60 = sadd.s32 %s59, 1
    %s61 = scalar_select %p58, %s59, %s60
    %p64 = pneg %p58
    %p65 = scmp.eq.s32.totalorder %s9, 1
    %p66 = por %p64, %p65
    %p67 = scmp.ne.s32.totalorder %s59, %s62
    %p68 = scmp.eq.s32.totalorder %s9, 0
    %p69 = por %p67, %p68
    %p70 = scmp.ne.s32.totalorder %s59, %s62
    %p71 = scmp.eq.s32.totalorder %s14, 1
    %p72 = por %p70, %p71
    %p73 = scmp.ne.s32.totalorder %s62, %s63
    %p74 = scmp.eq.s32.totalorder %s14, 0
    %p75 = por %p73, %p74
    %p76 = scmp.ne.s32.totalorder %s62, %s63
    %p77 = scmp.eq.s32.totalorder %s15, 1
    %p78 = por %p76, %p77
    %p80 = scmp.ne.s32.totalorder %s63, %s79
    %p81 = scmp.eq.s32.totalorder %s15, 0
    %p82 = por %p80, %p81
    %s83 = ssub.s32 %s16, %s28
    %s84 = ssub.s32 %s17, %s24
    %s85 = sor.u32 %s83, %s84
    %p86 = scmp.eq.s32.totalorder %s85, 0
    %s88 = sadd.s32 %s87, 1
    %s89 = scalar_select %p86, %s87, %s88
    %p92 = pneg %p86
    %p93 = scmp.eq.s32.totalorder %s9, 1
    %p94 = por %p92, %p93
    %p95 = scmp.ne.s32.totalorder %s87, %s90
    %p96 = scmp.eq.s32.totalorder %s9, 0
    %p97 = por %p95, %p96
    %p98 = scmp.ne.s32.totalorder %s87, %s90
    %p99 = scmp.eq.s32.totalorder %s14, 1
    %p100 = por %p98, %p99
    %p101 = scmp.ne.s32.totalorder %s90, %s91
    %p102 = scmp.eq.s32.totalorder %s14, 0
    %p103 = por %p101, %p102
    %p104 = scmp.ne.s32.totalorder %s90, %s91
    %p105 = scmp.eq.s32.totalorder %s15, 1
    %p106 = por %p104, %p105
    %p108 = scmp.ne.s32.totalorder %s91, %s107
    %p109 = scmp.eq.s32.totalorder %s15, 0
    %p110 = por %p108, %p109
    %s111 = ssub.s32 %s16, %s28
    %s112 = ssub.s32 %s17, %s24
    %s113 = sor.u32 %s111, %s112
    %p114 = scmp.eq.s32.totalorder %s113, 0
    %s116 = sadd.s32 %s115, 1
    %s117 = scalar_select %p114, %s115, %s116
    %p120 = pneg %p114
    %p121 = scmp.eq.s32.totalorder %s9, 1
    %p122 = por %p120, %p121
    %p123 = scmp.ne.s32.totalorder %s115, %s118
    %p124 = scmp.eq.s32.totalorder %s9, 0
    %p125 = por %p123, %p124
    %p126 = scmp.ne.s32.totalorder %s115, %s118
    %p127 = scmp.eq.s32.totalorder %s14, 1
    %p128 = por %p126, %p127
    %p129 = scmp.ne.s32.totalorder %s118, %s119
    %p130 = scmp.eq.s32.totalorder %s14, 0
    %p131 = por %p129, %p130
    %p132 = scmp.ne.s32.totalorder %s118, %s119
    %p133 = scmp.eq.s32.totalorder %s15, 1
    %p134 = por %p132, %p133
    %p136 = scmp.ne.s32.totalorder %s119, %s135
    %p137 = scmp.eq.s32.totalorder %s15, 0
    %p138 = por %p136, %p137
    %p139 = scmp.le.s32.totalorder 1, %s9
    %p140 = scmp.lt.s32.totalorder %s9, 3
    %p141 = pnand %p139, %p140
    %p142 = pneg %p141
    // Predicated region
    $region9: #{run.24} parent=5 // pred_check
      _
    $region10: #{run.24} parent=5 // pred_check_branch
      %144 = sbr.rel (%p141) target = $region12
    $region11: #{run.24} parent=5 // pred_region
      %s145 = ssub.s32 %s9, 1
    $region12: #{run.24} parent=5 // pred_fallthru
      _
    %p146 = scmp.lt.s32.totalorder %s9, 2
    // Predicated region
    $region13: #{run.24} parent=5 // pred_check
      %p147 = pneg %p146
    $region14: #{run.24} parent=5 // pred_check_branch
      %149 = sbr.rel (%p147) target = $region16
    $region15: #{run.24} parent=5 // pred_region
      // Predicated region
      $region17: #{run.24} parent=15 // pred_check
        %p150 = pneg %p43
      $region18: #{run.24} parent=15 // pred_check_branch
        %152 = sbr.rel (%p150) target = $region20
      $region19: #{run.24} parent=15 // pred_region
        %s153 = smul.u32 8, %s17
        %p154 = scmp.lt.s32.totalorder %s16, 1
        %s155 = scalar_select %p154, %s16, 1
        %p156 = scmp.lt.s32.totalorder %s153, 7
        %s157 = scalar_select %p156, %s153, 7
        %s158 = smul.addr %s155, 8
        %s159 = sadd.s32 %s157, %s158
        %s160 = smul.addr %s159, 4
        %s161 = scalar_lea.vmem %s0, %s160
        %s162 = smul.u32 8, %s17
      $region20: #{run.24} parent=15 // pred_fallthru
        _
      // Predicated region
      $region21: #{run.24} parent=15 // pred_check
        %p163 = pneg %p69
      $region22: #{run.24} parent=15 // pred_check_branch
        %165 = sbr.rel (%p163) target = $region24
      $region23: #{run.24} parent=15 // pred_region
        %p166 = scmp.lt.s32.totalorder %s16, 1
        %s167 = scalar_select %p166, %s16, 1
        %s168 = scalar_lea.vmem %s1, %s167
      $region24: #{run.24} parent=15 // pred_fallthru
        _
      // Predicated region
      $region25: #{run.24} parent=15 // pred_check
        %p169 = pneg %p97
      $region26: #{run.24} parent=15 // pred_check_branch
        %171 = sbr.rel (%p169) target = $region28
      $region27: #{run.24} parent=15 // pred_region
        %s172 = smul.u32 8, %s17
        %p173 = scmp.lt.s32.totalorder %s16, 1
        %s174 = scalar_select %p173, %s16, 1
        %p175 = scmp.lt.s32.totalorder %s172, 7
        %s176 = scalar_select %p175, %s172, 7
        %s177 = smul.addr %s174, 8
        %s178 = sadd.s32 %s176, %s177
        %s179 = smul.addr %s178, 8
        %s180 = scalar_lea.vmem %s2, %s179
        %s181 = smul.u32 8, %s17
      $region28: #{run.24} parent=15 // pred_fallthru
        _
    $region16: #{run.24} parent=5 // pred_fallthru
      _
    %p182 = scmp.le.s32.totalorder 1, %s9
    %p183 = scmp.lt.s32.totalorder %s9, 3
    %p184 = pnand %p182, %p183
    %p185 = pneg %p184
    // Predicated region
    $region29: #{run.24} parent=5 // pred_check
      _
    $region30: #{run.24} parent=5 // pred_check_branch
      %187 = sbr.rel (%p184) target = $region32
    $region31: #{run.24} parent=5 // pred_region
      %s188 = ssub.s32 %s9, 1
      %s189 = smul.u32 8, %s19
      %p190 = scmp.lt.s32.totalorder %s18, 1
      %s191 = scalar_select %p190, %s18, 1
      %p192 = scmp.lt.s32.totalorder %s189, 7
      %s193 = scalar_select %p192, %s189, 7
      %s194 = smul.addr %s191, 8
      %s195 = sadd.s32 %s193, %s194
      %s196 = smul.addr %s195, 4
      %s197 = scalar_lea.vmem %s0, %s196
      %p198 = pneg %p49
      %p199 = pneg %p46
      %p200 = scmp.lt.s32.totalorder %s18, 1
      %s201 = scalar_select %p200, %s18, 1
      %s202 = scalar_lea.vmem %s1, %s201
      %p203 = pneg %p75
      %p204 = pneg %p72
      %s205 = smul.u32 8, %s19
      %p206 = scmp.lt.s32.totalorder %s18, 1
      %s207 = scalar_select %p206, %s18, 1
      %p208 = scmp.lt.s32.totalorder %s205, 7
      %s209 = scalar_select %p208, %s205, 7
      %s210 = smul.addr %s207, 8
      %s211 = sadd.s32 %s209, %s210
      %s212 = smul.addr %s211, 8
      %s213 = scalar_lea.vmem %s2, %s212
      %p214 = pneg %p103
      %p215 = pneg %p100
      %p216 = pneg %p131
      %p217 = pneg %p128
      %s218 = smul.u32 8, %s19
      %p219 = scmp.lt.s32.totalorder %s18, 1
      %s220 = scalar_select %p219, %s18, 1
      %p221 = scmp.lt.s32.totalorder %s218, 7
      %s222 = scalar_select %p221, %s218, 7
      %s223 = smul.addr %s220, 8
      %s224 = sadd.s32 %s222, %s223
      %s225 = smul.addr %s224, 8
      %s226 = scalar_lea.vmem %s3, %s225
      %s227 = smul.u32 8, %s19
      %p228 = scmp.lt.s32.totalorder %s18, 1
      %s229 = scalar_select %p228, %s18, 1
      %p230 = scmp.lt.s32.totalorder %s227, 7
      %s231 = scalar_select %p230, %s227, 7
      %s232 = smul.addr %s229, 8
      %s233 = sadd.s32 %s231, %s232
      %s234 = smul.addr %s233, 4
      %s235 = scalar_lea.vmem %s0, %s234
      %s236 = smul.u32 8, %s19
      %p237 = scmp.lt.s32.totalorder %s18, 1
      %s238 = scalar_select %p237, %s18, 1
      %s239 = scalar_lea.vmem %s1, %s238
      %s240 = smul.u32 8, %s19
      %p241 = scmp.lt.s32.totalorder %s18, 1
      %s242 = scalar_select %p241, %s18, 1
      %p243 = scmp.lt.s32.totalorder %s240, 7
      %s244 = scalar_select %p243, %s240, 7
      %s245 = smul.addr %s242, 8
      %s246 = sadd.s32 %s244, %s245
      %s247 = smul.addr %s246, 8
      %s248 = scalar_lea.vmem %s2, %s247
      %s249 = smul.u32 8, %s19
      %s250 = smul.u32 8, %s19
      %p251 = scmp.lt.s32.totalorder %s18, 1
      %s252 = scalar_select %p251, %s18, 1
      %p253 = scmp.lt.s32.totalorder %s250, 7
      %s254 = scalar_select %p253, %s250, 7
      %s255 = smul.addr %s252, 8
      %s256 = sadd.s32 %s254, %s255
      %s257 = smul.addr %s256, 8
      %s258 = scalar_lea.vmem %s3, %s257
      %s259 = smul.u32 8, %s19
      %v260 = vld [vmem:[%s235] sm:$0xf]
      %v261 = vld [vmem:[%s235 + $0x4] sm:$0xf]
      %v262 = vld [vmem:[%s235 + $0x8] sm:$0xf]
      %v263 = vld [vmem:[%s235 + $0xc] sm:$0xf]
      %v264 = vld [vmem:[%s235 + $0x10] sm:$0xf]
      %v265 = vld [vmem:[%s235 + $0x14] sm:$0xf]
      %v266 = vld [vmem:[%s235 + $0x18] sm:$0xf]
      %v267 = vld [vmem:[%s235 + $0x1c] sm:$0xf]
      %v268 = vunpack.c.l.bf16 %v260
      %v269 = vunpack.c.l.bf16 %v261
      %v270 = vunpack.c.l.bf16 %v262
      %v271 = vunpack.c.l.bf16 %v263
      %v272 = vunpack.c.l.bf16 %v264
      %v273 = vunpack.c.l.bf16 %v265
      %v274 = vunpack.c.l.bf16 %v266
      %v275 = vunpack.c.l.bf16 %v267
      %v276 = vld [vmem:[%s239] sm:$0x1]
      %v278 = vlaneseq
      %v279 = vshrl.u32 %v278, 7
      %v280 = vsub.s32 0, %v279
      %v281 = vrot.slane %v276, %v280
      %v283 = vmul.f32 %v268, %v281
      %v284 = vmul.f32 %v269, %v281
      %v285 = vmul.f32 %v270, %v281
      %v286 = vmul.f32 %v271, %v281
      %v287 = vmul.f32 %v272, %v281
      %v288 = vmul.f32 %v273, %v281
      %v289 = vmul.f32 %v274, %v281
      %v290 = vmul.f32 %v275, %v281
      %v291 = vld [vmem:[%s248] sm:$0xff]
      %v292 = vld [vmem:[%s248 + $0x8] sm:$0xff]
      %v293 = vld [vmem:[%s248 + $0x10] sm:$0xff]
      %v294 = vld [vmem:[%s248 + $0x18] sm:$0xff]
      %v295 = vld [vmem:[%s248 + $0x20] sm:$0xff]
      %v296 = vld [vmem:[%s248 + $0x28] sm:$0xff]
      %v297 = vld [vmem:[%s248 + $0x30] sm:$0xff]
      %v298 = vld [vmem:[%s248 + $0x38] sm:$0xff]
      %v299 = vadd.f32 %v283, %v291
      %v300 = vadd.f32 %v284, %v292
      %v301 = vadd.f32 %v285, %v293
      %v302 = vadd.f32 %v286, %v294
      %v303 = vadd.f32 %v287, %v295
      %v304 = vadd.f32 %v288, %v296
      %v305 = vadd.f32 %v289, %v297
      %v306 = vadd.f32 %v290, %v298
      %307 = vst [vmem:[%s258] sm:$0xff] %v299
      %308 = vst [vmem:[%s258 + $0x8] sm:$0xff] %v300
      %309 = vst [vmem:[%s258 + $0x10] sm:$0xff] %v301
      %310 = vst [vmem:[%s258 + $0x18] sm:$0xff] %v302
      %311 = vst [vmem:[%s258 + $0x20] sm:$0xff] %v303
      %312 = vst [vmem:[%s258 + $0x28] sm:$0xff] %v304
      %313 = vst [vmem:[%s258 + $0x30] sm:$0xff] %v305
      %314 = vst [vmem:[%s258 + $0x38] sm:$0xff] %v306
      %s315 = smul.u32 8, %s19
      %p316 = scmp.lt.s32.totalorder %s18, 1
      %s317 = scalar_select %p316, %s18, 1
      %p318 = scmp.lt.s32.totalorder %s315, 7
      %s319 = scalar_select %p318, %s315, 7
      %s320 = smul.addr %s317, 8
      %s321 = sadd.s32 %s319, %s320
      %s322 = smul.addr %s321, 8
      %s323 = scalar_lea.vmem %s3, %s322
      // Predicated region
      $region33: #{run.24} parent=31 // pred_check
        %p324 = pneg %p128
      $region34: #{run.24} parent=31 // pred_check_branch
        %326 = sbr.rel (%p324) target = $region36
      $region35: #{run.24} parent=31 // pred_region
        %s327 = smul.u32 8, %s19
      $region36: #{run.24} parent=31 // pred_fallthru
        _
    $region32: #{run.24} parent=5 // pred_fallthru
      _
    %p328 = scmp.le.s32.totalorder 2, %s9
    // Predicated region
    $region37: #{run.24} parent=5 // pred_check
      %p329 = pneg %p328
    $region38: #{run.24} parent=5 // pred_check_branch
      %331 = sbr.rel (%p329) target = $region40
    $region39: #{run.24} parent=5 // pred_region
      %s332 = ssub.s32 %s9, 2
      // Predicated region
      $region41: #{run.24} parent=39 // pred_check
        %p333 = pneg %p134
      $region42: #{run.24} parent=39 // pred_check_branch
        %335 = sbr.rel (%p333) target = $region44
      $region43: #{run.24} parent=39 // pred_region
        %s336 = smul.u32 8, %s21
        %p337 = scmp.lt.s32.totalorder %s20, 1
        %s338 = scalar_select %p337, %s20, 1
        %p339 = scmp.lt.s32.totalorder %s336, 7
        %s340 = scalar_select %p339, %s336, 7
        %s341 = smul.addr %s338, 8
        %s342 = sadd.s32 %s340, %s341
        %s343 = smul.addr %s342, 8
        %s344 = scalar_lea.vmem %s3, %s343
      $region44: #{run.24} parent=39 // pred_fallthru
        _
    $region40: #{run.24} parent=5 // pred_fallthru
      _
  $region6: #{run.24} parent=0 // loop_footer
    %s13 = sadd.s32 1, %s9
  $region7: #{run.24} parent=0 // loop_footer_branch
    %8 = sbr.rel target = $region3
  $region8: #{run.24} parent=0 // loop_exit
    _

// kernel: run.29
$region0: #{run.29}
  #allocation0 [shape = 'u32[]', space=smem, size = 0x4, offset = 0x4, fixed_abs, tag = 'smem constant byte address 0x4 - core index']
  #allocation1 [shape = 'u32[144,128]{1,0:T(1,128)}', space=vmem, size = 0x12000, scoped, tag = 'internal scratch']
  %s0 = inlined_call_operand.vmem [shape: bf16[2,64,128], index: 0, kind: input, shape index: {}]
  %s1 = inlined_call_operand.vmem [shape: f32[2,1,128], index: 1, kind: input, shape index: {}]
  %s2 = inlined_call_operand.vmem [shape: f32[2,64,128], index: 2, kind: input, shape index: {}]
  %s3 = inlined_call_operand.hbm [shape: f32[2,64,128], index: 3, kind: output, shape index: {}]
  %s4 = sld [smem:[#allocation0]]
  $region45: #{run.29} parent=0
    _
  %s6 = ssub.s32 1, %s4
  %s7 = scalar_select 0, %s6, %s4
  $region1: #{run.29} parent=0
    #allocation2 [shape = 'u8[65536]{0}', space=vmem, size = 0x10000, scoped, tag = 'output window, operand 0']
    #allocation3 [shape = 's32[2]{0}', space=sflag, size = 0x8, scoped, tag = 'scoped memory for run.29']
    %8 = vsyncpa [#allocation3], 0
    %s9 = scalar_lea.sflag [#allocation3], 1
    %10 = vsyncpa %s9, 0
    loop: start=0, step=1, limit=4
    $region2: #{run.29} parent=1 // loop_pre_header
      _
    $region3: #{run.29} parent=1 // loop_header
      %s12 = sphi 0, %s16
      %p13 = scmp.ge.s32.totalorder %s12, 4
      %s19 = sphi 0, %s31
      %s20 = sphi 0, %s27
      %s21 = sphi 0, %s19
      %s22 = sphi 0, %s20
      %s23 = sphi 0, %s21
      %s24 = sphi 0, %s22
      %s36 = sphi 0, %s38
      %s39 = sphi 0, %s36
      %s40 = sphi 0, %s39
      %s56 = sphi 0, %s40
      %s62 = sphi 0, %s64
      %s65 = sphi 0, %s62
      %s66 = sphi 0, %s65
      %s82 = sphi 0, %s66
      %s90 = sphi 0, %s92
      %s93 = sphi 0, %s90
      %s94 = sphi 0, %s93
      %s110 = sphi 0, %s94
      %s118 = sphi 0, %s120
      %s121 = sphi 0, %s118
      %s122 = sphi 0, %s121
      %s138 = sphi 0, %s122
    $region4: #{run.29} parent=1 // loop_header_branch
      %15 = sbr.rel (%p13) target = $region8
    $region5: #{run.29} parent=1 // loop_body
      %s17 = ssub.s32 %s12, 1
      %s18 = ssub.s32 %s12, 2
      %s25 = sadd.s32 1, %s20
      %p26 = scmp.ge.s32.totalorder %s25, 1
      %s27 = scalar_select %p26, 0, %s25
      %s28 = sadd.s32 1, %s19
      %s29 = scalar_select %p26, %s28, %s19
      %p30 = scmp.ge.s32.totalorder %s29, 2
      %s31 = scalar_select %p30, 0, %s29
      %s32 = ssub.s32 %s19, %s31
      %s33 = ssub.s32 %s20, %s27
      %s34 = sor.u32 %s32, %s33
      %p35 = scmp.eq.s32.totalorder %s34, 0
      %s37 = sadd.s32 %s36, 1
      %s38 = scalar_select %p35, %s36, %s37
      %p41 = pneg %p35
      %p42 = scmp.eq.s32.totalorder %s12, 1
      %p43 = por %p41, %p42
      %p44 = scmp.ne.s32.totalorder %s36, %s39
      %p45 = scmp.eq.s32.totalorder %s12, 0
      %p46 = por %p44, %p45
      %p47 = scmp.ne.s32.totalorder %s36, %s39
      %p48 = scmp.eq.s32.totalorder %s17, 1
      %p49 = por %p47, %p48
      %p50 = scmp.ne.s32.totalorder %s39, %s40
      %p51 = scmp.eq.s32.totalorder %s17, 0
      %p52 = por %p50, %p51
      %p53 = scmp.ne.s32.totalorder %s39, %s40
      %p54 = scmp.eq.s32.totalorder %s18, 1
      %p55 = por %p53, %p54
      %p57 = scmp.ne.s32.totalorder %s40, %s56
      %p58 = scmp.eq.s32.totalorder %s18, 0
      %p59 = por %p57, %p58
      %s60 = ssub.s32 %s19, %s31
      %p61 = scmp.eq.s32.totalorder %s60, 0
      %s63 = sadd.s32 %s62, 1
      %s64 = scalar_select %p61, %s62, %s63
      %p67 = pneg %p61
      %p68 = scmp.eq.s32.totalorder %s12, 1
      %p69 = por %p67, %p68
      %p70 = scmp.ne.s32.totalorder %s62, %s65
      %p71 = scmp.eq.s32.totalorder %s12, 0
      %p72 = por %p70, %p71
      %p73 = scmp.ne.s32.totalorder %s62, %s65
      %p74 = scmp.eq.s32.totalorder %s17, 1
      %p75 = por %p73, %p74
      %p76 = scmp.ne.s32.totalorder %s65, %s66
      %p77 = scmp.eq.s32.totalorder %s17, 0
      %p78 = por %p76, %p77
      %p79 = scmp.ne.s32.totalorder %s65, %s66
      %p80 = scmp.eq.s32.totalorder %s18, 1
      %p81 = por %p79, %p80
      %p83 = scmp.ne.s32.totalorder %s66, %s82
      %p84 = scmp.eq.s32.totalorder %s18, 0
      %p85 = por %p83, %p84
      %s86 = ssub.s32 %s19, %s31
      %s87 = ssub.s32 %s20, %s27
      %s88 = sor.u32 %s86, %s87
      %p89 = scmp.eq.s32.totalorder %s88, 0
      %s91 = sadd.s32 %s90, 1
      %s92 = scalar_select %p89, %s90, %s91
      %p95 = pneg %p89
      %p96 = scmp.eq.s32.totalorder %s12, 1
      %p97 = por %p95, %p96
      %p98 = scmp.ne.s32.totalorder %s90, %s93
      %p99 = scmp.eq.s32.totalorder %s12, 0
      %p100 = por %p98, %p99
      %p101 = scmp.ne.s32.totalorder %s90, %s93
      %p102 = scmp.eq.s32.totalorder %s17, 1
      %p103 = por %p101, %p102
      %p104 = scmp.ne.s32.totalorder %s93, %s94
      %p105 = scmp.eq.s32.totalorder %s17, 0
      %p106 = por %p104, %p105
      %p107 = scmp.ne.s32.totalorder %s93, %s94
      %p108 = scmp.eq.s32.totalorder %s18, 1
      %p109 = por %p107, %p108
      %p111 = scmp.ne.s32.totalorder %s94, %s110
      %p112 = scmp.eq.s32.totalorder %s18, 0
      %p113 = por %p111, %p112
      %s114 = ssub.s32 %s19, %s31
      %s115 = ssub.s32 %s20, %s27
      %s116 = sor.u32 %s114, %s115
      %p117 = scmp.eq.s32.totalorder %s116, 0
      %s119 = sadd.s32 %s118, 1
      %s120 = scalar_select %p117, %s118, %s119
      %p123 = pneg %p117
      %p124 = scmp.eq.s32.totalorder %s12, 1
      %p125 = por %p123, %p124
      %p126 = scmp.ne.s32.totalorder %s118, %s121
      %p127 = scmp.eq.s32.totalorder %s12, 0
      %p128 = por %p126, %p127
      %p129 = scmp.ne.s32.totalorder %s118, %s121
      %p130 = scmp.eq.s32.totalorder %s17, 1
      %p131 = por %p129, %p130
      %p132 = scmp.ne.s32.totalorder %s121, %s122
      %p133 = scmp.eq.s32.totalorder %s17, 0
      %p134 = por %p132, %p133
      %p135 = scmp.ne.s32.totalorder %s121, %s122
      %p136 = scmp.eq.s32.totalorder %s18, 1
      %p137 = por %p135, %p136
      %p139 = scmp.ne.s32.totalorder %s122, %s138
      %p140 = scmp.eq.s32.totalorder %s18, 0
      %p141 = por %p139, %p140
      %p142 = scmp.le.s32.totalorder 1, %s12
      %p143 = scmp.lt.s32.totalorder %s12, 3
      %p144 = pnand %p142, %p143
      %p145 = pneg %p144
      // Predicated region
      $region9: #{run.29} parent=5 // pred_check
        _
      $region10: #{run.29} parent=5 // pred_check_branch
        %147 = sbr.rel (%p144) target = $region12
      $region11: #{run.29} parent=5 // pred_region
        %s148 = ssub.s32 %s12, 1
      $region12: #{run.29} parent=5 // pred_fallthru
        _
      %p149 = scmp.lt.s32.totalorder %s12, 2
      // Predicated region
      $region13: #{run.29} parent=5 // pred_check
        %p150 = pneg %p149
      $region14: #{run.29} parent=5 // pred_check_branch
        %152 = sbr.rel (%p150) target = $region16
      $region15: #{run.29} parent=5 // pred_region
        // Predicated region
        $region17: #{run.29} parent=15 // pred_check
          %p153 = pneg %p46
        $region18: #{run.29} parent=15 // pred_check_branch
          %155 = sbr.rel (%p153) target = $region20
        $region19: #{run.29} parent=15 // pred_region
          %s156 = smul.u32 8, %s20
          %p157 = scmp.lt.s32.totalorder %s19, 1
          %s158 = scalar_select %p157, %s19, 1
          %p159 = scmp.lt.s32.totalorder %s156, 7
          %s160 = scalar_select %p159, %s156, 7
          %s161 = smul.addr %s158, 8
          %s162 = sadd.s32 %s160, %s161
          %s163 = smul.addr %s162, 4
          %s164 = scalar_lea.vmem %s0, %s163
          %s165 = smul.u32 8, %s20
        $region20: #{run.29} parent=15 // pred_fallthru
          _
        // Predicated region
        $region21: #{run.29} parent=15 // pred_check
          %p166 = pneg %p72
        $region22: #{run.29} parent=15 // pred_check_branch
          %168 = sbr.rel (%p166) target = $region24
        $region23: #{run.29} parent=15 // pred_region
          %p169 = scmp.lt.s32.totalorder %s19, 1
          %s170 = scalar_select %p169, %s19, 1
          %s171 = scalar_lea.vmem %s1, %s170
        $region24: #{run.29} parent=15 // pred_fallthru
          _
        // Predicated region
        $region25: #{run.29} parent=15 // pred_check
          %p172 = pneg %p100
        $region26: #{run.29} parent=15 // pred_check_branch
          %174 = sbr.rel (%p172) target = $region28
        $region27: #{run.29} parent=15 // pred_region
          %s175 = smul.u32 8, %s20
          %p176 = scmp.lt.s32.totalorder %s19, 1
          %s177 = scalar_select %p176, %s19, 1
          %p178 = scmp.lt.s32.totalorder %s175, 7
          %s179 = scalar_select %p178, %s175, 7
          %s180 = smul.addr %s177, 8
          %s181 = sadd.s32 %s179, %s180
          %s182 = smul.addr %s181, 8
          %s183 = scalar_lea.vmem %s2, %s182
          %s184 = smul.u32 8, %s20
        $region28: #{run.29} parent=15 // pred_fallthru
          _
      $region16: #{run.29} parent=5 // pred_fallthru
        _
      %p185 = scmp.le.s32.totalorder 1, %s12
      %p186 = scmp.lt.s32.totalorder %s12, 3
      %p187 = pnand %p185, %p186
      %p188 = pneg %p187
      // Predicated region
      $region29: #{run.29} parent=5 // pred_check
        _
      $region30: #{run.29} parent=5 // pred_check_branch
        %190 = sbr.rel (%p187) target = $region32
      $region31: #{run.29} parent=5 // pred_region
        %s191 = ssub.s32 %s12, 1
        %s192 = smul.u32 8, %s22
        %p193 = scmp.lt.s32.totalorder %s21, 1
        %s194 = scalar_select %p193, %s21, 1
        %p195 = scmp.lt.s32.totalorder %s192, 7
        %s196 = scalar_select %p195, %s192, 7
        %s197 = smul.addr %s194, 8
        %s198 = sadd.s32 %s196, %s197
        %s199 = smul.addr %s198, 4
        %s200 = scalar_lea.vmem %s0, %s199
        %p201 = pneg %p52
        %p202 = pneg %p49
        %p203 = scmp.lt.s32.totalorder %s21, 1
        %s204 = scalar_select %p203, %s21, 1
        %s205 = scalar_lea.vmem %s1, %s204
        %p206 = pneg %p78
        %p207 = pneg %p75
        %s208 = smul.u32 8, %s22
        %p209 = scmp.lt.s32.totalorder %s21, 1
        %s210 = scalar_select %p209, %s21, 1
        %p211 = scmp.lt.s32.totalorder %s208, 7
        %s212 = scalar_select %p211, %s208, 7
        %s213 = smul.addr %s210, 8
        %s214 = sadd.s32 %s212, %s213
        %s215 = smul.addr %s214, 8
        %s216 = scalar_lea.vmem %s2, %s215
        %p217 = pneg %p106
        %p218 = pneg %p103
        %p219 = pneg %p134
        %p220 = pneg %p131
        %s221 = sand.u32 %s121, 1
        %s222 = scalar_lea.sflag [#allocation3], %s221
        %s223 = sand.u32 %s121, 1
        %s224 = smul.addr %s223, 64
        %s225 = scalar_lea.vmem [#allocation2], %s224
        %s226 = smul.u32 8, %s22
        %p227 = scmp.lt.s32.totalorder %s21, 1
        %s228 = scalar_select %p227, %s21, 1
        %p229 = scmp.lt.s32.totalorder %s226, 7
        %s230 = scalar_select %p229, %s226, 7
        %s231 = smul.addr %s228, 8
        %s232 = sadd.s32 %s230, %s231
        %s233 = smul.addr %s232, 4
        %s234 = scalar_lea.vmem %s0, %s233
        %s235 = smul.u32 8, %s22
        %p236 = scmp.lt.s32.totalorder %s21, 1
        %s237 = scalar_select %p236, %s21, 1
        %s238 = scalar_lea.vmem %s1, %s237
        %s239 = smul.u32 8, %s22
        %p240 = scmp.lt.s32.totalorder %s21, 1
        %s241 = scalar_select %p240, %s21, 1
        %p242 = scmp.lt.s32.totalorder %s239, 7
        %s243 = scalar_select %p242, %s239, 7
        %s244 = smul.addr %s241, 8
        %s245 = sadd.s32 %s243, %s244
        %s246 = smul.addr %s245, 8
        %s247 = scalar_lea.vmem %s2, %s246
        %s248 = smul.u32 8, %s22
        %s249 = smul.u32 8, %s22
        %v250 = vld [vmem:[%s234] sm:$0xf]
        %v251 = vld [vmem:[%s234 + $0x4] sm:$0xf]
        %v252 = vld [vmem:[%s234 + $0x8] sm:$0xf]
        %v253 = vld [vmem:[%s234 + $0xc] sm:$0xf]
        %v254 = vld [vmem:[%s234 + $0x10] sm:$0xf]
        %v255 = vld [vmem:[%s234 + $0x14] sm:$0xf]
        %v256 = vld [vmem:[%s234 + $0x18] sm:$0xf]
        %v257 = vld [vmem:[%s234 + $0x1c] sm:$0xf]
        %v258 = vunpack.c.l.bf16 %v250
        %v259 = vunpack.c.l.bf16 %v251
        %v260 = vunpack.c.l.bf16 %v252
        %v261 = vunpack.c.l.bf16 %v253
        %v262 = vunpack.c.l.bf16 %v254
        %v263 = vunpack.c.l.bf16 %v255
        %v264 = vunpack.c.l.bf16 %v256
        %v265 = vunpack.c.l.bf16 %v257
        %v266 = vld [vmem:[%s238] sm:$0x1]
        %v268 = vlaneseq
        %v269 = vshrl.u32 %v268, 7
        %v270 = vsub.s32 0, %v269
        %v271 = vrot.slane %v266, %v270
        %v273 = vmul.f32 %v258, %v271
        %v274 = vmul.f32 %v259, %v271
        %v275 = vmul.f32 %v260, %v271
        %v276 = vmul.f32 %v261, %v271
        %v277 = vmul.f32 %v262, %v271
        %v278 = vmul.f32 %v263, %v271
        %v279 = vmul.f32 %v264, %v271
        %v280 = vmul.f32 %v265, %v271
        %v281 = vld [vmem:[%s247] sm:$0xff]
        %v282 = vld [vmem:[%s247 + $0x8] sm:$0xff]
        %v283 = vld [vmem:[%s247 + $0x10] sm:$0xff]
        %v284 = vld [vmem:[%s247 + $0x18] sm:$0xff]
        %v285 = vld [vmem:[%s247 + $0x20] sm:$0xff]
        %v286 = vld [vmem:[%s247 + $0x28] sm:$0xff]
        %v287 = vld [vmem:[%s247 + $0x30] sm:$0xff]
        %v288 = vld [vmem:[%s247 + $0x38] sm:$0xff]
        %v289 = vadd.f32 %v273, %v281
        %v290 = vadd.f32 %v274, %v282
        %v291 = vadd.f32 %v275, %v283
        %v292 = vadd.f32 %v276, %v284
        %v293 = vadd.f32 %v277, %v285
        %v294 = vadd.f32 %v278, %v286
        %v295 = vadd.f32 %v279, %v287
        %v296 = vadd.f32 %v280, %v288
        %297 = vst [vmem:[%s225] sm:$0xff] %v289
        %298 = vst [vmem:[%s225 + $0x8] sm:$0xff] %v290
        %299 = vst [vmem:[%s225 + $0x10] sm:$0xff] %v291
        %300 = vst [vmem:[%s225 + $0x18] sm:$0xff] %v292
        %301 = vst [vmem:[%s225 + $0x20] sm:$0xff] %v293
        %302 = vst [vmem:[%s225 + $0x28] sm:$0xff] %v294
        %303 = vst [vmem:[%s225 + $0x30] sm:$0xff] %v295
        %304 = vst [vmem:[%s225 + $0x38] sm:$0xff] %v296
        %s305 = sand.u32 %s121, 1
        %s306 = scalar_lea.sflag [#allocation3], %s305
        %s307 = sand.u32 %s121, 1
        %s308 = smul.addr %s307, 64
        %s309 = scalar_lea.vmem [#allocation2], %s308
        // Predicated region
        $region33: #{run.29} parent=31 // pred_check
          %p310 = pneg %p131
        $region34: #{run.29} parent=31 // pred_check_branch
          %312 = sbr.rel (%p310) target = $region36
        $region35: #{run.29} parent=31 // pred_region
          %s313 = smul.u32 8, %s22
          %s315 = ssub.s32 1024, 1024
          %316 = vsyncadd %s306, %s315
          %s317 = smul.addr %s21, 8
          %s318 = sadd.s32 %s313, %s317
          %s319 = smul.addr %s318, 128
          %s320 = scalar_lea.hbm %s3, %s319
          %s321 = sshll.u32 %s309, 4
          %s322 = int_to_ptr.vmem [resolvable:$true] %s321
          %327 = dma.vmem_to_hbm [thread:$0]  %s322, 1024, %s320, %s306, 128, 128, 8
        $region36: #{run.29} parent=31 // pred_fallthru
          _
      $region32: #{run.29} parent=5 // pred_fallthru
        _
      %p328 = scmp.le.s32.totalorder 2, %s12
      // Predicated region
      $region37: #{run.29} parent=5 // pred_check
        %p329 = pneg %p328
      $region38: #{run.29} parent=5 // pred_check_branch
        %331 = sbr.rel (%p329) target = $region40
      $region39: #{run.29} parent=5 // pred_region
        %s332 = ssub.s32 %s12, 2
        // Predicated region
        $region41: #{run.29} parent=39 // pred_check
          %p333 = pneg %p137
        $region42: #{run.29} parent=39 // pred_check_branch
          %335 = sbr.rel (%p333) target = $region44
        $region43: #{run.29} parent=39 // pred_region
          %s336 = sand.u32 %s122, 1
          %s337 = scalar_lea.sflag [#allocation3], %s336
          %s338 = sand.u32 %s122, 1
          %s339 = smul.addr %s338, 64
          %s340 = scalar_lea.vmem [#allocation2], %s339
          %341 = dma.done %s337, 1024
        $region44: #{run.29} parent=39 // pred_fallthru
          _
      $region40: #{run.29} parent=5 // pred_fallthru
        _
    $region6: #{run.29} parent=1 // loop_footer
      %s16 = sadd.s32 1, %s12
    $region7: #{run.29} parent=1 // loop_footer_branch
      %11 = sbr.rel target = $region3
    $region8: #{run.29} parent=1 // loop_exit
      _
    %342 = vsyncpa [#allocation3], 1
    %s343 = scalar_lea.sflag [#allocation3], 1
    %344 = vsyncpa %s343, 1

// kernel: run.26
$region0: #{run.26}
  #allocation0 [shape = 'u32[]', space=smem, size = 0x4, offset = 0x4, fixed_abs, tag = 'smem constant byte address 0x4 - core index']
  #allocation1 [shape = 'u32[144,128]{1,0:T(1,128)}', space=vmem, size = 0x12000, scoped, tag = 'internal scratch']
  %s0 = inlined_call_operand.vmem [shape: bf16[128,1152], index: 0, kind: input, shape index: {}]
  %s1 = inlined_call_operand.vmem [shape: bf16[1152,128], index: 1, kind: input, shape index: {}]
  %s2 = inlined_call_operand.vmem [shape: f32[1,128], index: 2, kind: input, shape index: {}]
  %s3 = inlined_call_operand.vmem [shape: f32[1,128], index: 3, kind: input, shape index: {}]
  %s4 = inlined_call_operand.vmem [shape: bf16[128,128], index: 4, kind: output, shape index: {}]
  %s5 = sld [smem:[#allocation0]]
  $region49: #{run.26} parent=0
    _
  %s7 = ssub.s32 1, %s5
  %s8 = scalar_select 0, %s7, %s5
  loop: start=0, step=1, limit=4
  $region2: #{run.26} parent=0 // loop_pre_header
    _
  $region3: #{run.26} parent=0 // loop_header
    %s10 = sphi 0, %s14
    %p11 = scmp.ge.s32.totalorder %s10, 4
    %s17 = sphi 0, %s29
    %s18 = sphi 0, %s25
    %s19 = sphi 0, %s17
    %s20 = sphi 0, %s18
    %s21 = sphi 0, %s19
    %s22 = sphi 0, %s20
    %s32 = sphi 0, %s34
    %s35 = sphi 0, %s32
    %s36 = sphi 0, %s35
    %s52 = sphi 0, %s36
    %s58 = sphi 0, %s60
    %s61 = sphi 0, %s58
    %s62 = sphi 0, %s61
    %s78 = sphi 0, %s62
    %s84 = sphi 0, %s86
    %s87 = sphi 0, %s84
    %s88 = sphi 0, %s87
    %s104 = sphi 0, %s88
    %s110 = sphi 0, %s112
    %s113 = sphi 0, %s110
    %s114 = sphi 0, %s113
    %s130 = sphi 0, %s114
    %s138 = sphi 0, %s140
    %s141 = sphi 0, %s138
    %s142 = sphi 0, %s141
    %s158 = sphi 0, %s142
  $region4: #{run.26} parent=0 // loop_header_branch
    %13 = sbr.rel (%p11) target = $region8
  $region5: #{run.26} parent=0 // loop_body
    %s15 = ssub.s32 %s10, 1
    %s16 = ssub.s32 %s10, 2
    %s23 = sadd.s32 1, %s18
    %p24 = scmp.ge.s32.totalorder %s23, 1
    %s25 = scalar_select %p24, 0, %s23
    %s26 = sadd.s32 1, %s17
    %s27 = scalar_select %p24, %s26, %s17
    %p28 = scmp.ge.s32.totalorder %s27, 2
    %s29 = scalar_select %p28, 0, %s27
    %s30 = ssub.s32 %s17, %s29
    %p31 = scmp.eq.s32.totalorder %s30, 0
    %s33 = sadd.s32 %s32, 1
    %s34 = scalar_select %p31, %s32, %s33
    %p37 = pneg %p31
    %p38 = scmp.eq.s32.totalorder %s10, 1
    %p39 = por %p37, %p38
    %p40 = scmp.ne.s32.totalorder %s32, %s35
    %p41 = scmp.eq.s32.totalorder %s10, 0
    %p42 = por %p40, %p41
    %p43 = scmp.ne.s32.totalorder %s32, %s35
    %p44 = scmp.eq.s32.totalorder %s15, 1
    %p45 = por %p43, %p44
    %p46 = scmp.ne.s32.totalorder %s35, %s36
    %p47 = scmp.eq.s32.totalorder %s15, 0
    %p48 = por %p46, %p47
    %p49 = scmp.ne.s32.totalorder %s35, %s36
    %p50 = scmp.eq.s32.totalorder %s16, 1
    %p51 = por %p49, %p50
    %p53 = scmp.ne.s32.totalorder %s36, %s52
    %p54 = scmp.eq.s32.totalorder %s16, 0
    %p55 = por %p53, %p54
    %s56 = ssub.s32 %s18, %s25
    %p57 = scmp.eq.s32.totalorder %s56, 0
    %s59 = sadd.s32 %s58, 1
    %s60 = scalar_select %p57, %s58, %s59
    %p63 = pneg %p57
    %p64 = scmp.eq.s32.totalorder %s10, 1
    %p65 = por %p63, %p64
    %p66 = scmp.ne.s32.totalorder %s58, %s61
    %p67 = scmp.eq.s32.totalorder %s10, 0
    %p68 = por %p66, %p67
    %p69 = scmp.ne.s32.totalorder %s58, %s61
    %p70 = scmp.eq.s32.totalorder %s15, 1
    %p71 = por %p69, %p70
    %p72 = scmp.ne.s32.totalorder %s61, %s62
    %p73 = scmp.eq.s32.totalorder %s15, 0
    %p74 = por %p72, %p73
    %p75 = scmp.ne.s32.totalorder %s61, %s62
    %p76 = scmp.eq.s32.totalorder %s16, 1
    %p77 = por %p75, %p76
    %p79 = scmp.ne.s32.totalorder %s62, %s78
    %p80 = scmp.eq.s32.totalorder %s16, 0
    %p81 = por %p79, %p80
    %s82 = ssub.s32 %s18, %s25
    %p83 = scmp.eq.s32.totalorder %s82, 0
    %s85 = sadd.s32 %s84, 1
    %s86 = scalar_select %p83, %s84, %s85
    %p89 = pneg %p83
    %p90 = scmp.eq.s32.totalorder %s10, 1
    %p91 = por %p89, %p90
    %p92 = scmp.ne.s32.totalorder %s84, %s87
    %p93 = scmp.eq.s32.totalorder %s10, 0
    %p94 = por %p92, %p93
    %p95 = scmp.ne.s32.totalorder %s84, %s87
    %p96 = scmp.eq.s32.totalorder %s15, 1
    %p97 = por %p95, %p96
    %p98 = scmp.ne.s32.totalorder %s87, %s88
    %p99 = scmp.eq.s32.totalorder %s15, 0
    %p100 = por %p98, %p99
    %p101 = scmp.ne.s32.totalorder %s87, %s88
    %p102 = scmp.eq.s32.totalorder %s16, 1
    %p103 = por %p101, %p102
    %p105 = scmp.ne.s32.totalorder %s88, %s104
    %p106 = scmp.eq.s32.totalorder %s16, 0
    %p107 = por %p105, %p106
    %s108 = ssub.s32 %s18, %s25
    %p109 = scmp.eq.s32.totalorder %s108, 0
    %s111 = sadd.s32 %s110, 1
    %s112 = scalar_select %p109, %s110, %s111
    %p115 = pneg %p109
    %p116 = scmp.eq.s32.totalorder %s10, 1
    %p117 = por %p115, %p116
    %p118 = scmp.ne.s32.totalorder %s110, %s113
    %p119 = scmp.eq.s32.totalorder %s10, 0
    %p120 = por %p118, %p119
    %p121 = scmp.ne.s32.totalorder %s110, %s113
    %p122 = scmp.eq.s32.totalorder %s15, 1
    %p123 = por %p121, %p122
    %p124 = scmp.ne.s32.totalorder %s113, %s114
    %p125 = scmp.eq.s32.totalorder %s15, 0
    %p126 = por %p124, %p125
    %p127 = scmp.ne.s32.totalorder %s113, %s114
    %p128 = scmp.eq.s32.totalorder %s16, 1
    %p129 = por %p127, %p128
    %p131 = scmp.ne.s32.totalorder %s114, %s130
    %p132 = scmp.eq.s32.totalorder %s16, 0
    %p133 = por %p131, %p132
    %s134 = ssub.s32 %s17, %s29
    %s135 = ssub.s32 %s18, %s25
    %s136 = sor.u32 %s134, %s135
    %p137 = scmp.eq.s32.totalorder %s136, 0
    %s139 = sadd.s32 %s138, 1
    %s140 = scalar_select %p137, %s138, %s139
    %p143 = pneg %p137
    %p144 = scmp.eq.s32.totalorder %s10, 1
    %p145 = por %p143, %p144
    %p146 = scmp.ne.s32.totalorder %s138, %s141
    %p147 = scmp.eq.s32.totalorder %s10, 0
    %p148 = por %p146, %p147
    %p149 = scmp.ne.s32.totalorder %s138, %s141
    %p150 = scmp.eq.s32.totalorder %s15, 1
    %p151 = por %p149, %p150
    %p152 = scmp.ne.s32.totalorder %s141, %s142
    %p153 = scmp.eq.s32.totalorder %s15, 0
    %p154 = por %p152, %p153
    %p155 = scmp.ne.s32.totalorder %s141, %s142
    %p156 = scmp.eq.s32.totalorder %s16, 1
    %p157 = por %p155, %p156
    %p159 = scmp.ne.s32.totalorder %s142, %s158
    %p160 = scmp.eq.s32.totalorder %s16, 0
    %p161 = por %p159, %p160
    %p162 = scmp.le.s32.totalorder 1, %s10
    %p163 = scmp.lt.s32.totalorder %s10, 3
    %p164 = pnand %p162, %p163
    %p165 = pneg %p164
    // Predicated region
    $region9: #{run.26} parent=5 // pred_check
      _
    $region10: #{run.26} parent=5 // pred_check_branch
      %167 = sbr.rel (%p164) target = $region12
    $region11: #{run.26} parent=5 // pred_region
      %s168 = ssub.s32 %s10, 1
      // Predicated region
      $region13: #{run.26} parent=11 // pred_check
        %p169 = pneg %p74
      $region14: #{run.26} parent=11 // pred_check_branch
        %171 = sbr.rel (%p169) target = $region16
      $region15: #{run.26} parent=11 // pred_region
        %p172 = scmp.lt.s32.totalorder %s20, 0
        %s173 = scalar_select %p172, %s20, 0
        %s174 = smul.addr %s173, 4
        %s175 = scalar_lea.vmem %s1, %s174
      $region16: #{run.26} parent=11 // pred_fallthru
        _
      // Predicated region
      $region17: #{run.26} parent=11 // pred_check
        %p176 = pneg %p100
      $region18: #{run.26} parent=11 // pred_check_branch
        %178 = sbr.rel (%p176) target = $region20
      $region19: #{run.26} parent=11 // pred_region
        %p179 = scmp.lt.s32.totalorder %s20, 0
        %s180 = scalar_select %p179, %s20, 0
        %s181 = scalar_lea.vmem %s2, %s180
      $region20: #{run.26} parent=11 // pred_fallthru
        _
      // Predicated region
      $region21: #{run.26} parent=11 // pred_check
        %p182 = pneg %p126
      $region22: #{run.26} parent=11 // pred_check_branch
        %184 = sbr.rel (%p182) target = $region24
      $region23: #{run.26} parent=11 // pred_region
        %p185 = scmp.lt.s32.totalorder %s20, 0
        %s186 = scalar_select %p185, %s20, 0
        %s187 = scalar_lea.vmem %s3, %s186
      $region24: #{run.26} parent=11 // pred_fallthru
        _
    $region12: #{run.26} parent=5 // pred_fallthru
      _
    %p188 = scmp.lt.s32.totalorder %s10, 2
    // Predicated region
    $region25: #{run.26} parent=5 // pred_check
      %p189 = pneg %p188
    $region26: #{run.26} parent=5 // pred_check_branch
      %191 = sbr.rel (%p189) target = $region28
    $region27: #{run.26} parent=5 // pred_region
      // Predicated region
      $region29: #{run.26} parent=27 // pred_check
        %p192 = pneg %p42
      $region30: #{run.26} parent=27 // pred_check_branch
        %194 = sbr.rel (%p192) target = $region32
      $region31: #{run.26} parent=27 // pred_region
        %s195 = smul.u32 8, %s17
        %p196 = scmp.lt.s32.totalorder %s195, 15
        %s197 = scalar_select %p196, %s195, 15
        %s198 = smul.addr %s197, 9
        %s199 = smul.addr %s198, 4
        %s200 = scalar_lea.vmem %s0, %s199
        %s201 = smul.u32 8, %s17
      $region32: #{run.26} parent=27 // pred_fallthru
        _
    $region28: #{run.26} parent=5 // pred_fallthru
      _
    %p202 = scmp.le.s32.totalorder 1, %s10
    %p203 = scmp.lt.s32.totalorder %s10, 3
    %p204 = pnand %p202, %p203
    %p205 = pneg %p204
    // Predicated region
    $region33: #{run.26} parent=5 // pred_check
      _
    $region34: #{run.26} parent=5 // pred_check_branch
      %207 = sbr.rel (%p204) target = $region36
    $region35: #{run.26} parent=5 // pred_region
      %s208 = ssub.s32 %s10, 1
      %s209 = smul.u32 8, %s19
      %p210 = scmp.lt.s32.totalorder %s209, 15
      %s211 = scalar_select %p210, %s209, 15
      %s212 = smul.addr %s211, 9
      %s213 = smul.addr %s212, 4
      %s214 = scalar_lea.vmem %s0, %s213
      %p215 = pneg %p48
      %p216 = pneg %p45
      %p217 = scmp.lt.s32.totalorder %s20, 0
      %s218 = scalar_select %p217, %s20, 0
      %s219 = smul.addr %s218, 4
      %s220 = scalar_lea.vmem %s1, %s219
      %p221 = pneg %p74
      %p222 = pneg %p71
      %p223 = scmp.lt.s32.totalorder %s20, 0
      %s224 = scalar_select %p223, %s20, 0
      %s225 = scalar_lea.vmem %s2, %s224
      %p226 = pneg %p100
      %p227 = pneg %p97
      %p228 = scmp.lt.s32.totalorder %s20, 0
      %s229 = scalar_select %p228, %s20, 0
      %s230 = scalar_lea.vmem %s3, %s229
      %p231 = pneg %p126
      %p232 = pneg %p123
      %p233 = pneg %p154
      %p234 = pneg %p151
      %s235 = smul.u32 8, %s19
      %p236 = scmp.lt.s32.totalorder %s235, 15
      %s237 = scalar_select %p236, %s235, 15
      %p238 = scmp.lt.s32.totalorder %s20, 0
      %s239 = scalar_select %p238, %s20, 0
      %s240 = sadd.s32 %s239, %s237
      %s241 = smul.addr %s240, 4
      %s242 = scalar_lea.vmem %s4, %s241
      %s243 = smul.u32 8, %s19
      %p244 = scmp.lt.s32.totalorder %s243, 15
      %s245 = scalar_select %p244, %s243, 15
      %s246 = smul.addr %s245, 9
      %s247 = smul.addr %s246, 4
      %s248 = scalar_lea.vmem %s0, %s247
      %s249 = smul.u32 8, %s19
      %p250 = scmp.lt.s32.totalorder %s20, 0
      %s251 = scalar_select %p250, %s20, 0
      %s252 = smul.addr %s251, 4
      %s253 = scalar_lea.vmem %s1, %s252
      %p254 = scmp.lt.s32.totalorder %s20, 0
      %s255 = scalar_select %p254, %s20, 0
      %s256 = scalar_lea.vmem %s2, %s255
      %p257 = scmp.lt.s32.totalorder %s20, 0
      %s258 = scalar_select %p257, %s20, 0
      %s259 = scalar_lea.vmem %s3, %s258
      %s260 = smul.u32 8, %s19
      %p261 = scmp.lt.s32.totalorder %s260, 15
      %s262 = scalar_select %p261, %s260, 15
      %p263 = scmp.lt.s32.totalorder %s20, 0
      %s264 = scalar_select %p263, %s20, 0
      %s265 = sadd.s32 %s264, %s262
      %s266 = smul.addr %s265, 4
      %s267 = scalar_lea.vmem %s4, %s266
      %s268 = smul.u32 8, %s19
      %v270 = vld [vmem:[%s248] sm:$0xff]
      %v271 = vld [vmem:[%s248 + $0x8] sm:$0xff]
      %v272 = vld [vmem:[%s248 + $0x10] sm:$0xff]
      %v273 = vld [vmem:[%s248 + $0x18] sm:$0xff]
      %v274 = vld [vmem:[%s248 + $0x20] sm:$0xf]
      %v275 = vld [vmem:[%s248 + $0x24] sm:$0xff]
      %v276 = vld [vmem:[%s248 + $0x2c] sm:$0xff]
      %v277 = vld [vmem:[%s248 + $0x34] sm:$0xff]
      %v278 = vld [vmem:[%s248 + $0x3c] sm:$0xff]
      %v279 = vld [vmem:[%s248 + $0x44] sm:$0xf]
      %v280 = vld [vmem:[%s248 + $0x48] sm:$0xff]
      %v281 = vld [vmem:[%s248 + $0x50] sm:$0xff]
      %v282 = vld [vmem:[%s248 + $0x58] sm:$0xff]
      %v283 = vld [vmem:[%s248 + $0x60] sm:$0xff]
      %v284 = vld [vmem:[%s248 + $0x68] sm:$0xf]
      %v285 = vld [vmem:[%s248 + $0x6c] sm:$0xff]
      %v286 = vld [vmem:[%s248 + $0x74] sm:$0xff]
      %v287 = vld [vmem:[%s248 + $0x7c] sm:$0xff]
      %v288 = vld [vmem:[%s248 + $0x84] sm:$0xff]
      %v289 = vld [vmem:[%s248 + $0x8c] sm:$0xf]
      %v290 = vld [vmem:[%s248 + $0x90] sm:$0xff]
      %v291 = vld [vmem:[%s248 + $0x98] sm:$0xff]
      %v292 = vld [vmem:[%s248 + $0xa0] sm:$0xff]
      %v293 = vld [vmem:[%s248 + $0xa8] sm:$0xff]
      %v294 = vld [vmem:[%s248 + $0xb0] sm:$0xf]
      %v295 = vld [vmem:[%s248 + $0xb4] sm:$0xff]
      %v296 = vld [vmem:[%s248 + $0xbc] sm:$0xff]
      %v297 = vld [vmem:[%s248 + $0xc4] sm:$0xff]
      %v298 = vld [vmem:[%s248 + $0xcc] sm:$0xff]
      %v299 = vld [vmem:[%s248 + $0xd4] sm:$0xf]
      %v300 = vld [vmem:[%s248 + $0xd8] sm:$0xff]
      %v301 = vld [vmem:[%s248 + $0xe0] sm:$0xff]
      %v302 = vld [vmem:[%s248 + $0xe8] sm:$0xff]
      %v303 = vld [vmem:[%s248 + $0xf0] sm:$0xff]
      %v304 = vld [vmem:[%s248 + $0xf8] sm:$0xf]
      %v305 = vld [vmem:[%s248 + $0xfc] sm:$0xff]
      %v306 = vld [vmem:[%s248 + $0x104] sm:$0xff]
      %v307 = vld [vmem:[%s248 + $0x10c] sm:$0xff]
      %v308 = vld [vmem:[%s248 + $0x114] sm:$0xff]
      %v309 = vld [vmem:[%s248 + $0x11c] sm:$0xf]
      %v310 = vld [vmem:[%s253] sm:$0xf]
      %v311 = vld [vmem:[%s253 + $0x4] sm:$0xf]
      %v312 = vld [vmem:[%s253 + $0x8] sm:$0xf]
      %v313 = vld [vmem:[%s253 + $0xc] sm:$0xf]
      %v314 = vld [vmem:[%s253 + $0x10] sm:$0xf]
      %v315 = vld [vmem:[%s253 + $0x14] sm:$0xf]
      %v316 = vld [vmem:[%s253 + $0x18] sm:$0xf]
      %v317 = vld [vmem:[%s253 + $0x1c] sm:$0xf]
      %v318 = vld [vmem:[%s253 + $0x20] sm:$0xf]
      %v319 = vld [vmem:[%s253 + $0x24] sm:$0xf]
      %v320 = vld [vmem:[%s253 + $0x28] sm:$0xf]
      %v321 = vld [vmem:[%s253 + $0x2c] sm:$0xf]
      %v322 = vld [vmem:[%s253 + $0x30] sm:$0xf]
      %v323 = vld [vmem:[%s253 + $0x34] sm:$0xf]
      %v324 = vld [vmem:[%s253 + $0x38] sm:$0xf]
      %v325 = vld [vmem:[%s253 + $0x3c] sm:$0xf]
      %v326 = vld [vmem:[%s253 + $0x40] sm:$0xf]
      %v327 = vld [vmem:[%s253 + $0x44] sm:$0xf]
      %v328 = vld [vmem:[%s253 + $0x48] sm:$0xf]
      %v329 = vld [vmem:[%s253 + $0x4c] sm:$0xf]
      %v330 = vld [vmem:[%s253 + $0x50] sm:$0xf]
      %v331 = vld [vmem:[%s253 + $0x54] sm:$0xf]
      %v332 = vld [vmem:[%s253 + $0x58] sm:$0xf]
      %v333 = vld [vmem:[%s253 + $0x5c] sm:$0xf]
      %v334 = vld [vmem:[%s253 + $0x60] sm:$0xf]
      %v335 = vld [vmem:[%s253 + $0x64] sm:$0xf]
      %v336 = vld [vmem:[%s253 + $0x68] sm:$0xf]
      %v337 = vld [vmem:[%s253 + $0x6c] sm:$0xf]
      %v338 = vld [vmem:[%s253 + $0x70] sm:$0xf]
      %v339 = vld [vmem:[%s253 + $0x74] sm:$0xf]
      %v340 = vld [vmem:[%s253 + $0x78] sm:$0xf]
      %v341 = vld [vmem:[%s253 + $0x7c] sm:$0xf]
      %v342 = vld [vmem:[%s253 + $0x80] sm:$0xf]
      %v343 = vld [vmem:[%s253 + $0x84] sm:$0xf]
      %v344 = vld [vmem:[%s253 + $0x88] sm:$0xf]
      %v345 = vld [vmem:[%s253 + $0x8c] sm:$0xf]
      %v346 = vld [vmem:[%s253 + $0x90] sm:$0xf]
      %v347 = vld [vmem:[%s253 + $0x94] sm:$0xf]
      %v348 = vld [vmem:[%s253 + $0x98] sm:$0xf]
      %v349 = vld [vmem:[%s253 + $0x9c] sm:$0xf]
      %v350 = vld [vmem:[%s253 + $0xa0] sm:$0xf]
      %v351 = vld [vmem:[%s253 + $0xa4] sm:$0xf]
      %v352 = vld [vmem:[%s253 + $0xa8] sm:$0xf]
      %v353 = vld [vmem:[%s253 + $0xac] sm:$0xf]
      %v354 = vld [vmem:[%s253 + $0xb0] sm:$0xf]
      %v355 = vld [vmem:[%s253 + $0xb4] sm:$0xf]
      %v356 = vld [vmem:[%s253 + $0xb8] sm:$0xf]
      %v357 = vld [vmem:[%s253 + $0xbc] sm:$0xf]
      %v358 = vld [vmem:[%s253 + $0xc0] sm:$0xf]
      %v359 = vld [vmem:[%s253 + $0xc4] sm:$0xf]
      %v360 = vld [vmem:[%s253 + $0xc8] sm:$0xf]
      %v361 = vld [vmem:[%s253 + $0xcc] sm:$0xf]
      %v362 = vld [vmem:[%s253 + $0xd0] sm:$0xf]
      %v363 = vld [vmem:[%s253 + $0xd4] sm:$0xf]
      %v364 = vld [vmem:[%s253 + $0xd8] sm:$0xf]
      %v365 = vld [vmem:[%s253 + $0xdc] sm:$0xf]
      %v366 = vld [vmem:[%s253 + $0xe0] sm:$0xf]
      %v367 = vld [vmem:[%s253 + $0xe4] sm:$0xf]
      %v368 = vld [vmem:[%s253 + $0xe8] sm:$0xf]
      %v369 = vld [vmem:[%s253 + $0xec] sm:$0xf]
      %v370 = vld [vmem:[%s253 + $0xf0] sm:$0xf]
      %v371 = vld [vmem:[%s253 + $0xf4] sm:$0xf]
      %v372 = vld [vmem:[%s253 + $0xf8] sm:$0xf]
      %v373 = vld [vmem:[%s253 + $0xfc] sm:$0xf]
      %v374 = vld [vmem:[%s253 + $0x100] sm:$0xf]
      %v375 = vld [vmem:[%s253 + $0x104] sm:$0xf]
      %v376 = vld [vmem:[%s253 + $0x108] sm:$0xf]
      %v377 = vld [vmem:[%s253 + $0x10c] sm:$0xf]
      %v378 = vld [vmem:[%s253 + $0x110] sm:$0xf]
      %v379 = vld [vmem:[%s253 + $0x114] sm:$0xf]
      %v380 = vld [vmem:[%s253 + $0x118] sm:$0xf]
      %v381 = vld [vmem:[%s253 + $0x11c] sm:$0xf]
      %v382 = vld [vmem:[%s253 + $0x120] sm:$0xf]
      %v383 = vld [vmem:[%s253 + $0x124] sm:$0xf]
      %v384 = vld [vmem:[%s253 + $0x128] sm:$0xf]
      %v385 = vld [vmem:[%s253 + $0x12c] sm:$0xf]
      %v386 = vld [vmem:[%s253 + $0x130] sm:$0xf]
      %v387 = vld [vmem:[%s253 + $0x134] sm:$0xf]
      %v388 = vld [vmem:[%s253 + $0x138] sm:$0xf]
      %v389 = vld [vmem:[%s253 + $0x13c] sm:$0xf]
      %v390 = vld [vmem:[%s253 + $0x140] sm:$0xf]
      %v391 = vld [vmem:[%s253 + $0x144] sm:$0xf]
      %v392 = vld [vmem:[%s253 + $0x148] sm:$0xf]
      %v393 = vld [vmem:[%s253 + $0x14c] sm:$0xf]
      %v394 = vld [vmem:[%s253 + $0x150] sm:$0xf]
      %v395 = vld [vmem:[%s253 + $0x154] sm:$0xf]
      %v396 = vld [vmem:[%s253 + $0x158] sm:$0xf]
      %v397 = vld [vmem:[%s253 + $0x15c] sm:$0xf]
      %v398 = vld [vmem:[%s253 + $0x160] sm:$0xf]
      %v399 = vld [vmem:[%s253 + $0x164] sm:$0xf]
      %v400 = vld [vmem:[%s253 + $0x168] sm:$0xf]
      %v401 = vld [vmem:[%s253 + $0x16c] sm:$0xf]
      %v402 = vld [vmem:[%s253 + $0x170] sm:$0xf]
      %v403 = vld [vmem:[%s253 + $0x174] sm:$0xf]
      %v404 = vld [vmem:[%s253 + $0x178] sm:$0xf]
      %v405 = vld [vmem:[%s253 + $0x17c] sm:$0xf]
      %v406 = vld [vmem:[%s253 + $0x180] sm:$0xf]
      %v407 = vld [vmem:[%s253 + $0x184] sm:$0xf]
      %v408 = vld [vmem:[%s253 + $0x188] sm:$0xf]
      %v409 = vld [vmem:[%s253 + $0x18c] sm:$0xf]
      %v410 = vld [vmem:[%s253 + $0x190] sm:$0xf]
      %v411 = vld [vmem:[%s253 + $0x194] sm:$0xf]
      %v412 = vld [vmem:[%s253 + $0x198] sm:$0xf]
      %v413 = vld [vmem:[%s253 + $0x19c] sm:$0xf]
      %v414 = vld [vmem:[%s253 + $0x1a0] sm:$0xf]
      %v415 = vld [vmem:[%s253 + $0x1a4] sm:$0xf]
      %v416 = vld [vmem:[%s253 + $0x1a8] sm:$0xf]
      %v417 = vld [vmem:[%s253 + $0x1ac] sm:$0xf]
      %v418 = vld [vmem:[%s253 + $0x1b0] sm:$0xf]
      %v419 = vld [vmem:[%s253 + $0x1b4] sm:$0xf]
      %v420 = vld [vmem:[%s253 + $0x1b8] sm:$0xf]
      %v421 = vld [vmem:[%s253 + $0x1bc] sm:$0xf]
      %v422 = vld [vmem:[%s253 + $0x1c0] sm:$0xf]
      %v423 = vld [vmem:[%s253 + $0x1c4] sm:$0xf]
      %v424 = vld [vmem:[%s253 + $0x1c8] sm:$0xf]
      %v425 = vld [vmem:[%s253 + $0x1cc] sm:$0xf]
      %v426 = vld [vmem:[%s253 + $0x1d0] sm:$0xf]
      %v427 = vld [vmem:[%s253 + $0x1d4] sm:$0xf]
      %v428 = vld [vmem:[%s253 + $0x1d8] sm:$0xf]
      %v429 = vld [vmem:[%s253 + $0x1dc] sm:$0xf]
      %v430 = vld [vmem:[%s253 + $0x1e0] sm:$0xf]
      %v431 = vld [vmem:[%s253 + $0x1e4] sm:$0xf]
      %v432 = vld [vmem:[%s253 + $0x1e8] sm:$0xf]
      %v433 = vld [vmem:[%s253 + $0x1ec] sm:$0xf]
      %v434 = vld [vmem:[%s253 + $0x1f0] sm:$0xf]
      %v435 = vld [vmem:[%s253 + $0x1f4] sm:$0xf]
      %v436 = vld [vmem:[%s253 + $0x1f8] sm:$0xf]
      %v437 = vld [vmem:[%s253 + $0x1fc] sm:$0xf]
      %v438 = vld [vmem:[%s253 + $0x200] sm:$0xf]
      %v439 = vld [vmem:[%s253 + $0x204] sm:$0xf]
      %v440 = vld [vmem:[%s253 + $0x208] sm:$0xf]
      %v441 = vld [vmem:[%s253 + $0x20c] sm:$0xf]
      %v442 = vld [vmem:[%s253 + $0x210] sm:$0xf]
      %v443 = vld [vmem:[%s253 + $0x214] sm:$0xf]
      %v444 = vld [vmem:[%s253 + $0x218] sm:$0xf]
      %v445 = vld [vmem:[%s253 + $0x21c] sm:$0xf]
      %v446 = vld [vmem:[%s253 + $0x220] sm:$0xf]
      %v447 = vld [vmem:[%s253 + $0x224] sm:$0xf]
      %v448 = vld [vmem:[%s253 + $0x228] sm:$0xf]
      %v449 = vld [vmem:[%s253 + $0x22c] sm:$0xf]
      %v450 = vld [vmem:[%s253 + $0x230] sm:$0xf]
      %v451 = vld [vmem:[%s253 + $0x234] sm:$0xf]
      %v452 = vld [vmem:[%s253 + $0x238] sm:$0xf]
      %v453 = vld [vmem:[%s253 + $0x23c] sm:$0xf]
      %v494 = vunpack.c.l.b16 %v270
      %v495 = vunpack.c.h.b16 %v270
      %v496 = vunpack.c.l.b16 %v271
      %v497 = vunpack.c.h.b16 %v271
      %v498 = vunpack.c.l.b16 %v272
      %v499 = vunpack.c.h.b16 %v272
      %v500 = vunpack.c.l.b16 %v273
      %v501 = vunpack.c.h.b16 %v273
      %v502 = vunpack.c.l.b16 %v274
      %v503 = vunpack.c.l.b16 %v275
      %v504 = vunpack.c.h.b16 %v275
      %v505 = vunpack.c.l.b16 %v276
      %v506 = vunpack.c.h.b16 %v276
      %v507 = vunpack.c.l.b16 %v277
      %v508 = vunpack.c.h.b16 %v277
      %v509 = vunpack.c.l.b16 %v278
      %v510 = vunpack.c.h.b16 %v278
      %v511 = vunpack.c.l.b16 %v279
      %v512 = vunpack.c.l.b16 %v280
      %v513 = vunpack.c.h.b16 %v280
      %v514 = vunpack.c.l.b16 %v281
      %v515 = vunpack.c.h.b16 %v281
      %v516 = vunpack.c.l.b16 %v282
      %v517 = vunpack.c.h.b16 %v282
      %v518 = vunpack.c.l.b16 %v283
      %v519 = vunpack.c.h.b16 %v283
      %v520 = vunpack.c.l.b16 %v284
      %v521 = vunpack.c.l.b16 %v285
      %v522 = vunpack.c.h.b16 %v285
      %v523 = vunpack.c.l.b16 %v286
      %v524 = vunpack.c.h.b16 %v286
      %v525 = vunpack.c.l.b16 %v287
      %v526 = vunpack.c.h.b16 %v287
      %v527 = vunpack.c.l.b16 %v288
      %v528 = vunpack.c.h.b16 %v288
      %v529 = vunpack.c.l.b16 %v289
      %v530 = vunpack.c.l.b16 %v290
      %v531 = vunpack.c.h.b16 %v290
      %v532 = vunpack.c.l.b16 %v291
      %v533 = vunpack.c.h.b16 %v291
      %v534 = vunpack.c.l.b16 %v292
      %v535 = vunpack.c.h.b16 %v292
      %v536 = vunpack.c.l.b16 %v293
      %v537 = vunpack.c.h.b16 %v293
      %v538 = vunpack.c.l.b16 %v294
      %v539 = vunpack.c.l.b16 %v295
      %v540 = vunpack.c.h.b16 %v295
      %v541 = vunpack.c.l.b16 %v296
      %v542 = vunpack.c.h.b16 %v296
      %v543 = vunpack.c.l.b16 %v297
      %v544 = vunpack.c.h.b16 %v297
      %v545 = vunpack.c.l.b16 %v298
      %v546 = vunpack.c.h.b16 %v298
      %v547 = vunpack.c.l.b16 %v299
      %v548 = vunpack.c.l.b16 %v300
      %v549 = vunpack.c.h.b16 %v300
      %v550 = vunpack.c.l.b16 %v301
      %v551 = vunpack.c.h.b16 %v301
      %v552 = vunpack.c.l.b16 %v302
      %v553 = vunpack.c.h.b16 %v302
      %v554 = vunpack.c.l.b16 %v303
      %v555 = vunpack.c.h.b16 %v303
      %v556 = vunpack.c.l.b16 %v304
      %v557 = vunpack.c.l.b16 %v305
      %v558 = vunpack.c.h.b16 %v305
      %v559 = vunpack.c.l.b16 %v306
      %v560 = vunpack.c.h.b16 %v306
      %v561 = vunpack.c.l.b16 %v307
      %v562 = vunpack.c.h.b16 %v307
      %v563 = vunpack.c.l.b16 %v308
      %v564 = vunpack.c.h.b16 %v308
      %v565 = vunpack.c.l.b16 %v309
      %v566 = vpack.c.b16 %v503, %v494
      %v567 = vpack.c.b16 %v504, %v495
      %v568 = vpack.c.b16 %v505, %v496
      %v569 = vpack.c.b16 %v506, %v497
      %v570 = vpack.c.b16 %v507, %v498
      %v571 = vpack.c.b16 %v508, %v499
      %v572 = vpack.c.b16 %v509, %v500
      %v573 = vpack.c.b16 %v510, %v501
      %v574 = vpack.c.b16 %v511, %v502
      %v575 = vpack.c.b16 %v521, %v512
      %v576 = vpack.c.b16 %v522, %v513
      %v577 = vpack.c.b16 %v523, %v514
      %v578 = vpack.c.b16 %v524, %v515
      %v579 = vpack.c.b16 %v525, %v516
      %v580 = vpack.c.b16 %v526, %v517
      %v581 = vpack.c.b16 %v527, %v518
      %v582 = vpack.c.b16 %v528, %v519
      %v583 = vpack.c.b16 %v529, %v520
      %v584 = vpack.c.b16 %v539, %v530
      %v585 = vpack.c.b16 %v540, %v531
      %v586 = vpack.c.b16 %v541, %v532
      %v587 = vpack.c.b16 %v542, %v533
      %v588 = vpack.c.b16 %v543, %v534
      %v589 = vpack.c.b16 %v544, %v535
      %v590 = vpack.c.b16 %v545, %v536
      %v591 = vpack.c.b16 %v546, %v537
      %v592 = vpack.c.b16 %v547, %v538
      %v593 = vpack.c.b16 %v557, %v548
      %v594 = vpack.c.b16 %v558, %v549
      %v595 = vpack.c.b16 %v559, %v550
      %v596 = vpack.c.b16 %v560, %v551
      %v597 = vpack.c.b16 %v561, %v552
      %v598 = vpack.c.b16 %v562, %v553
      %v599 = vpack.c.b16 %v563, %v554
      %v600 = vpack.c.b16 %v564, %v555
      %v601 = vpack.c.b16 %v565, %v556
      %v782 = vunpack.c.l.b16 %v310
      %v783 = vunpack.c.l.b16 %v311
      %v784 = vunpack.c.l.b16 %v312
      %v785 = vunpack.c.l.b16 %v313
      %v786 = vunpack.c.l.b16 %v314
      %v787 = vunpack.c.l.b16 %v315
      %v788 = vunpack.c.l.b16 %v316
      %v789 = vunpack.c.l.b16 %v317
      %v790 = vunpack.c.l.b16 %v318
      %v791 = vunpack.c.l.b16 %v319
      %v792 = vunpack.c.l.b16 %v320
      %v793 = vunpack.c.l.b16 %v321
      %v794 = vunpack.c.l.b16 %v322
      %v795 = vunpack.c.l.b16 %v323
      %v796 = vunpack.c.l.b16 %v324
      %v797 = vunpack.c.l.b16 %v325
      %v798 = vunpack.c.l.b16 %v326
      %v799 = vunpack.c.l.b16 %v327
      %v800 = vunpack.c.l.b16 %v328
      %v801 = vunpack.c.l.b16 %v329
      %v802 = vunpack.c.l.b16 %v330
      %v803 = vunpack.c.l.b16 %v331
      %v804 = vunpack.c.l.b16 %v332
      %v805 = vunpack.c.l.b16 %v333
      %v806 = vunpack.c.l.b16 %v334
      %v807 = vunpack.c.l.b16 %v335
      %v808 = vunpack.c.l.b16 %v336
      %v809 = vunpack.c.l.b16 %v337
      %v810 = vunpack.c.l.b16 %v338
      %v811 = vunpack.c.l.b16 %v339
      %v812 = vunpack.c.l.b16 %v340
      %v813 = vunpack.c.l.b16 %v341
      %v814 = vunpack.c.l.b16 %v342
      %v815 = vunpack.c.l.b16 %v343
      %v816 = vunpack.c.l.b16 %v344
      %v817 = vunpack.c.l.b16 %v345
      %v818 = vunpack.c.l.b16 %v346
      %v819 = vunpack.c.l.b16 %v347
      %v820 = vunpack.c.l.b16 %v348
      %v821 = vunpack.c.l.b16 %v349
      %v822 = vunpack.c.l.b16 %v350
      %v823 = vunpack.c.l.b16 %v351
      %v824 = vunpack.c.l.b16 %v352
      %v825 = vunpack.c.l.b16 %v353
      %v826 = vunpack.c.l.b16 %v354
      %v827 = vunpack.c.l.b16 %v355
      %v828 = vunpack.c.l.b16 %v356
      %v829 = vunpack.c.l.b16 %v357
      %v830 = vunpack.c.l.b16 %v358
      %v831 = vunpack.c.l.b16 %v359
      %v832 = vunpack.c.l.b16 %v360
      %v833 = vunpack.c.l.b16 %v361
      %v834 = vunpack.c.l.b16 %v362
      %v835 = vunpack.c.l.b16 %v363
      %v836 = vunpack.c.l.b16 %v364
      %v837 = vunpack.c.l.b16 %v365
      %v838 = vunpack.c.l.b16 %v366
      %v839 = vunpack.c.l.b16 %v367
      %v840 = vunpack.c.l.b16 %v368
      %v841 = vunpack.c.l.b16 %v369
      %v842 = vunpack.c.l.b16 %v370
      %v843 = vunpack.c.l.b16 %v371
      %v844 = vunpack.c.l.b16 %v372
      %v845 = vunpack.c.l.b16 %v373
      %v846 = vunpack.c.l.b16 %v374
      %v847 = vunpack.c.l.b16 %v375
      %v848 = vunpack.c.l.b16 %v376
      %v849 = vunpack.c.l.b16 %v377
      %v850 = vunpack.c.l.b16 %v378
      %v851 = vunpack.c.l.b16 %v379
      %v852 = vunpack.c.l.b16 %v380
      %v853 = vunpack.c.l.b16 %v381
      %v854 = vunpack.c.l.b16 %v382
      %v855 = vunpack.c.l.b16 %v383
      %v856 = vunpack.c.l.b16 %v384
      %v857 = vunpack.c.l.b16 %v385
      %v858 = vunpack.c.l.b16 %v386
      %v859 = vunpack.c.l.b16 %v387
      %v860 = vunpack.c.l.b16 %v388
      %v861 = vunpack.c.l.b16 %v389
      %v862 = vunpack.c.l.b16 %v390
      %v863 = vunpack.c.l.b16 %v391
      %v864 = vunpack.c.l.b16 %v392
      %v865 = vunpack.c.l.b16 %v393
      %v866 = vunpack.c.l.b16 %v394
      %v867 = vunpack.c.l.b16 %v395
      %v868 = vunpack.c.l.b16 %v396
      %v869 = vunpack.c.l.b16 %v397
      %v870 = vunpack.c.l.b16 %v398
      %v871 = vunpack.c.l.b16 %v399
      %v872 = vunpack.c.l.b16 %v400
      %v873 = vunpack.c.l.b16 %v401
      %v874 = vunpack.c.l.b16 %v402
      %v875 = vunpack.c.l.b16 %v403
      %v876 = vunpack.c.l.b16 %v404
      %v877 = vunpack.c.l.b16 %v405
      %v878 = vunpack.c.l.b16 %v406
      %v879 = vunpack.c.l.b16 %v407
      %v880 = vunpack.c.l.b16 %v408
      %v881 = vunpack.c.l.b16 %v409
      %v882 = vunpack.c.l.b16 %v410
      %v883 = vunpack.c.l.b16 %v411
      %v884 = vunpack.c.l.b16 %v412
      %v885 = vunpack.c.l.b16 %v413
      %v886 = vunpack.c.l.b16 %v414
      %v887 = vunpack.c.l.b16 %v415
      %v888 = vunpack.c.l.b16 %v416
      %v889 = vunpack.c.l.b16 %v417
      %v890 = vunpack.c.l.b16 %v418
      %v891 = vunpack.c.l.b16 %v419
      %v892 = vunpack.c.l.b16 %v420
      %v893 = vunpack.c.l.b16 %v421
      %v894 = vunpack.c.l.b16 %v422
      %v895 = vunpack.c.l.b16 %v423
      %v896 = vunpack.c.l.b16 %v424
      %v897 = vunpack.c.l.b16 %v425
      %v898 = vunpack.c.l.b16 %v426
      %v899 = vunpack.c.l.b16 %v427
      %v900 = vunpack.c.l.b16 %v428
      %v901 = vunpack.c.l.b16 %v429
      %v902 = vunpack.c.l.b16 %v430
      %v903 = vunpack.c.l.b16 %v431
      %v904 = vunpack.c.l.b16 %v432
      %v905 = vunpack.c.l.b16 %v433
      %v906 = vunpack.c.l.b16 %v434
      %v907 = vunpack.c.l.b16 %v435
      %v908 = vunpack.c.l.b16 %v436
      %v909 = vunpack.c.l.b16 %v437
      %v910 = vunpack.c.l.b16 %v438
      %v911 = vunpack.c.l.b16 %v439
      %v912 = vunpack.c.l.b16 %v440
      %v913 = vunpack.c.l.b16 %v441
      %v914 = vunpack.c.l.b16 %v442
      %v915 = vunpack.c.l.b16 %v443
      %v916 = vunpack.c.l.b16 %v444
      %v917 = vunpack.c.l.b16 %v445
      %v918 = vunpack.c.l.b16 %v446
      %v919 = vunpack.c.l.b16 %v447
      %v920 = vunpack.c.l.b16 %v448
      %v921 = vunpack.c.l.b16 %v449
      %v922 = vunpack.c.l.b16 %v450
      %v923 = vunpack.c.l.b16 %v451
      %v924 = vunpack.c.l.b16 %v452
      %v925 = vunpack.c.l.b16 %v453
      %v926 = vpack.c.b16 %v783, %v782
      %v927 = vpack.c.b16 %v785, %v784
      %v928 = vpack.c.b16 %v787, %v786
      %v929 = vpack.c.b16 %v789, %v788
      %v930 = vpack.c.b16 %v791, %v790
      %v931 = vpack.c.b16 %v793, %v792
      %v932 = vpack.c.b16 %v795, %v794
      %v933 = vpack.c.b16 %v797, %v796
      %v934 = vpack.c.b16 %v799, %v798
      %v935 = vpack.c.b16 %v801, %v800
      %v936 = vpack.c.b16 %v803, %v802
      %v937 = vpack.c.b16 %v805, %v804
      %v938 = vpack.c.b16 %v807, %v806
      %v939 = vpack.c.b16 %v809, %v808
      %v940 = vpack.c.b16 %v811, %v810
      %v941 = vpack.c.b16 %v813, %v812
      %v942 = vpack.c.b16 %v815, %v814
      %v943 = vpack.c.b16 %v817, %v816
      %v944 = vpack.c.b16 %v819, %v818
      %v945 = vpack.c.b16 %v821, %v820
      %v946 = vpack.c.b16 %v823, %v822
      %v947 = vpack.c.b16 %v825, %v824
      %v948 = vpack.c.b16 %v827, %v826
      %v949 = vpack.c.b16 %v829, %v828
      %v950 = vpack.c.b16 %v831, %v830
      %v951 = vpack.c.b16 %v833, %v832
      %v952 = vpack.c.b16 %v835, %v834
      %v953 = vpack.c.b16 %v837, %v836
      %v954 = vpack.c.b16 %v839, %v838
      %v955 = vpack.c.b16 %v841, %v840
      %v956 = vpack.c.b16 %v843, %v842
      %v957 = vpack.c.b16 %v845, %v844
      %v958 = vpack.c.b16 %v847, %v846
      %v959 = vpack.c.b16 %v849, %v848
      %v960 = vpack.c.b16 %v851, %v850
      %v961 = vpack.c.b16 %v853, %v852
      %v962 = vpack.c.b16 %v855, %v854
      %v963 = vpack.c.b16 %v857, %v856
      %v964 = vpack.c.b16 %v859, %v858
      %v965 = vpack.c.b16 %v861, %v860
      %v966 = vpack.c.b16 %v863, %v862
      %v967 = vpack.c.b16 %v865, %v864
      %v968 = vpack.c.b16 %v867, %v866
      %v969 = vpack.c.b16 %v869, %v868
      %v970 = vpack.c.b16 %v871, %v870
      %v971 = vpack.c.b16 %v873, %v872
      %v972 = vpack.c.b16 %v875, %v874
      %v973 = vpack.c.b16 %v877, %v876
      %v974 = vpack.c.b16 %v879, %v878
      %v975 = vpack.c.b16 %v881, %v880
      %v976 = vpack.c.b16 %v883, %v882
      %v977 = vpack.c.b16 %v885, %v884
      %v978 = vpack.c.b16 %v887, %v886
      %v979 = vpack.c.b16 %v889, %v888
      %v980 = vpack.c.b16 %v891, %v890
      %v981 = vpack.c.b16 %v893, %v892
      %v982 = vpack.c.b16 %v895, %v894
      %v983 = vpack.c.b16 %v897, %v896
      %v984 = vpack.c.b16 %v899, %v898
      %v985 = vpack.c.b16 %v901, %v900
      %v986 = vpack.c.b16 %v903, %v902
      %v987 = vpack.c.b16 %v905, %v904
      %v988 = vpack.c.b16 %v907, %v906
      %v989 = vpack.c.b16 %v909, %v908
      %v990 = vpack.c.b16 %v911, %v910
      %v991 = vpack.c.b16 %v913, %v912
      %v992 = vpack.c.b16 %v915, %v914
      %v993 = vpack.c.b16 %v917, %v916
      %v994 = vpack.c.b16 %v919, %v918
      %v995 = vpack.c.b16 %v921, %v920
      %v996 = vpack.c.b16 %v923, %v922
      %v997 = vpack.c.b16 %v925, %v924
      %1070 = vmatprep.subr.bf16.mxu0 0
      %1071 = vmatpush1.bf16.msra.mxu0 %v933
      %1072 = vmatprep.subr.bf16.mxu0 0
      %1073 = vmatpush1.bf16.msra.mxu0 %v932
      %1074 = vmatprep.subr.bf16.mxu0 0
      %1075 = vmatpush1.bf16.msra.mxu0 %v931
      %1076 = vmatprep.subr.bf16.mxu0 0
      %1077 = vmatpush1.bf16.msra.mxu0 %v930
      %1078 = vmatprep.subr.bf16.mxu0 0
      %1079 = vmatpush1.bf16.msra.mxu0 %v929
      %1080 = vmatprep.subr.bf16.mxu0 0
      %1081 = vmatpush1.bf16.msra.mxu0 %v928
      %1082 = vmatprep.subr.bf16.mxu0 0
      %1083 = vmatpush1.bf16.msra.mxu0 %v927
      %1084 = vmatprep.subr.bf16.mxu0 0
      %1085 = vmatpush1.bf16.msra.mxu0 %v926
      %1086 = vmatprep.subr.bf16.mxu0 0
      %1087 = vmatpush2.bf16.msra.mxu0 %v941
      %1088 = vmatprep.subr.bf16.mxu0 0
      %1089 = vmatpush2.bf16.msra.mxu0 %v940
      %1090 = vmatprep.subr.bf16.mxu0 0
      %1091 = vmatpush2.bf16.msra.mxu0 %v939
      %1092 = vmatprep.subr.bf16.mxu0 0
      %1093 = vmatpush2.bf16.msra.mxu0 %v938
      %1094 = vmatprep.subr.bf16.mxu0 0
      %1095 = vmatpush2.bf16.msra.mxu0 %v937
      %1096 = vmatprep.subr.bf16.mxu0 0
      %1097 = vmatpush2.bf16.msra.mxu0 %v936
      %1098 = vmatprep.subr.bf16.mxu0 0
      %1099 = vmatpush2.bf16.msra.mxu0 %v935
      %1100 = vmatprep.subr.bf16.mxu0 0
      %1101 = vmatpush2.bf16.msra.mxu0 %v934
      %1102 = vmatprep.mubr.bf16.mxu0 %v567
      %1103 = vmatmul.mubr.bf16.gmra.mxu0 %v566
      %v1104 = vpop.f32.mrf.mxu0
      %v1105 = vadd.f32 0.0, %v1104
      %v1106 = vpop.f32.mrf.mxu0
      %v1107 = vpop.f32.mrf.mxu0
      %v1108 = vadd.f32 0.0, %v1107
      %v1109 = vpop.f32.mrf.mxu0
      %1110 = vmatprep.mubr.bf16.mxu0 %v576
      %1111 = vmatmul.mubr.bf16.gmra.mxu0 %v575
      %v1112 = vpop.f32.mrf.mxu0
      %v1113 = vadd.f32 0.0, %v1112
      %v1114 = vpop.f32.mrf.mxu0
      %v1115 = vpop.f32.mrf.mxu0
      %v1116 = vadd.f32 0.0, %v1115
      %v1117 = vpop.f32.mrf.mxu0
      %1118 = vmatprep.mubr.bf16.mxu0 %v585
      %1119 = vmatmul.mubr.bf16.gmra.mxu0 %v584
      %v1120 = vpop.f32.mrf.mxu0
      %v1121 = vadd.f32 0.0, %v1120
      %v1122 = vpop.f32.mrf.mxu0
      %v1123 = vpop.f32.mrf.mxu0
      %v1124 = vadd.f32 0.0, %v1123
      %v1125 = vpop.f32.mrf.mxu0
      %1126 = vmatprep.mubr.bf16.mxu0 %v594
      %1127 = vmatmul.mubr.bf16.gmra.mxu0 %v593
      %v1128 = vpop.f32.mrf.mxu0
      %v1129 = vadd.f32 0.0, %v1128
      %v1130 = vpop.f32.mrf.mxu0
      %v1131 = vpop.f32.mrf.mxu0
      %v1132 = vadd.f32 0.0, %v1131
      %v1133 = vpop.f32.mrf.mxu0
      %1134 = vdwg.mxu0
      %1135 = vmatprep.subr.bf16.mxu0 0
      %1136 = vmatpush1.bf16.msra.mxu0 %v949
      %1137 = vmatprep.subr.bf16.mxu0 0
      %1138 = vmatpush1.bf16.msra.mxu0 %v948
      %1139 = vmatprep.subr.bf16.mxu0 0
      %1140 = vmatpush1.bf16.msra.mxu0 %v947
      %1141 = vmatprep.subr.bf16.mxu0 0
      %1142 = vmatpush1.bf16.msra.mxu0 %v946
      %1143 = vmatprep.subr.bf16.mxu0 0
      %1144 = vmatpush1.bf16.msra.mxu0 %v945
      %1145 = vmatprep.subr.bf16.mxu0 0
      %1146 = vmatpush1.bf16.msra.mxu0 %v944
      %1147 = vmatprep.subr.bf16.mxu0 0
      %1148 = vmatpush1.bf16.msra.mxu0 %v943
      %1149 = vmatprep.subr.bf16.mxu0 0
      %1150 = vmatpush1.bf16.msra.mxu0 %v942
      %1151 = vmatprep.subr.bf16.mxu0 0
      %1152 = vmatpush2.bf16.msra.mxu0 %v957
      %1153 = vmatprep.subr.bf16.mxu0 0
      %1154 = vmatpush2.bf16.msra.mxu0 %v956
      %1155 = vmatprep.subr.bf16.mxu0 0
      %1156 = vmatpush2.bf16.msra.mxu0 %v955
      %1157 = vmatprep.subr.bf16.mxu0 0
      %1158 = vmatpush2.bf16.msra.mxu0 %v954
      %1159 = vmatprep.subr.bf16.mxu0 0
      %1160 = vmatpush2.bf16.msra.mxu0 %v953
      %1161 = vmatprep.subr.bf16.mxu0 0
      %1162 = vmatpush2.bf16.msra.mxu0 %v952
      %1163 = vmatprep.subr.bf16.mxu0 0
      %1164 = vmatpush2.bf16.msra.mxu0 %v951
      %1165 = vmatprep.subr.bf16.mxu0 0
      %1166 = vmatpush2.bf16.msra.mxu0 %v950
      %1167 = vmatprep.mubr.bf16.mxu0 %v569
      %1168 = vmatmul.mubr.bf16.gmra.mxu0 %v568
      %v1169 = vpop.f32.mrf.mxu0
      %v1170 = vadd.f32 %v1105, %v1169
      %v1171 = vpop.f32.mrf.mxu0
      %v1172 = vpop.f32.mrf.mxu0
      %v1173 = vadd.f32 %v1108, %v1172
      %v1174 = vpop.f32.mrf.mxu0
      %1175 = vmatprep.mubr.bf16.mxu0 %v578
      %1176 = vmatmul.mubr.bf16.gmra.mxu0 %v577
      %v1177 = vpop.f32.mrf.mxu0
      %v1178 = vadd.f32 %v1113, %v1177
      %v1179 = vpop.f32.mrf.mxu0
      %v1180 = vpop.f32.mrf.mxu0
      %v1181 = vadd.f32 %v1116, %v1180
      %v1182 = vpop.f32.mrf.mxu0
      %1183 = vmatprep.mubr.bf16.mxu0 %v587
      %1184 = vmatmul.mubr.bf16.gmra.mxu0 %v586
      %v1185 = vpop.f32.mrf.mxu0
      %v1186 = vadd.f32 %v1121, %v1185
      %v1187 = vpop.f32.mrf.mxu0
      %v1188 = vpop.f32.mrf.mxu0
      %v1189 = vadd.f32 %v1124, %v1188
      %v1190 = vpop.f32.mrf.mxu0
      %1191 = vmatprep.mubr.bf16.mxu0 %v596
      %1192 = vmatmul.mubr.bf16.gmra.mxu0 %v595
      %v1193 = vpop.f32.mrf.mxu0
      %v1194 = vadd.f32 %v1129, %v1193
      %v1195 = vpop.f32.mrf.mxu0
      %v1196 = vpop.f32.mrf.mxu0
      %v1197 = vadd.f32 %v1132, %v1196
      %v1198 = vpop.f32.mrf.mxu0
      %1199 = vdwg.mxu0
      %1200 = vmatprep.subr.bf16.mxu0 0
      %1201 = vmatpush1.bf16.msra.mxu0 %v965
      %1202 = vmatprep.subr.bf16.mxu0 0
      %1203 = vmatpush1.bf16.msra.mxu0 %v964
      %1204 = vmatprep.subr.bf16.mxu0 0
      %1205 = vmatpush1.bf16.msra.mxu0 %v963
      %1206 = vmatprep.subr.bf16.mxu0 0
      %1207 = vmatpush1.bf16.msra.mxu0 %v962
      %1208 = vmatprep.subr.bf16.mxu0 0
      %1209 = vmatpush1.bf16.msra.mxu0 %v961
      %1210 = vmatprep.subr.bf16.mxu0 0
      %1211 = vmatpush1.bf16.msra.mxu0 %v960
      %1212 = vmatprep.subr.bf16.mxu0 0
      %1213 = vmatpush1.bf16.msra.mxu0 %v959
      %1214 = vmatprep.subr.bf16.mxu0 0
      %1215 = vmatpush1.bf16.msra.mxu0 %v958
      %1216 = vmatprep.subr.bf16.mxu0 0
      %1217 = vmatpush2.bf16.msra.mxu0 %v973
      %1218 = vmatprep.subr.bf16.mxu0 0
      %1219 = vmatpush2.bf16.msra.mxu0 %v972
      %1220 = vmatprep.subr.bf16.mxu0 0
      %1221 = vmatpush2.bf16.msra.mxu0 %v971
      %1222 = vmatprep.subr.bf16.mxu0 0
      %1223 = vmatpush2.bf16.msra.mxu0 %v970
      %1224 = vmatprep.subr.bf16.mxu0 0
      %1225 = vmatpush2.bf16.msra.mxu0 %v969
      %1226 = vmatprep.subr.bf16.mxu0 0
      %1227 = vmatpush2.bf16.msra.mxu0 %v968
      %1228 = vmatprep.subr.bf16.mxu0 0
      %1229 = vmatpush2.bf16.msra.mxu0 %v967
      %1230 = vmatprep.subr.bf16.mxu0 0
      %1231 = vmatpush2.bf16.msra.mxu0 %v966
      %1232 = vmatprep.mubr.bf16.mxu0 %v571
      %1233 = vmatmul.mubr.bf16.gmra.mxu0 %v570
      %v1234 = vpop.f32.mrf.mxu0
      %v1235 = vadd.f32 %v1170, %v1234
      %v1236 = vpop.f32.mrf.mxu0
      %v1237 = vpop.f32.mrf.mxu0
      %v1238 = vadd.f32 %v1173, %v1237
      %v1239 = vpop.f32.mrf.mxu0
      %1240 = vmatprep.mubr.bf16.mxu0 %v580
      %1241 = vmatmul.mubr.bf16.gmra.mxu0 %v579
      %v1242 = vpop.f32.mrf.mxu0
      %v1243 = vadd.f32 %v1178, %v1242
      %v1244 = vpop.f32.mrf.mxu0
      %v1245 = vpop.f32.mrf.mxu0
      %v1246 = vadd.f32 %v1181, %v1245
      %v1247 = vpop.f32.mrf.mxu0
      %1248 = vmatprep.mubr.bf16.mxu0 %v589
      %1249 = vmatmul.mubr.bf16.gmra.mxu0 %v588
      %v1250 = vpop.f32.mrf.mxu0
      %v1251 = vadd.f32 %v1186, %v1250
      %v1252 = vpop.f32.mrf.mxu0
      %v1253 = vpop.f32.mrf.mxu0
      %v1254 = vadd.f32 %v1189, %v1253
      %v1255 = vpop.f32.mrf.mxu0
      %1256 = vmatprep.mubr.bf16.mxu0 %v598
      %1257 = vmatmul.mubr.bf16.gmra.mxu0 %v597
      %v1258 = vpop.f32.mrf.mxu0
      %v1259 = vadd.f32 %v1194, %v1258
      %v1260 = vpop.f32.mrf.mxu0
      %v1261 = vpop.f32.mrf.mxu0
      %v1262 = vadd.f32 %v1197, %v1261
      %v1263 = vpop.f32.mrf.mxu0
      %1264 = vdwg.mxu0
      %1265 = vmatprep.subr.bf16.mxu0 0
      %1266 = vmatpush1.bf16.msra.mxu0 %v981
      %1267 = vmatprep.subr.bf16.mxu0 0
      %1268 = vmatpush1.bf16.msra.mxu0 %v980
      %1269 = vmatprep.subr.bf16.mxu0 0
      %1270 = vmatpush1.bf16.msra.mxu0 %v979
      %1271 = vmatprep.subr.bf16.mxu0 0
      %1272 = vmatpush1.bf16.msra.mxu0 %v978
      %1273 = vmatprep.subr.bf16.mxu0 0
      %1274 = vmatpush1.bf16.msra.mxu0 %v977
      %1275 = vmatprep.subr.bf16.mxu0 0
      %1276 = vmatpush1.bf16.msra.mxu0 %v976
      %1277 = vmatprep.subr.bf16.mxu0 0
      %1278 = vmatpush1.bf16.msra.mxu0 %v975
      %1279 = vmatprep.subr.bf16.mxu0 0
      %1280 = vmatpush1.bf16.msra.mxu0 %v974
      %1281 = vmatprep.subr.bf16.mxu0 0
      %1282 = vmatpush2.bf16.msra.mxu0 %v989
      %1283 = vmatprep.subr.bf16.mxu0 0
      %1284 = vmatpush2.bf16.msra.mxu0 %v988
      %1285 = vmatprep.subr.bf16.mxu0 0
      %1286 = vmatpush2.bf16.msra.mxu0 %v987
      %1287 = vmatprep.subr.bf16.mxu0 0
      %1288 = vmatpush2.bf16.msra.mxu0 %v986
      %1289 = vmatprep.subr.bf16.mxu0 0
      %1290 = vmatpush2.bf16.msra.mxu0 %v985
      %1291 = vmatprep.subr.bf16.mxu0 0
      %1292 = vmatpush2.bf16.msra.mxu0 %v984
      %1293 = vmatprep.subr.bf16.mxu0 0
      %1294 = vmatpush2.bf16.msra.mxu0 %v983
      %1295 = vmatprep.subr.bf16.mxu0 0
      %1296 = vmatpush2.bf16.msra.mxu0 %v982
      %1297 = vmatprep.mubr.bf16.mxu0 %v573
      %1298 = vmatmul.mubr.bf16.gmra.mxu0 %v572
      %v1299 = vpop.f32.mrf.mxu0
      %v1300 = vadd.f32 %v1235, %v1299
      %v1301 = vpop.f32.mrf.mxu0
      %v1302 = vpop.f32.mrf.mxu0
      %v1303 = vadd.f32 %v1238, %v1302
      %v1304 = vpop.f32.mrf.mxu0
      %1305 = vmatprep.mubr.bf16.mxu0 %v582
      %1306 = vmatmul.mubr.bf16.gmra.mxu0 %v581
      %v1307 = vpop.f32.mrf.mxu0
      %v1308 = vadd.f32 %v1243, %v1307
      %v1309 = vpop.f32.mrf.mxu0
      %v1310 = vpop.f32.mrf.mxu0
      %v1311 = vadd.f32 %v1246, %v1310
      %v1312 = vpop.f32.mrf.mxu0
      %1313 = vmatprep.mubr.bf16.mxu0 %v591
      %1314 = vmatmul.mubr.bf16.gmra.mxu0 %v590
      %v1315 = vpop.f32.mrf.mxu0
      %v1316 = vadd.f32 %v1251, %v1315
      %v1317 = vpop.f32.mrf.mxu0
      %v1318 = vpop.f32.mrf.mxu0
      %v1319 = vadd.f32 %v1254, %v1318
      %v1320 = vpop.f32.mrf.mxu0
      %1321 = vmatprep.mubr.bf16.mxu0 %v600
      %1322 = vmatmul.mubr.bf16.gmra.mxu0 %v599
      %v1323 = vpop.f32.mrf.mxu0
      %v1324 = vadd.f32 %v1259, %v1323
      %v1325 = vpop.f32.mrf.mxu0
      %v1326 = vpop.f32.mrf.mxu0
      %v1327 = vadd.f32 %v1262, %v1326
      %v1328 = vpop.f32.mrf.mxu0
      %1329 = vdwg.mxu0
      %1330 = vmatprep.subr.bf16.mxu0 0
      %1331 = vmatpush1.bf16.msra.mxu0 %v997
      %1332 = vmatprep.subr.bf16.mxu0 0
      %1333 = vmatpush1.bf16.msra.mxu0 %v996
      %1334 = vmatprep.subr.bf16.mxu0 0
      %1335 = vmatpush1.bf16.msra.mxu0 %v995
      %1336 = vmatprep.subr.bf16.mxu0 0
      %1337 = vmatpush1.bf16.msra.mxu0 %v994
      %1338 = vmatprep.subr.bf16.mxu0 0
      %1339 = vmatpush1.bf16.msra.mxu0 %v993
      %1340 = vmatprep.subr.bf16.mxu0 0
      %1341 = vmatpush1.bf16.msra.mxu0 %v992
      %1342 = vmatprep.subr.bf16.mxu0 0
      %1343 = vmatpush1.bf16.msra.mxu0 %v991
      %1344 = vmatprep.subr.bf16.mxu0 0
      %1345 = vmatpush1.bf16.msra.mxu0 %v990
      %1346 = vmatprep.subr.bf16.mxu0 0
      %1347 = vmatpush2.bf16.msra.mxu0 0
      %1348 = vmatprep.subr.bf16.mxu0 0
      %1349 = vmatpush2.bf16.msra.mxu0 0
      %1350 = vmatprep.subr.bf16.mxu0 0
      %1351 = vmatpush2.bf16.msra.mxu0 0
      %1352 = vmatprep.subr.bf16.mxu0 0
      %1353 = vmatpush2.bf16.msra.mxu0 0
      %1354 = vmatprep.subr.bf16.mxu0 0
      %1355 = vmatpush2.bf16.msra.mxu0 0
      %1356 = vmatprep.subr.bf16.mxu0 0
      %1357 = vmatpush2.bf16.msra.mxu0 0
      %1358 = vmatprep.subr.bf16.mxu0 0
      %1359 = vmatpush2.bf16.msra.mxu0 0
      %1360 = vmatprep.subr.bf16.mxu0 0
      %1361 = vmatpush2.bf16.msra.mxu0 0
      %1362 = vmatprep.mubr.bf16.mxu0 0
      %1363 = vmatmul.mubr.bf16.gmra.mxu0 %v574
      %v1364 = vpop.f32.mrf.mxu0
      %v1365 = vadd.f32 %v1300, %v1364
      %v1366 = vpop.f32.mrf.mxu0
      %v1367 = vpop.f32.mrf.mxu0
      %v1368 = vadd.f32 %v1303, %v1367
      %v1369 = vpop.f32.mrf.mxu0
      %1370 = vmatprep.mubr.bf16.mxu0 0
      %1371 = vmatmul.mubr.bf16.gmra.mxu0 %v583
      %v1372 = vpop.f32.mrf.mxu0
      %v1373 = vadd.f32 %v1308, %v1372
      %v1374 = vpop.f32.mrf.mxu0
      %v1375 = vpop.f32.mrf.mxu0
      %v1376 = vadd.f32 %v1311, %v1375
      %v1377 = vpop.f32.mrf.mxu0
      %1378 = vmatprep.mubr.bf16.mxu0 0
      %1379 = vmatmul.mubr.bf16.gmra.mxu0 %v592
      %v1380 = vpop.f32.mrf.mxu0
      %v1381 = vadd.f32 %v1316, %v1380
      %v1382 = vpop.f32.mrf.mxu0
      %v1383 = vpop.f32.mrf.mxu0
      %v1384 = vadd.f32 %v1319, %v1383
      %v1385 = vpop.f32.mrf.mxu0
      %1386 = vmatprep.mubr.bf16.mxu0 0
      %1387 = vmatmul.mubr.bf16.gmra.mxu0 %v601
      %v1388 = vpop.f32.mrf.mxu0
      %v1389 = vadd.f32 %v1324, %v1388
      %v1390 = vpop.f32.mrf.mxu0
      %v1391 = vpop.f32.mrf.mxu0
      %v1392 = vadd.f32 %v1327, %v1391
      %v1393 = vpop.f32.mrf.mxu0
      %1394 = vdwg.mxu0
      %v1395 = vld [vmem:[%s256] sm:$0x1]
      %v1397 = vlaneseq
      %v1398 = vshrl.u32 %v1397, 7
      %v1399 = vsub.s32 0, %v1398
      %v1400 = vrot.slane %v1395, %v1399
      %v1402 = vmul.f32 %v1365, %v1400
      %v1403 = vmul.f32 %v1368, %v1400
      %v1404 = vmul.f32 %v1373, %v1400
      %v1405 = vmul.f32 %v1376, %v1400
      %v1406 = vmul.f32 %v1381, %v1400
      %v1407 = vmul.f32 %v1384, %v1400
      %v1408 = vmul.f32 %v1389, %v1400
      %v1409 = vmul.f32 %v1392, %v1400
      %v1410 = vld [vmem:[%s259] sm:$0x1]
      %v1412 = vlaneseq
      %v1413 = vshrl.u32 %v1412, 7
      %v1414 = vsub.s32 0, %v1413
      %v1415 = vrot.slane %v1410, %v1414
      %v1417 = vadd.f32 %v1402, %v1415
      %v1418 = vadd.f32 %v1403, %v1415
      %v1419 = vadd.f32 %v1404, %v1415
      %v1420 = vadd.f32 %v1405, %v1415
      %v1421 = vadd.f32 %v1406, %v1415
      %v1422 = vadd.f32 %v1407, %v1415
      %v1423 = vadd.f32 %v1408, %v1415
      %v1424 = vadd.f32 %v1409, %v1415
      %v1425 = vmax.f32 %v1417, 0.0
      %v1426 = vmax.f32 %v1418, 0.0
      %v1427 = vmax.f32 %v1419, 0.0
      %v1428 = vmax.f32 %v1420, 0.0
      %v1429 = vmax.f32 %v1421, 0.0
      %v1430 = vmax.f32 %v1422, 0.0
      %v1431 = vmax.f32 %v1423, 0.0
      %v1432 = vmax.f32 %v1424, 0.0
      %v1433 = vpack.c.bf16 %v1426, %v1425
      %v1434 = vpack.c.bf16 %v1428, %v1427
      %v1435 = vpack.c.bf16 %v1430, %v1429
      %v1436 = vpack.c.bf16 %v1432, %v1431
      %v1441 = vunpack.c.l.b16 %v1433
      %v1442 = vunpack.c.h.b16 %v1433
      %v1443 = vunpack.c.l.b16 %v1434
      %v1444 = vunpack.c.h.b16 %v1434
      %v1445 = vunpack.c.l.b16 %v1435
      %v1446 = vunpack.c.h.b16 %v1435
      %v1447 = vunpack.c.l.b16 %v1436
      %v1448 = vunpack.c.h.b16 %v1436
      %v1449 = vpack.c.b16 %v1441, %v1441
      %v1450 = vpack.c.b16 %v1442, %v1442
      %v1451 = vpack.c.b16 %v1443, %v1443
      %v1452 = vpack.c.b16 %v1444, %v1444
      %v1453 = vpack.c.b16 %v1445, %v1445
      %v1454 = vpack.c.b16 %v1446, %v1446
      %v1455 = vpack.c.b16 %v1447, %v1447
      %v1456 = vpack.c.b16 %v1448, %v1448
      %1465 = vst [vmem:[%s267] sm:$0xf] %v1449
      %1466 = vst [vmem:[%s267 + $0x4] sm:$0xf] %v1450
      %1467 = vst [vmem:[%s267 + $0x8] sm:$0xf] %v1451
      %1468 = vst [vmem:[%s267 + $0xc] sm:$0xf] %v1452
      %1469 = vst [vmem:[%s267 + $0x10] sm:$0xf] %v1453
      %1470 = vst [vmem:[%s267 + $0x14] sm:$0xf] %v1454
      %1471 = vst [vmem:[%s267 + $0x18] sm:$0xf] %v1455
      %1472 = vst [vmem:[%s267 + $0x1c] sm:$0xf] %v1456
      %s1473 = smul.u32 8, %s19
      %p1474 = scmp.lt.s32.totalorder %s1473, 15
      %s1475 = scalar_select %p1474, %s1473, 15
      %p1476 = scmp.lt.s32.totalorder %s20, 0
      %s1477 = scalar_select %p1476, %s20, 0
      %s1478 = sadd.s32 %s1477, %s1475
      %s1479 = smul.addr %s1478, 4
      %s1480 = scalar_lea.vmem %s4, %s1479
      // Predicated region
      $region37: #{run.26} parent=35 // pred_check
        %p1481 = pneg %p151
      $region38: #{run.26} parent=35 // pred_check_branch
        %1483 = sbr.rel (%p1481) target = $region40
      $region39: #{run.26} parent=35 // pred_region
        %s1484 = smul.u32 8, %s19
      $region40: #{run.26} parent=35 // pred_fallthru
        _
    $region36: #{run.26} parent=5 // pred_fallthru
      _
    %p1485 = scmp.le.s32.totalorder 2, %s10
    // Predicated region
    $region41: #{run.26} parent=5 // pred_check
      %p1486 = pneg %p1485
    $region42: #{run.26} parent=5 // pred_check_branch
      %1488 = sbr.rel (%p1486) target = $region44
    $region43: #{run.26} parent=5 // pred_region
      %s1489 = ssub.s32 %s10, 2
      // Predicated region
      $region45: #{run.26} parent=43 // pred_check
        %p1490 = pneg %p157
      $region46: #{run.26} parent=43 // pred_check_branch
        %1492 = sbr.rel (%p1490) target = $region48
      $region47: #{run.26} parent=43 // pred_region
        %s1493 = smul.u32 8, %s21
        %p1494 = scmp.lt.s32.totalorder %s1493, 15
        %s1495 = scalar_select %p1494, %s1493, 15
        %p1496 = scmp.lt.s32.totalorder %s22, 0
        %s1497 = scalar_select %p1496, %s22, 0
        %s1498 = sadd.s32 %s1497, %s1495
        %s1499 = smul.addr %s1498, 4
        %s1500 = scalar_lea.vmem %s4, %s1499
      $region48: #{run.26} parent=43 // pred_fallthru
        _
    $region44: #{run.26} parent=5 // pred_fallthru
      _
  $region6: #{run.26} parent=0 // loop_footer
    %s14 = sadd.s32 1, %s10
  $region7: #{run.26} parent=0 // loop_footer_branch
    %9 = sbr.rel target = $region3
  $region8: #{run.26} parent=0 // loop_exit
    _

// kernel: run.22
$region0: #{run.22}
  #allocation0 [shape = 'u32[]', space=smem, size = 0x4, offset = 0x4, fixed_abs, tag = 'smem constant byte address 0x4 - core index']
  #allocation1 [shape = 'u32[144,128]{1,0:T(1,128)}', space=vmem, size = 0x12000, scoped, tag = 'internal scratch']
  %s0 = inlined_call_operand.vmem [shape: bf16[128,1152], index: 0, kind: input, shape index: {}]
  %s1 = inlined_call_operand.vmem [shape: bf16[1152,128], index: 1, kind: input, shape index: {}]
  %s2 = inlined_call_operand.vmem [shape: bf16[128,128], index: 2, kind: output, shape index: {0}]
  %s3 = inlined_call_operand.vmem [shape: f32[2,8,128], index: 3, kind: output, shape index: {1}]
  %4 = xla_tuple %s2, %s3
  %s5 = sld [smem:[#allocation0]]
  $region49: #{run.22} parent=0
    _
  %s7 = ssub.s32 1, %s5
  %s8 = scalar_select 0, %s7, %s5
  loop: start=0, step=1, limit=4
  $region2: #{run.22} parent=0 // loop_pre_header
    _
  $region3: #{run.22} parent=0 // loop_header
    %s10 = sphi 0, %s14
    %p11 = scmp.ge.s32.totalorder %s10, 4
    %s17 = sphi 0, %s29
    %s18 = sphi 0, %s25
    %s19 = sphi 0, %s17
    %s20 = sphi 0, %s18
    %s21 = sphi 0, %s19
    %s22 = sphi 0, %s20
    %s32 = sphi 0, %s34
    %s35 = sphi 0, %s32
    %s36 = sphi 0, %s35
    %s52 = sphi 0, %s36
    %s58 = sphi 0, %s60
    %s61 = sphi 0, %s58
    %s62 = sphi 0, %s61
    %s78 = sphi 0, %s62
    %s86 = sphi 0, %s88
    %s89 = sphi 0, %s86
    %s90 = sphi 0, %s89
    %s106 = sphi 0, %s90
    %s114 = sphi 0, %s116
    %s117 = sphi 0, %s114
    %s118 = sphi 0, %s117
    %s134 = sphi 0, %s118
  $region4: #{run.22} parent=0 // loop_header_branch
    %13 = sbr.rel (%p11) target = $region8
  $region5: #{run.22} parent=0 // loop_body
    %s15 = ssub.s32 %s10, 1
    %s16 = ssub.s32 %s10, 2
    %s23 = sadd.s32 1, %s18
    %p24 = scmp.ge.s32.totalorder %s23, 1
    %s25 = scalar_select %p24, 0, %s23
    %s26 = sadd.s32 1, %s17
    %s27 = scalar_select %p24, %s26, %s17
    %p28 = scmp.ge.s32.totalorder %s27, 2
    %s29 = scalar_select %p28, 0, %s27
    %s30 = ssub.s32 %s17, %s29
    %p31 = scmp.eq.s32.totalorder %s30, 0
    %s33 = sadd.s32 %s32, 1
    %s34 = scalar_select %p31, %s32, %s33
    %p37 = pneg %p31
    %p38 = scmp.eq.s32.totalorder %s10, 1
    %p39 = por %p37, %p38
    %p40 = scmp.ne.s32.totalorder %s32, %s35
    %p41 = scmp.eq.s32.totalorder %s10, 0
    %p42 = por %p40, %p41
    %p43 = scmp.ne.s32.totalorder %s32, %s35
    %p44 = scmp.eq.s32.totalorder %s15, 1
    %p45 = por %p43, %p44
    %p46 = scmp.ne.s32.totalorder %s35, %s36
    %p47 = scmp.eq.s32.totalorder %s15, 0
    %p48 = por %p46, %p47
    %p49 = scmp.ne.s32.totalorder %s35, %s36
    %p50 = scmp.eq.s32.totalorder %s16, 1
    %p51 = por %p49, %p50
    %p53 = scmp.ne.s32.totalorder %s36, %s52
    %p54 = scmp.eq.s32.totalorder %s16, 0
    %p55 = por %p53, %p54
    %s56 = ssub.s32 %s18, %s25
    %p57 = scmp.eq.s32.totalorder %s56, 0
    %s59 = sadd.s32 %s58, 1
    %s60 = scalar_select %p57, %s58, %s59
    %p63 = pneg %p57
    %p64 = scmp.eq.s32.totalorder %s10, 1
    %p65 = por %p63, %p64
    %p66 = scmp.ne.s32.totalorder %s58, %s61
    %p67 = scmp.eq.s32.totalorder %s10, 0
    %p68 = por %p66, %p67
    %p69 = scmp.ne.s32.totalorder %s58, %s61
    %p70 = scmp.eq.s32.totalorder %s15, 1
    %p71 = por %p69, %p70
    %p72 = scmp.ne.s32.totalorder %s61, %s62
    %p73 = scmp.eq.s32.totalorder %s15, 0
    %p74 = por %p72, %p73
    %p75 = scmp.ne.s32.totalorder %s61, %s62
    %p76 = scmp.eq.s32.totalorder %s16, 1
    %p77 = por %p75, %p76
    %p79 = scmp.ne.s32.totalorder %s62, %s78
    %p80 = scmp.eq.s32.totalorder %s16, 0
    %p81 = por %p79, %p80
    %s82 = ssub.s32 %s17, %s29
    %s83 = ssub.s32 %s18, %s25
    %s84 = sor.u32 %s82, %s83
    %p85 = scmp.eq.s32.totalorder %s84, 0
    %s87 = sadd.s32 %s86, 1
    %s88 = scalar_select %p85, %s86, %s87
    %p91 = pneg %p85
    %p92 = scmp.eq.s32.totalorder %s10, 1
    %p93 = por %p91, %p92
    %p94 = scmp.ne.s32.totalorder %s86, %s89
    %p95 = scmp.eq.s32.totalorder %s10, 0
    %p96 = por %p94, %p95
    %p97 = scmp.ne.s32.totalorder %s86, %s89
    %p98 = scmp.eq.s32.totalorder %s15, 1
    %p99 = por %p97, %p98
    %p100 = scmp.ne.s32.totalorder %s89, %s90
    %p101 = scmp.eq.s32.totalorder %s15, 0
    %p102 = por %p100, %p101
    %p103 = scmp.ne.s32.totalorder %s89, %s90
    %p104 = scmp.eq.s32.totalorder %s16, 1
    %p105 = por %p103, %p104
    %p107 = scmp.ne.s32.totalorder %s90, %s106
    %p108 = scmp.eq.s32.totalorder %s16, 0
    %p109 = por %p107, %p108
    %s110 = ssub.s32 %s17, %s29
    %s111 = ssub.s32 %s18, %s25
    %s112 = sor.u32 %s110, %s111
    %p113 = scmp.eq.s32.totalorder %s112, 0
    %s115 = sadd.s32 %s114, 1
    %s116 = scalar_select %p113, %s114, %s115
    %p119 = pneg %p113
    %p120 = scmp.eq.s32.totalorder %s10, 1
    %p121 = por %p119, %p120
    %p122 = scmp.ne.s32.totalorder %s114, %s117
    %p123 = scmp.eq.s32.totalorder %s10, 0
    %p124 = por %p122, %p123
    %p125 = scmp.ne.s32.totalorder %s114, %s117
    %p126 = scmp.eq.s32.totalorder %s15, 1
    %p127 = por %p125, %p126
    %p128 = scmp.ne.s32.totalorder %s117, %s118
    %p129 = scmp.eq.s32.totalorder %s15, 0
    %p130 = por %p128, %p129
    %p131 = scmp.ne.s32.totalorder %s117, %s118
    %p132 = scmp.eq.s32.totalorder %s16, 1
    %p133 = por %p131, %p132
    %p135 = scmp.ne.s32.totalorder %s118, %s134
    %p136 = scmp.eq.s32.totalorder %s16, 0
    %p137 = por %p135, %p136
    %p138 = scmp.le.s32.totalorder 1, %s10
    %p139 = scmp.lt.s32.totalorder %s10, 3
    %p140 = pnand %p138, %p139
    %p141 = pneg %p140
    // Predicated region
    $region9: #{run.22} parent=5 // pred_check
      _
    $region10: #{run.22} parent=5 // pred_check_branch
      %143 = sbr.rel (%p140) target = $region12
    $region11: #{run.22} parent=5 // pred_region
      %s144 = ssub.s32 %s10, 1
      // Predicated region
      $region13: #{run.22} parent=11 // pred_check
        %p145 = pneg %p74
      $region14: #{run.22} parent=11 // pred_check_branch
        %147 = sbr.rel (%p145) target = $region16
      $region15: #{run.22} parent=11 // pred_region
        %p148 = scmp.lt.s32.totalorder %s20, 0
        %s149 = scalar_select %p148, %s20, 0
        %s150 = smul.addr %s149, 4
        %s151 = scalar_lea.vmem %s1, %s150
      $region16: #{run.22} parent=11 // pred_fallthru
        _
    $region12: #{run.22} parent=5 // pred_fallthru
      _
    %p152 = scmp.lt.s32.totalorder %s10, 2
    // Predicated region
    $region17: #{run.22} parent=5 // pred_check
      %p153 = pneg %p152
    $region18: #{run.22} parent=5 // pred_check_branch
      %155 = sbr.rel (%p153) target = $region20
    $region19: #{run.22} parent=5 // pred_region
      // Predicated region
      $region21: #{run.22} parent=19 // pred_check
        %p156 = pneg %p42
      $region22: #{run.22} parent=19 // pred_check_branch
        %158 = sbr.rel (%p156) target = $region24
      $region23: #{run.22} parent=19 // pred_region
        %s159 = smul.u32 8, %s17
        %p160 = scmp.lt.s32.totalorder %s159, 15
        %s161 = scalar_select %p160, %s159, 15
        %s162 = smul.addr %s161, 9
        %s163 = smul.addr %s162, 4
        %s164 = scalar_lea.vmem %s0, %s163
        %s165 = smul.u32 8, %s17
      $region24: #{run.22} parent=19 // pred_fallthru
        _
    $region20: #{run.22} parent=5 // pred_fallthru
      _
    %p166 = scmp.le.s32.totalorder 1, %s10
    %p167 = scmp.lt.s32.totalorder %s10, 3
    %p168 = pnand %p166, %p167
    %p169 = pneg %p168
    // Predicated region
    $region25: #{run.22} parent=5 // pred_check
      _
    $region26: #{run.22} parent=5 // pred_check_branch
      %171 = sbr.rel (%p168) target = $region28
    $region27: #{run.22} parent=5 // pred_region
      %s172 = ssub.s32 %s10, 1
      %s173 = smul.u32 8, %s19
      %p174 = scmp.lt.s32.totalorder %s173, 15
      %s175 = scalar_select %p174, %s173, 15
      %s176 = smul.addr %s175, 9
      %s177 = smul.addr %s176, 4
      %s178 = scalar_lea.vmem %s0, %s177
      %p179 = pneg %p48
      %p180 = pneg %p45
      %p181 = scmp.lt.s32.totalorder %s20, 0
      %s182 = scalar_select %p181, %s20, 0
      %s183 = smul.addr %s182, 4
      %s184 = scalar_lea.vmem %s1, %s183
      %p185 = pneg %p74
      %p186 = pneg %p71
      %p187 = pneg %p102
      %p188 = pneg %p99
      %s189 = smul.u32 8, %s19
      %p190 = scmp.lt.s32.totalorder %s189, 15
      %s191 = scalar_select %p190, %s189, 15
      %p192 = scmp.lt.s32.totalorder %s20, 0
      %s193 = scalar_select %p192, %s20, 0
      %s194 = sadd.s32 %s193, %s191
      %s195 = smul.addr %s194, 4
      %s196 = scalar_lea.vmem %s2, %s195
      %p197 = pneg %p130
      %p198 = pneg %p127
      %p199 = scmp.lt.s32.totalorder %s19, 1
      %s200 = scalar_select %p199, %s19, 1
      %p201 = scmp.lt.s32.totalorder %s20, 0
      %s202 = scalar_select %p201, %s20, 0
      %s203 = sadd.s32 %s202, %s200
      %s204 = smul.addr %s203, 8
      %s205 = scalar_lea.vmem %s3, %s204
      %s206 = smul.u32 8, %s19
      %p207 = scmp.lt.s32.totalorder %s206, 15
      %s208 = scalar_select %p207, %s206, 15
      %s209 = smul.addr %s208, 9
      %s210 = smul.addr %s209, 4
      %s211 = scalar_lea.vmem %s0, %s210
      %s212 = smul.u32 8, %s19
      %p213 = scmp.lt.s32.totalorder %s20, 0
      %s214 = scalar_select %p213, %s20, 0
      %s215 = smul.addr %s214, 4
      %s216 = scalar_lea.vmem %s1, %s215
      %s217 = smul.u32 8, %s19
      %p218 = scmp.lt.s32.totalorder %s217, 15
      %s219 = scalar_select %p218, %s217, 15
      %p220 = scmp.lt.s32.totalorder %s20, 0
      %s221 = scalar_select %p220, %s20, 0
      %s222 = sadd.s32 %s221, %s219
      %s223 = smul.addr %s222, 4
      %s224 = scalar_lea.vmem %s2, %s223
      %s225 = smul.u32 8, %s19
      %p226 = scmp.lt.s32.totalorder %s19, 1
      %s227 = scalar_select %p226, %s19, 1
      %p228 = scmp.lt.s32.totalorder %s20, 0
      %s229 = scalar_select %p228, %s20, 0
      %s230 = sadd.s32 %s229, %s227
      %s231 = smul.addr %s230, 8
      %s232 = scalar_lea.vmem %s3, %s231
      %v234 = vld [vmem:[%s211] sm:$0xff]
      %v235 = vld [vmem:[%s211 + $0x8] sm:$0xff]
      %v236 = vld [vmem:[%s211 + $0x10] sm:$0xff]
      %v237 = vld [vmem:[%s211 + $0x18] sm:$0xff]
      %v238 = vld [vmem:[%s211 + $0x20] sm:$0xf]
      %v239 = vld [vmem:[%s211 + $0x24] sm:$0xff]
      %v240 = vld [vmem:[%s211 + $0x2c] sm:$0xff]
      %v241 = vld [vmem:[%s211 + $0x34] sm:$0xff]
      %v242 = vld [vmem:[%s211 + $0x3c] sm:$0xff]
      %v243 = vld [vmem:[%s211 + $0x44] sm:$0xf]
      %v244 = vld [vmem:[%s211 + $0x48] sm:$0xff]
      %v245 = vld [vmem:[%s211 + $0x50] sm:$0xff]
      %v246 = vld [vmem:[%s211 + $0x58] sm:$0xff]
      %v247 = vld [vmem:[%s211 + $0x60] sm:$0xff]
      %v248 = vld [vmem:[%s211 + $0x68] sm:$0xf]
      %v249 = vld [vmem:[%s211 + $0x6c] sm:$0xff]
      %v250 = vld [vmem:[%s211 + $0x74] sm:$0xff]
      %v251 = vld [vmem:[%s211 + $0x7c] sm:$0xff]
      %v252 = vld [vmem:[%s211 + $0x84] sm:$0xff]
      %v253 = vld [vmem:[%s211 + $0x8c] sm:$0xf]
      %v254 = vld [vmem:[%s211 + $0x90] sm:$0xff]
      %v255 = vld [vmem:[%s211 + $0x98] sm:$0xff]
      %v256 = vld [vmem:[%s211 + $0xa0] sm:$0xff]
      %v257 = vld [vmem:[%s211 + $0xa8] sm:$0xff]
      %v258 = vld [vmem:[%s211 + $0xb0] sm:$0xf]
      %v259 = vld [vmem:[%s211 + $0xb4] sm:$0xff]
      %v260 = vld [vmem:[%s211 + $0xbc] sm:$0xff]
      %v261 = vld [vmem:[%s211 + $0xc4] sm:$0xff]
      %v262 = vld [vmem:[%s211 + $0xcc] sm:$0xff]
      %v263 = vld [vmem:[%s211 + $0xd4] sm:$0xf]
      %v264 = vld [vmem:[%s211 + $0xd8] sm:$0xff]
      %v265 = vld [vmem:[%s211 + $0xe0] sm:$0xff]
      %v266 = vld [vmem:[%s211 + $0xe8] sm:$0xff]
      %v267 = vld [vmem:[%s211 + $0xf0] sm:$0xff]
      %v268 = vld [vmem:[%s211 + $0xf8] sm:$0xf]
      %v269 = vld [vmem:[%s211 + $0xfc] sm:$0xff]
      %v270 = vld [vmem:[%s211 + $0x104] sm:$0xff]
      %v271 = vld [vmem:[%s211 + $0x10c] sm:$0xff]
      %v272 = vld [vmem:[%s211 + $0x114] sm:$0xff]
      %v273 = vld [vmem:[%s211 + $0x11c] sm:$0xf]
      %v274 = vld [vmem:[%s216] sm:$0xf]
      %v275 = vld [vmem:[%s216 + $0x4] sm:$0xf]
      %v276 = vld [vmem:[%s216 + $0x8] sm:$0xf]
      %v277 = vld [vmem:[%s216 + $0xc] sm:$0xf]
      %v278 = vld [vmem:[%s216 + $0x10] sm:$0xf]
      %v279 = vld [vmem:[%s216 + $0x14] sm:$0xf]
      %v280 = vld [vmem:[%s216 + $0x18] sm:$0xf]
      %v281 = vld [vmem:[%s216 + $0x1c] sm:$0xf]
      %v282 = vld [vmem:[%s216 + $0x20] sm:$0xf]
      %v283 = vld [vmem:[%s216 + $0x24] sm:$0xf]
      %v284 = vld [vmem:[%s216 + $0x28] sm:$0xf]
      %v285 = vld [vmem:[%s216 + $0x2c] sm:$0xf]
      %v286 = vld [vmem:[%s216 + $0x30] sm:$0xf]
      %v287 = vld [vmem:[%s216 + $0x34] sm:$0xf]
      %v288 = vld [vmem:[%s216 + $0x38] sm:$0xf]
      %v289 = vld [vmem:[%s216 + $0x3c] sm:$0xf]
      %v290 = vld [vmem:[%s216 + $0x40] sm:$0xf]
      %v291 = vld [vmem:[%s216 + $0x44] sm:$0xf]
      %v292 = vld [vmem:[%s216 + $0x48] sm:$0xf]
      %v293 = vld [vmem:[%s216 + $0x4c] sm:$0xf]
      %v294 = vld [vmem:[%s216 + $0x50] sm:$0xf]
      %v295 = vld [vmem:[%s216 + $0x54] sm:$0xf]
      %v296 = vld [vmem:[%s216 + $0x58] sm:$0xf]
      %v297 = vld [vmem:[%s216 + $0x5c] sm:$0xf]
      %v298 = vld [vmem:[%s216 + $0x60] sm:$0xf]
      %v299 = vld [vmem:[%s216 + $0x64] sm:$0xf]
      %v300 = vld [vmem:[%s216 + $0x68] sm:$0xf]
      %v301 = vld [vmem:[%s216 + $0x6c] sm:$0xf]
      %v302 = vld [vmem:[%s216 + $0x70] sm:$0xf]
      %v303 = vld [vmem:[%s216 + $0x74] sm:$0xf]
      %v304 = vld [vmem:[%s216 + $0x78] sm:$0xf]
      %v305 = vld [vmem:[%s216 + $0x7c] sm:$0xf]
      %v306 = vld [vmem:[%s216 + $0x80] sm:$0xf]
      %v307 = vld [vmem:[%s216 + $0x84] sm:$0xf]
      %v308 = vld [vmem:[%s216 + $0x88] sm:$0xf]
      %v309 = vld [vmem:[%s216 + $0x8c] sm:$0xf]
      %v310 = vld [vmem:[%s216 + $0x90] sm:$0xf]
      %v311 = vld [vmem:[%s216 + $0x94] sm:$0xf]
      %v312 = vld [vmem:[%s216 + $0x98] sm:$0xf]
      %v313 = vld [vmem:[%s216 + $0x9c] sm:$0xf]
      %v314 = vld [vmem:[%s216 + $0xa0] sm:$0xf]
      %v315 = vld [vmem:[%s216 + $0xa4] sm:$0xf]
      %v316 = vld [vmem:[%s216 + $0xa8] sm:$0xf]
      %v317 = vld [vmem:[%s216 + $0xac] sm:$0xf]
      %v318 = vld [vmem:[%s216 + $0xb0] sm:$0xf]
      %v319 = vld [vmem:[%s216 + $0xb4] sm:$0xf]
      %v320 = vld [vmem:[%s216 + $0xb8] sm:$0xf]
      %v321 = vld [vmem:[%s216 + $0xbc] sm:$0xf]
      %v322 = vld [vmem:[%s216 + $0xc0] sm:$0xf]
      %v323 = vld [vmem:[%s216 + $0xc4] sm:$0xf]
      %v324 = vld [vmem:[%s216 + $0xc8] sm:$0xf]
      %v325 = vld [vmem:[%s216 + $0xcc] sm:$0xf]
      %v326 = vld [vmem:[%s216 + $0xd0] sm:$0xf]
      %v327 = vld [vmem:[%s216 + $0xd4] sm:$0xf]
      %v328 = vld [vmem:[%s216 + $0xd8] sm:$0xf]
      %v329 = vld [vmem:[%s216 + $0xdc] sm:$0xf]
      %v330 = vld [vmem:[%s216 + $0xe0] sm:$0xf]
      %v331 = vld [vmem:[%s216 + $0xe4] sm:$0xf]
      %v332 = vld [vmem:[%s216 + $0xe8] sm:$0xf]
      %v333 = vld [vmem:[%s216 + $0xec] sm:$0xf]
      %v334 = vld [vmem:[%s216 + $0xf0] sm:$0xf]
      %v335 = vld [vmem:[%s216 + $0xf4] sm:$0xf]
      %v336 = vld [vmem:[%s216 + $0xf8] sm:$0xf]
      %v337 = vld [vmem:[%s216 + $0xfc] sm:$0xf]
      %v338 = vld [vmem:[%s216 + $0x100] sm:$0xf]
      %v339 = vld [vmem:[%s216 + $0x104] sm:$0xf]
      %v340 = vld [vmem:[%s216 + $0x108] sm:$0xf]
      %v341 = vld [vmem:[%s216 + $0x10c] sm:$0xf]
      %v342 = vld [vmem:[%s216 + $0x110] sm:$0xf]
      %v343 = vld [vmem:[%s216 + $0x114] sm:$0xf]
      %v344 = vld [vmem:[%s216 + $0x118] sm:$0xf]
      %v345 = vld [vmem:[%s216 + $0x11c] sm:$0xf]
      %v346 = vld [vmem:[%s216 + $0x120] sm:$0xf]
      %v347 = vld [vmem:[%s216 + $0x124] sm:$0xf]
      %v348 = vld [vmem:[%s216 + $0x128] sm:$0xf]
      %v349 = vld [vmem:[%s216 + $0x12c] sm:$0xf]
      %v350 = vld [vmem:[%s216 + $0x130] sm:$0xf]
      %v351 = vld [vmem:[%s216 + $0x134] sm:$0xf]
      %v352 = vld [vmem:[%s216 + $0x138] sm:$0xf]
      %v353 = vld [vmem:[%s216 + $0x13c] sm:$0xf]
      %v354 = vld [vmem:[%s216 + $0x140] sm:$0xf]
      %v355 = vld [vmem:[%s216 + $0x144] sm:$0xf]
      %v356 = vld [vmem:[%s216 + $0x148] sm:$0xf]
      %v357 = vld [vmem:[%s216 + $0x14c] sm:$0xf]
      %v358 = vld [vmem:[%s216 + $0x150] sm:$0xf]
      %v359 = vld [vmem:[%s216 + $0x154] sm:$0xf]
      %v360 = vld [vmem:[%s216 + $0x158] sm:$0xf]
      %v361 = vld [vmem:[%s216 + $0x15c] sm:$0xf]
      %v362 = vld [vmem:[%s216 + $0x160] sm:$0xf]
      %v363 = vld [vmem:[%s216 + $0x164] sm:$0xf]
      %v364 = vld [vmem:[%s216 + $0x168] sm:$0xf]
      %v365 = vld [vmem:[%s216 + $0x16c] sm:$0xf]
      %v366 = vld [vmem:[%s216 + $0x170] sm:$0xf]
      %v367 = vld [vmem:[%s216 + $0x174] sm:$0xf]
      %v368 = vld [vmem:[%s216 + $0x178] sm:$0xf]
      %v369 = vld [vmem:[%s216 + $0x17c] sm:$0xf]
      %v370 = vld [vmem:[%s216 + $0x180] sm:$0xf]
      %v371 = vld [vmem:[%s216 + $0x184] sm:$0xf]
      %v372 = vld [vmem:[%s216 + $0x188] sm:$0xf]
      %v373 = vld [vmem:[%s216 + $0x18c] sm:$0xf]
      %v374 = vld [vmem:[%s216 + $0x190] sm:$0xf]
      %v375 = vld [vmem:[%s216 + $0x194] sm:$0xf]
      %v376 = vld [vmem:[%s216 + $0x198] sm:$0xf]
      %v377 = vld [vmem:[%s216 + $0x19c] sm:$0xf]
      %v378 = vld [vmem:[%s216 + $0x1a0] sm:$0xf]
      %v379 = vld [vmem:[%s216 + $0x1a4] sm:$0xf]
      %v380 = vld [vmem:[%s216 + $0x1a8] sm:$0xf]
      %v381 = vld [vmem:[%s216 + $0x1ac] sm:$0xf]
      %v382 = vld [vmem:[%s216 + $0x1b0] sm:$0xf]
      %v383 = vld [vmem:[%s216 + $0x1b4] sm:$0xf]
      %v384 = vld [vmem:[%s216 + $0x1b8] sm:$0xf]
      %v385 = vld [vmem:[%s216 + $0x1bc] sm:$0xf]
      %v386 = vld [vmem:[%s216 + $0x1c0] sm:$0xf]
      %v387 = vld [vmem:[%s216 + $0x1c4] sm:$0xf]
      %v388 = vld [vmem:[%s216 + $0x1c8] sm:$0xf]
      %v389 = vld [vmem:[%s216 + $0x1cc] sm:$0xf]
      %v390 = vld [vmem:[%s216 + $0x1d0] sm:$0xf]
      %v391 = vld [vmem:[%s216 + $0x1d4] sm:$0xf]
      %v392 = vld [vmem:[%s216 + $0x1d8] sm:$0xf]
      %v393 = vld [vmem:[%s216 + $0x1dc] sm:$0xf]
      %v394 = vld [vmem:[%s216 + $0x1e0] sm:$0xf]
      %v395 = vld [vmem:[%s216 + $0x1e4] sm:$0xf]
      %v396 = vld [vmem:[%s216 + $0x1e8] sm:$0xf]
      %v397 = vld [vmem:[%s216 + $0x1ec] sm:$0xf]
      %v398 = vld [vmem:[%s216 + $0x1f0] sm:$0xf]
      %v399 = vld [vmem:[%s216 + $0x1f4] sm:$0xf]
      %v400 = vld [vmem:[%s216 + $0x1f8] sm:$0xf]
      %v401 = vld [vmem:[%s216 + $0x1fc] sm:$0xf]
      %v402 = vld [vmem:[%s216 + $0x200] sm:$0xf]
      %v403 = vld [vmem:[%s216 + $0x204] sm:$0xf]
      %v404 = vld [vmem:[%s216 + $0x208] sm:$0xf]
      %v405 = vld [vmem:[%s216 + $0x20c] sm:$0xf]
      %v406 = vld [vmem:[%s216 + $0x210] sm:$0xf]
      %v407 = vld [vmem:[%s216 + $0x214] sm:$0xf]
      %v408 = vld [vmem:[%s216 + $0x218] sm:$0xf]
      %v409 = vld [vmem:[%s216 + $0x21c] sm:$0xf]
      %v410 = vld [vmem:[%s216 + $0x220] sm:$0xf]
      %v411 = vld [vmem:[%s216 + $0x224] sm:$0xf]
      %v412 = vld [vmem:[%s216 + $0x228] sm:$0xf]
      %v413 = vld [vmem:[%s216 + $0x22c] sm:$0xf]
      %v414 = vld [vmem:[%s216 + $0x230] sm:$0xf]
      %v415 = vld [vmem:[%s216 + $0x234] sm:$0xf]
      %v416 = vld [vmem:[%s216 + $0x238] sm:$0xf]
      %v417 = vld [vmem:[%s216 + $0x23c] sm:$0xf]
      %v458 = vunpack.c.l.b16 %v234
      %v459 = vunpack.c.h.b16 %v234
      %v460 = vunpack.c.l.b16 %v235
      %v461 = vunpack.c.h.b16 %v235
      %v462 = vunpack.c.l.b16 %v236
      %v463 = vunpack.c.h.b16 %v236
      %v464 = vunpack.c.l.b16 %v237
      %v465 = vunpack.c.h.b16 %v237
      %v466 = vunpack.c.l.b16 %v238
      %v467 = vunpack.c.l.b16 %v239
      %v468 = vunpack.c.h.b16 %v239
      %v469 = vunpack.c.l.b16 %v240
      %v470 = vunpack.c.h.b16 %v240
      %v471 = vunpack.c.l.b16 %v241
      %v472 = vunpack.c.h.b16 %v241
      %v473 = vunpack.c.l.b16 %v242
      %v474 = vunpack.c.h.b16 %v242
      %v475 = vunpack.c.l.b16 %v243
      %v476 = vunpack.c.l.b16 %v244
      %v477 = vunpack.c.h.b16 %v244
      %v478 = vunpack.c.l.b16 %v245
      %v479 = vunpack.c.h.b16 %v245
      %v480 = vunpack.c.l.b16 %v246
      %v481 = vunpack.c.h.b16 %v246
      %v482 = vunpack.c.l.b16 %v247
      %v483 = vunpack.c.h.b16 %v247
      %v484 = vunpack.c.l.b16 %v248
      %v485 = vunpack.c.l.b16 %v249
      %v486 = vunpack.c.h.b16 %v249
      %v487 = vunpack.c.l.b16 %v250
      %v488 = vunpack.c.h.b16 %v250
      %v489 = vunpack.c.l.b16 %v251
      %v490 = vunpack.c.h.b16 %v251
      %v491 = vunpack.c.l.b16 %v252
      %v492 = vunpack.c.h.b16 %v252
      %v493 = vunpack.c.l.b16 %v253
      %v494 = vunpack.c.l.b16 %v254
      %v495 = vunpack.c.h.b16 %v254
      %v496 = vunpack.c.l.b16 %v255
      %v497 = vunpack.c.h.b16 %v255
      %v498 = vunpack.c.l.b16 %v256
      %v499 = vunpack.c.h.b16 %v256
      %v500 = vunpack.c.l.b16 %v257
      %v501 = vunpack.c.h.b16 %v257
      %v502 = vunpack.c.l.b16 %v258
      %v503 = vunpack.c.l.b16 %v259
      %v504 = vunpack.c.h.b16 %v259
      %v505 = vunpack.c.l.b16 %v260
      %v506 = vunpack.c.h.b16 %v260
      %v507 = vunpack.c.l.b16 %v261
      %v508 = vunpack.c.h.b16 %v261
      %v509 = vunpack.c.l.b16 %v262
      %v510 = vunpack.c.h.b16 %v262
      %v511 = vunpack.c.l.b16 %v263
      %v512 = vunpack.c.l.b16 %v264
      %v513 = vunpack.c.h.b16 %v264
      %v514 = vunpack.c.l.b16 %v265
      %v515 = vunpack.c.h.b16 %v265
      %v516 = vunpack.c.l.b16 %v266
      %v517 = vunpack.c.h.b16 %v266
      %v518 = vunpack.c.l.b16 %v267
      %v519 = vunpack.c.h.b16 %v267
      %v520 = vunpack.c.l.b16 %v268
      %v521 = vunpack.c.l.b16 %v269
      %v522 = vunpack.c.h.b16 %v269
      %v523 = vunpack.c.l.b16 %v270
      %v524 = vunpack.c.h.b16 %v270
      %v525 = vunpack.c.l.b16 %v271
      %v526 = vunpack.c.h.b16 %v271
      %v527 = vunpack.c.l.b16 %v272
      %v528 = vunpack.c.h.b16 %v272
      %v529 = vunpack.c.l.b16 %v273
      %v530 = vpack.c.b16 %v467, %v458
      %v531 = vpack.c.b16 %v468, %v459
      %v532 = vpack.c.b16 %v469, %v460
      %v533 = vpack.c.b16 %v470, %v461
      %v534 = vpack.c.b16 %v471, %v462
      %v535 = vpack.c.b16 %v472, %v463
      %v536 = vpack.c.b16 %v473, %v464
      %v537 = vpack.c.b16 %v474, %v465
      %v538 = vpack.c.b16 %v475, %v466
      %v539 = vpack.c.b16 %v485, %v476
      %v540 = vpack.c.b16 %v486, %v477
      %v541 = vpack.c.b16 %v487, %v478
      %v542 = vpack.c.b16 %v488, %v479
      %v543 = vpack.c.b16 %v489, %v480
      %v544 = vpack.c.b16 %v490, %v481
      %v545 = vpack.c.b16 %v491, %v482
      %v546 = vpack.c.b16 %v492, %v483
      %v547 = vpack.c.b16 %v493, %v484
      %v548 = vpack.c.b16 %v503, %v494
      %v549 = vpack.c.b16 %v504, %v495
      %v550 = vpack.c.b16 %v505, %v496
      %v551 = vpack.c.b16 %v506, %v497
      %v552 = vpack.c.b16 %v507, %v498
      %v553 = vpack.c.b16 %v508, %v499
      %v554 = vpack.c.b16 %v509, %v500
      %v555 = vpack.c.b16 %v510, %v501
      %v556 = vpack.c.b16 %v511, %v502
      %v557 = vpack.c.b16 %v521, %v512
      %v558 = vpack.c.b16 %v522, %v513
      %v559 = vpack.c.b16 %v523, %v514
      %v560 = vpack.c.b16 %v524, %v515
      %v561 = vpack.c.b16 %v525, %v516
      %v562 = vpack.c.b16 %v526, %v517
      %v563 = vpack.c.b16 %v527, %v518
      %v564 = vpack.c.b16 %v528, %v519
      %v565 = vpack.c.b16 %v529, %v520
      %v746 = vunpack.c.l.b16 %v274
      %v747 = vunpack.c.l.b16 %v275
      %v748 = vunpack.c.l.b16 %v276
      %v749 = vunpack.c.l.b16 %v277
      %v750 = vunpack.c.l.b16 %v278
      %v751 = vunpack.c.l.b16 %v279
      %v752 = vunpack.c.l.b16 %v280
      %v753 = vunpack.c.l.b16 %v281
      %v754 = vunpack.c.l.b16 %v282
      %v755 = vunpack.c.l.b16 %v283
      %v756 = vunpack.c.l.b16 %v284
      %v757 = vunpack.c.l.b16 %v285
      %v758 = vunpack.c.l.b16 %v286
      %v759 = vunpack.c.l.b16 %v287
      %v760 = vunpack.c.l.b16 %v288
      %v761 = vunpack.c.l.b16 %v289
      %v762 = vunpack.c.l.b16 %v290
      %v763 = vunpack.c.l.b16 %v291
      %v764 = vunpack.c.l.b16 %v292
      %v765 = vunpack.c.l.b16 %v293
      %v766 = vunpack.c.l.b16 %v294
      %v767 = vunpack.c.l.b16 %v295
      %v768 = vunpack.c.l.b16 %v296
      %v769 = vunpack.c.l.b16 %v297
      %v770 = vunpack.c.l.b16 %v298
      %v771 = vunpack.c.l.b16 %v299
      %v772 = vunpack.c.l.b16 %v300
      %v773 = vunpack.c.l.b16 %v301
      %v774 = vunpack.c.l.b16 %v302
      %v775 = vunpack.c.l.b16 %v303
      %v776 = vunpack.c.l.b16 %v304
      %v777 = vunpack.c.l.b16 %v305
      %v778 = vunpack.c.l.b16 %v306
      %v779 = vunpack.c.l.b16 %v307
      %v780 = vunpack.c.l.b16 %v308
      %v781 = vunpack.c.l.b16 %v309
      %v782 = vunpack.c.l.b16 %v310
      %v783 = vunpack.c.l.b16 %v311
      %v784 = vunpack.c.l.b16 %v312
      %v785 = vunpack.c.l.b16 %v313
      %v786 = vunpack.c.l.b16 %v314
      %v787 = vunpack.c.l.b16 %v315
      %v788 = vunpack.c.l.b16 %v316
      %v789 = vunpack.c.l.b16 %v317
      %v790 = vunpack.c.l.b16 %v318
      %v791 = vunpack.c.l.b16 %v319
      %v792 = vunpack.c.l.b16 %v320
      %v793 = vunpack.c.l.b16 %v321
      %v794 = vunpack.c.l.b16 %v322
      %v795 = vunpack.c.l.b16 %v323
      %v796 = vunpack.c.l.b16 %v324
      %v797 = vunpack.c.l.b16 %v325
      %v798 = vunpack.c.l.b16 %v326
      %v799 = vunpack.c.l.b16 %v327
      %v800 = vunpack.c.l.b16 %v328
      %v801 = vunpack.c.l.b16 %v329
      %v802 = vunpack.c.l.b16 %v330
      %v803 = vunpack.c.l.b16 %v331
      %v804 = vunpack.c.l.b16 %v332
      %v805 = vunpack.c.l.b16 %v333
      %v806 = vunpack.c.l.b16 %v334
      %v807 = vunpack.c.l.b16 %v335
      %v808 = vunpack.c.l.b16 %v336
      %v809 = vunpack.c.l.b16 %v337
      %v810 = vunpack.c.l.b16 %v338
      %v811 = vunpack.c.l.b16 %v339
      %v812 = vunpack.c.l.b16 %v340
      %v813 = vunpack.c.l.b16 %v341
      %v814 = vunpack.c.l.b16 %v342
      %v815 = vunpack.c.l.b16 %v343
      %v816 = vunpack.c.l.b16 %v344
      %v817 = vunpack.c.l.b16 %v345
      %v818 = vunpack.c.l.b16 %v346
      %v819 = vunpack.c.l.b16 %v347
      %v820 = vunpack.c.l.b16 %v348
      %v821 = vunpack.c.l.b16 %v349
      %v822 = vunpack.c.l.b16 %v350
      %v823 = vunpack.c.l.b16 %v351
      %v824 = vunpack.c.l.b16 %v352
      %v825 = vunpack.c.l.b16 %v353
      %v826 = vunpack.c.l.b16 %v354
      %v827 = vunpack.c.l.b16 %v355
      %v828 = vunpack.c.l.b16 %v356
      %v829 = vunpack.c.l.b16 %v357
      %v830 = vunpack.c.l.b16 %v358
      %v831 = vunpack.c.l.b16 %v359
      %v832 = vunpack.c.l.b16 %v360
      %v833 = vunpack.c.l.b16 %v361
      %v834 = vunpack.c.l.b16 %v362
      %v835 = vunpack.c.l.b16 %v363
      %v836 = vunpack.c.l.b16 %v364
      %v837 = vunpack.c.l.b16 %v365
      %v838 = vunpack.c.l.b16 %v366
      %v839 = vunpack.c.l.b16 %v367
      %v840 = vunpack.c.l.b16 %v368
      %v841 = vunpack.c.l.b16 %v369
      %v842 = vunpack.c.l.b16 %v370
      %v843 = vunpack.c.l.b16 %v371
      %v844 = vunpack.c.l.b16 %v372
      %v845 = vunpack.c.l.b16 %v373
      %v846 = vunpack.c.l.b16 %v374
      %v847 = vunpack.c.l.b16 %v375
      %v848 = vunpack.c.l.b16 %v376
      %v849 = vunpack.c.l.b16 %v377
      %v850 = vunpack.c.l.b16 %v378
      %v851 = vunpack.c.l.b16 %v379
      %v852 = vunpack.c.l.b16 %v380
      %v853 = vunpack.c.l.b16 %v381
      %v854 = vunpack.c.l.b16 %v382
      %v855 = vunpack.c.l.b16 %v383
      %v856 = vunpack.c.l.b16 %v384
      %v857 = vunpack.c.l.b16 %v385
      %v858 = vunpack.c.l.b16 %v386
      %v859 = vunpack.c.l.b16 %v387
      %v860 = vunpack.c.l.b16 %v388
      %v861 = vunpack.c.l.b16 %v389
      %v862 = vunpack.c.l.b16 %v390
      %v863 = vunpack.c.l.b16 %v391
      %v864 = vunpack.c.l.b16 %v392
      %v865 = vunpack.c.l.b16 %v393
      %v866 = vunpack.c.l.b16 %v394
      %v867 = vunpack.c.l.b16 %v395
      %v868 = vunpack.c.l.b16 %v396
      %v869 = vunpack.c.l.b16 %v397
      %v870 = vunpack.c.l.b16 %v398
      %v871 = vunpack.c.l.b16 %v399
      %v872 = vunpack.c.l.b16 %v400
      %v873 = vunpack.c.l.b16 %v401
      %v874 = vunpack.c.l.b16 %v402
      %v875 = vunpack.c.l.b16 %v403
      %v876 = vunpack.c.l.b16 %v404
      %v877 = vunpack.c.l.b16 %v405
      %v878 = vunpack.c.l.b16 %v406
      %v879 = vunpack.c.l.b16 %v407
      %v880 = vunpack.c.l.b16 %v408
      %v881 = vunpack.c.l.b16 %v409
      %v882 = vunpack.c.l.b16 %v410
      %v883 = vunpack.c.l.b16 %v411
      %v884 = vunpack.c.l.b16 %v412
      %v885 = vunpack.c.l.b16 %v413
      %v886 = vunpack.c.l.b16 %v414
      %v887 = vunpack.c.l.b16 %v415
      %v888 = vunpack.c.l.b16 %v416
      %v889 = vunpack.c.l.b16 %v417
      %v890 = vpack.c.b16 %v747, %v746
      %v891 = vpack.c.b16 %v749, %v748
      %v892 = vpack.c.b16 %v751, %v750
      %v893 = vpack.c.b16 %v753, %v752
      %v894 = vpack.c.b16 %v755, %v754
      %v895 = vpack.c.b16 %v757, %v756
      %v896 = vpack.c.b16 %v759, %v758
      %v897 = vpack.c.b16 %v761, %v760
      %v898 = vpack.c.b16 %v763, %v762
      %v899 = vpack.c.b16 %v765, %v764
      %v900 = vpack.c.b16 %v767, %v766
      %v901 = vpack.c.b16 %v769, %v768
      %v902 = vpack.c.b16 %v771, %v770
      %v903 = vpack.c.b16 %v773, %v772
      %v904 = vpack.c.b16 %v775, %v774
      %v905 = vpack.c.b16 %v777, %v776
      %v906 = vpack.c.b16 %v779, %v778
      %v907 = vpack.c.b16 %v781, %v780
      %v908 = vpack.c.b16 %v783, %v782
      %v909 = vpack.c.b16 %v785, %v784
      %v910 = vpack.c.b16 %v787, %v786
      %v911 = vpack.c.b16 %v789, %v788
      %v912 = vpack.c.b16 %v791, %v790
      %v913 = vpack.c.b16 %v793, %v792
      %v914 = vpack.c.b16 %v795, %v794
      %v915 = vpack.c.b16 %v797, %v796
      %v916 = vpack.c.b16 %v799, %v798
      %v917 = vpack.c.b16 %v801, %v800
      %v918 = vpack.c.b16 %v803, %v802
      %v919 = vpack.c.b16 %v805, %v804
      %v920 = vpack.c.b16 %v807, %v806
      %v921 = vpack.c.b16 %v809, %v808
      %v922 = vpack.c.b16 %v811, %v810
      %v923 = vpack.c.b16 %v813, %v812
      %v924 = vpack.c.b16 %v815, %v814
      %v925 = vpack.c.b16 %v817, %v816
      %v926 = vpack.c.b16 %v819, %v818
      %v927 = vpack.c.b16 %v821, %v820
      %v928 = vpack.c.b16 %v823, %v822
      %v929 = vpack.c.b16 %v825, %v824
      %v930 = vpack.c.b16 %v827, %v826
      %v931 = vpack.c.b16 %v829, %v828
      %v932 = vpack.c.b16 %v831, %v830
      %v933 = vpack.c.b16 %v833, %v832
      %v934 = vpack.c.b16 %v835, %v834
      %v935 = vpack.c.b16 %v837, %v836
      %v936 = vpack.c.b16 %v839, %v838
      %v937 = vpack.c.b16 %v841, %v840
      %v938 = vpack.c.b16 %v843, %v842
      %v939 = vpack.c.b16 %v845, %v844
      %v940 = vpack.c.b16 %v847, %v846
      %v941 = vpack.c.b16 %v849, %v848
      %v942 = vpack.c.b16 %v851, %v850
      %v943 = vpack.c.b16 %v853, %v852
      %v944 = vpack.c.b16 %v855, %v854
      %v945 = vpack.c.b16 %v857, %v856
      %v946 = vpack.c.b16 %v859, %v858
      %v947 = vpack.c.b16 %v861, %v860
      %v948 = vpack.c.b16 %v863, %v862
      %v949 = vpack.c.b16 %v865, %v864
      %v950 = vpack.c.b16 %v867, %v866
      %v951 = vpack.c.b16 %v869, %v868
      %v952 = vpack.c.b16 %v871, %v870
      %v953 = vpack.c.b16 %v873, %v872
      %v954 = vpack.c.b16 %v875, %v874
      %v955 = vpack.c.b16 %v877, %v876
      %v956 = vpack.c.b16 %v879, %v878
      %v957 = vpack.c.b16 %v881, %v880
      %v958 = vpack.c.b16 %v883, %v882
      %v959 = vpack.c.b16 %v885, %v884
      %v960 = vpack.c.b16 %v887, %v886
      %v961 = vpack.c.b16 %v889, %v888
      %1034 = vmatprep.subr.bf16.mxu0 0
      %1035 = vmatpush1.bf16.msra.mxu0 %v897
      %1036 = vmatprep.subr.bf16.mxu0 0
      %1037 = vmatpush1.bf16.msra.mxu0 %v896
      %1038 = vmatprep.subr.bf16.mxu0 0
      %1039 = vmatpush1.bf16.msra.mxu0 %v895
      %1040 = vmatprep.subr.bf16.mxu0 0
      %1041 = vmatpush1.bf16.msra.mxu0 %v894
      %1042 = vmatprep.subr.bf16.mxu0 0
      %1043 = vmatpush1.bf16.msra.mxu0 %v893
      %1044 = vmatprep.subr.bf16.mxu0 0
      %1045 = vmatpush1.bf16.msra.mxu0 %v892
      %1046 = vmatprep.subr.bf16.mxu0 0
      %1047 = vmatpush1.bf16.msra.mxu0 %v891
      %1048 = vmatprep.subr.bf16.mxu0 0
      %1049 = vmatpush1.bf16.msra.mxu0 %v890
      %1050 = vmatprep.subr.bf16.mxu0 0
      %1051 = vmatpush2.bf16.msra.mxu0 %v905
      %1052 = vmatprep.subr.bf16.mxu0 0
      %1053 = vmatpush2.bf16.msra.mxu0 %v904
      %1054 = vmatprep.subr.bf16.mxu0 0
      %1055 = vmatpush2.bf16.msra.mxu0 %v903
      %1056 = vmatprep.subr.bf16.mxu0 0
      %1057 = vmatpush2.bf16.msra.mxu0 %v902
      %1058 = vmatprep.subr.bf16.mxu0 0
      %1059 = vmatpush2.bf16.msra.mxu0 %v901
      %1060 = vmatprep.subr.bf16.mxu0 0
      %1061 = vmatpush2.bf16.msra.mxu0 %v900
      %1062 = vmatprep.subr.bf16.mxu0 0
      %1063 = vmatpush2.bf16.msra.mxu0 %v899
      %1064 = vmatprep.subr.bf16.mxu0 0
      %1065 = vmatpush2.bf16.msra.mxu0 %v898
      %1066 = vmatprep.mubr.bf16.mxu0 %v531
      %1067 = vmatmul.mubr.bf16.gmra.mxu0 %v530
      %v1068 = vpop.f32.mrf.mxu0
      %v1069 = vadd.f32 0.0, %v1068
      %v1070 = vpop.f32.mrf.mxu0
      %v1071 = vpop.f32.mrf.mxu0
      %v1072 = vadd.f32 0.0, %v1071
      %v1073 = vpop.f32.mrf.mxu0
      %1074 = vmatprep.mubr.bf16.mxu0 %v540
      %1075 = vmatmul.mubr.bf16.gmra.mxu0 %v539
      %v1076 = vpop.f32.mrf.mxu0
      %v1077 = vadd.f32 0.0, %v1076
      %v1078 = vpop.f32.mrf.mxu0
      %v1079 = vpop.f32.mrf.mxu0
      %v1080 = vadd.f32 0.0, %v1079
      %v1081 = vpop.f32.mrf.mxu0
      %1082 = vmatprep.mubr.bf16.mxu0 %v549
      %1083 = vmatmul.mubr.bf16.gmra.mxu0 %v548
      %v1084 = vpop.f32.mrf.mxu0
      %v1085 = vadd.f32 0.0, %v1084
      %v1086 = vpop.f32.mrf.mxu0
      %v1087 = vpop.f32.mrf.mxu0
      %v1088 = vadd.f32 0.0, %v1087
      %v1089 = vpop.f32.mrf.mxu0
      %1090 = vmatprep.mubr.bf16.mxu0 %v558
      %1091 = vmatmul.mubr.bf16.gmra.mxu0 %v557
      %v1092 = vpop.f32.mrf.mxu0
      %v1093 = vadd.f32 0.0, %v1092
      %v1094 = vpop.f32.mrf.mxu0
      %v1095 = vpop.f32.mrf.mxu0
      %v1096 = vadd.f32 0.0, %v1095
      %v1097 = vpop.f32.mrf.mxu0
      %1098 = vdwg.mxu0
      %1099 = vmatprep.subr.bf16.mxu0 0
      %1100 = vmatpush1.bf16.msra.mxu0 %v913
      %1101 = vmatprep.subr.bf16.mxu0 0
      %1102 = vmatpush1.bf16.msra.mxu0 %v912
      %1103 = vmatprep.subr.bf16.mxu0 0
      %1104 = vmatpush1.bf16.msra.mxu0 %v911
      %1105 = vmatprep.subr.bf16.mxu0 0
      %1106 = vmatpush1.bf16.msra.mxu0 %v910
      %1107 = vmatprep.subr.bf16.mxu0 0
      %1108 = vmatpush1.bf16.msra.mxu0 %v909
      %1109 = vmatprep.subr.bf16.mxu0 0
      %1110 = vmatpush1.bf16.msra.mxu0 %v908
      %1111 = vmatprep.subr.bf16.mxu0 0
      %1112 = vmatpush1.bf16.msra.mxu0 %v907
      %1113 = vmatprep.subr.bf16.mxu0 0
      %1114 = vmatpush1.bf16.msra.mxu0 %v906
      %1115 = vmatprep.subr.bf16.mxu0 0
      %1116 = vmatpush2.bf16.msra.mxu0 %v921
      %1117 = vmatprep.subr.bf16.mxu0 0
      %1118 = vmatpush2.bf16.msra.mxu0 %v920
      %1119 = vmatprep.subr.bf16.mxu0 0
      %1120 = vmatpush2.bf16.msra.mxu0 %v919
      %1121 = vmatprep.subr.bf16.mxu0 0
      %1122 = vmatpush2.bf16.msra.mxu0 %v918
      %1123 = vmatprep.subr.bf16.mxu0 0
      %1124 = vmatpush2.bf16.msra.mxu0 %v917
      %1125 = vmatprep.subr.bf16.mxu0 0
      %1126 = vmatpush2.bf16.msra.mxu0 %v916
      %1127 = vmatprep.subr.bf16.mxu0 0
      %1128 = vmatpush2.bf16.msra.mxu0 %v915
      %1129 = vmatprep.subr.bf16.mxu0 0
      %1130 = vmatpush2.bf16.msra.mxu0 %v914
      %1131 = vmatprep.mubr.bf16.mxu0 %v533
      %1132 = vmatmul.mubr.bf16.gmra.mxu0 %v532
      %v1133 = vpop.f32.mrf.mxu0
      %v1134 = vadd.f32 %v1069, %v1133
      %v1135 = vpop.f32.mrf.mxu0
      %v1136 = vpop.f32.mrf.mxu0
      %v1137 = vadd.f32 %v1072, %v1136
      %v1138 = vpop.f32.mrf.mxu0
      %1139 = vmatprep.mubr.bf16.mxu0 %v542
      %1140 = vmatmul.mubr.bf16.gmra.mxu0 %v541
      %v1141 = vpop.f32.mrf.mxu0
      %v1142 = vadd.f32 %v1077, %v1141
      %v1143 = vpop.f32.mrf.mxu0
      %v1144 = vpop.f32.mrf.mxu0
      %v1145 = vadd.f32 %v1080, %v1144
      %v1146 = vpop.f32.mrf.mxu0
      %1147 = vmatprep.mubr.bf16.mxu0 %v551
      %1148 = vmatmul.mubr.bf16.gmra.mxu0 %v550
      %v1149 = vpop.f32.mrf.mxu0
      %v1150 = vadd.f32 %v1085, %v1149
      %v1151 = vpop.f32.mrf.mxu0
      %v1152 = vpop.f32.mrf.mxu0
      %v1153 = vadd.f32 %v1088, %v1152
      %v1154 = vpop.f32.mrf.mxu0
      %1155 = vmatprep.mubr.bf16.mxu0 %v560
      %1156 = vmatmul.mubr.bf16.gmra.mxu0 %v559
      %v1157 = vpop.f32.mrf.mxu0
      %v1158 = vadd.f32 %v1093, %v1157
      %v1159 = vpop.f32.mrf.mxu0
      %v1160 = vpop.f32.mrf.mxu0
      %v1161 = vadd.f32 %v1096, %v1160
      %v1162 = vpop.f32.mrf.mxu0
      %1163 = vdwg.mxu0
      %1164 = vmatprep.subr.bf16.mxu0 0
      %1165 = vmatpush1.bf16.msra.mxu0 %v929
      %1166 = vmatprep.subr.bf16.mxu0 0
      %1167 = vmatpush1.bf16.msra.mxu0 %v928
      %1168 = vmatprep.subr.bf16.mxu0 0
      %1169 = vmatpush1.bf16.msra.mxu0 %v927
      %1170 = vmatprep.subr.bf16.mxu0 0
      %1171 = vmatpush1.bf16.msra.mxu0 %v926
      %1172 = vmatprep.subr.bf16.mxu0 0
      %1173 = vmatpush1.bf16.msra.mxu0 %v925
      %1174 = vmatprep.subr.bf16.mxu0 0
      %1175 = vmatpush1.bf16.msra.mxu0 %v924
      %1176 = vmatprep.subr.bf16.mxu0 0
      %1177 = vmatpush1.bf16.msra.mxu0 %v923
      %1178 = vmatprep.subr.bf16.mxu0 0
      %1179 = vmatpush1.bf16.msra.mxu0 %v922
      %1180 = vmatprep.subr.bf16.mxu0 0
      %1181 = vmatpush2.bf16.msra.mxu0 %v937
      %1182 = vmatprep.subr.bf16.mxu0 0
      %1183 = vmatpush2.bf16.msra.mxu0 %v936
      %1184 = vmatprep.subr.bf16.mxu0 0
      %1185 = vmatpush2.bf16.msra.mxu0 %v935
      %1186 = vmatprep.subr.bf16.mxu0 0
      %1187 = vmatpush2.bf16.msra.mxu0 %v934
      %1188 = vmatprep.subr.bf16.mxu0 0
      %1189 = vmatpush2.bf16.msra.mxu0 %v933
      %1190 = vmatprep.subr.bf16.mxu0 0
      %1191 = vmatpush2.bf16.msra.mxu0 %v932
      %1192 = vmatprep.subr.bf16.mxu0 0
      %1193 = vmatpush2.bf16.msra.mxu0 %v931
      %1194 = vmatprep.subr.bf16.mxu0 0
      %1195 = vmatpush2.bf16.msra.mxu0 %v930
      %1196 = vmatprep.mubr.bf16.mxu0 %v535
      %1197 = vmatmul.mubr.bf16.gmra.mxu0 %v534
      %v1198 = vpop.f32.mrf.mxu0
      %v1199 = vadd.f32 %v1134, %v1198
      %v1200 = vpop.f32.mrf.mxu0
      %v1201 = vpop.f32.mrf.mxu0
      %v1202 = vadd.f32 %v1137, %v1201
      %v1203 = vpop.f32.mrf.mxu0
      %1204 = vmatprep.mubr.bf16.mxu0 %v544
      %1205 = vmatmul.mubr.bf16.gmra.mxu0 %v543
      %v1206 = vpop.f32.mrf.mxu0
      %v1207 = vadd.f32 %v1142, %v1206
      %v1208 = vpop.f32.mrf.mxu0
      %v1209 = vpop.f32.mrf.mxu0
      %v1210 = vadd.f32 %v1145, %v1209
      %v1211 = vpop.f32.mrf.mxu0
      %1212 = vmatprep.mubr.bf16.mxu0 %v553
      %1213 = vmatmul.mubr.bf16.gmra.mxu0 %v552
      %v1214 = vpop.f32.mrf.mxu0
      %v1215 = vadd.f32 %v1150, %v1214
      %v1216 = vpop.f32.mrf.mxu0
      %v1217 = vpop.f32.mrf.mxu0
      %v1218 = vadd.f32 %v1153, %v1217
      %v1219 = vpop.f32.mrf.mxu0
      %1220 = vmatprep.mubr.bf16.mxu0 %v562
      %1221 = vmatmul.mubr.bf16.gmra.mxu0 %v561
      %v1222 = vpop.f32.mrf.mxu0
      %v1223 = vadd.f32 %v1158, %v1222
      %v1224 = vpop.f32.mrf.mxu0
      %v1225 = vpop.f32.mrf.mxu0
      %v1226 = vadd.f32 %v1161, %v1225
      %v1227 = vpop.f32.mrf.mxu0
      %1228 = vdwg.mxu0
      %1229 = vmatprep.subr.bf16.mxu0 0
      %1230 = vmatpush1.bf16.msra.mxu0 %v945
      %1231 = vmatprep.subr.bf16.mxu0 0
      %1232 = vmatpush1.bf16.msra.mxu0 %v944
      %1233 = vmatprep.subr.bf16.mxu0 0
      %1234 = vmatpush1.bf16.msra.mxu0 %v943
      %1235 = vmatprep.subr.bf16.mxu0 0
      %1236 = vmatpush1.bf16.msra.mxu0 %v942
      %1237 = vmatprep.subr.bf16.mxu0 0
      %1238 = vmatpush1.bf16.msra.mxu0 %v941
      %1239 = vmatprep.subr.bf16.mxu0 0
      %1240 = vmatpush1.bf16.msra.mxu0 %v940
      %1241 = vmatprep.subr.bf16.mxu0 0
      %1242 = vmatpush1.bf16.msra.mxu0 %v939
      %1243 = vmatprep.subr.bf16.mxu0 0
      %1244 = vmatpush1.bf16.msra.mxu0 %v938
      %1245 = vmatprep.subr.bf16.mxu0 0
      %1246 = vmatpush2.bf16.msra.mxu0 %v953
      %1247 = vmatprep.subr.bf16.mxu0 0
      %1248 = vmatpush2.bf16.msra.mxu0 %v952
      %1249 = vmatprep.subr.bf16.mxu0 0
      %1250 = vmatpush2.bf16.msra.mxu0 %v951
      %1251 = vmatprep.subr.bf16.mxu0 0
      %1252 = vmatpush2.bf16.msra.mxu0 %v950
      %1253 = vmatprep.subr.bf16.mxu0 0
      %1254 = vmatpush2.bf16.msra.mxu0 %v949
      %1255 = vmatprep.subr.bf16.mxu0 0
      %1256 = vmatpush2.bf16.msra.mxu0 %v948
      %1257 = vmatprep.subr.bf16.mxu0 0
      %1258 = vmatpush2.bf16.msra.mxu0 %v947
      %1259 = vmatprep.subr.bf16.mxu0 0
      %1260 = vmatpush2.bf16.msra.mxu0 %v946
      %1261 = vmatprep.mubr.bf16.mxu0 %v537
      %1262 = vmatmul.mubr.bf16.gmra.mxu0 %v536
      %v1263 = vpop.f32.mrf.mxu0
      %v1264 = vadd.f32 %v1199, %v1263
      %v1265 = vpop.f32.mrf.mxu0
      %v1266 = vpop.f32.mrf.mxu0
      %v1267 = vadd.f32 %v1202, %v1266
      %v1268 = vpop.f32.mrf.mxu0
      %1269 = vmatprep.mubr.bf16.mxu0 %v546
      %1270 = vmatmul.mubr.bf16.gmra.mxu0 %v545
      %v1271 = vpop.f32.mrf.mxu0
      %v1272 = vadd.f32 %v1207, %v1271
      %v1273 = vpop.f32.mrf.mxu0
      %v1274 = vpop.f32.mrf.mxu0
      %v1275 = vadd.f32 %v1210, %v1274
      %v1276 = vpop.f32.mrf.mxu0
      %1277 = vmatprep.mubr.bf16.mxu0 %v555
      %1278 = vmatmul.mubr.bf16.gmra.mxu0 %v554
      %v1279 = vpop.f32.mrf.mxu0
      %v1280 = vadd.f32 %v1215, %v1279
      %v1281 = vpop.f32.mrf.mxu0
      %v1282 = vpop.f32.mrf.mxu0
      %v1283 = vadd.f32 %v1218, %v1282
      %v1284 = vpop.f32.mrf.mxu0
      %1285 = vmatprep.mubr.bf16.mxu0 %v564
      %1286 = vmatmul.mubr.bf16.gmra.mxu0 %v563
      %v1287 = vpop.f32.mrf.mxu0
      %v1288 = vadd.f32 %v1223, %v1287
      %v1289 = vpop.f32.mrf.mxu0
      %v1290 = vpop.f32.mrf.mxu0
      %v1291 = vadd.f32 %v1226, %v1290
      %v1292 = vpop.f32.mrf.mxu0
      %1293 = vdwg.mxu0
      %1294 = vmatprep.subr.bf16.mxu0 0
      %1295 = vmatpush1.bf16.msra.mxu0 %v961
      %1296 = vmatprep.subr.bf16.mxu0 0
      %1297 = vmatpush1.bf16.msra.mxu0 %v960
      %1298 = vmatprep.subr.bf16.mxu0 0
      %1299 = vmatpush1.bf16.msra.mxu0 %v959
      %1300 = vmatprep.subr.bf16.mxu0 0
      %1301 = vmatpush1.bf16.msra.mxu0 %v958
      %1302 = vmatprep.subr.bf16.mxu0 0
      %1303 = vmatpush1.bf16.msra.mxu0 %v957
      %1304 = vmatprep.subr.bf16.mxu0 0
      %1305 = vmatpush1.bf16.msra.mxu0 %v956
      %1306 = vmatprep.subr.bf16.mxu0 0
      %1307 = vmatpush1.bf16.msra.mxu0 %v955
      %1308 = vmatprep.subr.bf16.mxu0 0
      %1309 = vmatpush1.bf16.msra.mxu0 %v954
      %1310 = vmatprep.subr.bf16.mxu0 0
      %1311 = vmatpush2.bf16.msra.mxu0 0
      %1312 = vmatprep.subr.bf16.mxu0 0
      %1313 = vmatpush2.bf16.msra.mxu0 0
      %1314 = vmatprep.subr.bf16.mxu0 0
      %1315 = vmatpush2.bf16.msra.mxu0 0
      %1316 = vmatprep.subr.bf16.mxu0 0
      %1317 = vmatpush2.bf16.msra.mxu0 0
      %1318 = vmatprep.subr.bf16.mxu0 0
      %1319 = vmatpush2.bf16.msra.mxu0 0
      %1320 = vmatprep.subr.bf16.mxu0 0
      %1321 = vmatpush2.bf16.msra.mxu0 0
      %1322 = vmatprep.subr.bf16.mxu0 0
      %1323 = vmatpush2.bf16.msra.mxu0 0
      %1324 = vmatprep.subr.bf16.mxu0 0
      %1325 = vmatpush2.bf16.msra.mxu0 0
      %1326 = vmatprep.mubr.bf16.mxu0 0
      %1327 = vmatmul.mubr.bf16.gmra.mxu0 %v538
      %v1328 = vpop.f32.mrf.mxu0
      %v1329 = vadd.f32 %v1264, %v1328
      %v1330 = vpop.f32.mrf.mxu0
      %v1331 = vpop.f32.mrf.mxu0
      %v1332 = vadd.f32 %v1267, %v1331
      %v1333 = vpop.f32.mrf.mxu0
      %1334 = vmatprep.mubr.bf16.mxu0 0
      %1335 = vmatmul.mubr.bf16.gmra.mxu0 %v547
      %v1336 = vpop.f32.mrf.mxu0
      %v1337 = vadd.f32 %v1272, %v1336
      %v1338 = vpop.f32.mrf.mxu0
      %v1339 = vpop.f32.mrf.mxu0
      %v1340 = vadd.f32 %v1275, %v1339
      %v1341 = vpop.f32.mrf.mxu0
      %1342 = vmatprep.mubr.bf16.mxu0 0
      %1343 = vmatmul.mubr.bf16.gmra.mxu0 %v556
      %v1344 = vpop.f32.mrf.mxu0
      %v1345 = vadd.f32 %v1280, %v1344
      %v1346 = vpop.f32.mrf.mxu0
      %v1347 = vpop.f32.mrf.mxu0
      %v1348 = vadd.f32 %v1283, %v1347
      %v1349 = vpop.f32.mrf.mxu0
      %1350 = vmatprep.mubr.bf16.mxu0 0
      %1351 = vmatmul.mubr.bf16.gmra.mxu0 %v565
      %v1352 = vpop.f32.mrf.mxu0
      %v1353 = vadd.f32 %v1288, %v1352
      %v1354 = vpop.f32.mrf.mxu0
      %v1355 = vpop.f32.mrf.mxu0
      %v1356 = vadd.f32 %v1291, %v1355
      %v1357 = vpop.f32.mrf.mxu0
      %1358 = vdwg.mxu0
      %v1359 = vpack.c.bf16 %v1332, %v1329
      %v1360 = vpack.c.bf16 %v1340, %v1337
      %v1361 = vpack.c.bf16 %v1348, %v1345
      %v1362 = vpack.c.bf16 %v1356, %v1353
      %v1367 = vunpack.c.l.b16 %v1359
      %v1368 = vunpack.c.h.b16 %v1359
      %v1369 = vunpack.c.l.b16 %v1360
      %v1370 = vunpack.c.h.b16 %v1360
      %v1371 = vunpack.c.l.b16 %v1361
      %v1372 = vunpack.c.h.b16 %v1361
      %v1373 = vunpack.c.l.b16 %v1362
      %v1374 = vunpack.c.h.b16 %v1362
      %v1375 = vpack.c.b16 %v1367, %v1367
      %v1376 = vpack.c.b16 %v1368, %v1368
      %v1377 = vpack.c.b16 %v1369, %v1369
      %v1378 = vpack.c.b16 %v1370, %v1370
      %v1379 = vpack.c.b16 %v1371, %v1371
      %v1380 = vpack.c.b16 %v1372, %v1372
      %v1381 = vpack.c.b16 %v1373, %v1373
      %v1382 = vpack.c.b16 %v1374, %v1374
      %1391 = vst [vmem:[%s224] sm:$0xf] %v1375
      %1392 = vst [vmem:[%s224 + $0x4] sm:$0xf] %v1376
      %1393 = vst [vmem:[%s224 + $0x8] sm:$0xf] %v1377
      %1394 = vst [vmem:[%s224 + $0xc] sm:$0xf] %v1378
      %1395 = vst [vmem:[%s224 + $0x10] sm:$0xf] %v1379
      %1396 = vst [vmem:[%s224 + $0x14] sm:$0xf] %v1380
      %1397 = vst [vmem:[%s224 + $0x18] sm:$0xf] %v1381
      %1398 = vst [vmem:[%s224 + $0x1c] sm:$0xf] %v1382
      %v1399 = vadd.f32 %v1329, %v1332
      %v1400 = vadd.f32 %v1399, %v1337
      %v1401 = vadd.f32 %v1400, %v1340
      %v1402 = vadd.f32 %v1401, %v1345
      %v1403 = vadd.f32 %v1402, %v1348
      %v1404 = vadd.f32 %v1403, %v1353
      %v1405 = vadd.f32 %v1404, %v1356
      %v1406 = vrot.slane %v1405, 4
      %v1407 = vadd.f32 %v1405, %v1406
      %v1408 = vrot.slane %v1407, 2
      %v1409 = vadd.f32 %v1407, %v1408
      %v1410 = vrot.slane %v1409, 1
      %v1411 = vadd.f32 %v1409, %v1410
      %v1412 = vmul.f32 %v1411, 0.015625
      %1413 = vst [vmem:[%s232] sm:$0xff] %v1412
      %s1414 = smul.u32 8, %s19
      %p1415 = scmp.lt.s32.totalorder %s1414, 15
      %s1416 = scalar_select %p1415, %s1414, 15
      %p1417 = scmp.lt.s32.totalorder %s20, 0
      %s1418 = scalar_select %p1417, %s20, 0
      %s1419 = sadd.s32 %s1418, %s1416
      %s1420 = smul.addr %s1419, 4
      %s1421 = scalar_lea.vmem %s2, %s1420
      %p1422 = scmp.lt.s32.totalorder %s19, 1
      %s1423 = scalar_select %p1422, %s19, 1
      %p1424 = scmp.lt.s32.totalorder %s20, 0
      %s1425 = scalar_select %p1424, %s20, 0
      %s1426 = sadd.s32 %s1425, %s1423
      %s1427 = smul.addr %s1426, 8
      %s1428 = scalar_lea.vmem %s3, %s1427
      // Predicated region
      $region29: #{run.22} parent=27 // pred_check
        %p1429 = pneg %p99
      $region30: #{run.22} parent=27 // pred_check_branch
        %1431 = sbr.rel (%p1429) target = $region32
      $region31: #{run.22} parent=27 // pred_region
        %s1432 = smul.u32 8, %s19
      $region32: #{run.22} parent=27 // pred_fallthru
        _
      // Predicated region
      $region33: #{run.22} parent=27 // pred_check
        %p1433 = pneg %p127
      $region34: #{run.22} parent=27 // pred_check_branch
        %1435 = sbr.rel (%p1433) target = $region36
      $region35: #{run.22} parent=27 // pred_region
        _
      $region36: #{run.22} parent=27 // pred_fallthru
        _
    $region28: #{run.22} parent=5 // pred_fallthru
      _
    %p1436 = scmp.le.s32.totalorder 2, %s10
    // Predicated region
    $region37: #{run.22} parent=5 // pred_check
      %p1437 = pneg %p1436
    $region38: #{run.22} parent=5 // pred_check_branch
      %1439 = sbr.rel (%p1437) target = $region40
    $region39: #{run.22} parent=5 // pred_region
      %s1440 = ssub.s32 %s10, 2
      // Predicated region
      $region41: #{run.22} parent=39 // pred_check
        %p1441 = pneg %p105
      $region42: #{run.22} parent=39 // pred_check_branch
        %1443 = sbr.rel (%p1441) target = $region44
      $region43: #{run.22} parent=39 // pred_region
        %s1444 = smul.u32 8, %s21
        %p1445 = scmp.lt.s32.totalorder %s1444, 15
        %s1446 = scalar_select %p1445, %s1444, 15
        %p1447 = scmp.lt.s32.totalorder %s22, 0
        %s1448 = scalar_select %p1447, %s22, 0
        %s1449 = sadd.s32 %s1448, %s1446
        %s1450 = smul.addr %s1449, 4
        %s1451 = scalar_lea.vmem %s2, %s1450
      $region44: #{run.22} parent=39 // pred_fallthru
        _
      // Predicated region
      $region45: #{run.22} parent=39 // pred_check
        %p1452 = pneg %p133
      $region46: #{run.22} parent=39 // pred_check_branch
        %1454 = sbr.rel (%p1452) target = $region48
      $region47: #{run.22} parent=39 // pred_region
        %p1455 = scmp.lt.s32.totalorder %s21, 1
        %s1456 = scalar_select %p1455, %s21, 1
        %p1457 = scmp.lt.s32.totalorder %s22, 0
        %s1458 = scalar_select %p1457, %s22, 0
        %s1459 = sadd.s32 %s1458, %s1456
        %s1460 = smul.addr %s1459, 8
        %s1461 = scalar_lea.vmem %s3, %s1460
      $region48: #{run.22} parent=39 // pred_fallthru
        _
    $region40: #{run.22} parent=5 // pred_fallthru
      _
  $region6: #{run.22} parent=0 // loop_footer
    %s14 = sadd.s32 1, %s10
  $region7: #{run.22} parent=0 // loop_footer_branch
    %9 = sbr.rel target = $region3
  $region8: #{run.22} parent=0 // loop_exit
    _

</llo_original>
